<compile_context>
chip_gen: v7x
topology: tpu7x:2x2x1
jax: 0.10.0
libtpu: 0.0.40
codegen_flags: <defaults>
</compile_context>

<pallas_src>
import numpy as np
import jax
import jax.numpy as jnp
from jax.experimental import pallas as pl
from jax.experimental.pallas import tpu as pltpu

_GELU_C = 0.7978845608028654  # sqrt(2/pi)


# ----------------------------------------------------------------------------
# In-kernel elementwise math (EUP-friendly).
# ----------------------------------------------------------------------------
def _gelu(x):
    return 0.5 * x * (1.0 + jnp.tanh(_GELU_C * (x + 0.044715 * x * x * x)))


def _sigmoid(x):
    return 0.5 * (jnp.tanh(0.5 * x) + 1.0)


def _bf(x):
    return x.astype(jnp.bfloat16)


def _dot(a, b):
    return jnp.dot(a, b, preferred_element_type=jnp.float32)


def _ceil(n, m):
    return -(-n // m) * m


def _batch_tile(b, max_tile=2):
    # Prefer an even grid length (feeds both v7x TensorCores); keep the tile small
    # so the block-diagonal row-tap matrices stay cheap.
    for t in range(min(max_tile, b), 0, -1):
        if b % t == 0 and (b // t) % 2 == 0:
            return t
    for t in range(min(max_tile, b), 0, -1):
        if b % t == 0:
            return t
    return 1


# ----------------------------------------------------------------------------
# Operand packing: many small matrices -> one lane-aligned VMEM-resident array.
# Pieces are pre-cast to `dtype` at pack time (kernel never casts constants).
# ----------------------------------------------------------------------------
class _Pack:
    def __init__(self, dtype, row_align):
        self.dtype, self.row_align = dtype, row_align
        self.parts, self.shapes, self.offsets, self.rows = [], [], [], 0

    def add(self, arr):
        arr = jnp.asarray(arr).astype(self.dtype)
        h, w = int(arr.shape[0]), int(arr.shape[1])
        idx = len(self.parts)
        self.parts.append(arr)
        self.shapes.append((h, w))
        self.offsets.append(self.rows)
        self.rows += _ceil(h, self.row_align)
        return idx

    def finish(self):
        width = max(_ceil(w, 128) for _, w in self.shapes)
        pieces = [jnp.pad(a, ((0, _ceil(h, self.row_align) - h), (0, width - w)))
                  for a, (h, w) in zip(self.parts, self.shapes)]
        return jnp.concatenate(pieces, axis=0)

    def read(self, ref, idx):                       # in-kernel: static slice load
        off = self.offsets[idx]
        h, w = self.shapes[idx]
        return ref[off:off + h, 0:w]


# ----------------------------------------------------------------------------
# Structural matrices (trace time; 0/1 selections or weight bands, exact in bf16
# for the selections).
# ----------------------------------------------------------------------------
def _row_taps_up(h_in):
    """3 x (2*h_in, h_in): vertical conv taps with nearest 2x upsample + zero row
    padding folded in."""
    h_out = 2 * h_in
    mats = []
    for d in range(3):
        R = np.zeros((h_out, h_in), np.float32)
        for h in range(h_out):
            hs = h + d - 1
            if 0 <= hs < h_out:
                R[h, hs // 2] = 1.0
        mats.append(R)
    return mats


def _row_tap_pooled(h, d, phase):
    """(h//2, h): vertical conv tap d folded with the row half of a 2x2 max-pool."""
    R = np.zeros((h // 2, h), np.float32)
    for r in range(h // 2):
        hs = 2 * r + phase + d - 1
        if 0 <= hs < h:
            R[r, hs] = 1.0
    return R


def _band_block(wconv, w_in, w_out, upsample, dy, pool_phase=None):
    """(w_in*Cin, n_out*Cout) horizontal band for vertical tap dy; zero padding,
    optional nearest-2x upsample and optional column max-pool phase folded in."""
    cin, cout = int(wconv.shape[2]), int(wconv.shape[3])
    n_out = w_out // 2 if pool_phase is not None else w_out
    place = np.zeros((3, w_in, n_out), np.float32)
    for wq in range(n_out):
        wo = 2 * wq + pool_phase if pool_phase is not None else wq
        for dx in range(3):
            ws = wo + dx - 1
            if 0 <= ws < w_out:
                place[dx, ws // 2 if upsample else ws, wq] += 1.0
    blk = jnp.einsum('dxw,dio->xiwo', place, wconv[dy])
    return blk.reshape(w_in * cin, n_out * cout)


def _dense_to_spatial_perm(nc0, h):
    # torch .view(-1, nc0, 2, 2): dense feature c*4 + h*2 + w -> row h, lane w*nc0 + c
    P = np.zeros((nc0 * 4, 2 * nc0), np.float32)
    for c in range(nc0):
        for w in range(2):
            P[c * 4 + h * 2 + w, w * nc0 + c] = 1.0
    return P


def _row_scatter(tb, h_local, h):
    # places a (TB, lanes) slab at per-sample row h of a (TB*h_local, lanes) slab
    S = np.zeros((tb * h_local, tb), np.float32)
    for s in range(tb):
        S[s * h_local + h, s] = 1.0
    return S


def _flatten_fold(w_dense, c, hh, ww, h):
    """First critic dense weight with torch's NCHW flatten folded in: image row h
    of the (rows, W*C) activation @ result == that row's dense contribution."""
    idx = np.zeros((ww * c,), np.int64)
    for w in range(ww):
        for ci in range(c):
            idx[w * c + ci] = ci * hh * ww + h * ww + w
    return w_dense[idx, :]


def _block_diag(tb, mat):
    return np.kron(np.eye(tb, dtype=np.float32), mat)


# ----------------------------------------------------------------------------
# In-kernel building blocks.
# ----------------------------------------------------------------------------
def _vshift(a, d, h_local):
    """Vertical tap d (row shift by d-1) of row-stacked samples via an XLU roll +
    per-sample boundary mask (keeps pure row shifts off the MXU)."""
    if d == 1:
        return a
    n = int(a.shape[0])
    y = pltpu.roll(a, (1 - d) % n, 0)
    r = jax.lax.broadcasted_iota(jnp.int32, a.shape, 0) % h_local
    bad = (r == 0) if d == 0 else (r == h_local - 1)
    return jnp.where(bad, jnp.zeros_like(y), y)


def _gen_conv_layer(rw, rb, meta, a):
    """3x3 same conv (optionally fused with nearest 2x upsample) on (rows, W*C)."""
    ab = _bf(a)
    if meta["roll"]:
        taps = [ab if d == 1 else _bf(_vshift(a, d, meta["h_local"])) for d in range(3)]
    else:
        taps = [_bf(_dot(rw(i), ab)) for i in meta["taps"]]
    if meta["kstack"]:
        y = _dot(jnp.concatenate(taps, axis=1), rw(meta["bands"][0]))
    else:
        y = None
        for t, bi in zip(taps, meta["bands"]):
            c = _dot(t, rw(bi))
            y = c if y is None else y + c
    if meta["bias"] is not None:
        y = y + rb(meta["bias"])
    return _gelu(y) if meta["act"] else y


def _pool_col_cands(rw, meta, taps):
    """Two column-phase max-pool candidates from the three vertical taps."""
    if meta["kstack"]:
        tcat = jnp.concatenate(taps, axis=1)
        return [_dot(tcat, rw(meta["bands"][q][0])) for q in range(2)]
    cands = []
    for q in range(2):
        c = None
        for t, bi in zip(taps, meta["bands"][q]):
            y = _dot(t, rw(bi))
            c = y if c is None else c + y
        cands.append(c)
    return cands


def _critic_conv_layer(rw, rb, meta, a):
    """3x3 same conv + 2x2 max-pool + GELU; pool folded into the packed matrices
    (bias commutes with max)."""
    ab = _bf(a)
    if meta["stack_p"]:
        # both row phases stacked along M (one tap matmul per d, one band per q)
        taps = [_bf(_dot(rw(i), ab)) for i in meta["taps"]]
        c0, c1 = _pool_col_cands(rw, meta, taps)
        y = jnp.maximum(c0, c1)
        half = meta["half"]
        pooled = jnp.maximum(y[:half, :], y[half:, :])
    else:
        pooled = None
        for p in range(2):
            taps = [_bf(_dot(rw(i), ab)) for i in meta["taps"][p]]
            c0, c1 = _pool_col_cands(rw, meta, taps)
            c = jnp.maximum(c0, c1)
            pooled = c if pooled is None else jnp.maximum(pooled, c)
    return _gelu(pooled + rb(meta["bias"]))


# ----------------------------------------------------------------------------
# Generator: single fused Pallas kernel.
# ----------------------------------------------------------------------------
def generator_forward(params, z, batch_tile=None):
    B, latent = int(z.shape[0]), int(z.shape[1])
    TB = batch_tile or _batch_tile(B)
    G = B // TB
    nc0 = int(params["final_dense"]["w"].shape[1]) // 4

    wpack = _Pack(jnp.bfloat16, 16)        # all matmul operands, pre-cast once
    bpack = _Pack(jnp.float32, 8)          # biases stay f32

    dense_idx = []
    for layer in list(params["dense"]) + [params["final_dense"]]:
        dense_idx.append((wpack.add(layer["w"]), bpack.add(layer["b"].reshape(1, -1))))

    perm_idx = [wpack.add(_dense_to_spatial_perm(nc0, hh)) for hh in range(2)]
    srow_idx = [wpack.add(_row_scatter(TB, 2, hh)) for hh in range(2)]

    conv_meta = []
    H, W = 2, 2
    layers = ([(l, True, True, True) for l in params["up_convs"]]
              + [(params["final_res"], True, True, True),
                 (params["final_conv"], False, False, False)])
    for layer, ups, has_bias, has_act in layers:
        cin, cout = int(layer["w"].shape[2]), int(layer["w"].shape[3])
        Ho, Wo = (2 * H, 2 * W) if ups else (H, W)
        kstack = (W * cin) % 128 == 0
        use_roll = not ups                                   # pure shifts -> XLU roll
        taps_idx = None
        if not use_roll:
            taps_idx = [wpack.add(_block_diag(TB, t)) for t in _row_taps_up(H)]
        bands = [_band_block(layer["w"], W, Wo, ups, d) for d in range(3)]
        band_idx = ([wpack.add(jnp.concatenate(bands, axis=0))] if kstack
                    else [wpack.add(b) for b in bands])
        bias_idx = bpack.add(jnp.tile(layer["b"], Wo).reshape(1, -1)) if has_bias else None
        conv_meta.append(dict(roll=use_roll, h_local=H, taps=taps_idx, kstack=kstack,
                              bands=band_idx, bias=bias_idx, act=has_act))
        H, W = Ho, Wo
    H_f, W_f, C_f = H, W, int(params["final_conv"]["w"].shape[-1])
    out_w = W_f * C_f

    wp, bp = wpack.finish(), bpack.finish()

    def gen_kernel(z_ref, w_ref, b_ref, o_ref):
        rw = lambda i: wpack.read(w_ref, i)
        rb = lambda i: bpack.read(b_ref, i)
        h = z_ref[0]                                          # (TB, latent)
        for wi, bi in dense_idx:                              # fused dense chain (GELU)
            h = _gelu(_dot(_bf(h), rw(wi)) + rb(bi))
        hd = _bf(h)
        x = None                                              # dense -> (TB*2, 2*nc0) spatial
        for hh in range(2):
            piece = _dot(hd, rw(perm_idx[hh]))
            placed = _dot(rw(srow_idx[hh]), _bf(piece))
            x = placed if x is None else x + placed
        for meta in conv_meta:                                # fused (upsample+)conv stack
            x = _gen_conv_layer(rw, rb, meta, x)
        o_ref[0] = x                                          # (TB*H_f, W_f*C_f), lane dense

    z_t = z.reshape(G, TB, latent)
    out = pl.pallas_call(
        gen_kernel,
        grid=(G,),
        in_specs=[
            pl.BlockSpec((1, TB, latent), lambda g: (g, 0, 0)),
            pl.BlockSpec(wp.shape, lambda g: (0, 0)),
            pl.BlockSpec(bp.shape, lambda g: (0, 0)),
        ],
        out_specs=pl.BlockSpec((1, TB * H_f, out_w), lambda g: (g, 0, 0)),
        out_shape=jax.ShapeDtypeStruct((G, TB * H_f, out_w), jnp.float32),
        compiler_params=pltpu.CompilerParams(dimension_semantics=("parallel",)),
    )(z_t, wp, bp)

    out = out.reshape(B, H_f, W_f, C_f)                       # XLA glue
    Hc, Wc = min(64, H_f), min(64, W_f)                       # torch crop [:, :, :64, :64]
    out = out[:, :Hc, :Wc, :]
    return jnp.transpose(out, (0, 3, 1, 2))


# ----------------------------------------------------------------------------
# Critic: single fused Pallas kernel (conv+pool+GELU stack, folded flatten,
# dense chain, sigmoid).
# ----------------------------------------------------------------------------
def critic_forward(params, x_nchw, wasserstein=False, batch_tile=None):
    B, C0, H0, W0 = (int(s) for s in x_nchw.shape)
    TB = batch_tile or _batch_tile(B)
    G = B // TB
    x2d = jnp.transpose(x_nchw, (0, 2, 3, 1)).reshape(G, TB * H0, W0 * C0)   # XLA glue

    wpack = _Pack(jnp.bfloat16, 16)
    bpack = _Pack(jnp.float32, 8)

    conv_meta = []
    H, W = H0, W0
    for layer in params["convs"]:
        assert H % 2 == 0 and W % 2 == 0, "maxpool2x2 needs even spatial dims"
        cin = int(layer["w"].shape[2])
        kstack = (W * cin) % 128 == 0
        half = TB * (H // 2)
        stack_p = half % 8 == 0
        if stack_p:
            taps_idx = [wpack.add(np.concatenate(
                [_block_diag(TB, _row_tap_pooled(H, d, p)) for p in range(2)], axis=0))
                for d in range(3)]
        else:
            taps_idx = [[wpack.add(_block_diag(TB, _row_tap_pooled(H, d, p)))
                         for d in range(3)] for p in range(2)]
        band_idx = []
        for q in range(2):
            bq = [_band_block(layer["w"], W, W, False, d, pool_phase=q) for d in range(3)]
            band_idx.append([wpack.add(jnp.concatenate(bq, axis=0))] if kstack
                            else [wpack.add(b) for b in bq])
        bias_idx = bpack.add(jnp.tile(layer["b"], W // 2).reshape(1, -1))
        conv_meta.append(dict(kstack=kstack, stack_p=stack_p, half=half,
                              taps=taps_idx, bands=band_idx, bias=bias_idx))
        H, W = H // 2, W // 2
    C_last = int(params["convs"][-1]["w"].shape[-1])
    H_last, W_last = H, W

    # NCHW flatten folded into the first dense layer at pack time.
    assert len(params["dense"]) >= 1
    w0 = params["dense"][0]["w"]
    flat_idx = []
    for hh in range(H_last):
        sel = np.zeros((TB, TB * H_last), np.float32)
        for s in range(TB):
            sel[s, s * H_last + hh] = 1.0
        flat_idx.append((wpack.add(sel),
                         wpack.add(_flatten_fold(w0, C_last, H_last, W_last, hh))))
    b0_idx = bpack.add(params["dense"][0]["b"].reshape(1, -1))
    dense_idx = [(wpack.add(l["w"]), bpack.add(l["b"].reshape(1, -1)))
                 for l in params["dense"][1:]]
    out_idx = (wpack.add(params["output"]["w"]),
               bpack.add(params["output"]["b"].reshape(1, -1)))

    wp, bp = wpack.finish(), bpack.finish()

    def critic_kernel(x_ref, w_ref, b_ref, o_ref):
        rw = lambda i: wpack.read(w_ref, i)
        rb = lambda i: bpack.read(b_ref, i)
        a = x_ref[0]                                          # (TB*H0, W0*C0)
        for meta in conv_meta:                                # conv -> 2x2 maxpool -> GELU
            a = _critic_conv_layer(rw, rb, meta, a)
        ab = _bf(a)                                           # folded flatten + dense0
        h = None
        for sel_i, wf_i in flat_idx:
            rows = _bf(_dot(rw(sel_i), ab))
            c = _dot(rows, rw(wf_i))
            h = c if h is None else h + c
        h = _gelu(h + rb(b0_idx))
        for wi, bi in dense_idx:                              # remaining dense chain
            h = _gelu(_dot(_bf(h), rw(wi)) + rb(bi))
        s = _dot(_bf(h), rw(out_idx[0])) + rb(out_idx[1])
        if not wasserstein:
            s = _sigmoid(s)
        o_ref[0] = s                                          # (TB, 1)

    out = pl.pallas_call(
        critic_kernel,
        grid=(G,),
        in_specs=[
            pl.BlockSpec((1, TB * H0, W0 * C0), lambda g: (g, 0, 0)),
            pl.BlockSpec(wp.shape, lambda g: (0, 0)),
            pl.BlockSpec(bp.shape, lambda g: (0, 0)),
        ],
        out_specs=pl.BlockSpec((1, TB, 1), lambda g: (g, 0, 0)),
        out_shape=jax.ShapeDtypeStruct((G, TB, 1), jnp.float32),
        compiler_params=pltpu.CompilerParams(dimension_semantics=("parallel",)),
    )(x2d, wp, bp)
    return out.reshape(B, 1)


# ----------------------------------------------------------------------------
# Deterministic parameter init (PyTorch-like +-1/sqrt(fan_in) uniform).
# ----------------------------------------------------------------------------
def _linear_init(key, din, dout):
    kw, kb = jax.random.split(key)
    bound = 1.0 / np.sqrt(din)
    return {"w": jax.random.uniform(kw, (din, dout), jnp.float32, -bound, bound),
            "b": jax.random.uniform(kb, (dout,), jnp.float32, -bound, bound)}


def _conv_init(key, cin, cout, bias=True):
    kw, kb = jax.random.split(key)
    bound = 1.0 / np.sqrt(9 * cin)
    w = jax.random.uniform(kw, (3, 3, cin, cout), jnp.float32, -bound, bound)
    b = (jax.random.uniform(kb, (cout,), jnp.float32, -bound, bound)
         if bias else jnp.zeros((cout,), jnp.float32))
    return {"w": w, "b": b}


def init_generator_params(key, latent_dim, num_dense_neurons, num_channels):
    keys = iter(jax.random.split(key, 64))
    dense, din = [], latent_dim
    for dout in num_dense_neurons:
        dense.append(_linear_init(next(keys), din, dout))
        din = dout
    final_dense = _linear_init(next(keys), din, num_channels[0] * 2 * 2)
    up_chans = [num_channels[0]] + list(num_channels)
    up_convs = [_conv_init(next(keys), up_chans[i], up_chans[i + 1])
                for i in range(len(num_channels))]
    final_res = _conv_init(next(keys), num_channels[-1], 2)
    final_conv = _conv_init(next(keys), 2, 2, bias=False)
    return {"dense": dense, "final_dense": final_dense, "up_convs": up_convs,
            "final_res": final_res, "final_conv": final_conv}


def init_critic_params(key, num_channels, num_dense_neurons):
    keys = iter(jax.random.split(key, 64))
    chans = [2] + list(num_channels)           # first_layer_channels = 2
    convs = [_conv_init(next(keys), chans[i], chans[i + 1])
             for i in range(len(num_channels))]
    dense, din = [], 4 * num_channels[-1]
    for dout in num_dense_neurons:
        dense.append(_linear_init(next(keys), din, dout))
        din = dout
    output = _linear_init(next(keys), din, 1)
    return {"convs": convs, "dense": dense, "output": output}


# ----------------------------------------------------------------------------
def parameter_gan_forward(params, x, z):
    # TODO(synk): ParameterGAN.forward is literally `pass` in the reference; we expose
    # the generator / critic forward passes and compose them (fake sample + scores).
    fake = generator_forward(params["generator"], z)
    B = x.shape[0]
    scores = critic_forward(params["critic"], jnp.concatenate([x, fake], axis=0))
    return fake, scores[:B], scores[B:]


if __name__ == "__main__":
    root = jax.random.PRNGKey(0)
    kx, kz, kg, kc = jax.random.split(root, 4)

    # Real static spatial parameters (NCHW, 2 channels, 64x64 as implied by the crop)
    x = jax.random.normal(kx, (4, 2, 64, 64), jnp.float32)
    # Latent vectors
    z = jax.random.normal(kz, (4, 8), jnp.float32)

    params = {
        "generator": init_generator_params(
            kg, latent_dim=8, num_dense_neurons=[16, 32], num_channels=[8, 8, 4, 4]),
        "critic": init_critic_params(
            kc, num_channels=[4, 4, 8, 8, 16], num_dense_neurons=[32, 16]),
    }

    fake, score_real, score_fake = jax.jit(parameter_gan_forward)(params, x, z)
    jax.block_until_ready((fake, score_real, score_fake))

    assert fake.shape == (4, 2, 64, 64)
    assert score_real.shape == (4, 1) and score_fake.shape == (4, 1)
    assert bool(jnp.all(jnp.isfinite(fake)))
    assert bool(jnp.all(jnp.isfinite(score_real))) and bool(jnp.all(jnp.isfinite(score_fake)))
    assert bool(jnp.all((score_real >= 0.0) & (score_real <= 1.0)))
    assert bool(jnp.all((score_fake >= 0.0) & (score_fake <= 1.0)))
    print("KERNEL_OK")
</pallas_src>

<mosaic_0001>
module attributes {stable_mosaic.version = 11 : i64} {
  func.func @gen_kernel(%arg0: i32, %arg1: memref<1x2x8xf32, #tpu.memory_space<vmem>>, %arg2: memref<2224x128xbf16, #tpu.memory_space<vmem>>, %arg3: memref<64x128xf32, #tpu.memory_space<vmem>>, %arg4: memref<1x128x128xf32, #tpu.memory_space<vmem>>) attributes {dimension_semantics = [#tpu.dimension_semantics<parallel>], iteration_bounds = array<i64: 2>, scalar_prefetch = 0 : i64, scratch_operands = 0 : i64, tpu.core_type = #tpu.core_type<tc>, window_params = [{transform_indices = @transform_0, window_bounds = array<i64: 1, 2, 8>}, {pipeline_mode = #tpu.pipeline_mode<synchronous>, transform_indices = @transform_1, window_bounds = array<i64: 2224, 128>}, {pipeline_mode = #tpu.pipeline_mode<synchronous>, transform_indices = @transform_2, window_bounds = array<i64: 64, 128>}, {transform_indices = @transform_3, window_bounds = array<i64: 1, 128, 128>}]} {
    %c0 = arith.constant 0 : index
    %c0_0 = arith.constant 0 : index
    %c0_1 = arith.constant 0 : index
    %0 = vector.load %arg1[%c0, %c0_0, %c0_1] : memref<1x2x8xf32, #tpu.memory_space<vmem>>, vector<1x2x8xf32>
    %1 = vector.shape_cast %0 : vector<1x2x8xf32> to vector<2x8xf32>
    %2 = arith.truncf %1 : vector<2x8xf32> to vector<2x8xbf16>
    %c0_2 = arith.constant 0 : index
    %c0_3 = arith.constant 0 : index
    %3 = vector.load %arg2[%c0_2, %c0_3] : memref<2224x128xbf16, #tpu.memory_space<vmem>>, vector<8x16xbf16>
    %cst = arith.constant dense<0.000000e+00> : vector<2x16xf32>
    %4 = tpu.matmul %2, %3, %cst {dimension_numbers = #tpu.dot_dimension_numbers<[1], [0], [0], [1], [0, 0, 1, 1], [], []>} : vector<2x8xbf16>, vector<8x16xbf16>, vector<2x16xf32> -> vector<2x16xf32>
    %c0_4 = arith.constant 0 : index
    %c0_5 = arith.constant 0 : index
    %5 = vector.load %arg3[%c0_4, %c0_5] : memref<64x128xf32, #tpu.memory_space<vmem>>, vector<1x16xf32>
    %6 = vector.broadcast %5 : vector<1x16xf32> to vector<2x16xf32>
    %7 = arith.addf %4, %6 : vector<2x16xf32>
    %cst_6 = arith.constant 5.000000e-01 : f32
    %8 = vector.broadcast %cst_6 : f32 to vector<2x16xf32>
    %9 = arith.mulf %8, %7 : vector<2x16xf32>
    %cst_7 = arith.constant 4.471500e-02 : f32
    %10 = vector.broadcast %cst_7 : f32 to vector<2x16xf32>
    %11 = arith.mulf %10, %7 : vector<2x16xf32>
    %12 = arith.mulf %11, %7 : vector<2x16xf32>
    %13 = arith.mulf %12, %7 : vector<2x16xf32>
    %14 = arith.addf %7, %13 : vector<2x16xf32>
    %cst_8 = arith.constant 0.797884583 : f32
    %15 = vector.broadcast %cst_8 : f32 to vector<2x16xf32>
    %16 = arith.mulf %15, %14 : vector<2x16xf32>
    %17 = math.tanh %16 : vector<2x16xf32>
    %cst_9 = arith.constant 1.000000e+00 : f32
    %18 = vector.broadcast %cst_9 : f32 to vector<2x16xf32>
    %19 = arith.addf %18, %17 : vector<2x16xf32>
    %20 = arith.mulf %9, %19 : vector<2x16xf32>
    %21 = arith.truncf %20 : vector<2x16xf32> to vector<2x16xbf16>
    %c16 = arith.constant 16 : index
    %c0_10 = arith.constant 0 : index
    %22 = vector.load %arg2[%c16, %c0_10] : memref<2224x128xbf16, #tpu.memory_space<vmem>>, vector<16x32xbf16>
    %cst_11 = arith.constant dense<0.000000e+00> : vector<2x32xf32>
    %23 = tpu.matmul %21, %22, %cst_11 {dimension_numbers = #tpu.dot_dimension_numbers<[1], [0], [0], [1], [0, 0, 1, 1], [], []>} : vector<2x16xbf16>, vector<16x32xbf16>, vector<2x32xf32> -> vector<2x32xf32>
    %c8 = arith.constant 8 : index
    %c0_12 = arith.constant 0 : index
    %24 = vector.load %arg3[%c8, %c0_12] : memref<64x128xf32, #tpu.memory_space<vmem>>, vector<1x32xf32>
    %25 = vector.broadcast %24 : vector<1x32xf32> to vector<2x32xf32>
    %26 = arith.addf %23, %25 : vector<2x32xf32>
    %cst_13 = arith.constant 5.000000e-01 : f32
    %27 = vector.broadcast %cst_13 : f32 to vector<2x32xf32>
    %28 = arith.mulf %27, %26 : vector<2x32xf32>
    %cst_14 = arith.constant 4.471500e-02 : f32
    %29 = vector.broadcast %cst_14 : f32 to vector<2x32xf32>
    %30 = arith.mulf %29, %26 : vector<2x32xf32>
    %31 = arith.mulf %30, %26 : vector<2x32xf32>
    %32 = arith.mulf %31, %26 : vector<2x32xf32>
    %33 = arith.addf %26, %32 : vector<2x32xf32>
    %cst_15 = arith.constant 0.797884583 : f32
    %34 = vector.broadcast %cst_15 : f32 to vector<2x32xf32>
    %35 = arith.mulf %34, %33 : vector<2x32xf32>
    %36 = math.tanh %35 : vector<2x32xf32>
    %cst_16 = arith.constant 1.000000e+00 : f32
    %37 = vector.broadcast %cst_16 : f32 to vector<2x32xf32>
    %38 = arith.addf %37, %36 : vector<2x32xf32>
    %39 = arith.mulf %28, %38 : vector<2x32xf32>
    %40 = arith.truncf %39 : vector<2x32xf32> to vector<2x32xbf16>
    %c32 = arith.constant 32 : index
    %c0_17 = arith.constant 0 : index
    %41 = vector.load %arg2[%c32, %c0_17] : memref<2224x128xbf16, #tpu.memory_space<vmem>>, vector<32x32xbf16>
    %cst_18 = arith.constant dense<0.000000e+00> : vector<2x32xf32>
    %42 = tpu.matmul %40, %41, %cst_18 {dimension_numbers = #tpu.dot_dimension_numbers<[1], [0], [0], [1], [0, 0, 1, 1], [], []>} : vector<2x32xbf16>, vector<32x32xbf16>, vector<2x32xf32> -> vector<2x32xf32>
    %c16_19 = arith.constant 16 : index
    %c0_20 = arith.constant 0 : index
    %43 = vector.load %arg3[%c16_19, %c0_20] : memref<64x128xf32, #tpu.memory_space<vmem>>, vector<1x32xf32>
    %44 = vector.broadcast %43 : vector<1x32xf32> to vector<2x32xf32>
    %45 = arith.addf %42, %44 : vector<2x32xf32>
    %cst_21 = arith.constant 5.000000e-01 : f32
    %46 = vector.broadcast %cst_21 : f32 to vector<2x32xf32>
    %47 = arith.mulf %46, %45 : vector<2x32xf32>
    %cst_22 = arith.constant 4.471500e-02 : f32
    %48 = vector.broadcast %cst_22 : f32 to vector<2x32xf32>
    %49 = arith.mulf %48, %45 : vector<2x32xf32>
    %50 = arith.mulf %49, %45 : vector<2x32xf32>
    %51 = arith.mulf %50, %45 : vector<2x32xf32>
    %52 = arith.addf %45, %51 : vector<2x32xf32>
    %cst_23 = arith.constant 0.797884583 : f32
    %53 = vector.broadcast %cst_23 : f32 to vector<2x32xf32>
    %54 = arith.mulf %53, %52 : vector<2x32xf32>
    %55 = math.tanh %54 : vector<2x32xf32>
    %cst_24 = arith.constant 1.000000e+00 : f32
    %56 = vector.broadcast %cst_24 : f32 to vector<2x32xf32>
    %57 = arith.addf %56, %55 : vector<2x32xf32>
    %58 = arith.mulf %47, %57 : vector<2x32xf32>
    %59 = arith.truncf %58 : vector<2x32xf32> to vector<2x32xbf16>
    %c64 = arith.constant 64 : index
    %c0_25 = arith.constant 0 : index
    %60 = vector.load %arg2[%c64, %c0_25] : memref<2224x128xbf16, #tpu.memory_space<vmem>>, vector<32x16xbf16>
    %cst_26 = arith.constant dense<0.000000e+00> : vector<2x16xf32>
    %61 = tpu.matmul %59, %60, %cst_26 {dimension_numbers = #tpu.dot_dimension_numbers<[1], [0], [0], [1], [0, 0, 1, 1], [], []>} : vector<2x32xbf16>, vector<32x16xbf16>, vector<2x16xf32> -> vector<2x16xf32>
    %c128 = arith.constant 128 : index
    %c0_27 = arith.constant 0 : index
    %62 = vector.load %arg2[%c128, %c0_27] : memref<2224x128xbf16, #tpu.memory_space<vmem>>, vector<4x2xbf16>
    %63 = arith.truncf %61 : vector<2x16xf32> to vector<2x16xbf16>
    %cst_28 = arith.constant dense<0.000000e+00> : vector<4x16xf32>
    %64 = tpu.matmul %62, %63, %cst_28 {dimension_numbers = #tpu.dot_dimension_numbers<[1], [0], [0], [1], [0, 0, 1, 1], [], []>} : vector<4x2xbf16>, vector<2x16xbf16>, vector<4x16xf32> -> vector<4x16xf32>
    %c96 = arith.constant 96 : index
    %c0_29 = arith.constant 0 : index
    %65 = vector.load %arg2[%c96, %c0_29] : memref<2224x128xbf16, #tpu.memory_space<vmem>>, vector<32x16xbf16>
    %cst_30 = arith.constant dense<0.000000e+00> : vector<2x16xf32>
    %66 = tpu.matmul %59, %65, %cst_30 {dimension_numbers = #tpu.dot_dimension_numbers<[1], [0], [0], [1], [0, 0, 1, 1], [], []>} : vector<2x32xbf16>, vector<32x16xbf16>, vector<2x16xf32> -> vector<2x16xf32>
    %c144 = arith.constant 144 : index
    %c0_31 = arith.constant 0 : index
    %67 = vector.load %arg2[%c144, %c0_31] : memref<2224x128xbf16, #tpu.memory_space<vmem>>, vector<4x2xbf16>
    %68 = arith.truncf %66 : vector<2x16xf32> to vector<2x16xbf16>
    %cst_32 = arith.constant dense<0.000000e+00> : vector<4x16xf32>
    %69 = tpu.matmul %67, %68, %cst_32 {dimension_numbers = #tpu.dot_dimension_numbers<[1], [0], [0], [1], [0, 0, 1, 1], [], []>} : vector<4x2xbf16>, vector<2x16xbf16>, vector<4x16xf32> -> vector<4x16xf32>
    %70 = arith.addf %64, %69 : vector<4x16xf32>
    %71 = arith.truncf %70 : vector<4x16xf32> to vector<4x16xbf16>
    %c160 = arith.constant 160 : index
    %c0_33 = arith.constant 0 : index
    %72 = vector.load %arg2[%c160, %c0_33] : memref<2224x128xbf16, #tpu.memory_space<vmem>>, vector<8x4xbf16>
    %cst_34 = arith.constant dense<0.000000e+00> : vector<8x16xf32>
    %73 = tpu.matmul %72, %71, %cst_34 {dimension_numbers = #tpu.dot_dimension_numbers<[1], [0], [0], [1], [0, 0, 1, 1], [], []>} : vector<8x4xbf16>, vector<4x16xbf16>, vector<8x16xf32> -> vector<8x16xf32>
    %74 = arith.truncf %73 : vector<8x16xf32> to vector<8x16xbf16>
    %c176 = arith.constant 176 : index
    %c0_35 = arith.constant 0 : index
    %75 = vector.load %arg2[%c176, %c0_35] : memref<2224x128xbf16, #tpu.memory_space<vmem>>, vector<8x4xbf16>
    %cst_36 = arith.constant dense<0.000000e+00> : vector<8x16xf32>
    %76 = tpu.matmul %75, %71, %cst_36 {dimension_numbers = #tpu.dot_dimension_numbers<[1], [0], [0], [1], [0, 0, 1, 1], [], []>} : vector<8x4xbf16>, vector<4x16xbf16>, vector<8x16xf32> -> vector<8x16xf32>
    %77 = arith.truncf %76 : vector<8x16xf32> to vector<8x16xbf16>
    %c192 = arith.constant 192 : index
    %c0_37 = arith.constant 0 : index
    %78 = vector.load %arg2[%c192, %c0_37] : memref<2224x128xbf16, #tpu.memory_space<vmem>>, vector<8x4xbf16>
    %cst_38 = arith.constant dense<0.000000e+00> : vector<8x16xf32>
    %79 = tpu.matmul %78, %71, %cst_38 {dimension_numbers = #tpu.dot_dimension_numbers<[1], [0], [0], [1], [0, 0, 1, 1], [], []>} : vector<8x4xbf16>, vector<4x16xbf16>, vector<8x16xf32> -> vector<8x16xf32>
    %80 = arith.truncf %79 : vector<8x16xf32> to vector<8x16xbf16>
    %c208 = arith.constant 208 : index
    %c0_39 = arith.constant 0 : index
    %81 = vector.load %arg2[%c208, %c0_39] : memref<2224x128xbf16, #tpu.memory_space<vmem>>, vector<16x32xbf16>
    %cst_40 = arith.constant dense<0.000000e+00> : vector<8x32xf32>
    %82 = tpu.matmul %74, %81, %cst_40 {dimension_numbers = #tpu.dot_dimension_numbers<[1], [0], [0], [1], [0, 0, 1, 1], [], []>} : vector<8x16xbf16>, vector<16x32xbf16>, vector<8x32xf32> -> vector<8x32xf32>
    %c224 = arith.constant 224 : index
    %c0_41 = arith.constant 0 : index
    %83 = vector.load %arg2[%c224, %c0_41] : memref<2224x128xbf16, #tpu.memory_space<vmem>>, vector<16x32xbf16>
    %cst_42 = arith.constant dense<0.000000e+00> : vector<8x32xf32>
    %84 = tpu.matmul %77, %83, %cst_42 {dimension_numbers = #tpu.dot_dimension_numbers<[1], [0], [0], [1], [0, 0, 1, 1], [], []>} : vector<8x16xbf16>, vector<16x32xbf16>, vector<8x32xf32> -> vector<8x32xf32>
    %85 = arith.addf %82, %84 : vector<8x32xf32>
    %c240 = arith.constant 240 : index
    %c0_43 = arith.constant 0 : index
    %86 = vector.load %arg2[%c240, %c0_43] : memref<2224x128xbf16, #tpu.memory_space<vmem>>, vector<16x32xbf16>
    %cst_44 = arith.constant dense<0.000000e+00> : vector<8x32xf32>
    %87 = tpu.matmul %80, %86, %cst_44 {dimension_numbers = #tpu.dot_dimension_numbers<[1], [0], [0], [1], [0, 0, 1, 1], [], []>} : vector<8x16xbf16>, vector<16x32xbf16>, vector<8x32xf32> -> vector<8x32xf32>
    %88 = arith.addf %85, %87 : vector<8x32xf32>
    %c24 = arith.constant 24 : index
    %c0_45 = arith.constant 0 : index
    %89 = vector.load %arg3[%c24, %c0_45] : memref<64x128xf32, #tpu.memory_space<vmem>>, vector<1x32xf32>
    %90 = vector.broadcast %89 : vector<1x32xf32> to vector<8x32xf32>
    %91 = arith.addf %88, %90 : vector<8x32xf32>
    %cst_46 = arith.constant 5.000000e-01 : f32
    %92 = vector.broadcast %cst_46 : f32 to vector<8x32xf32>
    %93 = arith.mulf %92, %91 : vector<8x32xf32>
    %cst_47 = arith.constant 4.471500e-02 : f32
    %94 = vector.broadcast %cst_47 : f32 to vector<8x32xf32>
    %95 = arith.mulf %94, %91 : vector<8x32xf32>
    %96 = arith.mulf %95, %91 : vector<8x32xf32>
    %97 = arith.mulf %96, %91 : vector<8x32xf32>
    %98 = arith.addf %91, %97 : vector<8x32xf32>
    %cst_48 = arith.constant 0.797884583 : f32
    %99 = vector.broadcast %cst_48 : f32 to vector<8x32xf32>
    %100 = arith.mulf %99, %98 : vector<8x32xf32>
    %101 = math.tanh %100 : vector<8x32xf32>
    %cst_49 = arith.constant 1.000000e+00 : f32
    %102 = vector.broadcast %cst_49 : f32 to vector<8x32xf32>
    %103 = arith.addf %102, %101 : vector<8x32xf32>
    %104 = arith.mulf %93, %103 : vector<8x32xf32>
    %105 = arith.truncf %104 : vector<8x32xf32> to vector<8x32xbf16>
    %c256 = arith.constant 256 : index
    %c0_50 = arith.constant 0 : index
    %106 = vector.load %arg2[%c256, %c0_50] : memref<2224x128xbf16, #tpu.memory_space<vmem>>, vector<16x8xbf16>
    %cst_51 = arith.constant dense<0.000000e+00> : vector<16x32xf32>
    %107 = tpu.matmul %106, %105, %cst_51 {dimension_numbers = #tpu.dot_dimension_numbers<[1], [0], [0], [1], [0, 0, 1, 1], [], []>} : vector<16x8xbf16>, vector<8x32xbf16>, vector<16x32xf32> -> vector<16x32xf32>
    %108 = arith.truncf %107 : vector<16x32xf32> to vector<16x32xbf16>
    %c272 = arith.constant 272 : index
    %c0_52 = arith.constant 0 : index
    %109 = vector.load %arg2[%c272, %c0_52] : memref<2224x128xbf16, #tpu.memory_space<vmem>>, vector<16x8xbf16>
    %cst_53 = arith.constant dense<0.000000e+00> : vector<16x32xf32>
    %110 = tpu.matmul %109, %105, %cst_53 {dimension_numbers = #tpu.dot_dimension_numbers<[1], [0], [0], [1], [0, 0, 1, 1], [], []>} : vector<16x8xbf16>, vector<8x32xbf16>, vector<16x32xf32> -> vector<16x32xf32>
    %111 = arith.truncf %110 : vector<16x32xf32> to vector<16x32xbf16>
    %c288 = arith.constant 288 : index
    %c0_54 = arith.constant 0 : index
    %112 = vector.load %arg2[%c288, %c0_54] : memref<2224x128xbf16, #tpu.memory_space<vmem>>, vector<16x8xbf16>
    %cst_55 = arith.constant dense<0.000000e+00> : vector<16x32xf32>
    %113 = tpu.matmul %112, %105, %cst_55 {dimension_numbers = #tpu.dot_dimension_numbers<[1], [0], [0], [1], [0, 0, 1, 1], [], []>} : vector<16x8xbf16>, vector<8x32xbf16>, vector<16x32xf32> -> vector<16x32xf32>
    %114 = arith.truncf %113 : vector<16x32xf32> to vector<16x32xbf16>
    %c304 = arith.constant 304 : index
    %c0_56 = arith.constant 0 : index
    %115 = vector.load %arg2[%c304, %c0_56] : memref<2224x128xbf16, #tpu.memory_space<vmem>>, vector<32x64xbf16>
    %cst_57 = arith.constant dense<0.000000e+00> : vector<16x64xf32>
    %116 = tpu.matmul %108, %115, %cst_57 {dimension_numbers = #tpu.dot_dimension_numbers<[1], [0], [0], [1], [0, 0, 1, 1], [], []>} : vector<16x32xbf16>, vector<32x64xbf16>, vector<16x64xf32> -> vector<16x64xf32>
    %c336 = arith.constant 336 : index
    %c0_58 = arith.constant 0 : index
    %117 = vector.load %arg2[%c336, %c0_58] : memref<2224x128xbf16, #tpu.memory_space<vmem>>, vector<32x64xbf16>
    %cst_59 = arith.constant dense<0.000000e+00> : vector<16x64xf32>
    %118 = tpu.matmul %111, %117, %cst_59 {dimension_numbers = #tpu.dot_dimension_numbers<[1], [0], [0], [1], [0, 0, 1, 1], [], []>} : vector<16x32xbf16>, vector<32x64xbf16>, vector<16x64xf32> -> vector<16x64xf32>
    %119 = arith.addf %116, %118 : vector<16x64xf32>
    %c368 = arith.constant 368 : index
    %c0_60 = arith.constant 0 : index
    %120 = vector.load %arg2[%c368, %c0_60] : memref<2224x128xbf16, #tpu.memory_space<vmem>>, vector<32x64xbf16>
    %cst_61 = arith.constant dense<0.000000e+00> : vector<16x64xf32>
    %121 = tpu.matmul %114, %120, %cst_61 {dimension_numbers = #tpu.dot_dimension_numbers<[1], [0], [0], [1], [0, 0, 1, 1], [], []>} : vector<16x32xbf16>, vector<32x64xbf16>, vector<16x64xf32> -> vector<16x64xf32>
    %122 = arith.addf %119, %121 : vector<16x64xf32>
    %c32_62 = arith.constant 32 : index
    %c0_63 = arith.constant 0 : index
    %123 = vector.load %arg3[%c32_62, %c0_63] : memref<64x128xf32, #tpu.memory_space<vmem>>, vector<1x64xf32>
    %124 = vector.broadcast %123 : vector<1x64xf32> to vector<16x64xf32>
    %125 = arith.addf %122, %124 : vector<16x64xf32>
    %cst_64 = arith.constant 5.000000e-01 : f32
    %126 = vector.broadcast %cst_64 : f32 to vector<16x64xf32>
    %127 = arith.mulf %126, %125 : vector<16x64xf32>
    %cst_65 = arith.constant 4.471500e-02 : f32
    %128 = vector.broadcast %cst_65 : f32 to vector<16x64xf32>
    %129 = arith.mulf %128, %125 : vector<16x64xf32>
    %130 = arith.mulf %129, %125 : vector<16x64xf32>
    %131 = arith.mulf %130, %125 : vector<16x64xf32>
    %132 = arith.addf %125, %131 : vector<16x64xf32>
    %cst_66 = arith.constant 0.797884583 : f32
    %133 = vector.broadcast %cst_66 : f32 to vector<16x64xf32>
    %134 = arith.mulf %133, %132 : vector<16x64xf32>
    %135 = math.tanh %134 : vector<16x64xf32>
    %cst_67 = arith.constant 1.000000e+00 : f32
    %136 = vector.broadcast %cst_67 : f32 to vector<16x64xf32>
    %137 = arith.addf %136, %135 : vector<16x64xf32>
    %138 = arith.mulf %127, %137 : vector<16x64xf32>
    %139 = arith.truncf %138 : vector<16x64xf32> to vector<16x64xbf16>
    %c400 = arith.constant 400 : index
    %c0_68 = arith.constant 0 : index
    %140 = vector.load %arg2[%c400, %c0_68] : memref<2224x128xbf16, #tpu.memory_space<vmem>>, vector<32x16xbf16>
    %cst_69 = arith.constant dense<0.000000e+00> : vector<32x64xf32>
    %141 = tpu.matmul %140, %139, %cst_69 {dimension_numbers = #tpu.dot_dimension_numbers<[1], [0], [0], [1], [0, 0, 1, 1], [], []>} : vector<32x16xbf16>, vector<16x64xbf16>, vector<32x64xf32> -> vector<32x64xf32>
    %142 = arith.truncf %141 : vector<32x64xf32> to vector<32x64xbf16>
    %c432 = arith.constant 432 : index
    %c0_70 = arith.constant 0 : index
    %143 = vector.load %arg2[%c432, %c0_70] : memref<2224x128xbf16, #tpu.memory_space<vmem>>, vector<32x16xbf16>
    %cst_71 = arith.constant dense<0.000000e+00> : vector<32x64xf32>
    %144 = tpu.matmul %143, %139, %cst_71 {dimension_numbers = #tpu.dot_dimension_numbers<[1], [0], [0], [1], [0, 0, 1, 1], [], []>} : vector<32x16xbf16>, vector<16x64xbf16>, vector<32x64xf32> -> vector<32x64xf32>
    %145 = arith.truncf %144 : vector<32x64xf32> to vector<32x64xbf16>
    %c464 = arith.constant 464 : index
    %c0_72 = arith.constant 0 : index
    %146 = vector.load %arg2[%c464, %c0_72] : memref<2224x128xbf16, #tpu.memory_space<vmem>>, vector<32x16xbf16>
    %cst_73 = arith.constant dense<0.000000e+00> : vector<32x64xf32>
    %147 = tpu.matmul %146, %139, %cst_73 {dimension_numbers = #tpu.dot_dimension_numbers<[1], [0], [0], [1], [0, 0, 1, 1], [], []>} : vector<32x16xbf16>, vector<16x64xbf16>, vector<32x64xf32> -> vector<32x64xf32>
    %148 = arith.truncf %147 : vector<32x64xf32> to vector<32x64xbf16>
    %c496 = arith.constant 496 : index
    %c0_74 = arith.constant 0 : index
    %149 = vector.load %arg2[%c496, %c0_74] : memref<2224x128xbf16, #tpu.memory_space<vmem>>, vector<64x64xbf16>
    %cst_75 = arith.constant dense<0.000000e+00> : vector<32x64xf32>
    %150 = tpu.matmul %142, %149, %cst_75 {dimension_numbers = #tpu.dot_dimension_numbers<[1], [0], [0], [1], [0, 0, 1, 1], [], []>} : vector<32x64xbf16>, vector<64x64xbf16>, vector<32x64xf32> -> vector<32x64xf32>
    %c560 = arith.constant 560 : index
    %c0_76 = arith.constant 0 : index
    %151 = vector.load %arg2[%c560, %c0_76] : memref<2224x128xbf16, #tpu.memory_space<vmem>>, vector<64x64xbf16>
    %cst_77 = arith.constant dense<0.000000e+00> : vector<32x64xf32>
    %152 = tpu.matmul %145, %151, %cst_77 {dimension_numbers = #tpu.dot_dimension_numbers<[1], [0], [0], [1], [0, 0, 1, 1], [], []>} : vector<32x64xbf16>, vector<64x64xbf16>, vector<32x64xf32> -> vector<32x64xf32>
    %153 = arith.addf %150, %152 : vector<32x64xf32>
    %c624 = arith.constant 624 : index
    %c0_78 = arith.constant 0 : index
    %154 = vector.load %arg2[%c624, %c0_78] : memref<2224x128xbf16, #tpu.memory_space<vmem>>, vector<64x64xbf16>
    %cst_79 = arith.constant dense<0.000000e+00> : vector<32x64xf32>
    %155 = tpu.matmul %148, %154, %cst_79 {dimension_numbers = #tpu.dot_dimension_numbers<[1], [0], [0], [1], [0, 0, 1, 1], [], []>} : vector<32x64xbf16>, vector<64x64xbf16>, vector<32x64xf32> -> vector<32x64xf32>
    %156 = arith.addf %153, %155 : vector<32x64xf32>
    %c40 = arith.constant 40 : index
    %c0_80 = arith.constant 0 : index
    %157 = vector.load %arg3[%c40, %c0_80] : memref<64x128xf32, #tpu.memory_space<vmem>>, vector<1x64xf32>
    %158 = vector.broadcast %157 : vector<1x64xf32> to vector<32x64xf32>
    %159 = arith.addf %156, %158 : vector<32x64xf32>
    %cst_81 = arith.constant 5.000000e-01 : f32
    %160 = vector.broadcast %cst_81 : f32 to vector<32x64xf32>
    %161 = arith.mulf %160, %159 : vector<32x64xf32>
    %cst_82 = arith.constant 4.471500e-02 : f32
    %162 = vector.broadcast %cst_82 : f32 to vector<32x64xf32>
    %163 = arith.mulf %162, %159 : vector<32x64xf32>
    %164 = arith.mulf %163, %159 : vector<32x64xf32>
    %165 = arith.mulf %164, %159 : vector<32x64xf32>
    %166 = arith.addf %159, %165 : vector<32x64xf32>
    %cst_83 = arith.constant 0.797884583 : f32
    %167 = vector.broadcast %cst_83 : f32 to vector<32x64xf32>
    %168 = arith.mulf %167, %166 : vector<32x64xf32>
    %169 = math.tanh %168 : vector<32x64xf32>
    %cst_84 = arith.constant 1.000000e+00 : f32
    %170 = vector.broadcast %cst_84 : f32 to vector<32x64xf32>
    %171 = arith.addf %170, %169 : vector<32x64xf32>
    %172 = arith.mulf %161, %171 : vector<32x64xf32>
    %173 = arith.truncf %172 : vector<32x64xf32> to vector<32x64xbf16>
    %c688 = arith.constant 688 : index
    %c0_85 = arith.constant 0 : index
    %174 = vector.load %arg2[%c688, %c0_85] : memref<2224x128xbf16, #tpu.memory_space<vmem>>, vector<64x32xbf16>
    %cst_86 = arith.constant dense<0.000000e+00> : vector<64x64xf32>
    %175 = tpu.matmul %174, %173, %cst_86 {dimension_numbers = #tpu.dot_dimension_numbers<[1], [0], [0], [1], [0, 0, 1, 1], [], []>} : vector<64x32xbf16>, vector<32x64xbf16>, vector<64x64xf32> -> vector<64x64xf32>
    %176 = arith.truncf %175 : vector<64x64xf32> to vector<64x64xbf16>
    %c752 = arith.constant 752 : index
    %c0_87 = arith.constant 0 : index
    %177 = vector.load %arg2[%c752, %c0_87] : memref<2224x128xbf16, #tpu.memory_space<vmem>>, vector<64x32xbf16>
    %cst_88 = arith.constant dense<0.000000e+00> : vector<64x64xf32>
    %178 = tpu.matmul %177, %173, %cst_88 {dimension_numbers = #tpu.dot_dimension_numbers<[1], [0], [0], [1], [0, 0, 1, 1], [], []>} : vector<64x32xbf16>, vector<32x64xbf16>, vector<64x64xf32> -> vector<64x64xf32>
    %179 = arith.truncf %178 : vector<64x64xf32> to vector<64x64xbf16>
    %c816 = arith.constant 816 : index
    %c0_89 = arith.constant 0 : index
    %180 = vector.load %arg2[%c816, %c0_89] : memref<2224x128xbf16, #tpu.memory_space<vmem>>, vector<64x32xbf16>
    %cst_90 = arith.constant dense<0.000000e+00> : vector<64x64xf32>
    %181 = tpu.matmul %180, %173, %cst_90 {dimension_numbers = #tpu.dot_dimension_numbers<[1], [0], [0], [1], [0, 0, 1, 1], [], []>} : vector<64x32xbf16>, vector<32x64xbf16>, vector<64x64xf32> -> vector<64x64xf32>
    %182 = arith.truncf %181 : vector<64x64xf32> to vector<64x64xbf16>
    %c880 = arith.constant 880 : index
    %c0_91 = arith.constant 0 : index
    %183 = vector.load %arg2[%c880, %c0_91] : memref<2224x128xbf16, #tpu.memory_space<vmem>>, vector<64x128xbf16>
    %cst_92 = arith.constant dense<0.000000e+00> : vector<64x128xf32>
    %184 = tpu.matmul %176, %183, %cst_92 {dimension_numbers = #tpu.dot_dimension_numbers<[1], [0], [0], [1], [0, 0, 1, 1], [], []>} : vector<64x64xbf16>, vector<64x128xbf16>, vector<64x128xf32> -> vector<64x128xf32>
    %c944 = arith.constant 944 : index
    %c0_93 = arith.constant 0 : index
    %185 = vector.load %arg2[%c944, %c0_93] : memref<2224x128xbf16, #tpu.memory_space<vmem>>, vector<64x128xbf16>
    %cst_94 = arith.constant dense<0.000000e+00> : vector<64x128xf32>
    %186 = tpu.matmul %179, %185, %cst_94 {dimension_numbers = #tpu.dot_dimension_numbers<[1], [0], [0], [1], [0, 0, 1, 1], [], []>} : vector<64x64xbf16>, vector<64x128xbf16>, vector<64x128xf32> -> vector<64x128xf32>
    %187 = arith.addf %184, %186 : vector<64x128xf32>
    %c1008 = arith.constant 1008 : index
    %c0_95 = arith.constant 0 : index
    %188 = vector.load %arg2[%c1008, %c0_95] : memref<2224x128xbf16, #tpu.memory_space<vmem>>, vector<64x128xbf16>
    %cst_96 = arith.constant dense<0.000000e+00> : vector<64x128xf32>
    %189 = tpu.matmul %182, %188, %cst_96 {dimension_numbers = #tpu.dot_dimension_numbers<[1], [0], [0], [1], [0, 0, 1, 1], [], []>} : vector<64x64xbf16>, vector<64x128xbf16>, vector<64x128xf32> -> vector<64x128xf32>
    %190 = arith.addf %187, %189 : vector<64x128xf32>
    %c48 = arith.constant 48 : index
    %c0_97 = arith.constant 0 : index
    %191 = vector.load %arg3[%c48, %c0_97] : memref<64x128xf32, #tpu.memory_space<vmem>>, vector<1x128xf32>
    %192 = vector.broadcast %191 : vector<1x128xf32> to vector<64x128xf32>
    %193 = arith.addf %190, %192 : vector<64x128xf32>
    %cst_98 = arith.constant 5.000000e-01 : f32
    %194 = vector.broadcast %cst_98 : f32 to vector<64x128xf32>
    %195 = arith.mulf %194, %193 : vector<64x128xf32>
    %cst_99 = arith.constant 4.471500e-02 : f32
    %196 = vector.broadcast %cst_99 : f32 to vector<64x128xf32>
    %197 = arith.mulf %196, %193 : vector<64x128xf32>
    %198 = arith.mulf %197, %193 : vector<64x128xf32>
    %199 = arith.mulf %198, %193 : vector<64x128xf32>
    %200 = arith.addf %193, %199 : vector<64x128xf32>
    %cst_100 = arith.constant 0.797884583 : f32
    %201 = vector.broadcast %cst_100 : f32 to vector<64x128xf32>
    %202 = arith.mulf %201, %200 : vector<64x128xf32>
    %203 = math.tanh %202 : vector<64x128xf32>
    %cst_101 = arith.constant 1.000000e+00 : f32
    %204 = vector.broadcast %cst_101 : f32 to vector<64x128xf32>
    %205 = arith.addf %204, %203 : vector<64x128xf32>
    %206 = arith.mulf %195, %205 : vector<64x128xf32>
    %207 = arith.truncf %206 : vector<64x128xf32> to vector<64x128xbf16>
    %c1072 = arith.constant 1072 : index
    %c0_102 = arith.constant 0 : index
    %208 = vector.load %arg2[%c1072, %c0_102] : memref<2224x128xbf16, #tpu.memory_space<vmem>>, vector<128x64xbf16>
    %cst_103 = arith.constant dense<0.000000e+00> : vector<128x128xf32>
    %209 = tpu.matmul %208, %207, %cst_103 {dimension_numbers = #tpu.dot_dimension_numbers<[1], [0], [0], [1], [0, 0, 1, 1], [], []>} : vector<128x64xbf16>, vector<64x128xbf16>, vector<128x128xf32> -> vector<128x128xf32>
    %210 = arith.truncf %209 : vector<128x128xf32> to vector<128x128xbf16>
    %c1200 = arith.constant 1200 : index
    %c0_104 = arith.constant 0 : index
    %211 = vector.load %arg2[%c1200, %c0_104] : memref<2224x128xbf16, #tpu.memory_space<vmem>>, vector<128x64xbf16>
    %cst_105 = arith.constant dense<0.000000e+00> : vector<128x128xf32>
    %212 = tpu.matmul %211, %207, %cst_105 {dimension_numbers = #tpu.dot_dimension_numbers<[1], [0], [0], [1], [0, 0, 1, 1], [], []>} : vector<128x64xbf16>, vector<64x128xbf16>, vector<128x128xf32> -> vector<128x128xf32>
    %213 = arith.truncf %212 : vector<128x128xf32> to vector<128x128xbf16>
    %c1328 = arith.constant 1328 : index
    %c0_106 = arith.constant 0 : index
    %214 = vector.load %arg2[%c1328, %c0_106] : memref<2224x128xbf16, #tpu.memory_space<vmem>>, vector<128x64xbf16>
    %cst_107 = arith.constant dense<0.000000e+00> : vector<128x128xf32>
    %215 = tpu.matmul %214, %207, %cst_107 {dimension_numbers = #tpu.dot_dimension_numbers<[1], [0], [0], [1], [0, 0, 1, 1], [], []>} : vector<128x64xbf16>, vector<64x128xbf16>, vector<128x128xf32> -> vector<128x128xf32>
    %216 = arith.truncf %215 : vector<128x128xf32> to vector<128x128xbf16>
    %217 = tpu.concatenate %210, %213, %216 in 1 : vector<128x128xbf16>, vector<128x128xbf16>, vector<128x128xbf16> -> vector<128x384xbf16>
    %c1456 = arith.constant 1456 : index
    %c0_108 = arith.constant 0 : index
    %218 = vector.load %arg2[%c1456, %c0_108] : memref<2224x128xbf16, #tpu.memory_space<vmem>>, vector<384x128xbf16>
    %cst_109 = arith.constant dense<0.000000e+00> : vector<128x128xf32>
    %219 = tpu.matmul %217, %218, %cst_109 {dimension_numbers = #tpu.dot_dimension_numbers<[1], [0], [0], [1], [0, 0, 1, 1], [], []>} : vector<128x384xbf16>, vector<384x128xbf16>, vector<128x128xf32> -> vector<128x128xf32>
    %c56 = arith.constant 56 : index
    %c0_110 = arith.constant 0 : index
    %220 = vector.load %arg3[%c56, %c0_110] : memref<64x128xf32, #tpu.memory_space<vmem>>, vector<1x128xf32>
    %221 = vector.broadcast %220 : vector<1x128xf32> to vector<128x128xf32>
    %222 = arith.addf %219, %221 : vector<128x128xf32>
    %cst_111 = arith.constant 5.000000e-01 : f32
    %223 = vector.broadcast %cst_111 : f32 to vector<128x128xf32>
    %224 = arith.mulf %223, %222 : vector<128x128xf32>
    %cst_112 = arith.constant 4.471500e-02 : f32
    %225 = vector.broadcast %cst_112 : f32 to vector<128x128xf32>
    %226 = arith.mulf %225, %222 : vector<128x128xf32>
    %227 = arith.mulf %226, %222 : vector<128x128xf32>
    %228 = arith.mulf %227, %222 : vector<128x128xf32>
    %229 = arith.addf %222, %228 : vector<128x128xf32>
    %cst_113 = arith.constant 0.797884583 : f32
    %230 = vector.broadcast %cst_113 : f32 to vector<128x128xf32>
    %231 = arith.mulf %230, %229 : vector<128x128xf32>
    %232 = math.tanh %231 : vector<128x128xf32>
    %cst_114 = arith.constant 1.000000e+00 : f32
    %233 = vector.broadcast %cst_114 : f32 to vector<128x128xf32>
    %234 = arith.addf %233, %232 : vector<128x128xf32>
    %235 = arith.mulf %224, %234 : vector<128x128xf32>
    %236 = arith.truncf %235 : vector<128x128xf32> to vector<128x128xbf16>
    %c1_i32 = arith.constant 1 : i32
    %237 = tpu.dynamic_rotate %235 by %c1_i32 dim 0 : vector<128x128xf32>, i32 -> vector<128x128xf32>
    %238 = tpu.iota {dimensions = array<i32: 0>} : vector<128x128xi32>
    %c64_i32 = arith.constant 64 : i32
    %c0_i32 = arith.constant 0 : i32
    %239 = arith.cmpi eq, %c64_i32, %c0_i32 : i32
    %c1_i32_115 = arith.constant 1 : i32
    %240 = arith.select %239, %c1_i32_115, %c64_i32 : i32
    %241 = vector.broadcast %240 : i32 to vector<128x128xi32>
    %242 = arith.remsi %238, %241 : vector<128x128xi32>
    %c0_i32_116 = arith.constant 0 : i32
    %243 = vector.broadcast %c0_i32_116 : i32 to vector<128x128xi32>
    %244 = arith.cmpi ne, %242, %243 : vector<128x128xi32>
    %c0_i32_117 = arith.constant 0 : i32
    %245 = vector.broadcast %c0_i32_117 : i32 to vector<128x128xi32>
    %246 = arith.cmpi slt, %242, %245 : vector<128x128xi32>
    %c0_i32_118 = arith.constant 0 : i32
    %247 = arith.cmpi slt, %240, %c0_i32_118 : i32
    %248 = vector.broadcast %247 : i1 to vector<128x128xi1>
    %249 = vector.broadcast %248 : vector<128x128xi1> to vector<128x128xi1>
    %250 = arith.xori %246, %249 : vector<128x128xi1>
    %251 = arith.andi %250, %244 : vector<128x128xi1>
    %252 = vector.broadcast %240 : i32 to vector<128x128xi32>
    %253 = arith.addi %242, %252 : vector<128x128xi32>
    %254 = arith.select %251, %253, %242 : vector<128x128xi1>, vector<128x128xi32>
    %c0_i32_119 = arith.constant 0 : i32
    %255 = vector.broadcast %c0_i32_119 : i32 to vector<128x128xi32>
    %256 = arith.cmpi eq, %254, %255 : vector<128x128xi32>
    %cst_120 = arith.constant 0.000000e+00 : f32
    %257 = vector.broadcast %cst_120 : f32 to vector<128x128xf32>
    %258 = arith.select %256, %257, %237 : vector<128x128xi1>, vector<128x128xf32>
    %259 = arith.truncf %258 : vector<128x128xf32> to vector<128x128xbf16>
    %c127_i32 = arith.constant 127 : i32
    %260 = tpu.dynamic_rotate %235 by %c127_i32 dim 0 : vector<128x128xf32>, i32 -> vector<128x128xf32>
    %261 = tpu.iota {dimensions = array<i32: 0>} : vector<128x128xi32>
    %c64_i32_121 = arith.constant 64 : i32
    %c0_i32_122 = arith.constant 0 : i32
    %262 = arith.cmpi eq, %c64_i32_121, %c0_i32_122 : i32
    %c1_i32_123 = arith.constant 1 : i32
    %263 = arith.select %262, %c1_i32_123, %c64_i32_121 : i32
    %264 = vector.broadcast %263 : i32 to vector<128x128xi32>
    %265 = arith.remsi %261, %264 : vector<128x128xi32>
    %c0_i32_124 = arith.constant 0 : i32
    %266 = vector.broadcast %c0_i32_124 : i32 to vector<128x128xi32>
    %267 = arith.cmpi ne, %265, %266 : vector<128x128xi32>
    %c0_i32_125 = arith.constant 0 : i32
    %268 = vector.broadcast %c0_i32_125 : i32 to vector<128x128xi32>
    %269 = arith.cmpi slt, %265, %268 : vector<128x128xi32>
    %c0_i32_126 = arith.constant 0 : i32
    %270 = arith.cmpi slt, %263, %c0_i32_126 : i32
    %271 = vector.broadcast %270 : i1 to vector<128x128xi1>
    %272 = vector.broadcast %271 : vector<128x128xi1> to vector<128x128xi1>
    %273 = arith.xori %269, %272 : vector<128x128xi1>
    %274 = arith.andi %273, %267 : vector<128x128xi1>
    %275 = vector.broadcast %263 : i32 to vector<128x128xi32>
    %276 = arith.addi %265, %275 : vector<128x128xi32>
    %277 = arith.select %274, %276, %265 : vector<128x128xi1>, vector<128x128xi32>
    %c63_i32 = arith.constant 63 : i32
    %278 = vector.broadcast %c63_i32 : i32 to vector<128x128xi32>
    %279 = arith.cmpi eq, %277, %278 : vector<128x128xi32>
    %cst_127 = arith.constant 0.000000e+00 : f32
    %280 = vector.broadcast %cst_127 : f32 to vector<128x128xf32>
    %281 = arith.select %279, %280, %260 : vector<128x128xi1>, vector<128x128xf32>
    %282 = arith.truncf %281 : vector<128x128xf32> to vector<128x128xbf16>
    %283 = tpu.concatenate %259, %236, %282 in 1 : vector<128x128xbf16>, vector<128x128xbf16>, vector<128x128xbf16> -> vector<128x384xbf16>
    %c1840 = arith.constant 1840 : index
    %c0_128 = arith.constant 0 : index
    %284 = vector.load %arg2[%c1840, %c0_128] : memref<2224x128xbf16, #tpu.memory_space<vmem>>, vector<384x128xbf16>
    %cst_129 = arith.constant dense<0.000000e+00> : vector<128x128xf32>
    %285 = tpu.matmul %283, %284, %cst_129 {dimension_numbers = #tpu.dot_dimension_numbers<[1], [0], [0], [1], [0, 0, 1, 1], [], []>} : vector<128x384xbf16>, vector<384x128xbf16>, vector<128x128xf32> -> vector<128x128xf32>
    %c0_130 = arith.constant 0 : index
    %c0_131 = arith.constant 0 : index
    %c0_132 = arith.constant 0 : index
    %286 = vector.load %arg4[%c0_130, %c0_131, %c0_132] : memref<1x128x128xf32, #tpu.memory_space<vmem>>, vector<1x128x128xf32>
    %287 = vector.shape_cast %286 : vector<1x128x128xf32> to vector<128x128xf32>
    %288 = vector.shape_cast %285 : vector<128x128xf32> to vector<1x128x128xf32>
    tpu.vector_store %arg4[%c0_130, %c0_131, %c0_132], %288 {strides = array<i32>} : memref<1x128x128xf32, #tpu.memory_space<vmem>>, vector<1x128x128xf32>,
    return
  }
  func.func @transform_0(%arg0: i32) -> (i32, i32, i32) {
    %c0_i32 = arith.constant 0 : i32
    %c0_i32_0 = arith.constant 0 : i32
    %c0_i32_1 = arith.constant 0 : i32
    return %arg0, %c0_i32, %c0_i32_0 : i32, i32, i32
  }
  func.func @transform_1(%arg0: i32) -> (i32, i32) {
    %c0_i32 = arith.constant 0 : i32
    %c0_i32_0 = arith.constant 0 : i32
    %c0_i32_1 = arith.constant 0 : i32
    return %c0_i32, %c0_i32_0 : i32, i32
  }
  func.func @transform_2(%arg0: i32) -> (i32, i32) {
    %c0_i32 = arith.constant 0 : i32
    %c0_i32_0 = arith.constant 0 : i32
    %c0_i32_1 = arith.constant 0 : i32
    return %c0_i32, %c0_i32_0 : i32, i32
  }
  func.func @transform_3(%arg0: i32) -> (i32, i32, i32) {
    %c0_i32 = arith.constant 0 : i32
    %c0_i32_0 = arith.constant 0 : i32
    %c0_i32_1 = arith.constant 0 : i32
    return %arg0, %c0_i32, %c0_i32_0 : i32, i32, i32
  }
}

module attributes {stable_mosaic.version = 11 : i64} {
  func.func @critic_kernel(%arg0: i32, %arg1: memref<1x128x128xf32, #tpu.memory_space<vmem>>, %arg2: memref<3456x128xbf16, #tpu.memory_space<vmem>>, %arg3: memref<64x128xf32, #tpu.memory_space<vmem>>, %arg4: memref<1x2x1xf32, #tpu.memory_space<vmem>>) attributes {dimension_semantics = [#tpu.dimension_semantics<parallel>], iteration_bounds = array<i64: 4>, scalar_prefetch = 0 : i64, scratch_operands = 0 : i64, tpu.core_type = #tpu.core_type<tc>, window_params = [{transform_indices = @transform_0, window_bounds = array<i64: 1, 128, 128>}, {pipeline_mode = #tpu.pipeline_mode<synchronous>, transform_indices = @transform_1, window_bounds = array<i64: 3456, 128>}, {pipeline_mode = #tpu.pipeline_mode<synchronous>, transform_indices = @transform_2, window_bounds = array<i64: 64, 128>}, {transform_indices = @transform_3, window_bounds = array<i64: 1, 2, 1>}]} {
    %c0 = arith.constant 0 : index
    %c0_0 = arith.constant 0 : index
    %c0_1 = arith.constant 0 : index
    %0 = vector.load %arg1[%c0, %c0_0, %c0_1] : memref<1x128x128xf32, #tpu.memory_space<vmem>>, vector<1x128x128xf32>
    %1 = vector.shape_cast %0 : vector<1x128x128xf32> to vector<128x128xf32>
    %2 = arith.truncf %1 : vector<128x128xf32> to vector<128x128xbf16>
    %c0_2 = arith.constant 0 : index
    %c0_3 = arith.constant 0 : index
    %3 = vector.load %arg2[%c0_2, %c0_3] : memref<3456x128xbf16, #tpu.memory_space<vmem>>, vector<128x128xbf16>
    %cst = arith.constant dense<0.000000e+00> : vector<128x128xf32>
    %4 = tpu.matmul %3, %2, %cst {dimension_numbers = #tpu.dot_dimension_numbers<[1], [0], [0], [1], [0, 0, 1, 1], [], []>} : vector<128x128xbf16>, vector<128x128xbf16>, vector<128x128xf32> -> vector<128x128xf32>
    %5 = arith.truncf %4 : vector<128x128xf32> to vector<128x128xbf16>
    %c128 = arith.constant 128 : index
    %c0_4 = arith.constant 0 : index
    %6 = vector.load %arg2[%c128, %c0_4] : memref<3456x128xbf16, #tpu.memory_space<vmem>>, vector<128x128xbf16>
    %cst_5 = arith.constant dense<0.000000e+00> : vector<128x128xf32>
    %7 = tpu.matmul %6, %2, %cst_5 {dimension_numbers = #tpu.dot_dimension_numbers<[1], [0], [0], [1], [0, 0, 1, 1], [], []>} : vector<128x128xbf16>, vector<128x128xbf16>, vector<128x128xf32> -> vector<128x128xf32>
    %8 = arith.truncf %7 : vector<128x128xf32> to vector<128x128xbf16>
    %c256 = arith.constant 256 : index
    %c0_6 = arith.constant 0 : index
    %9 = vector.load %arg2[%c256, %c0_6] : memref<3456x128xbf16, #tpu.memory_space<vmem>>, vector<128x128xbf16>
    %cst_7 = arith.constant dense<0.000000e+00> : vector<128x128xf32>
    %10 = tpu.matmul %9, %2, %cst_7 {dimension_numbers = #tpu.dot_dimension_numbers<[1], [0], [0], [1], [0, 0, 1, 1], [], []>} : vector<128x128xbf16>, vector<128x128xbf16>, vector<128x128xf32> -> vector<128x128xf32>
    %11 = arith.truncf %10 : vector<128x128xf32> to vector<128x128xbf16>
    %12 = tpu.concatenate %5, %8, %11 in 1 : vector<128x128xbf16>, vector<128x128xbf16>, vector<128x128xbf16> -> vector<128x384xbf16>
    %c384 = arith.constant 384 : index
    %c0_8 = arith.constant 0 : index
    %13 = vector.load %arg2[%c384, %c0_8] : memref<3456x128xbf16, #tpu.memory_space<vmem>>, vector<384x128xbf16>
    %cst_9 = arith.constant dense<0.000000e+00> : vector<128x128xf32>
    %14 = tpu.matmul %12, %13, %cst_9 {dimension_numbers = #tpu.dot_dimension_numbers<[1], [0], [0], [1], [0, 0, 1, 1], [], []>} : vector<128x384xbf16>, vector<384x128xbf16>, vector<128x128xf32> -> vector<128x128xf32>
    %c768 = arith.constant 768 : index
    %c0_10 = arith.constant 0 : index
    %15 = vector.load %arg2[%c768, %c0_10] : memref<3456x128xbf16, #tpu.memory_space<vmem>>, vector<384x128xbf16>
    %cst_11 = arith.constant dense<0.000000e+00> : vector<128x128xf32>
    %16 = tpu.matmul %12, %15, %cst_11 {dimension_numbers = #tpu.dot_dimension_numbers<[1], [0], [0], [1], [0, 0, 1, 1], [], []>} : vector<128x384xbf16>, vector<384x128xbf16>, vector<128x128xf32> -> vector<128x128xf32>
    %17 = arith.maximumf %14, %16 : vector<128x128xf32>
    %18 = vector.extract_strided_slice %17 {offsets = [0, 0], sizes = [64, 128], strides = [1, 1]} : vector<128x128xf32> to vector<64x128xf32>
    %19 = vector.extract_strided_slice %17 {offsets = [64, 0], sizes = [64, 128], strides = [1, 1]} : vector<128x128xf32> to vector<64x128xf32>
    %20 = arith.maximumf %18, %19 : vector<64x128xf32>
    %c0_12 = arith.constant 0 : index
    %c0_13 = arith.constant 0 : index
    %21 = vector.load %arg3[%c0_12, %c0_13] : memref<64x128xf32, #tpu.memory_space<vmem>>, vector<1x128xf32>
    %22 = vector.broadcast %21 : vector<1x128xf32> to vector<64x128xf32>
    %23 = arith.addf %20, %22 : vector<64x128xf32>
    %cst_14 = arith.constant 5.000000e-01 : f32
    %24 = vector.broadcast %cst_14 : f32 to vector<64x128xf32>
    %25 = arith.mulf %24, %23 : vector<64x128xf32>
    %cst_15 = arith.constant 4.471500e-02 : f32
    %26 = vector.broadcast %cst_15 : f32 to vector<64x128xf32>
    %27 = arith.mulf %26, %23 : vector<64x128xf32>
    %28 = arith.mulf %27, %23 : vector<64x128xf32>
    %29 = arith.mulf %28, %23 : vector<64x128xf32>
    %30 = arith.addf %23, %29 : vector<64x128xf32>
    %cst_16 = arith.constant 0.797884583 : f32
    %31 = vector.broadcast %cst_16 : f32 to vector<64x128xf32>
    %32 = arith.mulf %31, %30 : vector<64x128xf32>
    %33 = math.tanh %32 : vector<64x128xf32>
    %cst_17 = arith.constant 1.000000e+00 : f32
    %34 = vector.broadcast %cst_17 : f32 to vector<64x128xf32>
    %35 = arith.addf %34, %33 : vector<64x128xf32>
    %36 = arith.mulf %25, %35 : vector<64x128xf32>
    %37 = arith.truncf %36 : vector<64x128xf32> to vector<64x128xbf16>
    %c1152 = arith.constant 1152 : index
    %c0_18 = arith.constant 0 : index
    %38 = vector.load %arg2[%c1152, %c0_18] : memref<3456x128xbf16, #tpu.memory_space<vmem>>, vector<64x64xbf16>
    %cst_19 = arith.constant dense<0.000000e+00> : vector<64x128xf32>
    %39 = tpu.matmul %38, %37, %cst_19 {dimension_numbers = #tpu.dot_dimension_numbers<[1], [0], [0], [1], [0, 0, 1, 1], [], []>} : vector<64x64xbf16>, vector<64x128xbf16>, vector<64x128xf32> -> vector<64x128xf32>
    %40 = arith.truncf %39 : vector<64x128xf32> to vector<64x128xbf16>
    %c1216 = arith.constant 1216 : index
    %c0_20 = arith.constant 0 : index
    %41 = vector.load %arg2[%c1216, %c0_20] : memref<3456x128xbf16, #tpu.memory_space<vmem>>, vector<64x64xbf16>
    %cst_21 = arith.constant dense<0.000000e+00> : vector<64x128xf32>
    %42 = tpu.matmul %41, %37, %cst_21 {dimension_numbers = #tpu.dot_dimension_numbers<[1], [0], [0], [1], [0, 0, 1, 1], [], []>} : vector<64x64xbf16>, vector<64x128xbf16>, vector<64x128xf32> -> vector<64x128xf32>
    %43 = arith.truncf %42 : vector<64x128xf32> to vector<64x128xbf16>
    %c1280 = arith.constant 1280 : index
    %c0_22 = arith.constant 0 : index
    %44 = vector.load %arg2[%c1280, %c0_22] : memref<3456x128xbf16, #tpu.memory_space<vmem>>, vector<64x64xbf16>
    %cst_23 = arith.constant dense<0.000000e+00> : vector<64x128xf32>
    %45 = tpu.matmul %44, %37, %cst_23 {dimension_numbers = #tpu.dot_dimension_numbers<[1], [0], [0], [1], [0, 0, 1, 1], [], []>} : vector<64x64xbf16>, vector<64x128xbf16>, vector<64x128xf32> -> vector<64x128xf32>
    %46 = arith.truncf %45 : vector<64x128xf32> to vector<64x128xbf16>
    %47 = tpu.concatenate %40, %43, %46 in 1 : vector<64x128xbf16>, vector<64x128xbf16>, vector<64x128xbf16> -> vector<64x384xbf16>
    %c1344 = arith.constant 1344 : index
    %c0_24 = arith.constant 0 : index
    %48 = vector.load %arg2[%c1344, %c0_24] : memref<3456x128xbf16, #tpu.memory_space<vmem>>, vector<384x64xbf16>
    %cst_25 = arith.constant dense<0.000000e+00> : vector<64x64xf32>
    %49 = tpu.matmul %47, %48, %cst_25 {dimension_numbers = #tpu.dot_dimension_numbers<[1], [0], [0], [1], [0, 0, 1, 1], [], []>} : vector<64x384xbf16>, vector<384x64xbf16>, vector<64x64xf32> -> vector<64x64xf32>
    %c1728 = arith.constant 1728 : index
    %c0_26 = arith.constant 0 : index
    %50 = vector.load %arg2[%c1728, %c0_26] : memref<3456x128xbf16, #tpu.memory_space<vmem>>, vector<384x64xbf16>
    %cst_27 = arith.constant dense<0.000000e+00> : vector<64x64xf32>
    %51 = tpu.matmul %47, %50, %cst_27 {dimension_numbers = #tpu.dot_dimension_numbers<[1], [0], [0], [1], [0, 0, 1, 1], [], []>} : vector<64x384xbf16>, vector<384x64xbf16>, vector<64x64xf32> -> vector<64x64xf32>
    %52 = arith.maximumf %49, %51 : vector<64x64xf32>
    %53 = vector.extract_strided_slice %52 {offsets = [0, 0], sizes = [32, 64], strides = [1, 1]} : vector<64x64xf32> to vector<32x64xf32>
    %54 = vector.extract_strided_slice %52 {offsets = [32, 0], sizes = [32, 64], strides = [1, 1]} : vector<64x64xf32> to vector<32x64xf32>
    %55 = arith.maximumf %53, %54 : vector<32x64xf32>
    %c8 = arith.constant 8 : index
    %c0_28 = arith.constant 0 : index
    %56 = vector.load %arg3[%c8, %c0_28] : memref<64x128xf32, #tpu.memory_space<vmem>>, vector<1x64xf32>
    %57 = vector.broadcast %56 : vector<1x64xf32> to vector<32x64xf32>
    %58 = arith.addf %55, %57 : vector<32x64xf32>
    %cst_29 = arith.constant 5.000000e-01 : f32
    %59 = vector.broadcast %cst_29 : f32 to vector<32x64xf32>
    %60 = arith.mulf %59, %58 : vector<32x64xf32>
    %cst_30 = arith.constant 4.471500e-02 : f32
    %61 = vector.broadcast %cst_30 : f32 to vector<32x64xf32>
    %62 = arith.mulf %61, %58 : vector<32x64xf32>
    %63 = arith.mulf %62, %58 : vector<32x64xf32>
    %64 = arith.mulf %63, %58 : vector<32x64xf32>
    %65 = arith.addf %58, %64 : vector<32x64xf32>
    %cst_31 = arith.constant 0.797884583 : f32
    %66 = vector.broadcast %cst_31 : f32 to vector<32x64xf32>
    %67 = arith.mulf %66, %65 : vector<32x64xf32>
    %68 = math.tanh %67 : vector<32x64xf32>
    %cst_32 = arith.constant 1.000000e+00 : f32
    %69 = vector.broadcast %cst_32 : f32 to vector<32x64xf32>
    %70 = arith.addf %69, %68 : vector<32x64xf32>
    %71 = arith.mulf %60, %70 : vector<32x64xf32>
    %72 = arith.truncf %71 : vector<32x64xf32> to vector<32x64xbf16>
    %c2112 = arith.constant 2112 : index
    %c0_33 = arith.constant 0 : index
    %73 = vector.load %arg2[%c2112, %c0_33] : memref<3456x128xbf16, #tpu.memory_space<vmem>>, vector<32x32xbf16>
    %cst_34 = arith.constant dense<0.000000e+00> : vector<32x64xf32>
    %74 = tpu.matmul %73, %72, %cst_34 {dimension_numbers = #tpu.dot_dimension_numbers<[1], [0], [0], [1], [0, 0, 1, 1], [], []>} : vector<32x32xbf16>, vector<32x64xbf16>, vector<32x64xf32> -> vector<32x64xf32>
    %75 = arith.truncf %74 : vector<32x64xf32> to vector<32x64xbf16>
    %c2144 = arith.constant 2144 : index
    %c0_35 = arith.constant 0 : index
    %76 = vector.load %arg2[%c2144, %c0_35] : memref<3456x128xbf16, #tpu.memory_space<vmem>>, vector<32x32xbf16>
    %cst_36 = arith.constant dense<0.000000e+00> : vector<32x64xf32>
    %77 = tpu.matmul %76, %72, %cst_36 {dimension_numbers = #tpu.dot_dimension_numbers<[1], [0], [0], [1], [0, 0, 1, 1], [], []>} : vector<32x32xbf16>, vector<32x64xbf16>, vector<32x64xf32> -> vector<32x64xf32>
    %78 = arith.truncf %77 : vector<32x64xf32> to vector<32x64xbf16>
    %c2176 = arith.constant 2176 : index
    %c0_37 = arith.constant 0 : index
    %79 = vector.load %arg2[%c2176, %c0_37] : memref<3456x128xbf16, #tpu.memory_space<vmem>>, vector<32x32xbf16>
    %cst_38 = arith.constant dense<0.000000e+00> : vector<32x64xf32>
    %80 = tpu.matmul %79, %72, %cst_38 {dimension_numbers = #tpu.dot_dimension_numbers<[1], [0], [0], [1], [0, 0, 1, 1], [], []>} : vector<32x32xbf16>, vector<32x64xbf16>, vector<32x64xf32> -> vector<32x64xf32>
    %81 = arith.truncf %80 : vector<32x64xf32> to vector<32x64xbf16>
    %c2208 = arith.constant 2208 : index
    %c0_39 = arith.constant 0 : index
    %82 = vector.load %arg2[%c2208, %c0_39] : memref<3456x128xbf16, #tpu.memory_space<vmem>>, vector<64x64xbf16>
    %cst_40 = arith.constant dense<0.000000e+00> : vector<32x64xf32>
    %83 = tpu.matmul %75, %82, %cst_40 {dimension_numbers = #tpu.dot_dimension_numbers<[1], [0], [0], [1], [0, 0, 1, 1], [], []>} : vector<32x64xbf16>, vector<64x64xbf16>, vector<32x64xf32> -> vector<32x64xf32>
    %c2272 = arith.constant 2272 : index
    %c0_41 = arith.constant 0 : index
    %84 = vector.load %arg2[%c2272, %c0_41] : memref<3456x128xbf16, #tpu.memory_space<vmem>>, vector<64x64xbf16>
    %cst_42 = arith.constant dense<0.000000e+00> : vector<32x64xf32>
    %85 = tpu.matmul %78, %84, %cst_42 {dimension_numbers = #tpu.dot_dimension_numbers<[1], [0], [0], [1], [0, 0, 1, 1], [], []>} : vector<32x64xbf16>, vector<64x64xbf16>, vector<32x64xf32> -> vector<32x64xf32>
    %86 = arith.addf %83, %85 : vector<32x64xf32>
    %c2336 = arith.constant 2336 : index
    %c0_43 = arith.constant 0 : index
    %87 = vector.load %arg2[%c2336, %c0_43] : memref<3456x128xbf16, #tpu.memory_space<vmem>>, vector<64x64xbf16>
    %cst_44 = arith.constant dense<0.000000e+00> : vector<32x64xf32>
    %88 = tpu.matmul %81, %87, %cst_44 {dimension_numbers = #tpu.dot_dimension_numbers<[1], [0], [0], [1], [0, 0, 1, 1], [], []>} : vector<32x64xbf16>, vector<64x64xbf16>, vector<32x64xf32> -> vector<32x64xf32>
    %89 = arith.addf %86, %88 : vector<32x64xf32>
    %c2400 = arith.constant 2400 : index
    %c0_45 = arith.constant 0 : index
    %90 = vector.load %arg2[%c2400, %c0_45] : memref<3456x128xbf16, #tpu.memory_space<vmem>>, vector<64x64xbf16>
    %cst_46 = arith.constant dense<0.000000e+00> : vector<32x64xf32>
    %91 = tpu.matmul %75, %90, %cst_46 {dimension_numbers = #tpu.dot_dimension_numbers<[1], [0], [0], [1], [0, 0, 1, 1], [], []>} : vector<32x64xbf16>, vector<64x64xbf16>, vector<32x64xf32> -> vector<32x64xf32>
    %c2464 = arith.constant 2464 : index
    %c0_47 = arith.constant 0 : index
    %92 = vector.load %arg2[%c2464, %c0_47] : memref<3456x128xbf16, #tpu.memory_space<vmem>>, vector<64x64xbf16>
    %cst_48 = arith.constant dense<0.000000e+00> : vector<32x64xf32>
    %93 = tpu.matmul %78, %92, %cst_48 {dimension_numbers = #tpu.dot_dimension_numbers<[1], [0], [0], [1], [0, 0, 1, 1], [], []>} : vector<32x64xbf16>, vector<64x64xbf16>, vector<32x64xf32> -> vector<32x64xf32>
    %94 = arith.addf %91, %93 : vector<32x64xf32>
    %c2528 = arith.constant 2528 : index
    %c0_49 = arith.constant 0 : index
    %95 = vector.load %arg2[%c2528, %c0_49] : memref<3456x128xbf16, #tpu.memory_space<vmem>>, vector<64x64xbf16>
    %cst_50 = arith.constant dense<0.000000e+00> : vector<32x64xf32>
    %96 = tpu.matmul %81, %95, %cst_50 {dimension_numbers = #tpu.dot_dimension_numbers<[1], [0], [0], [1], [0, 0, 1, 1], [], []>} : vector<32x64xbf16>, vector<64x64xbf16>, vector<32x64xf32> -> vector<32x64xf32>
    %97 = arith.addf %94, %96 : vector<32x64xf32>
    %98 = arith.maximumf %89, %97 : vector<32x64xf32>
    %99 = vector.extract_strided_slice %98 {offsets = [0, 0], sizes = [16, 64], strides = [1, 1]} : vector<32x64xf32> to vector<16x64xf32>
    %100 = vector.extract_strided_slice %98 {offsets = [16, 0], sizes = [16, 64], strides = [1, 1]} : vector<32x64xf32> to vector<16x64xf32>
    %101 = arith.maximumf %99, %100 : vector<16x64xf32>
    %c16 = arith.constant 16 : index
    %c0_51 = arith.constant 0 : index
    %102 = vector.load %arg3[%c16, %c0_51] : memref<64x128xf32, #tpu.memory_space<vmem>>, vector<1x64xf32>
    %103 = vector.broadcast %102 : vector<1x64xf32> to vector<16x64xf32>
    %104 = arith.addf %101, %103 : vector<16x64xf32>
    %cst_52 = arith.constant 5.000000e-01 : f32
    %105 = vector.broadcast %cst_52 : f32 to vector<16x64xf32>
    %106 = arith.mulf %105, %104 : vector<16x64xf32>
    %cst_53 = arith.constant 4.471500e-02 : f32
    %107 = vector.broadcast %cst_53 : f32 to vector<16x64xf32>
    %108 = arith.mulf %107, %104 : vector<16x64xf32>
    %109 = arith.mulf %108, %104 : vector<16x64xf32>
    %110 = arith.mulf %109, %104 : vector<16x64xf32>
    %111 = arith.addf %104, %110 : vector<16x64xf32>
    %cst_54 = arith.constant 0.797884583 : f32
    %112 = vector.broadcast %cst_54 : f32 to vector<16x64xf32>
    %113 = arith.mulf %112, %111 : vector<16x64xf32>
    %114 = math.tanh %113 : vector<16x64xf32>
    %cst_55 = arith.constant 1.000000e+00 : f32
    %115 = vector.broadcast %cst_55 : f32 to vector<16x64xf32>
    %116 = arith.addf %115, %114 : vector<16x64xf32>
    %117 = arith.mulf %106, %116 : vector<16x64xf32>
    %118 = arith.truncf %117 : vector<16x64xf32> to vector<16x64xbf16>
    %c2592 = arith.constant 2592 : index
    %c0_56 = arith.constant 0 : index
    %119 = vector.load %arg2[%c2592, %c0_56] : memref<3456x128xbf16, #tpu.memory_space<vmem>>, vector<16x16xbf16>
    %cst_57 = arith.constant dense<0.000000e+00> : vector<16x64xf32>
    %120 = tpu.matmul %119, %118, %cst_57 {dimension_numbers = #tpu.dot_dimension_numbers<[1], [0], [0], [1], [0, 0, 1, 1], [], []>} : vector<16x16xbf16>, vector<16x64xbf16>, vector<16x64xf32> -> vector<16x64xf32>
    %121 = arith.truncf %120 : vector<16x64xf32> to vector<16x64xbf16>
    %c2608 = arith.constant 2608 : index
    %c0_58 = arith.constant 0 : index
    %122 = vector.load %arg2[%c2608, %c0_58] : memref<3456x128xbf16, #tpu.memory_space<vmem>>, vector<16x16xbf16>
    %cst_59 = arith.constant dense<0.000000e+00> : vector<16x64xf32>
    %123 = tpu.matmul %122, %118, %cst_59 {dimension_numbers = #tpu.dot_dimension_numbers<[1], [0], [0], [1], [0, 0, 1, 1], [], []>} : vector<16x16xbf16>, vector<16x64xbf16>, vector<16x64xf32> -> vector<16x64xf32>
    %124 = arith.truncf %123 : vector<16x64xf32> to vector<16x64xbf16>
    %c2624 = arith.constant 2624 : index
    %c0_60 = arith.constant 0 : index
    %125 = vector.load %arg2[%c2624, %c0_60] : memref<3456x128xbf16, #tpu.memory_space<vmem>>, vector<16x16xbf16>
    %cst_61 = arith.constant dense<0.000000e+00> : vector<16x64xf32>
    %126 = tpu.matmul %125, %118, %cst_61 {dimension_numbers = #tpu.dot_dimension_numbers<[1], [0], [0], [1], [0, 0, 1, 1], [], []>} : vector<16x16xbf16>, vector<16x64xbf16>, vector<16x64xf32> -> vector<16x64xf32>
    %127 = arith.truncf %126 : vector<16x64xf32> to vector<16x64xbf16>
    %c2640 = arith.constant 2640 : index
    %c0_62 = arith.constant 0 : index
    %128 = vector.load %arg2[%c2640, %c0_62] : memref<3456x128xbf16, #tpu.memory_space<vmem>>, vector<64x32xbf16>
    %cst_63 = arith.constant dense<0.000000e+00> : vector<16x32xf32>
    %129 = tpu.matmul %121, %128, %cst_63 {dimension_numbers = #tpu.dot_dimension_numbers<[1], [0], [0], [1], [0, 0, 1, 1], [], []>} : vector<16x64xbf16>, vector<64x32xbf16>, vector<16x32xf32> -> vector<16x32xf32>
    %c2704 = arith.constant 2704 : index
    %c0_64 = arith.constant 0 : index
    %130 = vector.load %arg2[%c2704, %c0_64] : memref<3456x128xbf16, #tpu.memory_space<vmem>>, vector<64x32xbf16>
    %cst_65 = arith.constant dense<0.000000e+00> : vector<16x32xf32>
    %131 = tpu.matmul %124, %130, %cst_65 {dimension_numbers = #tpu.dot_dimension_numbers<[1], [0], [0], [1], [0, 0, 1, 1], [], []>} : vector<16x64xbf16>, vector<64x32xbf16>, vector<16x32xf32> -> vector<16x32xf32>
    %132 = arith.addf %129, %131 : vector<16x32xf32>
    %c2768 = arith.constant 2768 : index
    %c0_66 = arith.constant 0 : index
    %133 = vector.load %arg2[%c2768, %c0_66] : memref<3456x128xbf16, #tpu.memory_space<vmem>>, vector<64x32xbf16>
    %cst_67 = arith.constant dense<0.000000e+00> : vector<16x32xf32>
    %134 = tpu.matmul %127, %133, %cst_67 {dimension_numbers = #tpu.dot_dimension_numbers<[1], [0], [0], [1], [0, 0, 1, 1], [], []>} : vector<16x64xbf16>, vector<64x32xbf16>, vector<16x32xf32> -> vector<16x32xf32>
    %135 = arith.addf %132, %134 : vector<16x32xf32>
    %c2832 = arith.constant 2832 : index
    %c0_68 = arith.constant 0 : index
    %136 = vector.load %arg2[%c2832, %c0_68] : memref<3456x128xbf16, #tpu.memory_space<vmem>>, vector<64x32xbf16>
    %cst_69 = arith.constant dense<0.000000e+00> : vector<16x32xf32>
    %137 = tpu.matmul %121, %136, %cst_69 {dimension_numbers = #tpu.dot_dimension_numbers<[1], [0], [0], [1], [0, 0, 1, 1], [], []>} : vector<16x64xbf16>, vector<64x32xbf16>, vector<16x32xf32> -> vector<16x32xf32>
    %c2896 = arith.constant 2896 : index
    %c0_70 = arith.constant 0 : index
    %138 = vector.load %arg2[%c2896, %c0_70] : memref<3456x128xbf16, #tpu.memory_space<vmem>>, vector<64x32xbf16>
    %cst_71 = arith.constant dense<0.000000e+00> : vector<16x32xf32>
    %139 = tpu.matmul %124, %138, %cst_71 {dimension_numbers = #tpu.dot_dimension_numbers<[1], [0], [0], [1], [0, 0, 1, 1], [], []>} : vector<16x64xbf16>, vector<64x32xbf16>, vector<16x32xf32> -> vector<16x32xf32>
    %140 = arith.addf %137, %139 : vector<16x32xf32>
    %c2960 = arith.constant 2960 : index
    %c0_72 = arith.constant 0 : index
    %141 = vector.load %arg2[%c2960, %c0_72] : memref<3456x128xbf16, #tpu.memory_space<vmem>>, vector<64x32xbf16>
    %cst_73 = arith.constant dense<0.000000e+00> : vector<16x32xf32>
    %142 = tpu.matmul %127, %141, %cst_73 {dimension_numbers = #tpu.dot_dimension_numbers<[1], [0], [0], [1], [0, 0, 1, 1], [], []>} : vector<16x64xbf16>, vector<64x32xbf16>, vector<16x32xf32> -> vector<16x32xf32>
    %143 = arith.addf %140, %142 : vector<16x32xf32>
    %144 = arith.maximumf %135, %143 : vector<16x32xf32>
    %145 = vector.extract_strided_slice %144 {offsets = [0, 0], sizes = [8, 32], strides = [1, 1]} : vector<16x32xf32> to vector<8x32xf32>
    %146 = vector.extract_strided_slice %144 {offsets = [8, 0], sizes = [8, 32], strides = [1, 1]} : vector<16x32xf32> to vector<8x32xf32>
    %147 = arith.maximumf %145, %146 : vector<8x32xf32>
    %c24 = arith.constant 24 : index
    %c0_74 = arith.constant 0 : index
    %148 = vector.load %arg3[%c24, %c0_74] : memref<64x128xf32, #tpu.memory_space<vmem>>, vector<1x32xf32>
    %149 = vector.broadcast %148 : vector<1x32xf32> to vector<8x32xf32>
    %150 = arith.addf %147, %149 : vector<8x32xf32>
    %cst_75 = arith.constant 5.000000e-01 : f32
    %151 = vector.broadcast %cst_75 : f32 to vector<8x32xf32>
    %152 = arith.mulf %151, %150 : vector<8x32xf32>
    %cst_76 = arith.constant 4.471500e-02 : f32
    %153 = vector.broadcast %cst_76 : f32 to vector<8x32xf32>
    %154 = arith.mulf %153, %150 : vector<8x32xf32>
    %155 = arith.mulf %154, %150 : vector<8x32xf32>
    %156 = arith.mulf %155, %150 : vector<8x32xf32>
    %157 = arith.addf %150, %156 : vector<8x32xf32>
    %cst_77 = arith.constant 0.797884583 : f32
    %158 = vector.broadcast %cst_77 : f32 to vector<8x32xf32>
    %159 = arith.mulf %158, %157 : vector<8x32xf32>
    %160 = math.tanh %159 : vector<8x32xf32>
    %cst_78 = arith.constant 1.000000e+00 : f32
    %161 = vector.broadcast %cst_78 : f32 to vector<8x32xf32>
    %162 = arith.addf %161, %160 : vector<8x32xf32>
    %163 = arith.mulf %152, %162 : vector<8x32xf32>
    %164 = arith.truncf %163 : vector<8x32xf32> to vector<8x32xbf16>
    %c3024 = arith.constant 3024 : index
    %c0_79 = arith.constant 0 : index
    %165 = vector.load %arg2[%c3024, %c0_79] : memref<3456x128xbf16, #tpu.memory_space<vmem>>, vector<4x8xbf16>
    %cst_80 = arith.constant dense<0.000000e+00> : vector<4x32xf32>
    %166 = tpu.matmul %165, %164, %cst_80 {dimension_numbers = #tpu.dot_dimension_numbers<[1], [0], [0], [1], [0, 0, 1, 1], [], []>} : vector<4x8xbf16>, vector<8x32xbf16>, vector<4x32xf32> -> vector<4x32xf32>
    %167 = arith.truncf %166 : vector<4x32xf32> to vector<4x32xbf16>
    %c3040 = arith.constant 3040 : index
    %c0_81 = arith.constant 0 : index
    %168 = vector.load %arg2[%c3040, %c0_81] : memref<3456x128xbf16, #tpu.memory_space<vmem>>, vector<4x8xbf16>
    %cst_82 = arith.constant dense<0.000000e+00> : vector<4x32xf32>
    %169 = tpu.matmul %168, %164, %cst_82 {dimension_numbers = #tpu.dot_dimension_numbers<[1], [0], [0], [1], [0, 0, 1, 1], [], []>} : vector<4x8xbf16>, vector<8x32xbf16>, vector<4x32xf32> -> vector<4x32xf32>
    %170 = arith.truncf %169 : vector<4x32xf32> to vector<4x32xbf16>
    %c3056 = arith.constant 3056 : index
    %c0_83 = arith.constant 0 : index
    %171 = vector.load %arg2[%c3056, %c0_83] : memref<3456x128xbf16, #tpu.memory_space<vmem>>, vector<4x8xbf16>
    %cst_84 = arith.constant dense<0.000000e+00> : vector<4x32xf32>
    %172 = tpu.matmul %171, %164, %cst_84 {dimension_numbers = #tpu.dot_dimension_numbers<[1], [0], [0], [1], [0, 0, 1, 1], [], []>} : vector<4x8xbf16>, vector<8x32xbf16>, vector<4x32xf32> -> vector<4x32xf32>
    %173 = arith.truncf %172 : vector<4x32xf32> to vector<4x32xbf16>
    %c3120 = arith.constant 3120 : index
    %c0_85 = arith.constant 0 : index
    %174 = vector.load %arg2[%c3120, %c0_85] : memref<3456x128xbf16, #tpu.memory_space<vmem>>, vector<32x32xbf16>
    %cst_86 = arith.constant dense<0.000000e+00> : vector<4x32xf32>
    %175 = tpu.matmul %167, %174, %cst_86 {dimension_numbers = #tpu.dot_dimension_numbers<[1], [0], [0], [1], [0, 0, 1, 1], [], []>} : vector<4x32xbf16>, vector<32x32xbf16>, vector<4x32xf32> -> vector<4x32xf32>
    %c3152 = arith.constant 3152 : index
    %c0_87 = arith.constant 0 : index
    %176 = vector.load %arg2[%c3152, %c0_87] : memref<3456x128xbf16, #tpu.memory_space<vmem>>, vector<32x32xbf16>
    %cst_88 = arith.constant dense<0.000000e+00> : vector<4x32xf32>
    %177 = tpu.matmul %170, %176, %cst_88 {dimension_numbers = #tpu.dot_dimension_numbers<[1], [0], [0], [1], [0, 0, 1, 1], [], []>} : vector<4x32xbf16>, vector<32x32xbf16>, vector<4x32xf32> -> vector<4x32xf32>
    %178 = arith.addf %175, %177 : vector<4x32xf32>
    %c3184 = arith.constant 3184 : index
    %c0_89 = arith.constant 0 : index
    %179 = vector.load %arg2[%c3184, %c0_89] : memref<3456x128xbf16, #tpu.memory_space<vmem>>, vector<32x32xbf16>
    %cst_90 = arith.constant dense<0.000000e+00> : vector<4x32xf32>
    %180 = tpu.matmul %173, %179, %cst_90 {dimension_numbers = #tpu.dot_dimension_numbers<[1], [0], [0], [1], [0, 0, 1, 1], [], []>} : vector<4x32xbf16>, vector<32x32xbf16>, vector<4x32xf32> -> vector<4x32xf32>
    %181 = arith.addf %178, %180 : vector<4x32xf32>
    %c3216 = arith.constant 3216 : index
    %c0_91 = arith.constant 0 : index
    %182 = vector.load %arg2[%c3216, %c0_91] : memref<3456x128xbf16, #tpu.memory_space<vmem>>, vector<32x32xbf16>
    %cst_92 = arith.constant dense<0.000000e+00> : vector<4x32xf32>
    %183 = tpu.matmul %167, %182, %cst_92 {dimension_numbers = #tpu.dot_dimension_numbers<[1], [0], [0], [1], [0, 0, 1, 1], [], []>} : vector<4x32xbf16>, vector<32x32xbf16>, vector<4x32xf32> -> vector<4x32xf32>
    %c3248 = arith.constant 3248 : index
    %c0_93 = arith.constant 0 : index
    %184 = vector.load %arg2[%c3248, %c0_93] : memref<3456x128xbf16, #tpu.memory_space<vmem>>, vector<32x32xbf16>
    %cst_94 = arith.constant dense<0.000000e+00> : vector<4x32xf32>
    %185 = tpu.matmul %170, %184, %cst_94 {dimension_numbers = #tpu.dot_dimension_numbers<[1], [0], [0], [1], [0, 0, 1, 1], [], []>} : vector<4x32xbf16>, vector<32x32xbf16>, vector<4x32xf32> -> vector<4x32xf32>
    %186 = arith.addf %183, %185 : vector<4x32xf32>
    %c3280 = arith.constant 3280 : index
    %c0_95 = arith.constant 0 : index
    %187 = vector.load %arg2[%c3280, %c0_95] : memref<3456x128xbf16, #tpu.memory_space<vmem>>, vector<32x32xbf16>
    %cst_96 = arith.constant dense<0.000000e+00> : vector<4x32xf32>
    %188 = tpu.matmul %173, %187, %cst_96 {dimension_numbers = #tpu.dot_dimension_numbers<[1], [0], [0], [1], [0, 0, 1, 1], [], []>} : vector<4x32xbf16>, vector<32x32xbf16>, vector<4x32xf32> -> vector<4x32xf32>
    %189 = arith.addf %186, %188 : vector<4x32xf32>
    %190 = arith.maximumf %181, %189 : vector<4x32xf32>
    %c3072 = arith.constant 3072 : index
    %c0_97 = arith.constant 0 : index
    %191 = vector.load %arg2[%c3072, %c0_97] : memref<3456x128xbf16, #tpu.memory_space<vmem>>, vector<4x8xbf16>
    %cst_98 = arith.constant dense<0.000000e+00> : vector<4x32xf32>
    %192 = tpu.matmul %191, %164, %cst_98 {dimension_numbers = #tpu.dot_dimension_numbers<[1], [0], [0], [1], [0, 0, 1, 1], [], []>} : vector<4x8xbf16>, vector<8x32xbf16>, vector<4x32xf32> -> vector<4x32xf32>
    %193 = arith.truncf %192 : vector<4x32xf32> to vector<4x32xbf16>
    %c3088 = arith.constant 3088 : index
    %c0_99 = arith.constant 0 : index
    %194 = vector.load %arg2[%c3088, %c0_99] : memref<3456x128xbf16, #tpu.memory_space<vmem>>, vector<4x8xbf16>
    %cst_100 = arith.constant dense<0.000000e+00> : vector<4x32xf32>
    %195 = tpu.matmul %194, %164, %cst_100 {dimension_numbers = #tpu.dot_dimension_numbers<[1], [0], [0], [1], [0, 0, 1, 1], [], []>} : vector<4x8xbf16>, vector<8x32xbf16>, vector<4x32xf32> -> vector<4x32xf32>
    %196 = arith.truncf %195 : vector<4x32xf32> to vector<4x32xbf16>
    %c3104 = arith.constant 3104 : index
    %c0_101 = arith.constant 0 : index
    %197 = vector.load %arg2[%c3104, %c0_101] : memref<3456x128xbf16, #tpu.memory_space<vmem>>, vector<4x8xbf16>
    %cst_102 = arith.constant dense<0.000000e+00> : vector<4x32xf32>
    %198 = tpu.matmul %197, %164, %cst_102 {dimension_numbers = #tpu.dot_dimension_numbers<[1], [0], [0], [1], [0, 0, 1, 1], [], []>} : vector<4x8xbf16>, vector<8x32xbf16>, vector<4x32xf32> -> vector<4x32xf32>
    %199 = arith.truncf %198 : vector<4x32xf32> to vector<4x32xbf16>
    %c3120_103 = arith.constant 3120 : index
    %c0_104 = arith.constant 0 : index
    %200 = vector.load %arg2[%c3120_103, %c0_104] : memref<3456x128xbf16, #tpu.memory_space<vmem>>, vector<32x32xbf16>
    %cst_105 = arith.constant dense<0.000000e+00> : vector<4x32xf32>
    %201 = tpu.matmul %193, %200, %cst_105 {dimension_numbers = #tpu.dot_dimension_numbers<[1], [0], [0], [1], [0, 0, 1, 1], [], []>} : vector<4x32xbf16>, vector<32x32xbf16>, vector<4x32xf32> -> vector<4x32xf32>
    %c3152_106 = arith.constant 3152 : index
    %c0_107 = arith.constant 0 : index
    %202 = vector.load %arg2[%c3152_106, %c0_107] : memref<3456x128xbf16, #tpu.memory_space<vmem>>, vector<32x32xbf16>
    %cst_108 = arith.constant dense<0.000000e+00> : vector<4x32xf32>
    %203 = tpu.matmul %196, %202, %cst_108 {dimension_numbers = #tpu.dot_dimension_numbers<[1], [0], [0], [1], [0, 0, 1, 1], [], []>} : vector<4x32xbf16>, vector<32x32xbf16>, vector<4x32xf32> -> vector<4x32xf32>
    %204 = arith.addf %201, %203 : vector<4x32xf32>
    %c3184_109 = arith.constant 3184 : index
    %c0_110 = arith.constant 0 : index
    %205 = vector.load %arg2[%c3184_109, %c0_110] : memref<3456x128xbf16, #tpu.memory_space<vmem>>, vector<32x32xbf16>
    %cst_111 = arith.constant dense<0.000000e+00> : vector<4x32xf32>
    %206 = tpu.matmul %199, %205, %cst_111 {dimension_numbers = #tpu.dot_dimension_numbers<[1], [0], [0], [1], [0, 0, 1, 1], [], []>} : vector<4x32xbf16>, vector<32x32xbf16>, vector<4x32xf32> -> vector<4x32xf32>
    %207 = arith.addf %204, %206 : vector<4x32xf32>
    %c3216_112 = arith.constant 3216 : index
    %c0_113 = arith.constant 0 : index
    %208 = vector.load %arg2[%c3216_112, %c0_113] : memref<3456x128xbf16, #tpu.memory_space<vmem>>, vector<32x32xbf16>
    %cst_114 = arith.constant dense<0.000000e+00> : vector<4x32xf32>
    %209 = tpu.matmul %193, %208, %cst_114 {dimension_numbers = #tpu.dot_dimension_numbers<[1], [0], [0], [1], [0, 0, 1, 1], [], []>} : vector<4x32xbf16>, vector<32x32xbf16>, vector<4x32xf32> -> vector<4x32xf32>
    %c3248_115 = arith.constant 3248 : index
    %c0_116 = arith.constant 0 : index
    %210 = vector.load %arg2[%c3248_115, %c0_116] : memref<3456x128xbf16, #tpu.memory_space<vmem>>, vector<32x32xbf16>
    %cst_117 = arith.constant dense<0.000000e+00> : vector<4x32xf32>
    %211 = tpu.matmul %196, %210, %cst_117 {dimension_numbers = #tpu.dot_dimension_numbers<[1], [0], [0], [1], [0, 0, 1, 1], [], []>} : vector<4x32xbf16>, vector<32x32xbf16>, vector<4x32xf32> -> vector<4x32xf32>
    %212 = arith.addf %209, %211 : vector<4x32xf32>
    %c3280_118 = arith.constant 3280 : index
    %c0_119 = arith.constant 0 : index
    %213 = vector.load %arg2[%c3280_118, %c0_119] : memref<3456x128xbf16, #tpu.memory_space<vmem>>, vector<32x32xbf16>
    %cst_120 = arith.constant dense<0.000000e+00> : vector<4x32xf32>
    %214 = tpu.matmul %199, %213, %cst_120 {dimension_numbers = #tpu.dot_dimension_numbers<[1], [0], [0], [1], [0, 0, 1, 1], [], []>} : vector<4x32xbf16>, vector<32x32xbf16>, vector<4x32xf32> -> vector<4x32xf32>
    %215 = arith.addf %212, %214 : vector<4x32xf32>
    %216 = arith.maximumf %207, %215 : vector<4x32xf32>
    %217 = arith.maximumf %190, %216 : vector<4x32xf32>
    %c32 = arith.constant 32 : index
    %c0_121 = arith.constant 0 : index
    %218 = vector.load %arg3[%c32, %c0_121] : memref<64x128xf32, #tpu.memory_space<vmem>>, vector<1x32xf32>
    %219 = vector.broadcast %218 : vector<1x32xf32> to vector<4x32xf32>
    %220 = arith.addf %217, %219 : vector<4x32xf32>
    %cst_122 = arith.constant 5.000000e-01 : f32
    %221 = vector.broadcast %cst_122 : f32 to vector<4x32xf32>
    %222 = arith.mulf %221, %220 : vector<4x32xf32>
    %cst_123 = arith.constant 4.471500e-02 : f32
    %223 = vector.broadcast %cst_123 : f32 to vector<4x32xf32>
    %224 = arith.mulf %223, %220 : vector<4x32xf32>
    %225 = arith.mulf %224, %220 : vector<4x32xf32>
    %226 = arith.mulf %225, %220 : vector<4x32xf32>
    %227 = arith.addf %220, %226 : vector<4x32xf32>
    %cst_124 = arith.constant 0.797884583 : f32
    %228 = vector.broadcast %cst_124 : f32 to vector<4x32xf32>
    %229 = arith.mulf %228, %227 : vector<4x32xf32>
    %230 = math.tanh %229 : vector<4x32xf32>
    %cst_125 = arith.constant 1.000000e+00 : f32
    %231 = vector.broadcast %cst_125 : f32 to vector<4x32xf32>
    %232 = arith.addf %231, %230 : vector<4x32xf32>
    %233 = arith.mulf %222, %232 : vector<4x32xf32>
    %234 = arith.truncf %233 : vector<4x32xf32> to vector<4x32xbf16>
    %c3312 = arith.constant 3312 : index
    %c0_126 = arith.constant 0 : index
    %235 = vector.load %arg2[%c3312, %c0_126] : memref<3456x128xbf16, #tpu.memory_space<vmem>>, vector<2x4xbf16>
    %cst_127 = arith.constant dense<0.000000e+00> : vector<2x32xf32>
    %236 = tpu.matmul %235, %234, %cst_127 {dimension_numbers = #tpu.dot_dimension_numbers<[1], [0], [0], [1], [0, 0, 1, 1], [], []>} : vector<2x4xbf16>, vector<4x32xbf16>, vector<2x32xf32> -> vector<2x32xf32>
    %237 = arith.truncf %236 : vector<2x32xf32> to vector<2x32xbf16>
    %c3328 = arith.constant 3328 : index
    %c0_128 = arith.constant 0 : index
    %238 = vector.load %arg2[%c3328, %c0_128] : memref<3456x128xbf16, #tpu.memory_space<vmem>>, vector<32x32xbf16>
    %cst_129 = arith.constant dense<0.000000e+00> : vector<2x32xf32>
    %239 = tpu.matmul %237, %238, %cst_129 {dimension_numbers = #tpu.dot_dimension_numbers<[1], [0], [0], [1], [0, 0, 1, 1], [], []>} : vector<2x32xbf16>, vector<32x32xbf16>, vector<2x32xf32> -> vector<2x32xf32>
    %c3360 = arith.constant 3360 : index
    %c0_130 = arith.constant 0 : index
    %240 = vector.load %arg2[%c3360, %c0_130] : memref<3456x128xbf16, #tpu.memory_space<vmem>>, vector<2x4xbf16>
    %cst_131 = arith.constant dense<0.000000e+00> : vector<2x32xf32>
    %241 = tpu.matmul %240, %234, %cst_131 {dimension_numbers = #tpu.dot_dimension_numbers<[1], [0], [0], [1], [0, 0, 1, 1], [], []>} : vector<2x4xbf16>, vector<4x32xbf16>, vector<2x32xf32> -> vector<2x32xf32>
    %242 = arith.truncf %241 : vector<2x32xf32> to vector<2x32xbf16>
    %c3376 = arith.constant 3376 : index
    %c0_132 = arith.constant 0 : index
    %243 = vector.load %arg2[%c3376, %c0_132] : memref<3456x128xbf16, #tpu.memory_space<vmem>>, vector<32x32xbf16>
    %cst_133 = arith.constant dense<0.000000e+00> : vector<2x32xf32>
    %244 = tpu.matmul %242, %243, %cst_133 {dimension_numbers = #tpu.dot_dimension_numbers<[1], [0], [0], [1], [0, 0, 1, 1], [], []>} : vector<2x32xbf16>, vector<32x32xbf16>, vector<2x32xf32> -> vector<2x32xf32>
    %245 = arith.addf %239, %244 : vector<2x32xf32>
    %c40 = arith.constant 40 : index
    %c0_134 = arith.constant 0 : index
    %246 = vector.load %arg3[%c40, %c0_134] : memref<64x128xf32, #tpu.memory_space<vmem>>, vector<1x32xf32>
    %247 = vector.broadcast %246 : vector<1x32xf32> to vector<2x32xf32>
    %248 = arith.addf %245, %247 : vector<2x32xf32>
    %cst_135 = arith.constant 5.000000e-01 : f32
    %249 = vector.broadcast %cst_135 : f32 to vector<2x32xf32>
    %250 = arith.mulf %249, %248 : vector<2x32xf32>
    %cst_136 = arith.constant 4.471500e-02 : f32
    %251 = vector.broadcast %cst_136 : f32 to vector<2x32xf32>
    %252 = arith.mulf %251, %248 : vector<2x32xf32>
    %253 = arith.mulf %252, %248 : vector<2x32xf32>
    %254 = arith.mulf %253, %248 : vector<2x32xf32>
    %255 = arith.addf %248, %254 : vector<2x32xf32>
    %cst_137 = arith.constant 0.797884583 : f32
    %256 = vector.broadcast %cst_137 : f32 to vector<2x32xf32>
    %257 = arith.mulf %256, %255 : vector<2x32xf32>
    %258 = math.tanh %257 : vector<2x32xf32>
    %cst_138 = arith.constant 1.000000e+00 : f32
    %259 = vector.broadcast %cst_138 : f32 to vector<2x32xf32>
    %260 = arith.addf %259, %258 : vector<2x32xf32>
    %261 = arith.mulf %250, %260 : vector<2x32xf32>
    %262 = arith.truncf %261 : vector<2x32xf32> to vector<2x32xbf16>
    %c3408 = arith.constant 3408 : index
    %c0_139 = arith.constant 0 : index
    %263 = vector.load %arg2[%c3408, %c0_139] : memref<3456x128xbf16, #tpu.memory_space<vmem>>, vector<32x16xbf16>
    %cst_140 = arith.constant dense<0.000000e+00> : vector<2x16xf32>
    %264 = tpu.matmul %262, %263, %cst_140 {dimension_numbers = #tpu.dot_dimension_numbers<[1], [0], [0], [1], [0, 0, 1, 1], [], []>} : vector<2x32xbf16>, vector<32x16xbf16>, vector<2x16xf32> -> vector<2x16xf32>
    %c48 = arith.constant 48 : index
    %c0_141 = arith.constant 0 : index
    %265 = vector.load %arg3[%c48, %c0_141] : memref<64x128xf32, #tpu.memory_space<vmem>>, vector<1x16xf32>
    %266 = vector.broadcast %265 : vector<1x16xf32> to vector<2x16xf32>
    %267 = arith.addf %264, %266 : vector<2x16xf32>
    %cst_142 = arith.constant 5.000000e-01 : f32
    %268 = vector.broadcast %cst_142 : f32 to vector<2x16xf32>
    %269 = arith.mulf %268, %267 : vector<2x16xf32>
    %cst_143 = arith.constant 4.471500e-02 : f32
    %270 = vector.broadcast %cst_143 : f32 to vector<2x16xf32>
    %271 = arith.mulf %270, %267 : vector<2x16xf32>
    %272 = arith.mulf %271, %267 : vector<2x16xf32>
    %273 = arith.mulf %272, %267 : vector<2x16xf32>
    %274 = arith.addf %267, %273 : vector<2x16xf32>
    %cst_144 = arith.constant 0.797884583 : f32
    %275 = vector.broadcast %cst_144 : f32 to vector<2x16xf32>
    %276 = arith.mulf %275, %274 : vector<2x16xf32>
    %277 = math.tanh %276 : vector<2x16xf32>
    %cst_145 = arith.constant 1.000000e+00 : f32
    %278 = vector.broadcast %cst_145 : f32 to vector<2x16xf32>
    %279 = arith.addf %278, %277 : vector<2x16xf32>
    %280 = arith.mulf %269, %279 : vector<2x16xf32>
    %281 = arith.truncf %280 : vector<2x16xf32> to vector<2x16xbf16>
    %c3440 = arith.constant 3440 : index
    %c0_146 = arith.constant 0 : index
    %282 = vector.load %arg2[%c3440, %c0_146] : memref<3456x128xbf16, #tpu.memory_space<vmem>>, vector<16x1xbf16>
    %cst_147 = arith.constant dense<0.000000e+00> : vector<2x1xf32>
    %283 = tpu.matmul %281, %282, %cst_147 {dimension_numbers = #tpu.dot_dimension_numbers<[1], [0], [0], [1], [0, 0, 1, 1], [], []>} : vector<2x16xbf16>, vector<16x1xbf16>, vector<2x1xf32> -> vector<2x1xf32>
    %c56 = arith.constant 56 : index
    %c0_148 = arith.constant 0 : index
    %284 = vector.load %arg3[%c56, %c0_148] : memref<64x128xf32, #tpu.memory_space<vmem>>, vector<1x1xf32>
    %285 = vector.broadcast %284 : vector<1x1xf32> to vector<2x1xf32>
    %286 = arith.addf %283, %285 : vector<2x1xf32>
    %cst_149 = arith.constant 5.000000e-01 : f32
    %287 = vector.broadcast %cst_149 : f32 to vector<2x1xf32>
    %288 = arith.mulf %287, %286 : vector<2x1xf32>
    %289 = math.tanh %288 : vector<2x1xf32>
    %cst_150 = arith.constant 1.000000e+00 : f32
    %290 = vector.broadcast %cst_150 : f32 to vector<2x1xf32>
    %291 = arith.addf %289, %290 : vector<2x1xf32>
    %cst_151 = arith.constant 5.000000e-01 : f32
    %292 = vector.broadcast %cst_151 : f32 to vector<2x1xf32>
    %293 = arith.mulf %292, %291 : vector<2x1xf32>
    %c0_152 = arith.constant 0 : index
    %c0_153 = arith.constant 0 : index
    %c0_154 = arith.constant 0 : index
    %294 = vector.load %arg4[%c0_152, %c0_153, %c0_154] : memref<1x2x1xf32, #tpu.memory_space<vmem>>, vector<1x2x1xf32>
    %295 = vector.shape_cast %294 : vector<1x2x1xf32> to vector<2x1xf32>
    %296 = vector.shape_cast %293 : vector<2x1xf32> to vector<1x2x1xf32>
    tpu.vector_store %arg4[%c0_152, %c0_153, %c0_154], %296 {strides = array<i32>} : memref<1x2x1xf32, #tpu.memory_space<vmem>>, vector<1x2x1xf32>,
    return
  }
  func.func @transform_0(%arg0: i32) -> (i32, i32, i32) {
    %c0_i32 = arith.constant 0 : i32
    %c0_i32_0 = arith.constant 0 : i32
    %c0_i32_1 = arith.constant 0 : i32
    return %arg0, %c0_i32, %c0_i32_0 : i32, i32, i32
  }
  func.func @transform_1(%arg0: i32) -> (i32, i32) {
    %c0_i32 = arith.constant 0 : i32
    %c0_i32_0 = arith.constant 0 : i32
    %c0_i32_1 = arith.constant 0 : i32
    return %c0_i32, %c0_i32_0 : i32, i32
  }
  func.func @transform_2(%arg0: i32) -> (i32, i32) {
    %c0_i32 = arith.constant 0 : i32
    %c0_i32_0 = arith.constant 0 : i32
    %c0_i32_1 = arith.constant 0 : i32
    return %c0_i32, %c0_i32_0 : i32, i32
  }
  func.func @transform_3(%arg0: i32) -> (i32, i32, i32) {
    %c0_i32 = arith.constant 0 : i32
    %c0_i32_0 = arith.constant 0 : i32
    %c0_i32_1 = arith.constant 0 : i32
    return %arg0, %c0_i32, %c0_i32_0 : i32, i32, i32
  }
}

</mosaic_0001>

<llo_original>
// kernel: tile.53
$region0: #{tile.53}
  #allocation0 [shape = 's32[1]{0}', space=sflag, size = 0x4, scoped, tag = 'scoped memory for tile.53']
  %s0 = inlined_call_operand.vmem [shape: f32[8], index: 0, kind: input, shape index: {}]
  %s1 = inlined_call_operand.vmem [shape: f32[4,8], index: 1, kind: output, shape index: {}]
  // Predicated region
  $region2: #{tile.53} parent=0 // pred_check
    _
  $region3: #{tile.53} parent=0 // pred_check_branch
    %3 = sbr.rel (0) target = $region5
  $region4: #{tile.53} parent=0 // pred_region
    _
  $region5: #{tile.53} parent=0 // pred_fallthru
    _
  %v4 = vld [vmem:[%s0] ss:$0 sm:$0xff]
  %5 = vst [vmem:[%s1] sm:$0xf] %v4

// kernel: tile.54
$region0: #{tile.54}
  %s0 = inlined_call_operand.vmem [shape: f32[4,8], index: 0, kind: input, shape index: {}]
  %s1 = inlined_call_operand.vmem [shape: f32[1,32], index: 1, kind: output, shape index: {}]
  $region1: #{tile.54} parent=0
    #allocation0 [shape = 'u8[4096]{0}', space=vmem, size = 0x1000, scoped, tag = 'scoped mem for output reshape']
    #allocation1 [shape = 'u8[4096]{0}', space=vmem, size = 0x1000, scoped, tag = 'scoped mem for input reshape']
    %s3 = sshllo.u32 0, 4
    %v4 = vld [vmem:[%s0] sm:%s3]
    %5 = vst [vmem:[#allocation1] sm:%s3] %v4
    %v6 = vld [vmem:[#allocation1] sm:$0x1]
    %vm7 = vcmask 64512
    %8 = vst.msk [vmem:[#allocation0] sm:$0x1] %vm7, %v6
    %s9 = scalar_lea.vmem [#allocation1], 3
    %v10 = vld [vmem:[%s9] sm:$0x1]
    %11 = vrot.lane.b32.xlu0 %v10, 24
    %v12 = vpop.permute.xlu0 %11
    %vm13 = vcmask 261312
    %14 = vst.msk [vmem:[#allocation0] sm:$0x1] %vm13, %v12
    %s15 = scalar_lea.vmem [#allocation1], 2
    %v16 = vld [vmem:[%s15] sm:$0x1]
    %17 = vrot.lane.b32.xlu0 %v16, 16
    %v18 = vpop.permute.xlu0 %17
    %vm19 = vcmask 195712
    %20 = vst.msk [vmem:[#allocation0] sm:$0x1] %vm19, %v18
    %s21 = scalar_lea.vmem [#allocation1], 1
    %v22 = vld [vmem:[%s21] sm:$0x1]
    %23 = vrot.lane.b32.xlu0 %v22, 8
    %v24 = vpop.permute.xlu0 %23
    %vm25 = vcmask 130112
    %26 = vst.msk [vmem:[#allocation0] sm:$0x1] %vm25, %v24
    %s28 = sshllo.u32 0, 1
    %v30 = vld [vmem:[#allocation0] sm:%s28]
    %s31 = sshllo.u32 0, 1
    %32 = vst [vmem:[%s1] sm:%s31] %v30

// kernel: tile.58
$region0: #{tile.58}
  #allocation0 [shape = 's32[1]{0}', space=sflag, size = 0x4, scoped, tag = 'scoped memory for tile.58']
  %s0 = inlined_call_operand.vmem [shape: f32[8], index: 0, kind: input, shape index: {}]
  %s1 = inlined_call_operand.vmem [shape: f32[8,8], index: 1, kind: output, shape index: {}]
  // Predicated region
  $region2: #{tile.58} parent=0 // pred_check
    _
  $region3: #{tile.58} parent=0 // pred_check_branch
    %3 = sbr.rel (0) target = $region5
  $region4: #{tile.58} parent=0 // pred_region
    _
  $region5: #{tile.58} parent=0 // pred_fallthru
    _
  %v4 = vld [vmem:[%s0] ss:$0 sm:$0xff]
  %5 = vst [vmem:[%s1] sm:$0xff] %v4

// kernel: tile.59
$region0: #{tile.59}
  %s0 = inlined_call_operand.vmem [shape: f32[8,8], index: 0, kind: input, shape index: {}]
  %s1 = inlined_call_operand.vmem [shape: f32[1,64], index: 1, kind: output, shape index: {}]
  $region1: #{tile.59} parent=0
    #allocation0 [shape = 'u8[4096]{0}', space=vmem, size = 0x1000, scoped, tag = 'scoped mem for output reshape']
    %v2 = vld [vmem:[%s0] sm:$0x1]
    %vm3 = vcmask 64512
    %4 = vst.msk [vmem:[#allocation0] sm:$0x1] %vm3, %v2
    %s5 = scalar_lea.vmem %s0, 7
    %v6 = vld [vmem:[%s5] sm:$0x1]
    %7 = vrot.lane.b32.xlu0 %v6, 56
    %v8 = vpop.permute.xlu0 %7
    %vm9 = vcmask 523712
    %10 = vst.msk [vmem:[#allocation0] sm:$0x1] %vm9, %v8
    %s11 = scalar_lea.vmem %s0, 6
    %v12 = vld [vmem:[%s11] sm:$0x1]
    %13 = vrot.lane.b32.xlu0 %v12, 48
    %v14 = vpop.permute.xlu0 %13
    %vm15 = vcmask 458112
    %16 = vst.msk [vmem:[#allocation0] sm:$0x1] %vm15, %v14
    %s17 = scalar_lea.vmem %s0, 5
    %v18 = vld [vmem:[%s17] sm:$0x1]
    %19 = vrot.lane.b32.xlu0 %v18, 40
    %v20 = vpop.permute.xlu0 %19
    %vm21 = vcmask 392512
    %22 = vst.msk [vmem:[#allocation0] sm:$0x1] %vm21, %v20
    %s23 = scalar_lea.vmem %s0, 4
    %v24 = vld [vmem:[%s23] sm:$0x1]
    %25 = vrot.lane.b32.xlu0 %v24, 32
    %v26 = vpop.permute.xlu0 %25
    %vm27 = vcmask 326912
    %28 = vst.msk [vmem:[#allocation0] sm:$0x1] %vm27, %v26
    %s29 = scalar_lea.vmem %s0, 3
    %v30 = vld [vmem:[%s29] sm:$0x1]
    %31 = vrot.lane.b32.xlu0 %v30, 24
    %v32 = vpop.permute.xlu0 %31
    %vm33 = vcmask 261312
    %34 = vst.msk [vmem:[#allocation0] sm:$0x1] %vm33, %v32
    %s35 = scalar_lea.vmem %s0, 2
    %v36 = vld [vmem:[%s35] sm:$0x1]
    %37 = vrot.lane.b32.xlu0 %v36, 16
    %v38 = vpop.permute.xlu0 %37
    %vm39 = vcmask 195712
    %40 = vst.msk [vmem:[#allocation0] sm:$0x1] %vm39, %v38
    %s41 = scalar_lea.vmem %s0, 1
    %v42 = vld [vmem:[%s41] sm:$0x1]
    %43 = vrot.lane.b32.xlu0 %v42, 8
    %v44 = vpop.permute.xlu0 %43
    %vm45 = vcmask 130112
    %46 = vst.msk [vmem:[#allocation0] sm:$0x1] %vm45, %v44
    %s48 = sshllo.u32 0, 1
    %v50 = vld [vmem:[#allocation0] sm:%s48]
    %s51 = sshllo.u32 0, 1
    %52 = vst [vmem:[%s1] sm:%s51] %v50

// kernel: tile.63
$region0: #{tile.63}
  #allocation0 [shape = 's32[1]{0}', space=sflag, size = 0x4, scoped, tag = 'scoped memory for tile.63']
  %s0 = inlined_call_operand.vmem [shape: f32[4], index: 0, kind: input, shape index: {}]
  %s1 = inlined_call_operand.vmem [shape: f32[16,4], index: 1, kind: output, shape index: {}]
  // Predicated region
  $region2: #{tile.63} parent=0 // pred_check
    _
  $region3: #{tile.63} parent=0 // pred_check_branch
    %3 = sbr.rel (0) target = $region5
  $region4: #{tile.63} parent=0 // pred_region
    _
  $region5: #{tile.63} parent=0 // pred_fallthru
    _
  %v4 = vld [vmem:[%s0] ss:$0 sm:$0xff]
  %5 = vst [vmem:[%s1] sm:$0xff] %v4
  %s6 = scalar_lea.vmem %s1, 8
  %7 = vst [vmem:[%s6] sm:$0xff] %v4

// kernel: tile.64
$region0: #{tile.64}
  %s0 = inlined_call_operand.vmem [shape: f32[16,4], index: 0, kind: input, shape index: {}]
  %s1 = inlined_call_operand.vmem [shape: f32[1,64], index: 1, kind: output, shape index: {}]
  $region1: #{tile.64} parent=0
    #allocation0 [shape = 'u8[4096]{0}', space=vmem, size = 0x1000, scoped, tag = 'scoped mem for output reshape']
    %v2 = vld [vmem:[%s0] sm:$0x1]
    %vm3 = vcmask 31744
    %4 = vst.msk [vmem:[#allocation0] sm:$0x1] %vm3, %v2
    %s5 = scalar_lea.vmem %s0, 15
    %v6 = vld [vmem:[%s5] sm:$0x1]
    %7 = vrot.lane.b32.xlu0 %v6, 60
    %v8 = vpop.permute.xlu0 %7
    %vm9 = vcmask 523744
    %10 = vst.msk [vmem:[#allocation0] sm:$0x1] %vm9, %v8
    %s11 = scalar_lea.vmem %s0, 14
    %v12 = vld [vmem:[%s11] sm:$0x1]
    %13 = vrot.lane.b32.xlu0 %v12, 56
    %v14 = vpop.permute.xlu0 %13
    %vm15 = vcmask 490944
    %16 = vst.msk [vmem:[#allocation0] sm:$0x1] %vm15, %v14
    %s17 = scalar_lea.vmem %s0, 13
    %v18 = vld [vmem:[%s17] sm:$0x1]
    %19 = vrot.lane.b32.xlu0 %v18, 52
    %v20 = vpop.permute.xlu0 %19
    %vm21 = vcmask 458144
    %22 = vst.msk [vmem:[#allocation0] sm:$0x1] %vm21, %v20
    %s23 = scalar_lea.vmem %s0, 12
    %v24 = vld [vmem:[%s23] sm:$0x1]
    %25 = vrot.lane.b32.xlu0 %v24, 48
    %v26 = vpop.permute.xlu0 %25
    %vm27 = vcmask 425344
    %28 = vst.msk [vmem:[#allocation0] sm:$0x1] %vm27, %v26
    %s29 = scalar_lea.vmem %s0, 11
    %v30 = vld [vmem:[%s29] sm:$0x1]
    %31 = vrot.lane.b32.xlu0 %v30, 44
    %v32 = vpop.permute.xlu0 %31
    %vm33 = vcmask 392544
    %34 = vst.msk [vmem:[#allocation0] sm:$0x1] %vm33, %v32
    %s35 = scalar_lea.vmem %s0, 10
    %v36 = vld [vmem:[%s35] sm:$0x1]
    %37 = vrot.lane.b32.xlu0 %v36, 40
    %v38 = vpop.permute.xlu0 %37
    %vm39 = vcmask 359744
    %40 = vst.msk [vmem:[#allocation0] sm:$0x1] %vm39, %v38
    %s41 = scalar_lea.vmem %s0, 9
    %v42 = vld [vmem:[%s41] sm:$0x1]
    %43 = vrot.lane.b32.xlu0 %v42, 36
    %v44 = vpop.permute.xlu0 %43
    %vm45 = vcmask 326944
    %46 = vst.msk [vmem:[#allocation0] sm:$0x1] %vm45, %v44
    %s47 = scalar_lea.vmem %s0, 8
    %v48 = vld [vmem:[%s47] sm:$0x1]
    %49 = vrot.lane.b32.xlu0 %v48, 32
    %v50 = vpop.permute.xlu0 %49
    %vm51 = vcmask 294144
    %52 = vst.msk [vmem:[#allocation0] sm:$0x1] %vm51, %v50
    %s53 = scalar_lea.vmem %s0, 7
    %v54 = vld [vmem:[%s53] sm:$0x1]
    %55 = vrot.lane.b32.xlu0 %v54, 28
    %v56 = vpop.permute.xlu0 %55
    %vm57 = vcmask 261344
    %58 = vst.msk [vmem:[#allocation0] sm:$0x1] %vm57, %v56
    %s59 = scalar_lea.vmem %s0, 6
    %v60 = vld [vmem:[%s59] sm:$0x1]
    %61 = vrot.lane.b32.xlu0 %v60, 24
    %v62 = vpop.permute.xlu0 %61
    %vm63 = vcmask 228544
    %64 = vst.msk [vmem:[#allocation0] sm:$0x1] %vm63, %v62
    %s65 = scalar_lea.vmem %s0, 5
    %v66 = vld [vmem:[%s65] sm:$0x1]
    %67 = vrot.lane.b32.xlu0 %v66, 20
    %v68 = vpop.permute.xlu0 %67
    %vm69 = vcmask 195744
    %70 = vst.msk [vmem:[#allocation0] sm:$0x1] %vm69, %v68
    %s71 = scalar_lea.vmem %s0, 4
    %v72 = vld [vmem:[%s71] sm:$0x1]
    %73 = vrot.lane.b32.xlu0 %v72, 16
    %v74 = vpop.permute.xlu0 %73
    %vm75 = vcmask 162944
    %76 = vst.msk [vmem:[#allocation0] sm:$0x1] %vm75, %v74
    %s77 = scalar_lea.vmem %s0, 3
    %v78 = vld [vmem:[%s77] sm:$0x1]
    %79 = vrot.lane.b32.xlu0 %v78, 12
    %v80 = vpop.permute.xlu0 %79
    %vm81 = vcmask 130144
    %82 = vst.msk [vmem:[#allocation0] sm:$0x1] %vm81, %v80
    %s83 = scalar_lea.vmem %s0, 2
    %v84 = vld [vmem:[%s83] sm:$0x1]
    %85 = vrot.lane.b32.xlu0 %v84, 8
    %v86 = vpop.permute.xlu0 %85
    %vm87 = vcmask 97344
    %88 = vst.msk [vmem:[#allocation0] sm:$0x1] %vm87, %v86
    %s89 = scalar_lea.vmem %s0, 1
    %v90 = vld [vmem:[%s89] sm:$0x1]
    %91 = vrot.lane.b32.xlu0 %v90, 4
    %v92 = vpop.permute.xlu0 %91
    %vm93 = vcmask 64544
    %94 = vst.msk [vmem:[#allocation0] sm:$0x1] %vm93, %v92
    %s96 = sshllo.u32 0, 1
    %v98 = vld [vmem:[#allocation0] sm:%s96]
    %s99 = sshllo.u32 0, 1
    %100 = vst [vmem:[%s1] sm:%s99] %v98

// kernel: tile.68
$region0: #{tile.68}
  #allocation0 [shape = 's32[1]{0}', space=sflag, size = 0x4, scoped, tag = 'scoped memory for tile.68']
  %s0 = inlined_call_operand.vmem [shape: f32[4], index: 0, kind: input, shape index: {}]
  %s1 = inlined_call_operand.vmem [shape: f32[32,4], index: 1, kind: output, shape index: {}]
  // Predicated region
  $region2: #{tile.68} parent=0 // pred_check
    _
  $region3: #{tile.68} parent=0 // pred_check_branch
    %3 = sbr.rel (0) target = $region5
  $region4: #{tile.68} parent=0 // pred_region
    _
  $region5: #{tile.68} parent=0 // pred_fallthru
    _
  %v4 = vld [vmem:[%s0] ss:$0 sm:$0xff]
  %5 = vst [vmem:[%s1] sm:$0xff] %v4
  %s6 = scalar_lea.vmem %s1, 8
  %7 = vst [vmem:[%s6] sm:$0xff] %v4
  %s8 = scalar_lea.vmem %s1, 16
  %9 = vst [vmem:[%s8] sm:$0xff] %v4
  %s10 = scalar_lea.vmem %s1, 24
  %11 = vst [vmem:[%s10] sm:$0xff] %v4

// kernel: tile.69
$region0: #{tile.69}
  %s0 = inlined_call_operand.vmem [shape: f32[32,4], index: 0, kind: input, shape index: {}]
  %s1 = inlined_call_operand.vmem [shape: f32[1,128], index: 1, kind: output, shape index: {}]
  $region1: #{tile.69} parent=0
    #allocation0 [shape = 'u8[4096]{0}', space=vmem, size = 0x1000, scoped, tag = 'scoped mem for output reshape']
    %v2 = vld [vmem:[%s0] sm:$0x1]
    %vm3 = vcmask 31744
    %4 = vst.msk [vmem:[#allocation0] sm:$0x1] %vm3, %v2
    %s5 = scalar_lea.vmem %s0, 31
    %v6 = vld [vmem:[%s5] sm:$0x1]
    %7 = vrot.lane.b32.xlu0 %v6, 124
    %v8 = vpop.permute.xlu0 %7
    %vm9 = vcmask 1048544
    %10 = vst.msk [vmem:[#allocation0] sm:$0x1] %vm9, %v8
    %s11 = scalar_lea.vmem %s0, 30
    %v12 = vld [vmem:[%s11] sm:$0x1]
    %13 = vrot.lane.b32.xlu0 %v12, 120
    %v14 = vpop.permute.xlu0 %13
    %vm15 = vcmask 1015744
    %16 = vst.msk [vmem:[#allocation0] sm:$0x1] %vm15, %v14
    %s17 = scalar_lea.vmem %s0, 29
    %v18 = vld [vmem:[%s17] sm:$0x1]
    %19 = vrot.lane.b32.xlu0 %v18, 116
    %v20 = vpop.permute.xlu0 %19
    %vm21 = vcmask 982944
    %22 = vst.msk [vmem:[#allocation0] sm:$0x1] %vm21, %v20
    %s23 = scalar_lea.vmem %s0, 28
    %v24 = vld [vmem:[%s23] sm:$0x1]
    %25 = vrot.lane.b32.xlu0 %v24, 112
    %v26 = vpop.permute.xlu0 %25
    %vm27 = vcmask 950144
    %28 = vst.msk [vmem:[#allocation0] sm:$0x1] %vm27, %v26
    %s29 = scalar_lea.vmem %s0, 27
    %v30 = vld [vmem:[%s29] sm:$0x1]
    %31 = vrot.lane.b32.xlu0 %v30, 108
    %v32 = vpop.permute.xlu0 %31
    %vm33 = vcmask 917344
    %34 = vst.msk [vmem:[#allocation0] sm:$0x1] %vm33, %v32
    %s35 = scalar_lea.vmem %s0, 26
    %v36 = vld [vmem:[%s35] sm:$0x1]
    %37 = vrot.lane.b32.xlu0 %v36, 104
    %v38 = vpop.permute.xlu0 %37
    %vm39 = vcmask 884544
    %40 = vst.msk [vmem:[#allocation0] sm:$0x1] %vm39, %v38
    %s41 = scalar_lea.vmem %s0, 25
    %v42 = vld [vmem:[%s41] sm:$0x1]
    %43 = vrot.lane.b32.xlu0 %v42, 100
    %v44 = vpop.permute.xlu0 %43
    %vm45 = vcmask 851744
    %46 = vst.msk [vmem:[#allocation0] sm:$0x1] %vm45, %v44
    %s47 = scalar_lea.vmem %s0, 24
    %v48 = vld [vmem:[%s47] sm:$0x1]
    %49 = vrot.lane.b32.xlu0 %v48, 96
    %v50 = vpop.permute.xlu0 %49
    %vm51 = vcmask 818944
    %52 = vst.msk [vmem:[#allocation0] sm:$0x1] %vm51, %v50
    %s53 = scalar_lea.vmem %s0, 23
    %v54 = vld [vmem:[%s53] sm:$0x1]
    %55 = vrot.lane.b32.xlu0 %v54, 92
    %v56 = vpop.permute.xlu0 %55
    %vm57 = vcmask 786144
    %58 = vst.msk [vmem:[#allocation0] sm:$0x1] %vm57, %v56
    %s59 = scalar_lea.vmem %s0, 22
    %v60 = vld [vmem:[%s59] sm:$0x1]
    %61 = vrot.lane.b32.xlu0 %v60, 88
    %v62 = vpop.permute.xlu0 %61
    %vm63 = vcmask 753344
    %64 = vst.msk [vmem:[#allocation0] sm:$0x1] %vm63, %v62
    %s65 = scalar_lea.vmem %s0, 21
    %v66 = vld [vmem:[%s65] sm:$0x1]
    %67 = vrot.lane.b32.xlu0 %v66, 84
    %v68 = vpop.permute.xlu0 %67
    %vm69 = vcmask 720544
    %70 = vst.msk [vmem:[#allocation0] sm:$0x1] %vm69, %v68
    %s71 = scalar_lea.vmem %s0, 20
    %v72 = vld [vmem:[%s71] sm:$0x1]
    %73 = vrot.lane.b32.xlu0 %v72, 80
    %v74 = vpop.permute.xlu0 %73
    %vm75 = vcmask 687744
    %76 = vst.msk [vmem:[#allocation0] sm:$0x1] %vm75, %v74
    %s77 = scalar_lea.vmem %s0, 19
    %v78 = vld [vmem:[%s77] sm:$0x1]
    %79 = vrot.lane.b32.xlu0 %v78, 76
    %v80 = vpop.permute.xlu0 %79
    %vm81 = vcmask 654944
    %82 = vst.msk [vmem:[#allocation0] sm:$0x1] %vm81, %v80
    %s83 = scalar_lea.vmem %s0, 18
    %v84 = vld [vmem:[%s83] sm:$0x1]
    %85 = vrot.lane.b32.xlu0 %v84, 72
    %v86 = vpop.permute.xlu0 %85
    %vm87 = vcmask 622144
    %88 = vst.msk [vmem:[#allocation0] sm:$0x1] %vm87, %v86
    %s89 = scalar_lea.vmem %s0, 17
    %v90 = vld [vmem:[%s89] sm:$0x1]
    %91 = vrot.lane.b32.xlu0 %v90, 68
    %v92 = vpop.permute.xlu0 %91
    %vm93 = vcmask 589344
    %94 = vst.msk [vmem:[#allocation0] sm:$0x1] %vm93, %v92
    %s95 = scalar_lea.vmem %s0, 16
    %v96 = vld [vmem:[%s95] sm:$0x1]
    %97 = vrot.lane.b32.xlu0 %v96, 64
    %v98 = vpop.permute.xlu0 %97
    %vm99 = vcmask 556544
    %100 = vst.msk [vmem:[#allocation0] sm:$0x1] %vm99, %v98
    %s101 = scalar_lea.vmem %s0, 15
    %v102 = vld [vmem:[%s101] sm:$0x1]
    %103 = vrot.lane.b32.xlu0 %v102, 60
    %v104 = vpop.permute.xlu0 %103
    %vm105 = vcmask 523744
    %106 = vst.msk [vmem:[#allocation0] sm:$0x1] %vm105, %v104
    %s107 = scalar_lea.vmem %s0, 14
    %v108 = vld [vmem:[%s107] sm:$0x1]
    %109 = vrot.lane.b32.xlu0 %v108, 56
    %v110 = vpop.permute.xlu0 %109
    %vm111 = vcmask 490944
    %112 = vst.msk [vmem:[#allocation0] sm:$0x1] %vm111, %v110
    %s113 = scalar_lea.vmem %s0, 13
    %v114 = vld [vmem:[%s113] sm:$0x1]
    %115 = vrot.lane.b32.xlu0 %v114, 52
    %v116 = vpop.permute.xlu0 %115
    %vm117 = vcmask 458144
    %118 = vst.msk [vmem:[#allocation0] sm:$0x1] %vm117, %v116
    %s119 = scalar_lea.vmem %s0, 12
    %v120 = vld [vmem:[%s119] sm:$0x1]
    %121 = vrot.lane.b32.xlu0 %v120, 48
    %v122 = vpop.permute.xlu0 %121
    %vm123 = vcmask 425344
    %124 = vst.msk [vmem:[#allocation0] sm:$0x1] %vm123, %v122
    %s125 = scalar_lea.vmem %s0, 11
    %v126 = vld [vmem:[%s125] sm:$0x1]
    %127 = vrot.lane.b32.xlu0 %v126, 44
    %v128 = vpop.permute.xlu0 %127
    %vm129 = vcmask 392544
    %130 = vst.msk [vmem:[#allocation0] sm:$0x1] %vm129, %v128
    %s131 = scalar_lea.vmem %s0, 10
    %v132 = vld [vmem:[%s131] sm:$0x1]
    %133 = vrot.lane.b32.xlu0 %v132, 40
    %v134 = vpop.permute.xlu0 %133
    %vm135 = vcmask 359744
    %136 = vst.msk [vmem:[#allocation0] sm:$0x1] %vm135, %v134
    %s137 = scalar_lea.vmem %s0, 9
    %v138 = vld [vmem:[%s137] sm:$0x1]
    %139 = vrot.lane.b32.xlu0 %v138, 36
    %v140 = vpop.permute.xlu0 %139
    %vm141 = vcmask 326944
    %142 = vst.msk [vmem:[#allocation0] sm:$0x1] %vm141, %v140
    %s143 = scalar_lea.vmem %s0, 8
    %v144 = vld [vmem:[%s143] sm:$0x1]
    %145 = vrot.lane.b32.xlu0 %v144, 32
    %v146 = vpop.permute.xlu0 %145
    %vm147 = vcmask 294144
    %148 = vst.msk [vmem:[#allocation0] sm:$0x1] %vm147, %v146
    %s149 = scalar_lea.vmem %s0, 7
    %v150 = vld [vmem:[%s149] sm:$0x1]
    %151 = vrot.lane.b32.xlu0 %v150, 28
    %v152 = vpop.permute.xlu0 %151
    %vm153 = vcmask 261344
    %154 = vst.msk [vmem:[#allocation0] sm:$0x1] %vm153, %v152
    %s155 = scalar_lea.vmem %s0, 6
    %v156 = vld [vmem:[%s155] sm:$0x1]
    %157 = vrot.lane.b32.xlu0 %v156, 24
    %v158 = vpop.permute.xlu0 %157
    %vm159 = vcmask 228544
    %160 = vst.msk [vmem:[#allocation0] sm:$0x1] %vm159, %v158
    %s161 = scalar_lea.vmem %s0, 5
    %v162 = vld [vmem:[%s161] sm:$0x1]
    %163 = vrot.lane.b32.xlu0 %v162, 20
    %v164 = vpop.permute.xlu0 %163
    %vm165 = vcmask 195744
    %166 = vst.msk [vmem:[#allocation0] sm:$0x1] %vm165, %v164
    %s167 = scalar_lea.vmem %s0, 4
    %v168 = vld [vmem:[%s167] sm:$0x1]
    %169 = vrot.lane.b32.xlu0 %v168, 16
    %v170 = vpop.permute.xlu0 %169
    %vm171 = vcmask 162944
    %172 = vst.msk [vmem:[#allocation0] sm:$0x1] %vm171, %v170
    %s173 = scalar_lea.vmem %s0, 3
    %v174 = vld [vmem:[%s173] sm:$0x1]
    %175 = vrot.lane.b32.xlu0 %v174, 12
    %v176 = vpop.permute.xlu0 %175
    %vm177 = vcmask 130144
    %178 = vst.msk [vmem:[#allocation0] sm:$0x1] %vm177, %v176
    %s179 = scalar_lea.vmem %s0, 2
    %v180 = vld [vmem:[%s179] sm:$0x1]
    %181 = vrot.lane.b32.xlu0 %v180, 8
    %v182 = vpop.permute.xlu0 %181
    %vm183 = vcmask 97344
    %184 = vst.msk [vmem:[#allocation0] sm:$0x1] %vm183, %v182
    %s185 = scalar_lea.vmem %s0, 1
    %v186 = vld [vmem:[%s185] sm:$0x1]
    %187 = vrot.lane.b32.xlu0 %v186, 4
    %v188 = vpop.permute.xlu0 %187
    %vm189 = vcmask 64544
    %190 = vst.msk [vmem:[#allocation0] sm:$0x1] %vm189, %v188
    %s192 = sshllo.u32 0, 1
    %v194 = vld [vmem:[#allocation0] sm:%s192]
    %s195 = sshllo.u32 0, 1
    %196 = vst [vmem:[%s1] sm:%s195] %v194

// kernel: tile.73
$region0: #{tile.73}
  #allocation0 [shape = 's32[1]{0}', space=sflag, size = 0x4, scoped, tag = 'scoped memory for tile.73']
  %s0 = inlined_call_operand.vmem [shape: f32[2], index: 0, kind: input, shape index: {}]
  %s1 = inlined_call_operand.vmem [shape: f32[64,2], index: 1, kind: output, shape index: {}]
  // Predicated region
  $region2: #{tile.73} parent=0 // pred_check
    _
  $region3: #{tile.73} parent=0 // pred_check_branch
    %3 = sbr.rel (0) target = $region5
  $region4: #{tile.73} parent=0 // pred_region
    _
  $region5: #{tile.73} parent=0 // pred_fallthru
    _
  %v4 = vld [vmem:[%s0] ss:$0 sm:$0xff]
  %5 = vst [vmem:[%s1] sm:$0xff] %v4
  %s6 = scalar_lea.vmem %s1, 8
  %7 = vst [vmem:[%s6] sm:$0xff] %v4
  %s8 = scalar_lea.vmem %s1, 16
  %9 = vst [vmem:[%s8] sm:$0xff] %v4
  %s10 = scalar_lea.vmem %s1, 24
  %11 = vst [vmem:[%s10] sm:$0xff] %v4
  %s12 = scalar_lea.vmem %s1, 32
  %13 = vst [vmem:[%s12] sm:$0xff] %v4
  %s14 = scalar_lea.vmem %s1, 40
  %15 = vst [vmem:[%s14] sm:$0xff] %v4
  %s16 = scalar_lea.vmem %s1, 48
  %17 = vst [vmem:[%s16] sm:$0xff] %v4
  %s18 = scalar_lea.vmem %s1, 56
  %19 = vst [vmem:[%s18] sm:$0xff] %v4

// kernel: tile.74
$region0: #{tile.74}
  %s0 = inlined_call_operand.vmem [shape: f32[64,2], index: 0, kind: input, shape index: {}]
  %s1 = inlined_call_operand.vmem [shape: f32[1,128], index: 1, kind: output, shape index: {}]
  $region1: #{tile.74} parent=0
    #allocation0 [shape = 'u8[4096]{0}', space=vmem, size = 0x1000, scoped, tag = 'scoped mem for output reshape']
    %v2 = vld [vmem:[%s0] sm:$0x1]
    %vm3 = vcmask 15360
    %4 = vst.msk [vmem:[#allocation0] sm:$0x1] %vm3, %v2
    %s5 = scalar_lea.vmem %s0, 63
    %v6 = vld [vmem:[%s5] sm:$0x1]
    %7 = vrot.lane.b32.xlu0 %v6, 126
    %v8 = vpop.permute.xlu0 %7
    %vm9 = vcmask 1048560
    %10 = vst.msk [vmem:[#allocation0] sm:$0x1] %vm9, %v8
    %s11 = scalar_lea.vmem %s0, 62
    %v12 = vld [vmem:[%s11] sm:$0x1]
    %13 = vrot.lane.b32.xlu0 %v12, 124
    %v14 = vpop.permute.xlu0 %13
    %vm15 = vcmask 1032160
    %16 = vst.msk [vmem:[#allocation0] sm:$0x1] %vm15, %v14
    %s17 = scalar_lea.vmem %s0, 61
    %v18 = vld [vmem:[%s17] sm:$0x1]
    %19 = vrot.lane.b32.xlu0 %v18, 122
    %v20 = vpop.permute.xlu0 %19
    %vm21 = vcmask 1015760
    %22 = vst.msk [vmem:[#allocation0] sm:$0x1] %vm21, %v20
    %s23 = scalar_lea.vmem %s0, 60
    %v24 = vld [vmem:[%s23] sm:$0x1]
    %25 = vrot.lane.b32.xlu0 %v24, 120
    %v26 = vpop.permute.xlu0 %25
    %vm27 = vcmask 999360
    %28 = vst.msk [vmem:[#allocation0] sm:$0x1] %vm27, %v26
    %s29 = scalar_lea.vmem %s0, 59
    %v30 = vld [vmem:[%s29] sm:$0x1]
    %31 = vrot.lane.b32.xlu0 %v30, 118
    %v32 = vpop.permute.xlu0 %31
    %vm33 = vcmask 982960
    %34 = vst.msk [vmem:[#allocation0] sm:$0x1] %vm33, %v32
    %s35 = scalar_lea.vmem %s0, 58
    %v36 = vld [vmem:[%s35] sm:$0x1]
    %37 = vrot.lane.b32.xlu0 %v36, 116
    %v38 = vpop.permute.xlu0 %37
    %vm39 = vcmask 966560
    %40 = vst.msk [vmem:[#allocation0] sm:$0x1] %vm39, %v38
    %s41 = scalar_lea.vmem %s0, 57
    %v42 = vld [vmem:[%s41] sm:$0x1]
    %43 = vrot.lane.b32.xlu0 %v42, 114
    %v44 = vpop.permute.xlu0 %43
    %vm45 = vcmask 950160
    %46 = vst.msk [vmem:[#allocation0] sm:$0x1] %vm45, %v44
    %s47 = scalar_lea.vmem %s0, 56
    %v48 = vld [vmem:[%s47] sm:$0x1]
    %49 = vrot.lane.b32.xlu0 %v48, 112
    %v50 = vpop.permute.xlu0 %49
    %vm51 = vcmask 933760
    %52 = vst.msk [vmem:[#allocation0] sm:$0x1] %vm51, %v50
    %s53 = scalar_lea.vmem %s0, 55
    %v54 = vld [vmem:[%s53] sm:$0x1]
    %55 = vrot.lane.b32.xlu0 %v54, 110
    %v56 = vpop.permute.xlu0 %55
    %vm57 = vcmask 917360
    %58 = vst.msk [vmem:[#allocation0] sm:$0x1] %vm57, %v56
    %s59 = scalar_lea.vmem %s0, 54
    %v60 = vld [vmem:[%s59] sm:$0x1]
    %61 = vrot.lane.b32.xlu0 %v60, 108
    %v62 = vpop.permute.xlu0 %61
    %vm63 = vcmask 900960
    %64 = vst.msk [vmem:[#allocation0] sm:$0x1] %vm63, %v62
    %s65 = scalar_lea.vmem %s0, 53
    %v66 = vld [vmem:[%s65] sm:$0x1]
    %67 = vrot.lane.b32.xlu0 %v66, 106
    %v68 = vpop.permute.xlu0 %67
    %vm69 = vcmask 884560
    %70 = vst.msk [vmem:[#allocation0] sm:$0x1] %vm69, %v68
    %s71 = scalar_lea.vmem %s0, 52
    %v72 = vld [vmem:[%s71] sm:$0x1]
    %73 = vrot.lane.b32.xlu0 %v72, 104
    %v74 = vpop.permute.xlu0 %73
    %vm75 = vcmask 868160
    %76 = vst.msk [vmem:[#allocation0] sm:$0x1] %vm75, %v74
    %s77 = scalar_lea.vmem %s0, 51
    %v78 = vld [vmem:[%s77] sm:$0x1]
    %79 = vrot.lane.b32.xlu0 %v78, 102
    %v80 = vpop.permute.xlu0 %79
    %vm81 = vcmask 851760
    %82 = vst.msk [vmem:[#allocation0] sm:$0x1] %vm81, %v80
    %s83 = scalar_lea.vmem %s0, 50
    %v84 = vld [vmem:[%s83] sm:$0x1]
    %85 = vrot.lane.b32.xlu0 %v84, 100
    %v86 = vpop.permute.xlu0 %85
    %vm87 = vcmask 835360
    %88 = vst.msk [vmem:[#allocation0] sm:$0x1] %vm87, %v86
    %s89 = scalar_lea.vmem %s0, 49
    %v90 = vld [vmem:[%s89] sm:$0x1]
    %91 = vrot.lane.b32.xlu0 %v90, 98
    %v92 = vpop.permute.xlu0 %91
    %vm93 = vcmask 818960
    %94 = vst.msk [vmem:[#allocation0] sm:$0x1] %vm93, %v92
    %s95 = scalar_lea.vmem %s0, 48
    %v96 = vld [vmem:[%s95] sm:$0x1]
    %97 = vrot.lane.b32.xlu0 %v96, 96
    %v98 = vpop.permute.xlu0 %97
    %vm99 = vcmask 802560
    %100 = vst.msk [vmem:[#allocation0] sm:$0x1] %vm99, %v98
    %s101 = scalar_lea.vmem %s0, 47
    %v102 = vld [vmem:[%s101] sm:$0x1]
    %103 = vrot.lane.b32.xlu0 %v102, 94
    %v104 = vpop.permute.xlu0 %103
    %vm105 = vcmask 786160
    %106 = vst.msk [vmem:[#allocation0] sm:$0x1] %vm105, %v104
    %s107 = scalar_lea.vmem %s0, 46
    %v108 = vld [vmem:[%s107] sm:$0x1]
    %109 = vrot.lane.b32.xlu0 %v108, 92
    %v110 = vpop.permute.xlu0 %109
    %vm111 = vcmask 769760
    %112 = vst.msk [vmem:[#allocation0] sm:$0x1] %vm111, %v110
    %s113 = scalar_lea.vmem %s0, 45
    %v114 = vld [vmem:[%s113] sm:$0x1]
    %115 = vrot.lane.b32.xlu0 %v114, 90
    %v116 = vpop.permute.xlu0 %115
    %vm117 = vcmask 753360
    %118 = vst.msk [vmem:[#allocation0] sm:$0x1] %vm117, %v116
    %s119 = scalar_lea.vmem %s0, 44
    %v120 = vld [vmem:[%s119] sm:$0x1]
    %121 = vrot.lane.b32.xlu0 %v120, 88
    %v122 = vpop.permute.xlu0 %121
    %vm123 = vcmask 736960
    %124 = vst.msk [vmem:[#allocation0] sm:$0x1] %vm123, %v122
    %s125 = scalar_lea.vmem %s0, 43
    %v126 = vld [vmem:[%s125] sm:$0x1]
    %127 = vrot.lane.b32.xlu0 %v126, 86
    %v128 = vpop.permute.xlu0 %127
    %vm129 = vcmask 720560
    %130 = vst.msk [vmem:[#allocation0] sm:$0x1] %vm129, %v128
    %s131 = scalar_lea.vmem %s0, 42
    %v132 = vld [vmem:[%s131] sm:$0x1]
    %133 = vrot.lane.b32.xlu0 %v132, 84
    %v134 = vpop.permute.xlu0 %133
    %vm135 = vcmask 704160
    %136 = vst.msk [vmem:[#allocation0] sm:$0x1] %vm135, %v134
    %s137 = scalar_lea.vmem %s0, 41
    %v138 = vld [vmem:[%s137] sm:$0x1]
    %139 = vrot.lane.b32.xlu0 %v138, 82
    %v140 = vpop.permute.xlu0 %139
    %vm141 = vcmask 687760
    %142 = vst.msk [vmem:[#allocation0] sm:$0x1] %vm141, %v140
    %s143 = scalar_lea.vmem %s0, 40
    %v144 = vld [vmem:[%s143] sm:$0x1]
    %145 = vrot.lane.b32.xlu0 %v144, 80
    %v146 = vpop.permute.xlu0 %145
    %vm147 = vcmask 671360
    %148 = vst.msk [vmem:[#allocation0] sm:$0x1] %vm147, %v146
    %s149 = scalar_lea.vmem %s0, 39
    %v150 = vld [vmem:[%s149] sm:$0x1]
    %151 = vrot.lane.b32.xlu0 %v150, 78
    %v152 = vpop.permute.xlu0 %151
    %vm153 = vcmask 654960
    %154 = vst.msk [vmem:[#allocation0] sm:$0x1] %vm153, %v152
    %s155 = scalar_lea.vmem %s0, 38
    %v156 = vld [vmem:[%s155] sm:$0x1]
    %157 = vrot.lane.b32.xlu0 %v156, 76
    %v158 = vpop.permute.xlu0 %157
    %vm159 = vcmask 638560
    %160 = vst.msk [vmem:[#allocation0] sm:$0x1] %vm159, %v158
    %s161 = scalar_lea.vmem %s0, 37
    %v162 = vld [vmem:[%s161] sm:$0x1]
    %163 = vrot.lane.b32.xlu0 %v162, 74
    %v164 = vpop.permute.xlu0 %163
    %vm165 = vcmask 622160
    %166 = vst.msk [vmem:[#allocation0] sm:$0x1] %vm165, %v164
    %s167 = scalar_lea.vmem %s0, 36
    %v168 = vld [vmem:[%s167] sm:$0x1]
    %169 = vrot.lane.b32.xlu0 %v168, 72
    %v170 = vpop.permute.xlu0 %169
    %vm171 = vcmask 605760
    %172 = vst.msk [vmem:[#allocation0] sm:$0x1] %vm171, %v170
    %s173 = scalar_lea.vmem %s0, 35
    %v174 = vld [vmem:[%s173] sm:$0x1]
    %175 = vrot.lane.b32.xlu0 %v174, 70
    %v176 = vpop.permute.xlu0 %175
    %vm177 = vcmask 589360
    %178 = vst.msk [vmem:[#allocation0] sm:$0x1] %vm177, %v176
    %s179 = scalar_lea.vmem %s0, 34
    %v180 = vld [vmem:[%s179] sm:$0x1]
    %181 = vrot.lane.b32.xlu0 %v180, 68
    %v182 = vpop.permute.xlu0 %181
    %vm183 = vcmask 572960
    %184 = vst.msk [vmem:[#allocation0] sm:$0x1] %vm183, %v182
    %s185 = scalar_lea.vmem %s0, 33
    %v186 = vld [vmem:[%s185] sm:$0x1]
    %187 = vrot.lane.b32.xlu0 %v186, 66
    %v188 = vpop.permute.xlu0 %187
    %vm189 = vcmask 556560
    %190 = vst.msk [vmem:[#allocation0] sm:$0x1] %vm189, %v188
    %s191 = scalar_lea.vmem %s0, 32
    %v192 = vld [vmem:[%s191] sm:$0x1]
    %193 = vrot.lane.b32.xlu0 %v192, 64
    %v194 = vpop.permute.xlu0 %193
    %vm195 = vcmask 540160
    %196 = vst.msk [vmem:[#allocation0] sm:$0x1] %vm195, %v194
    %s197 = scalar_lea.vmem %s0, 31
    %v198 = vld [vmem:[%s197] sm:$0x1]
    %199 = vrot.lane.b32.xlu0 %v198, 62
    %v200 = vpop.permute.xlu0 %199
    %vm201 = vcmask 523760
    %202 = vst.msk [vmem:[#allocation0] sm:$0x1] %vm201, %v200
    %s203 = scalar_lea.vmem %s0, 30
    %v204 = vld [vmem:[%s203] sm:$0x1]
    %205 = vrot.lane.b32.xlu0 %v204, 60
    %v206 = vpop.permute.xlu0 %205
    %vm207 = vcmask 507360
    %208 = vst.msk [vmem:[#allocation0] sm:$0x1] %vm207, %v206
    %s209 = scalar_lea.vmem %s0, 29
    %v210 = vld [vmem:[%s209] sm:$0x1]
    %211 = vrot.lane.b32.xlu0 %v210, 58
    %v212 = vpop.permute.xlu0 %211
    %vm213 = vcmask 490960
    %214 = vst.msk [vmem:[#allocation0] sm:$0x1] %vm213, %v212
    %s215 = scalar_lea.vmem %s0, 28
    %v216 = vld [vmem:[%s215] sm:$0x1]
    %217 = vrot.lane.b32.xlu0 %v216, 56
    %v218 = vpop.permute.xlu0 %217
    %vm219 = vcmask 474560
    %220 = vst.msk [vmem:[#allocation0] sm:$0x1] %vm219, %v218
    %s221 = scalar_lea.vmem %s0, 27
    %v222 = vld [vmem:[%s221] sm:$0x1]
    %223 = vrot.lane.b32.xlu0 %v222, 54
    %v224 = vpop.permute.xlu0 %223
    %vm225 = vcmask 458160
    %226 = vst.msk [vmem:[#allocation0] sm:$0x1] %vm225, %v224
    %s227 = scalar_lea.vmem %s0, 26
    %v228 = vld [vmem:[%s227] sm:$0x1]
    %229 = vrot.lane.b32.xlu0 %v228, 52
    %v230 = vpop.permute.xlu0 %229
    %vm231 = vcmask 441760
    %232 = vst.msk [vmem:[#allocation0] sm:$0x1] %vm231, %v230
    %s233 = scalar_lea.vmem %s0, 25
    %v234 = vld [vmem:[%s233] sm:$0x1]
    %235 = vrot.lane.b32.xlu0 %v234, 50
    %v236 = vpop.permute.xlu0 %235
    %vm237 = vcmask 425360
    %238 = vst.msk [vmem:[#allocation0] sm:$0x1] %vm237, %v236
    %s239 = scalar_lea.vmem %s0, 24
    %v240 = vld [vmem:[%s239] sm:$0x1]
    %241 = vrot.lane.b32.xlu0 %v240, 48
    %v242 = vpop.permute.xlu0 %241
    %vm243 = vcmask 408960
    %244 = vst.msk [vmem:[#allocation0] sm:$0x1] %vm243, %v242
    %s245 = scalar_lea.vmem %s0, 23
    %v246 = vld [vmem:[%s245] sm:$0x1]
    %247 = vrot.lane.b32.xlu0 %v246, 46
    %v248 = vpop.permute.xlu0 %247
    %vm249 = vcmask 392560
    %250 = vst.msk [vmem:[#allocation0] sm:$0x1] %vm249, %v248
    %s251 = scalar_lea.vmem %s0, 22
    %v252 = vld [vmem:[%s251] sm:$0x1]
    %253 = vrot.lane.b32.xlu0 %v252, 44
    %v254 = vpop.permute.xlu0 %253
    %vm255 = vcmask 376160
    %256 = vst.msk [vmem:[#allocation0] sm:$0x1] %vm255, %v254
    %s257 = scalar_lea.vmem %s0, 21
    %v258 = vld [vmem:[%s257] sm:$0x1]
    %259 = vrot.lane.b32.xlu0 %v258, 42
    %v260 = vpop.permute.xlu0 %259
    %vm261 = vcmask 359760
    %262 = vst.msk [vmem:[#allocation0] sm:$0x1] %vm261, %v260
    %s263 = scalar_lea.vmem %s0, 20
    %v264 = vld [vmem:[%s263] sm:$0x1]
    %265 = vrot.lane.b32.xlu0 %v264, 40
    %v266 = vpop.permute.xlu0 %265
    %vm267 = vcmask 343360
    %268 = vst.msk [vmem:[#allocation0] sm:$0x1] %vm267, %v266
    %s269 = scalar_lea.vmem %s0, 19
    %v270 = vld [vmem:[%s269] sm:$0x1]
    %271 = vrot.lane.b32.xlu0 %v270, 38
    %v272 = vpop.permute.xlu0 %271
    %vm273 = vcmask 326960
    %274 = vst.msk [vmem:[#allocation0] sm:$0x1] %vm273, %v272
    %s275 = scalar_lea.vmem %s0, 18
    %v276 = vld [vmem:[%s275] sm:$0x1]
    %277 = vrot.lane.b32.xlu0 %v276, 36
    %v278 = vpop.permute.xlu0 %277
    %vm279 = vcmask 310560
    %280 = vst.msk [vmem:[#allocation0] sm:$0x1] %vm279, %v278
    %s281 = scalar_lea.vmem %s0, 17
    %v282 = vld [vmem:[%s281] sm:$0x1]
    %283 = vrot.lane.b32.xlu0 %v282, 34
    %v284 = vpop.permute.xlu0 %283
    %vm285 = vcmask 294160
    %286 = vst.msk [vmem:[#allocation0] sm:$0x1] %vm285, %v284
    %s287 = scalar_lea.vmem %s0, 16
    %v288 = vld [vmem:[%s287] sm:$0x1]
    %289 = vrot.lane.b32.xlu0 %v288, 32
    %v290 = vpop.permute.xlu0 %289
    %vm291 = vcmask 277760
    %292 = vst.msk [vmem:[#allocation0] sm:$0x1] %vm291, %v290
    %s293 = scalar_lea.vmem %s0, 15
    %v294 = vld [vmem:[%s293] sm:$0x1]
    %295 = vrot.lane.b32.xlu0 %v294, 30
    %v296 = vpop.permute.xlu0 %295
    %vm297 = vcmask 261360
    %298 = vst.msk [vmem:[#allocation0] sm:$0x1] %vm297, %v296
    %s299 = scalar_lea.vmem %s0, 14
    %v300 = vld [vmem:[%s299] sm:$0x1]
    %301 = vrot.lane.b32.xlu0 %v300, 28
    %v302 = vpop.permute.xlu0 %301
    %vm303 = vcmask 244960
    %304 = vst.msk [vmem:[#allocation0] sm:$0x1] %vm303, %v302
    %s305 = scalar_lea.vmem %s0, 13
    %v306 = vld [vmem:[%s305] sm:$0x1]
    %307 = vrot.lane.b32.xlu0 %v306, 26
    %v308 = vpop.permute.xlu0 %307
    %vm309 = vcmask 228560
    %310 = vst.msk [vmem:[#allocation0] sm:$0x1] %vm309, %v308
    %s311 = scalar_lea.vmem %s0, 12
    %v312 = vld [vmem:[%s311] sm:$0x1]
    %313 = vrot.lane.b32.xlu0 %v312, 24
    %v314 = vpop.permute.xlu0 %313
    %vm315 = vcmask 212160
    %316 = vst.msk [vmem:[#allocation0] sm:$0x1] %vm315, %v314
    %s317 = scalar_lea.vmem %s0, 11
    %v318 = vld [vmem:[%s317] sm:$0x1]
    %319 = vrot.lane.b32.xlu0 %v318, 22
    %v320 = vpop.permute.xlu0 %319
    %vm321 = vcmask 195760
    %322 = vst.msk [vmem:[#allocation0] sm:$0x1] %vm321, %v320
    %s323 = scalar_lea.vmem %s0, 10
    %v324 = vld [vmem:[%s323] sm:$0x1]
    %325 = vrot.lane.b32.xlu0 %v324, 20
    %v326 = vpop.permute.xlu0 %325
    %vm327 = vcmask 179360
    %328 = vst.msk [vmem:[#allocation0] sm:$0x1] %vm327, %v326
    %s329 = scalar_lea.vmem %s0, 9
    %v330 = vld [vmem:[%s329] sm:$0x1]
    %331 = vrot.lane.b32.xlu0 %v330, 18
    %v332 = vpop.permute.xlu0 %331
    %vm333 = vcmask 162960
    %334 = vst.msk [vmem:[#allocation0] sm:$0x1] %vm333, %v332
    %s335 = scalar_lea.vmem %s0, 8
    %v336 = vld [vmem:[%s335] sm:$0x1]
    %337 = vrot.lane.b32.xlu0 %v336, 16
    %v338 = vpop.permute.xlu0 %337
    %vm339 = vcmask 146560
    %340 = vst.msk [vmem:[#allocation0] sm:$0x1] %vm339, %v338
    %s341 = scalar_lea.vmem %s0, 7
    %v342 = vld [vmem:[%s341] sm:$0x1]
    %343 = vrot.lane.b32.xlu0 %v342, 14
    %v344 = vpop.permute.xlu0 %343
    %vm345 = vcmask 130160
    %346 = vst.msk [vmem:[#allocation0] sm:$0x1] %vm345, %v344
    %s347 = scalar_lea.vmem %s0, 6
    %v348 = vld [vmem:[%s347] sm:$0x1]
    %349 = vrot.lane.b32.xlu0 %v348, 12
    %v350 = vpop.permute.xlu0 %349
    %vm351 = vcmask 113760
    %352 = vst.msk [vmem:[#allocation0] sm:$0x1] %vm351, %v350
    %s353 = scalar_lea.vmem %s0, 5
    %v354 = vld [vmem:[%s353] sm:$0x1]
    %355 = vrot.lane.b32.xlu0 %v354, 10
    %v356 = vpop.permute.xlu0 %355
    %vm357 = vcmask 97360
    %358 = vst.msk [vmem:[#allocation0] sm:$0x1] %vm357, %v356
    %s359 = scalar_lea.vmem %s0, 4
    %v360 = vld [vmem:[%s359] sm:$0x1]
    %361 = vrot.lane.b32.xlu0 %v360, 8
    %v362 = vpop.permute.xlu0 %361
    %vm363 = vcmask 80960
    %364 = vst.msk [vmem:[#allocation0] sm:$0x1] %vm363, %v362
    %s365 = scalar_lea.vmem %s0, 3
    %v366 = vld [vmem:[%s365] sm:$0x1]
    %367 = vrot.lane.b32.xlu0 %v366, 6
    %v368 = vpop.permute.xlu0 %367
    %vm369 = vcmask 64560
    %370 = vst.msk [vmem:[#allocation0] sm:$0x1] %vm369, %v368
    %s371 = scalar_lea.vmem %s0, 2
    %v372 = vld [vmem:[%s371] sm:$0x1]
    %373 = vrot.lane.b32.xlu0 %v372, 4
    %v374 = vpop.permute.xlu0 %373
    %vm375 = vcmask 48160
    %376 = vst.msk [vmem:[#allocation0] sm:$0x1] %vm375, %v374
    %s377 = scalar_lea.vmem %s0, 1
    %v378 = vld [vmem:[%s377] sm:$0x1]
    %379 = vrot.lane.b32.xlu0 %v378, 2
    %v380 = vpop.permute.xlu0 %379
    %vm381 = vcmask 31760
    %382 = vst.msk [vmem:[#allocation0] sm:$0x1] %vm381, %v380
    %s384 = sshllo.u32 0, 1
    %v386 = vld [vmem:[#allocation0] sm:%s384]
    %s387 = sshllo.u32 0, 1
    %388 = vst [vmem:[%s1] sm:%s387] %v386

// kernel: parameter_gan_forward.2
$region0: #{parameter_gan_forward.2}
  #allocation0 [shape = 'u32[]', space=smem, size = 0x4, offset = 0x4, fixed_abs, tag = 'smem constant byte address 0x4 - core index']
  #allocation1 [shape = 'u32[144,128]{1,0:T(1,128)}', space=vmem, size = 0x12000, scoped, tag = 'internal scratch']
  %s0 = inlined_call_operand.vmem [shape: f32[2,2,8], index: 0, kind: input, shape index: {}]
  %s1 = inlined_call_operand.vmem [shape: bf16[2224,128], index: 1, kind: input, shape index: {}]
  %s2 = inlined_call_operand.vmem [shape: f32[64,128], index: 2, kind: input, shape index: {}]
  %s3 = inlined_call_operand.vmem [shape: f32[2,128,128], index: 3, kind: output, shape index: {}]
  %s4 = sld [smem:[#allocation0]]
  $region45: #{parameter_gan_forward.2} parent=0
    _
  %s6 = ssub.s32 1, %s4
  %s7 = scalar_select 0, %s6, %s4
  loop: start=0, step=1, limit=4
  $region2: #{parameter_gan_forward.2} parent=0 // loop_pre_header
    _
  $region3: #{parameter_gan_forward.2} parent=0 // loop_header
    %s9 = sphi 0, %s13
    %p10 = scmp.ge.s32.totalorder %s9, 4
    %s19 = sphi 0, %s21
    %s22 = sphi 0, %s19
    %s23 = sphi 0, %s22
    %s39 = sphi 0, %s23
    %s43 = sphi 0, %s43
    %s45 = sphi 0, %s43
    %s46 = sphi 0, %s45
    %s60 = sphi 0, %s46
    %s64 = sphi 0, %s64
    %s66 = sphi 0, %s64
    %s67 = sphi 0, %s66
    %s81 = sphi 0, %s67
    %s87 = sphi 0, %s89
    %s90 = sphi 0, %s87
    %s91 = sphi 0, %s90
    %s107 = sphi 0, %s91
  $region4: #{parameter_gan_forward.2} parent=0 // loop_header_branch
    %12 = sbr.rel (%p10) target = $region8
  $region5: #{parameter_gan_forward.2} parent=0 // loop_body
    %s14 = ssub.s32 %s9, 1
    %s15 = ssub.s32 %s9, 2
    %s16 = sadd.s32 %s9, 1
    %s17 = ssub.s32 %s9, %s16
    %p18 = scmp.eq.s32.totalorder %s17, 0
    %s20 = sadd.s32 %s19, 1
    %s21 = scalar_select %p18, %s19, %s20
    %p24 = pneg %p18
    %p25 = scmp.eq.s32.totalorder %s9, 1
    %p26 = por %p24, %p25
    %p27 = scmp.ne.s32.totalorder %s19, %s22
    %p28 = scmp.eq.s32.totalorder %s9, 0
    %p29 = por %p27, %p28
    %p30 = scmp.ne.s32.totalorder %s19, %s22
    %p31 = scmp.eq.s32.totalorder %s14, 1
    %p32 = por %p30, %p31
    %p33 = scmp.ne.s32.totalorder %s22, %s23
    %p34 = scmp.eq.s32.totalorder %s14, 0
    %p35 = por %p33, %p34
    %p36 = scmp.ne.s32.totalorder %s22, %s23
    %p37 = scmp.eq.s32.totalorder %s15, 1
    %p38 = por %p36, %p37
    %p40 = scmp.ne.s32.totalorder %s23, %s39
    %p41 = scmp.eq.s32.totalorder %s15, 0
    %p42 = por %p40, %p41
    %s44 = sadd.s32 %s43, 1
    %p47 = scmp.eq.s32.totalorder %s9, 1
    %p48 = scmp.ne.s32.totalorder %s43, %s45
    %p49 = scmp.eq.s32.totalorder %s9, 0
    %p50 = por %p48, %p49
    %p51 = scmp.ne.s32.totalorder %s43, %s45
    %p52 = scmp.eq.s32.totalorder %s14, 1
    %p53 = por %p51, %p52
    %p54 = scmp.ne.s32.totalorder %s45, %s46
    %p55 = scmp.eq.s32.totalorder %s14, 0
    %p56 = por %p54, %p55
    %p57 = scmp.ne.s32.totalorder %s45, %s46
    %p58 = scmp.eq.s32.totalorder %s15, 1
    %p59 = por %p57, %p58
    %p61 = scmp.ne.s32.totalorder %s46, %s60
    %p62 = scmp.eq.s32.totalorder %s15, 0
    %p63 = por %p61, %p62
    %s65 = sadd.s32 %s64, 1
    %p68 = scmp.eq.s32.totalorder %s9, 1
    %p69 = scmp.ne.s32.totalorder %s64, %s66
    %p70 = scmp.eq.s32.totalorder %s9, 0
    %p71 = por %p69, %p70
    %p72 = scmp.ne.s32.totalorder %s64, %s66
    %p73 = scmp.eq.s32.totalorder %s14, 1
    %p74 = por %p72, %p73
    %p75 = scmp.ne.s32.totalorder %s66, %s67
    %p76 = scmp.eq.s32.totalorder %s14, 0
    %p77 = por %p75, %p76
    %p78 = scmp.ne.s32.totalorder %s66, %s67
    %p79 = scmp.eq.s32.totalorder %s15, 1
    %p80 = por %p78, %p79
    %p82 = scmp.ne.s32.totalorder %s67, %s81
    %p83 = scmp.eq.s32.totalorder %s15, 0
    %p84 = por %p82, %p83
    %s85 = ssub.s32 %s9, %s16
    %p86 = scmp.eq.s32.totalorder %s85, 0
    %s88 = sadd.s32 %s87, 1
    %s89 = scalar_select %p86, %s87, %s88
    %p92 = pneg %p86
    %p93 = scmp.eq.s32.totalorder %s9, 1
    %p94 = por %p92, %p93
    %p95 = scmp.ne.s32.totalorder %s87, %s90
    %p96 = scmp.eq.s32.totalorder %s9, 0
    %p97 = por %p95, %p96
    %p98 = scmp.ne.s32.totalorder %s87, %s90
    %p99 = scmp.eq.s32.totalorder %s14, 1
    %p100 = por %p98, %p99
    %p101 = scmp.ne.s32.totalorder %s90, %s91
    %p102 = scmp.eq.s32.totalorder %s14, 0
    %p103 = por %p101, %p102
    %p104 = scmp.ne.s32.totalorder %s90, %s91
    %p105 = scmp.eq.s32.totalorder %s15, 1
    %p106 = por %p104, %p105
    %p108 = scmp.ne.s32.totalorder %s91, %s107
    %p109 = scmp.eq.s32.totalorder %s15, 0
    %p110 = por %p108, %p109
    %p111 = scmp.le.s32.totalorder 1, %s9
    %p112 = scmp.lt.s32.totalorder %s9, 3
    %p113 = pnand %p111, %p112
    %p114 = pneg %p113
    // Predicated region
    $region9: #{parameter_gan_forward.2} parent=5 // pred_check
      _
    $region10: #{parameter_gan_forward.2} parent=5 // pred_check_branch
      %116 = sbr.rel (%p113) target = $region12
    $region11: #{parameter_gan_forward.2} parent=5 // pred_region
      %s117 = ssub.s32 %s9, 1
      // Predicated region
      $region13: #{parameter_gan_forward.2} parent=11 // pred_check
        %p118 = pneg %p56
      $region14: #{parameter_gan_forward.2} parent=11 // pred_check_branch
        %120 = sbr.rel (%p118) target = $region16
      $region15: #{parameter_gan_forward.2} parent=11 // pred_region
        _
      $region16: #{parameter_gan_forward.2} parent=11 // pred_fallthru
        _
      // Predicated region
      $region17: #{parameter_gan_forward.2} parent=11 // pred_check
        %p121 = pneg %p77
      $region18: #{parameter_gan_forward.2} parent=11 // pred_check_branch
        %123 = sbr.rel (%p121) target = $region20
      $region19: #{parameter_gan_forward.2} parent=11 // pred_region
        _
      $region20: #{parameter_gan_forward.2} parent=11 // pred_fallthru
        _
    $region12: #{parameter_gan_forward.2} parent=5 // pred_fallthru
      _
    %p124 = scmp.lt.s32.totalorder %s9, 2
    // Predicated region
    $region21: #{parameter_gan_forward.2} parent=5 // pred_check
      %p125 = pneg %p124
    $region22: #{parameter_gan_forward.2} parent=5 // pred_check_branch
      %127 = sbr.rel (%p125) target = $region24
    $region23: #{parameter_gan_forward.2} parent=5 // pred_region
      // Predicated region
      $region25: #{parameter_gan_forward.2} parent=23 // pred_check
        %p128 = pneg %p29
      $region26: #{parameter_gan_forward.2} parent=23 // pred_check_branch
        %130 = sbr.rel (%p128) target = $region28
      $region27: #{parameter_gan_forward.2} parent=23 // pred_region
        %p131 = scmp.lt.s32.totalorder %s9, 1
        %s132 = scalar_select %p131, %s9, 1
        %s133 = smul.addr %s132, 2
        %s134 = scalar_lea.vmem %s0, %s133
      $region28: #{parameter_gan_forward.2} parent=23 // pred_fallthru
        _
    $region24: #{parameter_gan_forward.2} parent=5 // pred_fallthru
      _
    %p135 = scmp.le.s32.totalorder 1, %s9
    %p136 = scmp.lt.s32.totalorder %s9, 3
    %p137 = pnand %p135, %p136
    %p138 = pneg %p137
    // Predicated region
    $region29: #{parameter_gan_forward.2} parent=5 // pred_check
      _
    $region30: #{parameter_gan_forward.2} parent=5 // pred_check_branch
      %140 = sbr.rel (%p137) target = $region32
    $region31: #{parameter_gan_forward.2} parent=5 // pred_region
      %s141 = ssub.s32 %s9, 1
      %p142 = scmp.lt.s32.totalorder %s14, 1
      %s143 = scalar_select %p142, %s14, 1
      %s144 = smul.addr %s143, 2
      %s145 = scalar_lea.vmem %s0, %s144
      %p146 = pneg %p35
      %p147 = pneg %p32
      %p148 = pneg %p56
      %p149 = pneg %p53
      %p150 = pneg %p77
      %p151 = pneg %p74
      %p152 = pneg %p103
      %p153 = pneg %p100
      %p154 = scmp.lt.s32.totalorder %s14, 1
      %s155 = scalar_select %p154, %s14, 1
      %s156 = smul.addr %s155, 16
      %s157 = smul.addr %s156, 8
      %s158 = scalar_lea.vmem %s3, %s157
      %p159 = scmp.lt.s32.totalorder %s14, 1
      %s160 = scalar_select %p159, %s14, 1
      %s161 = smul.addr %s160, 2
      %s162 = scalar_lea.vmem %s0, %s161
      %p163 = scmp.lt.s32.totalorder %s14, 1
      %s164 = scalar_select %p163, %s14, 1
      %s165 = smul.addr %s164, 16
      %s166 = smul.addr %s165, 8
      %s167 = scalar_lea.vmem %s3, %s166
      %v169 = vld [vmem:[%s162] sm:$0x3]
      %v170 = vpack.c.bf16 %v169, %v169
      %v171 = vld [vmem:[%s1] sm:$0xf]
      %v172 = vld [vmem:[%s2] sm:$0x1]
      %v173 = vlaneseq
      %v174 = vshrl.u32 %v173, 7
      %v175 = vsub.s32 0, %v174
      %v176 = vrot.slane %v172, %v175
      %vm177 = vcmask 64512
      %v179 = vsel %vm177, %v170, 0
      %vm181 = vcmask 1043456
      %v183 = vsel %vm181, %v171, 0
      %185 = vmatprep.subr.bf16.mxu0 0
      %186 = vmatpush1.bf16.msra.mxu0 %v183
      %187 = vmatprep.subr.bf16.mxu0 0
      %188 = vmatpush1.bf16.msra.mxu0 0
      %189 = vmatprep.subr.bf16.mxu0 0
      %190 = vmatpush1.bf16.msra.mxu0 0
      %191 = vmatprep.subr.bf16.mxu0 0
      %192 = vmatpush1.bf16.msra.mxu0 0
      %193 = vmatprep.subr.bf16.mxu0 0
      %194 = vmatpush1.bf16.msra.mxu0 0
      %195 = vmatprep.subr.bf16.mxu0 0
      %196 = vmatpush1.bf16.msra.mxu0 0
      %197 = vmatprep.subr.bf16.mxu0 0
      %198 = vmatpush1.bf16.msra.mxu0 0
      %199 = vmatprep.subr.bf16.mxu0 0
      %200 = vmatpush1.bf16.msra.mxu0 0
      %201 = vmatprep.subr.bf16.mxu0 0
      %202 = vmatpush1.bf16.msra.mxu0 0
      %203 = vmatprep.subr.bf16.mxu0 0
      %204 = vmatpush1.bf16.msra.mxu0 0
      %205 = vmatprep.subr.bf16.mxu0 0
      %206 = vmatpush1.bf16.msra.mxu0 0
      %207 = vmatprep.subr.bf16.mxu0 0
      %208 = vmatpush1.bf16.msra.mxu0 0
      %209 = vmatprep.subr.bf16.mxu0 0
      %210 = vmatpush1.bf16.msra.mxu0 0
      %211 = vmatprep.subr.bf16.mxu0 0
      %212 = vmatpush1.bf16.msra.mxu0 0
      %213 = vmatprep.subr.bf16.mxu0 0
      %214 = vmatpush1.bf16.msra.mxu0 0
      %215 = vmatprep.subr.bf16.mxu0 0
      %216 = vmatpush1.bf16.msra.mxu0 0
      %217 = vmatprep.mubr.bf16.mxu0 0
      %218 = vmatmul.mubr.bf16.gmra.mrb[0].mxu0 %v179
      %v219 = vpop.f32.mrb[0].mxu0
      %v220 = vadd.f32 %v176, %v219
      %v221 = vpop.f32.mrb[0].mxu0
      %v222 = vpop.f32.mrb[0].mxu0
      %v223 = vpop.f32.mrb[0].mxu0
      %224 = vdwg.mxu0
      %v225 = vmul.f32 %v220, 0.5
      %v226 = vmul.f32 %v220, 0.044715
      %v227 = vmul.f32 %v226, %v220
      %v228 = vmul.f32 %v227, %v220
      %v229 = vadd.f32 %v220, %v228
      %v230 = vmul.f32 %v229, 0.7978846
      %v231 = vtanh.pop %v230
      %v232 = vadd.f32 %v231, 1.0
      %v233 = vmul.f32 %v225, %v232
      %v234 = vpack.c.bf16 %v233, %v233
      %v235 = vld [vmem:[%s1 + $0x8] sm:$0xf]
      %v236 = vld [vmem:[%s1 + $0xc] sm:$0xf]
      %v237 = vld [vmem:[%s2 + $0x8] sm:$0x1]
      %v238 = vlaneseq
      %v239 = vshrl.u32 %v238, 7
      %v240 = vsub.s32 0, %v239
      %v241 = vrot.slane %v237, %v240
      %v244 = vunpack.c.l.b16 %v235
      %v245 = vunpack.c.l.b16 %v236
      %v246 = vpack.c.b16 %v245, %v244
      %vm248 = vcmask 130048
      %v250 = vsel %vm248, %v234, 0
      %252 = vmatprep.subr.bf16.mxu0 0
      %253 = vmatpush1.bf16.msra.mxu0 %v246
      %254 = vmatprep.subr.bf16.mxu0 0
      %255 = vmatpush1.bf16.msra.mxu0 0
      %256 = vmatprep.subr.bf16.mxu0 0
      %257 = vmatpush1.bf16.msra.mxu0 0
      %258 = vmatprep.subr.bf16.mxu0 0
      %259 = vmatpush1.bf16.msra.mxu0 0
      %260 = vmatprep.subr.bf16.mxu0 0
      %261 = vmatpush1.bf16.msra.mxu0 0
      %262 = vmatprep.subr.bf16.mxu0 0
      %263 = vmatpush1.bf16.msra.mxu0 0
      %264 = vmatprep.subr.bf16.mxu0 0
      %265 = vmatpush1.bf16.msra.mxu0 0
      %266 = vmatprep.subr.bf16.mxu0 0
      %267 = vmatpush1.bf16.msra.mxu0 0
      %268 = vmatprep.subr.bf16.mxu0 0
      %269 = vmatpush1.bf16.msra.mxu0 0
      %270 = vmatprep.subr.bf16.mxu0 0
      %271 = vmatpush1.bf16.msra.mxu0 0
      %272 = vmatprep.subr.bf16.mxu0 0
      %273 = vmatpush1.bf16.msra.mxu0 0
      %274 = vmatprep.subr.bf16.mxu0 0
      %275 = vmatpush1.bf16.msra.mxu0 0
      %276 = vmatprep.subr.bf16.mxu0 0
      %277 = vmatpush1.bf16.msra.mxu0 0
      %278 = vmatprep.subr.bf16.mxu0 0
      %279 = vmatpush1.bf16.msra.mxu0 0
      %280 = vmatprep.subr.bf16.mxu0 0
      %281 = vmatpush1.bf16.msra.mxu0 0
      %282 = vmatprep.subr.bf16.mxu0 0
      %283 = vmatpush1.bf16.msra.mxu0 0
      %284 = vmatprep.mubr.bf16.mxu0 0
      %285 = vmatmul.mubr.bf16.gmra.mrb[0].mxu0 %v250
      %v286 = vpop.f32.mrb[0].mxu0
      %v287 = vadd.f32 %v241, %v286
      %v288 = vpop.f32.mrb[0].mxu0
      %v289 = vpop.f32.mrb[0].mxu0
      %v290 = vpop.f32.mrb[0].mxu0
      %291 = vdwg.mxu0
      %v292 = vmul.f32 %v287, 0.5
      %v293 = vmul.f32 %v287, 0.044715
      %v294 = vmul.f32 %v293, %v287
      %v295 = vmul.f32 %v294, %v287
      %v296 = vadd.f32 %v287, %v295
      %v297 = vmul.f32 %v296, 0.7978846
      %v298 = vtanh.pop %v297
      %v299 = vadd.f32 %v298, 1.0
      %v300 = vmul.f32 %v292, %v299
      %v301 = vpack.c.bf16 %v300, %v300
      %v302 = vld [vmem:[%s1 + $0x10] sm:$0xf]
      %v303 = vld [vmem:[%s1 + $0x14] sm:$0xf]
      %v304 = vld [vmem:[%s1 + $0x18] sm:$0xf]
      %v305 = vld [vmem:[%s1 + $0x1c] sm:$0xf]
      %v306 = vld [vmem:[%s2 + $0x10] sm:$0x1]
      %v307 = vlaneseq
      %v308 = vshrl.u32 %v307, 7
      %v309 = vsub.s32 0, %v308
      %v310 = vrot.slane %v306, %v309
      %v315 = vunpack.c.l.b16 %v302
      %v316 = vunpack.c.l.b16 %v303
      %v317 = vunpack.c.l.b16 %v304
      %v318 = vunpack.c.l.b16 %v305
      %v319 = vpack.c.b16 %v316, %v315
      %v320 = vpack.c.b16 %v318, %v317
      %vm323 = vcmask 261120
      %v325 = vsel %vm323, %v301, 0
      %327 = vmatprep.subr.bf16.mxu0 0
      %328 = vmatpush1.bf16.msra.mxu0 %v319
      %329 = vmatprep.subr.bf16.mxu0 0
      %330 = vmatpush1.bf16.msra.mxu0 %v320
      %331 = vmatprep.subr.bf16.mxu0 0
      %332 = vmatpush1.bf16.msra.mxu0 0
      %333 = vmatprep.subr.bf16.mxu0 0
      %334 = vmatpush1.bf16.msra.mxu0 0
      %335 = vmatprep.subr.bf16.mxu0 0
      %336 = vmatpush1.bf16.msra.mxu0 0
      %337 = vmatprep.subr.bf16.mxu0 0
      %338 = vmatpush1.bf16.msra.mxu0 0
      %339 = vmatprep.subr.bf16.mxu0 0
      %340 = vmatpush1.bf16.msra.mxu0 0
      %341 = vmatprep.subr.bf16.mxu0 0
      %342 = vmatpush1.bf16.msra.mxu0 0
      %343 = vmatprep.subr.bf16.mxu0 0
      %344 = vmatpush1.bf16.msra.mxu0 0
      %345 = vmatprep.subr.bf16.mxu0 0
      %346 = vmatpush1.bf16.msra.mxu0 0
      %347 = vmatprep.subr.bf16.mxu0 0
      %348 = vmatpush1.bf16.msra.mxu0 0
      %349 = vmatprep.subr.bf16.mxu0 0
      %350 = vmatpush1.bf16.msra.mxu0 0
      %351 = vmatprep.subr.bf16.mxu0 0
      %352 = vmatpush1.bf16.msra.mxu0 0
      %353 = vmatprep.subr.bf16.mxu0 0
      %354 = vmatpush1.bf16.msra.mxu0 0
      %355 = vmatprep.subr.bf16.mxu0 0
      %356 = vmatpush1.bf16.msra.mxu0 0
      %357 = vmatprep.subr.bf16.mxu0 0
      %358 = vmatpush1.bf16.msra.mxu0 0
      %359 = vmatprep.mubr.bf16.mxu0 0
      %360 = vmatmul.mubr.bf16.gmra.mrb[0].mxu0 %v325
      %v361 = vpop.f32.mrb[0].mxu0
      %v362 = vadd.f32 %v310, %v361
      %v363 = vpop.f32.mrb[0].mxu0
      %v364 = vpop.f32.mrb[0].mxu0
      %v365 = vpop.f32.mrb[0].mxu0
      %366 = vdwg.mxu0
      %v367 = vmul.f32 %v362, 0.5
      %v368 = vmul.f32 %v362, 0.044715
      %v369 = vmul.f32 %v368, %v362
      %v370 = vmul.f32 %v369, %v362
      %v371 = vadd.f32 %v362, %v370
      %v372 = vmul.f32 %v371, 0.7978846
      %v373 = vtanh.pop %v372
      %v374 = vadd.f32 %v373, 1.0
      %v375 = vmul.f32 %v367, %v374
      %v376 = vpack.c.bf16 %v375, %v375
      %v377 = vld [vmem:[%s1 + $0x20] sm:$0xf]
      %v378 = vld [vmem:[%s1 + $0x24] sm:$0xf]
      %v379 = vld [vmem:[%s1 + $0x28] sm:$0xf]
      %v380 = vld [vmem:[%s1 + $0x2c] sm:$0xf]
      %v385 = vunpack.c.l.b16 %v377
      %v386 = vunpack.c.l.b16 %v378
      %v387 = vunpack.c.l.b16 %v379
      %v388 = vunpack.c.l.b16 %v380
      %v389 = vpack.c.b16 %v386, %v385
      %v390 = vpack.c.b16 %v388, %v387
      %v394 = vsel %vm323, %v376, 0
      %396 = vmatprep.subr.bf16.mxu0 0
      %397 = vmatpush1.bf16.msra.mxu0 %v389
      %398 = vmatprep.subr.bf16.mxu0 0
      %399 = vmatpush1.bf16.msra.mxu0 %v390
      %400 = vmatprep.subr.bf16.mxu0 0
      %401 = vmatpush1.bf16.msra.mxu0 0
      %402 = vmatprep.subr.bf16.mxu0 0
      %403 = vmatpush1.bf16.msra.mxu0 0
      %404 = vmatprep.subr.bf16.mxu0 0
      %405 = vmatpush1.bf16.msra.mxu0 0
      %406 = vmatprep.subr.bf16.mxu0 0
      %407 = vmatpush1.bf16.msra.mxu0 0
      %408 = vmatprep.subr.bf16.mxu0 0
      %409 = vmatpush1.bf16.msra.mxu0 0
      %410 = vmatprep.subr.bf16.mxu0 0
      %411 = vmatpush1.bf16.msra.mxu0 0
      %412 = vmatprep.subr.bf16.mxu0 0
      %413 = vmatpush1.bf16.msra.mxu0 0
      %414 = vmatprep.subr.bf16.mxu0 0
      %415 = vmatpush1.bf16.msra.mxu0 0
      %416 = vmatprep.subr.bf16.mxu0 0
      %417 = vmatpush1.bf16.msra.mxu0 0
      %418 = vmatprep.subr.bf16.mxu0 0
      %419 = vmatpush1.bf16.msra.mxu0 0
      %420 = vmatprep.subr.bf16.mxu0 0
      %421 = vmatpush1.bf16.msra.mxu0 0
      %422 = vmatprep.subr.bf16.mxu0 0
      %423 = vmatpush1.bf16.msra.mxu0 0
      %424 = vmatprep.subr.bf16.mxu0 0
      %425 = vmatpush1.bf16.msra.mxu0 0
      %426 = vmatprep.subr.bf16.mxu0 0
      %427 = vmatpush1.bf16.msra.mxu0 0
      %428 = vmatprep.mubr.bf16.mxu0 0
      %429 = vmatmul.mubr.bf16.gmra.mrb[0].mxu0 %v394
      %v430 = vpop.f32.mrb[0].mxu0
      %v431 = vadd.f32 0.0, %v430
      %v432 = vpop.f32.mrb[0].mxu0
      %v433 = vpop.f32.mrb[0].mxu0
      %v434 = vpop.f32.mrb[0].mxu0
      %435 = vdwg.mxu0
      %v436 = vld [vmem:[%s1 + $0x40] sm:$0x3]
      %v437 = vpack.c.bf16 %v431, %v431
      %v438 = vld [vmem:[%s1 + $0x30] sm:$0xf]
      %v439 = vld [vmem:[%s1 + $0x34] sm:$0xf]
      %v440 = vld [vmem:[%s1 + $0x38] sm:$0xf]
      %v441 = vld [vmem:[%s1 + $0x3c] sm:$0xf]
      %v446 = vunpack.c.l.b16 %v438
      %v447 = vunpack.c.l.b16 %v439
      %v448 = vunpack.c.l.b16 %v440
      %v449 = vunpack.c.l.b16 %v441
      %v450 = vpack.c.b16 %v447, %v446
      %v451 = vpack.c.b16 %v449, %v448
      %454 = vmatprep.subr.bf16.mxu0 0
      %455 = vmatpush1.bf16.msra.mxu0 %v450
      %456 = vmatprep.subr.bf16.mxu0 0
      %457 = vmatpush1.bf16.msra.mxu0 %v451
      %458 = vmatprep.subr.bf16.mxu0 0
      %459 = vmatpush1.bf16.msra.mxu0 0
      %460 = vmatprep.subr.bf16.mxu0 0
      %461 = vmatpush1.bf16.msra.mxu0 0
      %462 = vmatprep.subr.bf16.mxu0 0
      %463 = vmatpush1.bf16.msra.mxu0 0
      %464 = vmatprep.subr.bf16.mxu0 0
      %465 = vmatpush1.bf16.msra.mxu0 0
      %466 = vmatprep.subr.bf16.mxu0 0
      %467 = vmatpush1.bf16.msra.mxu0 0
      %468 = vmatprep.subr.bf16.mxu0 0
      %469 = vmatpush1.bf16.msra.mxu0 0
      %470 = vmatprep.subr.bf16.mxu0 0
      %471 = vmatpush1.bf16.msra.mxu0 0
      %472 = vmatprep.subr.bf16.mxu0 0
      %473 = vmatpush1.bf16.msra.mxu0 0
      %474 = vmatprep.subr.bf16.mxu0 0
      %475 = vmatpush1.bf16.msra.mxu0 0
      %476 = vmatprep.subr.bf16.mxu0 0
      %477 = vmatpush1.bf16.msra.mxu0 0
      %478 = vmatprep.subr.bf16.mxu0 0
      %479 = vmatpush1.bf16.msra.mxu0 0
      %480 = vmatprep.subr.bf16.mxu0 0
      %481 = vmatpush1.bf16.msra.mxu0 0
      %482 = vmatprep.subr.bf16.mxu0 0
      %483 = vmatpush1.bf16.msra.mxu0 0
      %484 = vmatprep.subr.bf16.mxu0 0
      %485 = vmatpush1.bf16.msra.mxu0 0
      %486 = vmatprep.mubr.bf16.mxu0 0
      %487 = vmatmul.mubr.bf16.gmra.mrb[0].mxu0 %v394
      %v488 = vpop.f32.mrb[0].mxu0
      %v489 = vadd.f32 0.0, %v488
      %v490 = vpop.f32.mrb[0].mxu0
      %v491 = vpop.f32.mrb[0].mxu0
      %v492 = vpop.f32.mrb[0].mxu0
      %493 = vdwg.mxu0
      %v494 = vld [vmem:[%s1 + $0x48] sm:$0x3]
      %v495 = vpack.c.bf16 %v489, %v489
      %vm496 = vcmask 15360
      %v498 = vsel %vm496, %v494, 0
      %vm500 = vcmask 1040384
      %v502 = vsel %vm500, %v495, 0
      %504 = vmatprep.subr.bf16.mxu0 0
      %505 = vmatpush1.bf16.msra.mxu0 %v502
      %506 = vmatprep.subr.bf16.mxu0 0
      %507 = vmatpush1.bf16.msra.mxu0 0
      %508 = vmatprep.subr.bf16.mxu0 0
      %509 = vmatpush1.bf16.msra.mxu0 0
      %510 = vmatprep.subr.bf16.mxu0 0
      %511 = vmatpush1.bf16.msra.mxu0 0
      %512 = vmatprep.subr.bf16.mxu0 0
      %513 = vmatpush1.bf16.msra.mxu0 0
      %514 = vmatprep.subr.bf16.mxu0 0
      %515 = vmatpush1.bf16.msra.mxu0 0
      %516 = vmatprep.subr.bf16.mxu0 0
      %517 = vmatpush1.bf16.msra.mxu0 0
      %518 = vmatprep.subr.bf16.mxu0 0
      %519 = vmatpush1.bf16.msra.mxu0 0
      %520 = vmatprep.subr.bf16.mxu0 0
      %521 = vmatpush1.bf16.msra.mxu0 0
      %522 = vmatprep.subr.bf16.mxu0 0
      %523 = vmatpush1.bf16.msra.mxu0 0
      %524 = vmatprep.subr.bf16.mxu0 0
      %525 = vmatpush1.bf16.msra.mxu0 0
      %526 = vmatprep.subr.bf16.mxu0 0
      %527 = vmatpush1.bf16.msra.mxu0 0
      %528 = vmatprep.subr.bf16.mxu0 0
      %529 = vmatpush1.bf16.msra.mxu0 0
      %530 = vmatprep.subr.bf16.mxu0 0
      %531 = vmatpush1.bf16.msra.mxu0 0
      %532 = vmatprep.subr.bf16.mxu0 0
      %533 = vmatpush1.bf16.msra.mxu0 0
      %534 = vmatprep.subr.bf16.mxu0 0
      %535 = vmatpush1.bf16.msra.mxu0 0
      %536 = vmatprep.mubr.bf16.mxu0 0
      %537 = vmatmul.mubr.bf16.gmra.mrb[0].mxu0 %v498
      %v538 = vpop.f32.mrb[0].mxu0
      %v539 = vadd.f32 0.0, %v538
      %v540 = vpop.f32.mrb[0].mxu0
      %v541 = vpop.f32.mrb[0].mxu0
      %v542 = vpop.f32.mrb[0].mxu0
      %543 = vdwg.mxu0
      %v545 = vsel %vm496, %v436, 0
      %v548 = vsel %vm500, %v437, 0
      %550 = vmatprep.subr.bf16.mxu0 0
      %551 = vmatpush1.bf16.msra.mxu0 %v548
      %552 = vmatprep.subr.bf16.mxu0 0
      %553 = vmatpush1.bf16.msra.mxu0 0
      %554 = vmatprep.subr.bf16.mxu0 0
      %555 = vmatpush1.bf16.msra.mxu0 0
      %556 = vmatprep.subr.bf16.mxu0 0
      %557 = vmatpush1.bf16.msra.mxu0 0
      %558 = vmatprep.subr.bf16.mxu0 0
      %559 = vmatpush1.bf16.msra.mxu0 0
      %560 = vmatprep.subr.bf16.mxu0 0
      %561 = vmatpush1.bf16.msra.mxu0 0
      %562 = vmatprep.subr.bf16.mxu0 0
      %563 = vmatpush1.bf16.msra.mxu0 0
      %564 = vmatprep.subr.bf16.mxu0 0
      %565 = vmatpush1.bf16.msra.mxu0 0
      %566 = vmatprep.subr.bf16.mxu0 0
      %567 = vmatpush1.bf16.msra.mxu0 0
      %568 = vmatprep.subr.bf16.mxu0 0
      %569 = vmatpush1.bf16.msra.mxu0 0
      %570 = vmatprep.subr.bf16.mxu0 0
      %571 = vmatpush1.bf16.msra.mxu0 0
      %572 = vmatprep.subr.bf16.mxu0 0
      %573 = vmatpush1.bf16.msra.mxu0 0
      %574 = vmatprep.subr.bf16.mxu0 0
      %575 = vmatpush1.bf16.msra.mxu0 0
      %576 = vmatprep.subr.bf16.mxu0 0
      %577 = vmatpush1.bf16.msra.mxu0 0
      %578 = vmatprep.subr.bf16.mxu0 0
      %579 = vmatpush1.bf16.msra.mxu0 0
      %580 = vmatprep.subr.bf16.mxu0 0
      %581 = vmatpush1.bf16.msra.mxu0 0
      %582 = vmatprep.mubr.bf16.mxu0 0
      %583 = vmatmul.mubr.bf16.gmra.mrb[0].mxu0 %v545
      %v584 = vpop.f32.mrb[0].mxu0
      %v585 = vadd.f32 %v539, %v584
      %v586 = vpop.f32.mrb[0].mxu0
      %v587 = vpop.f32.mrb[0].mxu0
      %v588 = vpop.f32.mrb[0].mxu0
      %589 = vdwg.mxu0
      %v590 = vpack.c.bf16 %v585, %v585
      %v591 = vld [vmem:[%s1 + $0x50] sm:$0xf]
      %vm592 = vcmask 31744
      %v594 = vsel %vm592, %v591, 0
      %vm596 = vcmask 1041408
      %v598 = vsel %vm596, %v590, 0
      %600 = vmatprep.subr.bf16.mxu0 0
      %601 = vmatpush1.bf16.msra.mxu0 %v598
      %602 = vmatprep.subr.bf16.mxu0 0
      %603 = vmatpush1.bf16.msra.mxu0 0
      %604 = vmatprep.subr.bf16.mxu0 0
      %605 = vmatpush1.bf16.msra.mxu0 0
      %606 = vmatprep.subr.bf16.mxu0 0
      %607 = vmatpush1.bf16.msra.mxu0 0
      %608 = vmatprep.subr.bf16.mxu0 0
      %609 = vmatpush1.bf16.msra.mxu0 0
      %610 = vmatprep.subr.bf16.mxu0 0
      %611 = vmatpush1.bf16.msra.mxu0 0
      %612 = vmatprep.subr.bf16.mxu0 0
      %613 = vmatpush1.bf16.msra.mxu0 0
      %614 = vmatprep.subr.bf16.mxu0 0
      %615 = vmatpush1.bf16.msra.mxu0 0
      %616 = vmatprep.subr.bf16.mxu0 0
      %617 = vmatpush1.bf16.msra.mxu0 0
      %618 = vmatprep.subr.bf16.mxu0 0
      %619 = vmatpush1.bf16.msra.mxu0 0
      %620 = vmatprep.subr.bf16.mxu0 0
      %621 = vmatpush1.bf16.msra.mxu0 0
      %622 = vmatprep.subr.bf16.mxu0 0
      %623 = vmatpush1.bf16.msra.mxu0 0
      %624 = vmatprep.subr.bf16.mxu0 0
      %625 = vmatpush1.bf16.msra.mxu0 0
      %626 = vmatprep.subr.bf16.mxu0 0
      %627 = vmatpush1.bf16.msra.mxu0 0
      %628 = vmatprep.subr.bf16.mxu0 0
      %629 = vmatpush1.bf16.msra.mxu0 0
      %630 = vmatprep.subr.bf16.mxu0 0
      %631 = vmatpush1.bf16.msra.mxu0 0
      %632 = vmatprep.mubr.bf16.mxu0 0
      %633 = vmatmul.mubr.bf16.gmra.mrb[0].mxu0 %v594
      %v634 = vpop.f32.mrb[0].mxu0
      %v635 = vadd.f32 0.0, %v634
      %v636 = vpop.f32.mrb[0].mxu0
      %v637 = vpop.f32.mrb[0].mxu0
      %v638 = vpop.f32.mrb[0].mxu0
      %639 = vdwg.mxu0
      %v640 = vpack.c.bf16 %v635, %v635
      %v641 = vld [vmem:[%s1 + $0x58] sm:$0xf]
      %v643 = vsel %vm592, %v641, 0
      %645 = vmatprep.subr.bf16.mxu0 0
      %646 = vmatpush1.bf16.msra.mxu0 %v598
      %647 = vmatprep.subr.bf16.mxu0 0
      %648 = vmatpush1.bf16.msra.mxu0 0
      %649 = vmatprep.subr.bf16.mxu0 0
      %650 = vmatpush1.bf16.msra.mxu0 0
      %651 = vmatprep.subr.bf16.mxu0 0
      %652 = vmatpush1.bf16.msra.mxu0 0
      %653 = vmatprep.subr.bf16.mxu0 0
      %654 = vmatpush1.bf16.msra.mxu0 0
      %655 = vmatprep.subr.bf16.mxu0 0
      %656 = vmatpush1.bf16.msra.mxu0 0
      %657 = vmatprep.subr.bf16.mxu0 0
      %658 = vmatpush1.bf16.msra.mxu0 0
      %659 = vmatprep.subr.bf16.mxu0 0
      %660 = vmatpush1.bf16.msra.mxu0 0
      %661 = vmatprep.subr.bf16.mxu0 0
      %662 = vmatpush1.bf16.msra.mxu0 0
      %663 = vmatprep.subr.bf16.mxu0 0
      %664 = vmatpush1.bf16.msra.mxu0 0
      %665 = vmatprep.subr.bf16.mxu0 0
      %666 = vmatpush1.bf16.msra.mxu0 0
      %667 = vmatprep.subr.bf16.mxu0 0
      %668 = vmatpush1.bf16.msra.mxu0 0
      %669 = vmatprep.subr.bf16.mxu0 0
      %670 = vmatpush1.bf16.msra.mxu0 0
      %671 = vmatprep.subr.bf16.mxu0 0
      %672 = vmatpush1.bf16.msra.mxu0 0
      %673 = vmatprep.subr.bf16.mxu0 0
      %674 = vmatpush1.bf16.msra.mxu0 0
      %675 = vmatprep.subr.bf16.mxu0 0
      %676 = vmatpush1.bf16.msra.mxu0 0
      %677 = vmatprep.mubr.bf16.mxu0 0
      %678 = vmatmul.mubr.bf16.gmra.mrb[0].mxu0 %v643
      %v679 = vpop.f32.mrb[0].mxu0
      %v680 = vadd.f32 0.0, %v679
      %v681 = vpop.f32.mrb[0].mxu0
      %v682 = vpop.f32.mrb[0].mxu0
      %v683 = vpop.f32.mrb[0].mxu0
      %684 = vdwg.mxu0
      %v685 = vpack.c.bf16 %v680, %v680
      %v686 = vld [vmem:[%s1 + $0x60] sm:$0xf]
      %v688 = vsel %vm592, %v686, 0
      %690 = vmatprep.subr.bf16.mxu0 0
      %691 = vmatpush1.bf16.msra.mxu0 %v598
      %692 = vmatprep.subr.bf16.mxu0 0
      %693 = vmatpush1.bf16.msra.mxu0 0
      %694 = vmatprep.subr.bf16.mxu0 0
      %695 = vmatpush1.bf16.msra.mxu0 0
      %696 = vmatprep.subr.bf16.mxu0 0
      %697 = vmatpush1.bf16.msra.mxu0 0
      %698 = vmatprep.subr.bf16.mxu0 0
      %699 = vmatpush1.bf16.msra.mxu0 0
      %700 = vmatprep.subr.bf16.mxu0 0
      %701 = vmatpush1.bf16.msra.mxu0 0
      %702 = vmatprep.subr.bf16.mxu0 0
      %703 = vmatpush1.bf16.msra.mxu0 0
      %704 = vmatprep.subr.bf16.mxu0 0
      %705 = vmatpush1.bf16.msra.mxu0 0
      %706 = vmatprep.subr.bf16.mxu0 0
      %707 = vmatpush1.bf16.msra.mxu0 0
      %708 = vmatprep.subr.bf16.mxu0 0
      %709 = vmatpush1.bf16.msra.mxu0 0
      %710 = vmatprep.subr.bf16.mxu0 0
      %711 = vmatpush1.bf16.msra.mxu0 0
      %712 = vmatprep.subr.bf16.mxu0 0
      %713 = vmatpush1.bf16.msra.mxu0 0
      %714 = vmatprep.subr.bf16.mxu0 0
      %715 = vmatpush1.bf16.msra.mxu0 0
      %716 = vmatprep.subr.bf16.mxu0 0
      %717 = vmatpush1.bf16.msra.mxu0 0
      %718 = vmatprep.subr.bf16.mxu0 0
      %719 = vmatpush1.bf16.msra.mxu0 0
      %720 = vmatprep.subr.bf16.mxu0 0
      %721 = vmatpush1.bf16.msra.mxu0 0
      %722 = vmatprep.mubr.bf16.mxu0 0
      %723 = vmatmul.mubr.bf16.gmra.mrb[0].mxu0 %v688
      %v724 = vpop.f32.mrb[0].mxu0
      %v725 = vadd.f32 0.0, %v724
      %v726 = vpop.f32.mrb[0].mxu0
      %v727 = vpop.f32.mrb[0].mxu0
      %v728 = vpop.f32.mrb[0].mxu0
      %729 = vdwg.mxu0
      %v730 = vpack.c.bf16 %v725, %v725
      %v731 = vld [vmem:[%s1 + $0x68] sm:$0xf]
      %v732 = vld [vmem:[%s1 + $0x6c] sm:$0xf]
      %v733 = vld [vmem:[%s1 + $0x70] sm:$0xf]
      %v734 = vld [vmem:[%s1 + $0x74] sm:$0xf]
      %v737 = vunpack.c.l.b16 %v733
      %v738 = vunpack.c.l.b16 %v734
      %v739 = vpack.c.b16 %v738, %v737
      %v742 = vsel %vm248, %v685, 0
      %744 = vmatprep.subr.bf16.mxu0 0
      %745 = vmatpush1.bf16.msra.mxu0 %v739
      %746 = vmatprep.subr.bf16.mxu0 0
      %747 = vmatpush1.bf16.msra.mxu0 0
      %748 = vmatprep.subr.bf16.mxu0 0
      %749 = vmatpush1.bf16.msra.mxu0 0
      %750 = vmatprep.subr.bf16.mxu0 0
      %751 = vmatpush1.bf16.msra.mxu0 0
      %752 = vmatprep.subr.bf16.mxu0 0
      %753 = vmatpush1.bf16.msra.mxu0 0
      %754 = vmatprep.subr.bf16.mxu0 0
      %755 = vmatpush1.bf16.msra.mxu0 0
      %756 = vmatprep.subr.bf16.mxu0 0
      %757 = vmatpush1.bf16.msra.mxu0 0
      %758 = vmatprep.subr.bf16.mxu0 0
      %759 = vmatpush1.bf16.msra.mxu0 0
      %760 = vmatprep.subr.bf16.mxu0 0
      %761 = vmatpush1.bf16.msra.mxu0 0
      %762 = vmatprep.subr.bf16.mxu0 0
      %763 = vmatpush1.bf16.msra.mxu0 0
      %764 = vmatprep.subr.bf16.mxu0 0
      %765 = vmatpush1.bf16.msra.mxu0 0
      %766 = vmatprep.subr.bf16.mxu0 0
      %767 = vmatpush1.bf16.msra.mxu0 0
      %768 = vmatprep.subr.bf16.mxu0 0
      %769 = vmatpush1.bf16.msra.mxu0 0
      %770 = vmatprep.subr.bf16.mxu0 0
      %771 = vmatpush1.bf16.msra.mxu0 0
      %772 = vmatprep.subr.bf16.mxu0 0
      %773 = vmatpush1.bf16.msra.mxu0 0
      %774 = vmatprep.subr.bf16.mxu0 0
      %775 = vmatpush1.bf16.msra.mxu0 0
      %776 = vmatprep.mubr.bf16.mxu0 0
      %777 = vmatmul.mubr.bf16.gmra.mrb[0].mxu0 %v742
      %v778 = vpop.f32.mrb[0].mxu0
      %v779 = vadd.f32 0.0, %v778
      %v780 = vpop.f32.mrb[0].mxu0
      %v781 = vpop.f32.mrb[0].mxu0
      %v782 = vpop.f32.mrb[0].mxu0
      %783 = vdwg.mxu0
      %v786 = vunpack.c.l.b16 %v731
      %v787 = vunpack.c.l.b16 %v732
      %v788 = vpack.c.b16 %v787, %v786
      %v791 = vsel %vm248, %v640, 0
      %793 = vmatprep.subr.bf16.mxu0 0
      %794 = vmatpush1.bf16.msra.mxu0 %v788
      %795 = vmatprep.subr.bf16.mxu0 0
      %796 = vmatpush1.bf16.msra.mxu0 0
      %797 = vmatprep.subr.bf16.mxu0 0
      %798 = vmatpush1.bf16.msra.mxu0 0
      %799 = vmatprep.subr.bf16.mxu0 0
      %800 = vmatpush1.bf16.msra.mxu0 0
      %801 = vmatprep.subr.bf16.mxu0 0
      %802 = vmatpush1.bf16.msra.mxu0 0
      %803 = vmatprep.subr.bf16.mxu0 0
      %804 = vmatpush1.bf16.msra.mxu0 0
      %805 = vmatprep.subr.bf16.mxu0 0
      %806 = vmatpush1.bf16.msra.mxu0 0
      %807 = vmatprep.subr.bf16.mxu0 0
      %808 = vmatpush1.bf16.msra.mxu0 0
      %809 = vmatprep.subr.bf16.mxu0 0
      %810 = vmatpush1.bf16.msra.mxu0 0
      %811 = vmatprep.subr.bf16.mxu0 0
      %812 = vmatpush1.bf16.msra.mxu0 0
      %813 = vmatprep.subr.bf16.mxu0 0
      %814 = vmatpush1.bf16.msra.mxu0 0
      %815 = vmatprep.subr.bf16.mxu0 0
      %816 = vmatpush1.bf16.msra.mxu0 0
      %817 = vmatprep.subr.bf16.mxu0 0
      %818 = vmatpush1.bf16.msra.mxu0 0
      %819 = vmatprep.subr.bf16.mxu0 0
      %820 = vmatpush1.bf16.msra.mxu0 0
      %821 = vmatprep.subr.bf16.mxu0 0
      %822 = vmatpush1.bf16.msra.mxu0 0
      %823 = vmatprep.subr.bf16.mxu0 0
      %824 = vmatpush1.bf16.msra.mxu0 0
      %825 = vmatprep.mubr.bf16.mxu0 0
      %826 = vmatmul.mubr.bf16.gmra.mrb[0].mxu0 %v791
      %v827 = vpop.f32.mrb[0].mxu0
      %v828 = vadd.f32 %v779, %v827
      %v829 = vpop.f32.mrb[0].mxu0
      %v830 = vpop.f32.mrb[0].mxu0
      %v831 = vpop.f32.mrb[0].mxu0
      %832 = vdwg.mxu0
      %v833 = vld [vmem:[%s1 + $0x78] sm:$0xf]
      %v834 = vld [vmem:[%s1 + $0x7c] sm:$0xf]
      %v837 = vunpack.c.l.b16 %v833
      %v838 = vunpack.c.l.b16 %v834
      %v839 = vpack.c.b16 %v838, %v837
      %v842 = vsel %vm248, %v730, 0
      %844 = vmatprep.subr.bf16.mxu0 0
      %845 = vmatpush1.bf16.msra.mxu0 %v839
      %846 = vmatprep.subr.bf16.mxu0 0
      %847 = vmatpush1.bf16.msra.mxu0 0
      %848 = vmatprep.subr.bf16.mxu0 0
      %849 = vmatpush1.bf16.msra.mxu0 0
      %850 = vmatprep.subr.bf16.mxu0 0
      %851 = vmatpush1.bf16.msra.mxu0 0
      %852 = vmatprep.subr.bf16.mxu0 0
      %853 = vmatpush1.bf16.msra.mxu0 0
      %854 = vmatprep.subr.bf16.mxu0 0
      %855 = vmatpush1.bf16.msra.mxu0 0
      %856 = vmatprep.subr.bf16.mxu0 0
      %857 = vmatpush1.bf16.msra.mxu0 0
      %858 = vmatprep.subr.bf16.mxu0 0
      %859 = vmatpush1.bf16.msra.mxu0 0
      %860 = vmatprep.subr.bf16.mxu0 0
      %861 = vmatpush1.bf16.msra.mxu0 0
      %862 = vmatprep.subr.bf16.mxu0 0
      %863 = vmatpush1.bf16.msra.mxu0 0
      %864 = vmatprep.subr.bf16.mxu0 0
      %865 = vmatpush1.bf16.msra.mxu0 0
      %866 = vmatprep.subr.bf16.mxu0 0
      %867 = vmatpush1.bf16.msra.mxu0 0
      %868 = vmatprep.subr.bf16.mxu0 0
      %869 = vmatpush1.bf16.msra.mxu0 0
      %870 = vmatprep.subr.bf16.mxu0 0
      %871 = vmatpush1.bf16.msra.mxu0 0
      %872 = vmatprep.subr.bf16.mxu0 0
      %873 = vmatpush1.bf16.msra.mxu0 0
      %874 = vmatprep.subr.bf16.mxu0 0
      %875 = vmatpush1.bf16.msra.mxu0 0
      %876 = vmatprep.mubr.bf16.mxu0 0
      %877 = vmatmul.mubr.bf16.gmra.mrb[0].mxu0 %v842
      %v878 = vpop.f32.mrb[0].mxu0
      %v879 = vadd.f32 0.0, %v878
      %v880 = vpop.f32.mrb[0].mxu0
      %v881 = vpop.f32.mrb[0].mxu0
      %v882 = vpop.f32.mrb[0].mxu0
      %883 = vdwg.mxu0
      %v884 = vadd.f32 %v828, %v879
      %v885 = vld [vmem:[%s2 + $0x18] sm:$0x1]
      %v886 = vlaneseq
      %v887 = vshrl.u32 %v886, 7
      %v888 = vsub.s32 0, %v887
      %v889 = vrot.slane %v885, %v888
      %v890 = vadd.f32 %v884, %v889
      %v891 = vmul.f32 %v890, 0.5
      %v892 = vmul.f32 %v890, 0.044715
      %v893 = vmul.f32 %v892, %v890
      %v894 = vmul.f32 %v893, %v890
      %v895 = vadd.f32 %v890, %v894
      %v896 = vmul.f32 %v895, 0.7978846
      %v897 = vtanh.pop %v896
      %v898 = vadd.f32 %v897, 1.0
      %v899 = vmul.f32 %v891, %v898
      %v900 = vpack.c.bf16 %v899, %v899
      %v901 = vld [vmem:[%s1 + $0x80] sm:$0xf]
      %v902 = vld [vmem:[%s1 + $0x84] sm:$0xf]
      %v905 = vunpack.c.l.b16 %v901
      %v906 = vunpack.c.l.b16 %v902
      %v907 = vpack.c.b16 %v906, %v905
      %v909 = vsel %vm177, %v907, 0
      %v912 = vsel %vm181, %v900, 0
      %914 = vmatprep.subr.bf16.mxu0 0
      %915 = vmatpush1.bf16.msra.mxu0 %v912
      %916 = vmatprep.subr.bf16.mxu0 0
      %917 = vmatpush1.bf16.msra.mxu0 0
      %918 = vmatprep.subr.bf16.mxu0 0
      %919 = vmatpush1.bf16.msra.mxu0 0
      %920 = vmatprep.subr.bf16.mxu0 0
      %921 = vmatpush1.bf16.msra.mxu0 0
      %922 = vmatprep.subr.bf16.mxu0 0
      %923 = vmatpush1.bf16.msra.mxu0 0
      %924 = vmatprep.subr.bf16.mxu0 0
      %925 = vmatpush1.bf16.msra.mxu0 0
      %926 = vmatprep.subr.bf16.mxu0 0
      %927 = vmatpush1.bf16.msra.mxu0 0
      %928 = vmatprep.subr.bf16.mxu0 0
      %929 = vmatpush1.bf16.msra.mxu0 0
      %930 = vmatprep.subr.bf16.mxu0 0
      %931 = vmatpush1.bf16.msra.mxu0 0
      %932 = vmatprep.subr.bf16.mxu0 0
      %933 = vmatpush1.bf16.msra.mxu0 0
      %934 = vmatprep.subr.bf16.mxu0 0
      %935 = vmatpush1.bf16.msra.mxu0 0
      %936 = vmatprep.subr.bf16.mxu0 0
      %937 = vmatpush1.bf16.msra.mxu0 0
      %938 = vmatprep.subr.bf16.mxu0 0
      %939 = vmatpush1.bf16.msra.mxu0 0
      %940 = vmatprep.subr.bf16.mxu0 0
      %941 = vmatpush1.bf16.msra.mxu0 0
      %942 = vmatprep.subr.bf16.mxu0 0
      %943 = vmatpush1.bf16.msra.mxu0 0
      %944 = vmatprep.subr.bf16.mxu0 0
      %945 = vmatpush1.bf16.msra.mxu0 0
      %946 = vmatprep.mubr.bf16.mxu0 0
      %947 = vmatmul.mubr.bf16.gmra.mrb[0].mxu0 %v909
      %v948 = vpop.f32.mrb[0].mxu0
      %v949 = vadd.f32 0.0, %v948
      %v950 = vpop.f32.mrb[0].mxu0
      %v951 = vpop.f32.mrb[0].mxu0
      %v952 = vadd.f32 0.0, %v951
      %v953 = vpop.f32.mrb[0].mxu0
      %954 = vdwg.mxu0
      %v955 = vpack.c.bf16 %v952, %v949
      %v956 = vld [vmem:[%s1 + $0x88] sm:$0xf]
      %v957 = vld [vmem:[%s1 + $0x8c] sm:$0xf]
      %v960 = vunpack.c.l.b16 %v956
      %v961 = vunpack.c.l.b16 %v957
      %v962 = vpack.c.b16 %v961, %v960
      %v964 = vsel %vm177, %v962, 0
      %966 = vmatprep.subr.bf16.mxu0 0
      %967 = vmatpush1.bf16.msra.mxu0 %v912
      %968 = vmatprep.subr.bf16.mxu0 0
      %969 = vmatpush1.bf16.msra.mxu0 0
      %970 = vmatprep.subr.bf16.mxu0 0
      %971 = vmatpush1.bf16.msra.mxu0 0
      %972 = vmatprep.subr.bf16.mxu0 0
      %973 = vmatpush1.bf16.msra.mxu0 0
      %974 = vmatprep.subr.bf16.mxu0 0
      %975 = vmatpush1.bf16.msra.mxu0 0
      %976 = vmatprep.subr.bf16.mxu0 0
      %977 = vmatpush1.bf16.msra.mxu0 0
      %978 = vmatprep.subr.bf16.mxu0 0
      %979 = vmatpush1.bf16.msra.mxu0 0
      %980 = vmatprep.subr.bf16.mxu0 0
      %981 = vmatpush1.bf16.msra.mxu0 0
      %982 = vmatprep.subr.bf16.mxu0 0
      %983 = vmatpush1.bf16.msra.mxu0 0
      %984 = vmatprep.subr.bf16.mxu0 0
      %985 = vmatpush1.bf16.msra.mxu0 0
      %986 = vmatprep.subr.bf16.mxu0 0
      %987 = vmatpush1.bf16.msra.mxu0 0
      %988 = vmatprep.subr.bf16.mxu0 0
      %989 = vmatpush1.bf16.msra.mxu0 0
      %990 = vmatprep.subr.bf16.mxu0 0
      %991 = vmatpush1.bf16.msra.mxu0 0
      %992 = vmatprep.subr.bf16.mxu0 0
      %993 = vmatpush1.bf16.msra.mxu0 0
      %994 = vmatprep.subr.bf16.mxu0 0
      %995 = vmatpush1.bf16.msra.mxu0 0
      %996 = vmatprep.subr.bf16.mxu0 0
      %997 = vmatpush1.bf16.msra.mxu0 0
      %998 = vmatprep.mubr.bf16.mxu0 0
      %999 = vmatmul.mubr.bf16.gmra.mrb[0].mxu0 %v964
      %v1000 = vpop.f32.mrb[0].mxu0
      %v1001 = vadd.f32 0.0, %v1000
      %v1002 = vpop.f32.mrb[0].mxu0
      %v1003 = vpop.f32.mrb[0].mxu0
      %v1004 = vadd.f32 0.0, %v1003
      %v1005 = vpop.f32.mrb[0].mxu0
      %1006 = vdwg.mxu0
      %v1007 = vpack.c.bf16 %v1004, %v1001
      %v1008 = vld [vmem:[%s1 + $0x90] sm:$0xf]
      %v1009 = vld [vmem:[%s1 + $0x94] sm:$0xf]
      %v1012 = vunpack.c.l.b16 %v1008
      %v1013 = vunpack.c.l.b16 %v1009
      %v1014 = vpack.c.b16 %v1013, %v1012
      %v1016 = vsel %vm177, %v1014, 0
      %1018 = vmatprep.subr.bf16.mxu0 0
      %1019 = vmatpush1.bf16.msra.mxu0 %v912
      %1020 = vmatprep.subr.bf16.mxu0 0
      %1021 = vmatpush1.bf16.msra.mxu0 0
      %1022 = vmatprep.subr.bf16.mxu0 0
      %1023 = vmatpush1.bf16.msra.mxu0 0
      %1024 = vmatprep.subr.bf16.mxu0 0
      %1025 = vmatpush1.bf16.msra.mxu0 0
      %1026 = vmatprep.subr.bf16.mxu0 0
      %1027 = vmatpush1.bf16.msra.mxu0 0
      %1028 = vmatprep.subr.bf16.mxu0 0
      %1029 = vmatpush1.bf16.msra.mxu0 0
      %1030 = vmatprep.subr.bf16.mxu0 0
      %1031 = vmatpush1.bf16.msra.mxu0 0
      %1032 = vmatprep.subr.bf16.mxu0 0
      %1033 = vmatpush1.bf16.msra.mxu0 0
      %1034 = vmatprep.subr.bf16.mxu0 0
      %1035 = vmatpush1.bf16.msra.mxu0 0
      %1036 = vmatprep.subr.bf16.mxu0 0
      %1037 = vmatpush1.bf16.msra.mxu0 0
      %1038 = vmatprep.subr.bf16.mxu0 0
      %1039 = vmatpush1.bf16.msra.mxu0 0
      %1040 = vmatprep.subr.bf16.mxu0 0
      %1041 = vmatpush1.bf16.msra.mxu0 0
      %1042 = vmatprep.subr.bf16.mxu0 0
      %1043 = vmatpush1.bf16.msra.mxu0 0
      %1044 = vmatprep.subr.bf16.mxu0 0
      %1045 = vmatpush1.bf16.msra.mxu0 0
      %1046 = vmatprep.subr.bf16.mxu0 0
      %1047 = vmatpush1.bf16.msra.mxu0 0
      %1048 = vmatprep.subr.bf16.mxu0 0
      %1049 = vmatpush1.bf16.msra.mxu0 0
      %1050 = vmatprep.mubr.bf16.mxu0 0
      %1051 = vmatmul.mubr.bf16.gmra.mrb[0].mxu0 %v1016
      %v1052 = vpop.f32.mrb[0].mxu0
      %v1053 = vadd.f32 0.0, %v1052
      %v1054 = vpop.f32.mrb[0].mxu0
      %v1055 = vpop.f32.mrb[0].mxu0
      %v1056 = vadd.f32 0.0, %v1055
      %v1057 = vpop.f32.mrb[0].mxu0
      %1058 = vdwg.mxu0
      %v1059 = vpack.c.bf16 %v1056, %v1053
      %v1060 = vld [vmem:[%s1 + $0x98] sm:$0xf]
      %v1061 = vld [vmem:[%s1 + $0x9c] sm:$0xf]
      %v1062 = vld [vmem:[%s1 + $0xa0] sm:$0xf]
      %v1063 = vld [vmem:[%s1 + $0xa4] sm:$0xf]
      %v1064 = vld [vmem:[%s1 + $0xa8] sm:$0xf]
      %v1065 = vld [vmem:[%s1 + $0xac] sm:$0xf]
      %v1066 = vld [vmem:[%s1 + $0xb0] sm:$0xf]
      %v1067 = vld [vmem:[%s1 + $0xb4] sm:$0xf]
      %v1072 = vunpack.c.l.b16 %v1064
      %v1073 = vunpack.c.l.b16 %v1065
      %v1074 = vunpack.c.l.b16 %v1066
      %v1075 = vunpack.c.l.b16 %v1067
      %v1076 = vpack.c.b16 %v1073, %v1072
      %v1077 = vpack.c.b16 %v1075, %v1074
      %v1081 = vsel %vm323, %v1007, 0
      %1083 = vmatprep.subr.bf16.mxu0 0
      %1084 = vmatpush1.bf16.msra.mxu0 %v1076
      %1085 = vmatprep.subr.bf16.mxu0 0
      %1086 = vmatpush1.bf16.msra.mxu0 %v1077
      %1087 = vmatprep.subr.bf16.mxu0 0
      %1088 = vmatpush1.bf16.msra.mxu0 0
      %1089 = vmatprep.subr.bf16.mxu0 0
      %1090 = vmatpush1.bf16.msra.mxu0 0
      %1091 = vmatprep.subr.bf16.mxu0 0
      %1092 = vmatpush1.bf16.msra.mxu0 0
      %1093 = vmatprep.subr.bf16.mxu0 0
      %1094 = vmatpush1.bf16.msra.mxu0 0
      %1095 = vmatprep.subr.bf16.mxu0 0
      %1096 = vmatpush1.bf16.msra.mxu0 0
      %1097 = vmatprep.subr.bf16.mxu0 0
      %1098 = vmatpush1.bf16.msra.mxu0 0
      %1099 = vmatprep.subr.bf16.mxu0 0
      %1100 = vmatpush1.bf16.msra.mxu0 0
      %1101 = vmatprep.subr.bf16.mxu0 0
      %1102 = vmatpush1.bf16.msra.mxu0 0
      %1103 = vmatprep.subr.bf16.mxu0 0
      %1104 = vmatpush1.bf16.msra.mxu0 0
      %1105 = vmatprep.subr.bf16.mxu0 0
      %1106 = vmatpush1.bf16.msra.mxu0 0
      %1107 = vmatprep.subr.bf16.mxu0 0
      %1108 = vmatpush1.bf16.msra.mxu0 0
      %1109 = vmatprep.subr.bf16.mxu0 0
      %1110 = vmatpush1.bf16.msra.mxu0 0
      %1111 = vmatprep.subr.bf16.mxu0 0
      %1112 = vmatpush1.bf16.msra.mxu0 0
      %1113 = vmatprep.subr.bf16.mxu0 0
      %1114 = vmatpush1.bf16.msra.mxu0 0
      %1115 = vmatprep.mubr.bf16.mxu0 0
      %1116 = vmatmul.mubr.bf16.gmra.mrb[0].mxu0 %v1081
      %v1117 = vpop.f32.mrb[0].mxu0
      %v1118 = vadd.f32 0.0, %v1117
      %v1119 = vpop.f32.mrb[0].mxu0
      %v1120 = vpop.f32.mrb[0].mxu0
      %v1121 = vadd.f32 0.0, %v1120
      %v1122 = vpop.f32.mrb[0].mxu0
      %1123 = vdwg.mxu0
      %v1128 = vunpack.c.l.b16 %v1060
      %v1129 = vunpack.c.l.b16 %v1061
      %v1130 = vunpack.c.l.b16 %v1062
      %v1131 = vunpack.c.l.b16 %v1063
      %v1132 = vpack.c.b16 %v1129, %v1128
      %v1133 = vpack.c.b16 %v1131, %v1130
      %v1137 = vsel %vm323, %v955, 0
      %1139 = vmatprep.subr.bf16.mxu0 0
      %1140 = vmatpush1.bf16.msra.mxu0 %v1132
      %1141 = vmatprep.subr.bf16.mxu0 0
      %1142 = vmatpush1.bf16.msra.mxu0 %v1133
      %1143 = vmatprep.subr.bf16.mxu0 0
      %1144 = vmatpush1.bf16.msra.mxu0 0
      %1145 = vmatprep.subr.bf16.mxu0 0
      %1146 = vmatpush1.bf16.msra.mxu0 0
      %1147 = vmatprep.subr.bf16.mxu0 0
      %1148 = vmatpush1.bf16.msra.mxu0 0
      %1149 = vmatprep.subr.bf16.mxu0 0
      %1150 = vmatpush1.bf16.msra.mxu0 0
      %1151 = vmatprep.subr.bf16.mxu0 0
      %1152 = vmatpush1.bf16.msra.mxu0 0
      %1153 = vmatprep.subr.bf16.mxu0 0
      %1154 = vmatpush1.bf16.msra.mxu0 0
      %1155 = vmatprep.subr.bf16.mxu0 0
      %1156 = vmatpush1.bf16.msra.mxu0 0
      %1157 = vmatprep.subr.bf16.mxu0 0
      %1158 = vmatpush1.bf16.msra.mxu0 0
      %1159 = vmatprep.subr.bf16.mxu0 0
      %1160 = vmatpush1.bf16.msra.mxu0 0
      %1161 = vmatprep.subr.bf16.mxu0 0
      %1162 = vmatpush1.bf16.msra.mxu0 0
      %1163 = vmatprep.subr.bf16.mxu0 0
      %1164 = vmatpush1.bf16.msra.mxu0 0
      %1165 = vmatprep.subr.bf16.mxu0 0
      %1166 = vmatpush1.bf16.msra.mxu0 0
      %1167 = vmatprep.subr.bf16.mxu0 0
      %1168 = vmatpush1.bf16.msra.mxu0 0
      %1169 = vmatprep.subr.bf16.mxu0 0
      %1170 = vmatpush1.bf16.msra.mxu0 0
      %1171 = vmatprep.mubr.bf16.mxu0 0
      %1172 = vmatmul.mubr.bf16.gmra.mrb[0].mxu0 %v1137
      %v1173 = vpop.f32.mrb[0].mxu0
      %v1174 = vadd.f32 %v1118, %v1173
      %v1175 = vpop.f32.mrb[0].mxu0
      %v1176 = vpop.f32.mrb[0].mxu0
      %v1177 = vadd.f32 %v1121, %v1176
      %v1178 = vpop.f32.mrb[0].mxu0
      %1179 = vdwg.mxu0
      %v1180 = vld [vmem:[%s1 + $0xb8] sm:$0xf]
      %v1181 = vld [vmem:[%s1 + $0xbc] sm:$0xf]
      %v1182 = vld [vmem:[%s1 + $0xc0] sm:$0xf]
      %v1183 = vld [vmem:[%s1 + $0xc4] sm:$0xf]
      %v1188 = vunpack.c.l.b16 %v1180
      %v1189 = vunpack.c.l.b16 %v1181
      %v1190 = vunpack.c.l.b16 %v1182
      %v1191 = vunpack.c.l.b16 %v1183
      %v1192 = vpack.c.b16 %v1189, %v1188
      %v1193 = vpack.c.b16 %v1191, %v1190
      %v1197 = vsel %vm323, %v1059, 0
      %1199 = vmatprep.subr.bf16.mxu0 0
      %1200 = vmatpush1.bf16.msra.mxu0 %v1192
      %1201 = vmatprep.subr.bf16.mxu0 0
      %1202 = vmatpush1.bf16.msra.mxu0 %v1193
      %1203 = vmatprep.subr.bf16.mxu0 0
      %1204 = vmatpush1.bf16.msra.mxu0 0
      %1205 = vmatprep.subr.bf16.mxu0 0
      %1206 = vmatpush1.bf16.msra.mxu0 0
      %1207 = vmatprep.subr.bf16.mxu0 0
      %1208 = vmatpush1.bf16.msra.mxu0 0
      %1209 = vmatprep.subr.bf16.mxu0 0
      %1210 = vmatpush1.bf16.msra.mxu0 0
      %1211 = vmatprep.subr.bf16.mxu0 0
      %1212 = vmatpush1.bf16.msra.mxu0 0
      %1213 = vmatprep.subr.bf16.mxu0 0
      %1214 = vmatpush1.bf16.msra.mxu0 0
      %1215 = vmatprep.subr.bf16.mxu0 0
      %1216 = vmatpush1.bf16.msra.mxu0 0
      %1217 = vmatprep.subr.bf16.mxu0 0
      %1218 = vmatpush1.bf16.msra.mxu0 0
      %1219 = vmatprep.subr.bf16.mxu0 0
      %1220 = vmatpush1.bf16.msra.mxu0 0
      %1221 = vmatprep.subr.bf16.mxu0 0
      %1222 = vmatpush1.bf16.msra.mxu0 0
      %1223 = vmatprep.subr.bf16.mxu0 0
      %1224 = vmatpush1.bf16.msra.mxu0 0
      %1225 = vmatprep.subr.bf16.mxu0 0
      %1226 = vmatpush1.bf16.msra.mxu0 0
      %1227 = vmatprep.subr.bf16.mxu0 0
      %1228 = vmatpush1.bf16.msra.mxu0 0
      %1229 = vmatprep.subr.bf16.mxu0 0
      %1230 = vmatpush1.bf16.msra.mxu0 0
      %1231 = vmatprep.mubr.bf16.mxu0 0
      %1232 = vmatmul.mubr.bf16.gmra.mrb[0].mxu0 %v1197
      %v1233 = vpop.f32.mrb[0].mxu0
      %v1234 = vadd.f32 0.0, %v1233
      %v1235 = vpop.f32.mrb[0].mxu0
      %v1236 = vpop.f32.mrb[0].mxu0
      %v1237 = vadd.f32 0.0, %v1236
      %v1238 = vpop.f32.mrb[0].mxu0
      %1239 = vdwg.mxu0
      %v1240 = vadd.f32 %v1174, %v1234
      %v1241 = vadd.f32 %v1177, %v1237
      %v1242 = vld [vmem:[%s2 + $0x20] sm:$0x1]
      %v1243 = vlaneseq
      %v1244 = vshrl.u32 %v1243, 7
      %v1245 = vsub.s32 0, %v1244
      %v1246 = vrot.slane %v1242, %v1245
      %v1247 = vadd.f32 %v1240, %v1246
      %v1248 = vadd.f32 %v1241, %v1246
      %v1249 = vmul.f32 %v1247, 0.5
      %v1250 = vmul.f32 %v1248, 0.5
      %v1251 = vmul.f32 %v1247, 0.044715
      %v1252 = vmul.f32 %v1248, 0.044715
      %v1253 = vmul.f32 %v1251, %v1247
      %v1254 = vmul.f32 %v1252, %v1248
      %v1255 = vmul.f32 %v1253, %v1247
      %v1256 = vmul.f32 %v1254, %v1248
      %v1257 = vadd.f32 %v1247, %v1255
      %v1258 = vadd.f32 %v1248, %v1256
      %v1259 = vmul.f32 %v1257, 0.7978846
      %v1260 = vmul.f32 %v1258, 0.7978846
      %v1261 = vtanh.pop %v1259
      %v1262 = vtanh.pop %v1260
      %v1263 = vadd.f32 %v1261, 1.0
      %v1264 = vadd.f32 %v1262, 1.0
      %v1265 = vmul.f32 %v1249, %v1263
      %v1266 = vmul.f32 %v1250, %v1264
      %v1267 = vpack.c.bf16 %v1266, %v1265
      %v1268 = vld [vmem:[%s1 + $0xc8] sm:$0xf]
      %v1269 = vld [vmem:[%s1 + $0xcc] sm:$0xf]
      %v1270 = vld [vmem:[%s1 + $0xd0] sm:$0xf]
      %v1271 = vld [vmem:[%s1 + $0xd4] sm:$0xf]
      %v1276 = vunpack.c.l.b16 %v1268
      %v1277 = vunpack.c.l.b16 %v1269
      %v1278 = vunpack.c.l.b16 %v1270
      %v1279 = vunpack.c.l.b16 %v1271
      %v1280 = vpack.c.b16 %v1277, %v1276
      %v1281 = vpack.c.b16 %v1279, %v1278
      %v1283 = vsel %vm248, %v1280, 0
      %v1286 = vsel %vm248, %v1281, 0
      %1288 = vmatprep.subr.bf16.mxu0 0
      %1289 = vmatpush1.bf16.msra.mxu0 %v1267
      %1290 = vmatprep.subr.bf16.mxu0 0
      %1291 = vmatpush1.bf16.msra.mxu0 0
      %1292 = vmatprep.subr.bf16.mxu0 0
      %1293 = vmatpush1.bf16.msra.mxu0 0
      %1294 = vmatprep.subr.bf16.mxu0 0
      %1295 = vmatpush1.bf16.msra.mxu0 0
      %1296 = vmatprep.subr.bf16.mxu0 0
      %1297 = vmatpush1.bf16.msra.mxu0 0
      %1298 = vmatprep.subr.bf16.mxu0 0
      %1299 = vmatpush1.bf16.msra.mxu0 0
      %1300 = vmatprep.subr.bf16.mxu0 0
      %1301 = vmatpush1.bf16.msra.mxu0 0
      %1302 = vmatprep.subr.bf16.mxu0 0
      %1303 = vmatpush1.bf16.msra.mxu0 0
      %1304 = vmatprep.subr.bf16.mxu0 0
      %1305 = vmatpush1.bf16.msra.mxu0 0
      %1306 = vmatprep.subr.bf16.mxu0 0
      %1307 = vmatpush1.bf16.msra.mxu0 0
      %1308 = vmatprep.subr.bf16.mxu0 0
      %1309 = vmatpush1.bf16.msra.mxu0 0
      %1310 = vmatprep.subr.bf16.mxu0 0
      %1311 = vmatpush1.bf16.msra.mxu0 0
      %1312 = vmatprep.subr.bf16.mxu0 0
      %1313 = vmatpush1.bf16.msra.mxu0 0
      %1314 = vmatprep.subr.bf16.mxu0 0
      %1315 = vmatpush1.bf16.msra.mxu0 0
      %1316 = vmatprep.subr.bf16.mxu0 0
      %1317 = vmatpush1.bf16.msra.mxu0 0
      %1318 = vmatprep.subr.bf16.mxu0 0
      %1319 = vmatpush1.bf16.msra.mxu0 0
      %1320 = vmatprep.mubr.bf16.mxu0 0
      %1321 = vmatmul.mubr.bf16.gmra.mrb[0].mxu0 %v1283
      %v1322 = vpop.f32.mrb[0].mxu0
      %v1323 = vadd.f32 0.0, %v1322
      %v1324 = vpop.f32.mrb[0].mxu0
      %v1325 = vpop.f32.mrb[0].mxu0
      %v1326 = vadd.f32 0.0, %v1325
      %v1327 = vpop.f32.mrb[0].mxu0
      %1328 = vmatprep.mubr.bf16.mxu0 0
      %1329 = vmatmul.mubr.bf16.gmra.mrb[0].mxu0 %v1286
      %v1330 = vpop.f32.mrb[0].mxu0
      %v1331 = vadd.f32 0.0, %v1330
      %v1332 = vpop.f32.mrb[0].mxu0
      %v1333 = vpop.f32.mrb[0].mxu0
      %v1334 = vadd.f32 0.0, %v1333
      %v1335 = vpop.f32.mrb[0].mxu0
      %1336 = vdwg.mxu0
      %v1337 = vpack.c.bf16 %v1326, %v1323
      %v1338 = vpack.c.bf16 %v1334, %v1331
      %v1339 = vld [vmem:[%s1 + $0xd8] sm:$0xf]
      %v1340 = vld [vmem:[%s1 + $0xdc] sm:$0xf]
      %v1341 = vld [vmem:[%s1 + $0xe0] sm:$0xf]
      %v1342 = vld [vmem:[%s1 + $0xe4] sm:$0xf]
      %v1347 = vunpack.c.l.b16 %v1339
      %v1348 = vunpack.c.l.b16 %v1340
      %v1349 = vunpack.c.l.b16 %v1341
      %v1350 = vunpack.c.l.b16 %v1342
      %v1351 = vpack.c.b16 %v1348, %v1347
      %v1352 = vpack.c.b16 %v1350, %v1349
      %v1354 = vsel %vm248, %v1351, 0
      %v1357 = vsel %vm248, %v1352, 0
      %1359 = vmatprep.subr.bf16.mxu0 0
      %1360 = vmatpush1.bf16.msra.mxu0 %v1267
      %1361 = vmatprep.subr.bf16.mxu0 0
      %1362 = vmatpush1.bf16.msra.mxu0 0
      %1363 = vmatprep.subr.bf16.mxu0 0
      %1364 = vmatpush1.bf16.msra.mxu0 0
      %1365 = vmatprep.subr.bf16.mxu0 0
      %1366 = vmatpush1.bf16.msra.mxu0 0
      %1367 = vmatprep.subr.bf16.mxu0 0
      %1368 = vmatpush1.bf16.msra.mxu0 0
      %1369 = vmatprep.subr.bf16.mxu0 0
      %1370 = vmatpush1.bf16.msra.mxu0 0
      %1371 = vmatprep.subr.bf16.mxu0 0
      %1372 = vmatpush1.bf16.msra.mxu0 0
      %1373 = vmatprep.subr.bf16.mxu0 0
      %1374 = vmatpush1.bf16.msra.mxu0 0
      %1375 = vmatprep.subr.bf16.mxu0 0
      %1376 = vmatpush1.bf16.msra.mxu0 0
      %1377 = vmatprep.subr.bf16.mxu0 0
      %1378 = vmatpush1.bf16.msra.mxu0 0
      %1379 = vmatprep.subr.bf16.mxu0 0
      %1380 = vmatpush1.bf16.msra.mxu0 0
      %1381 = vmatprep.subr.bf16.mxu0 0
      %1382 = vmatpush1.bf16.msra.mxu0 0
      %1383 = vmatprep.subr.bf16.mxu0 0
      %1384 = vmatpush1.bf16.msra.mxu0 0
      %1385 = vmatprep.subr.bf16.mxu0 0
      %1386 = vmatpush1.bf16.msra.mxu0 0
      %1387 = vmatprep.subr.bf16.mxu0 0
      %1388 = vmatpush1.bf16.msra.mxu0 0
      %1389 = vmatprep.subr.bf16.mxu0 0
      %1390 = vmatpush1.bf16.msra.mxu0 0
      %1391 = vmatprep.mubr.bf16.mxu0 0
      %1392 = vmatmul.mubr.bf16.gmra.mrb[0].mxu0 %v1354
      %v1393 = vpop.f32.mrb[0].mxu0
      %v1394 = vadd.f32 0.0, %v1393
      %v1395 = vpop.f32.mrb[0].mxu0
      %v1396 = vpop.f32.mrb[0].mxu0
      %v1397 = vadd.f32 0.0, %v1396
      %v1398 = vpop.f32.mrb[0].mxu0
      %1399 = vmatprep.mubr.bf16.mxu0 0
      %1400 = vmatmul.mubr.bf16.gmra.mrb[0].mxu0 %v1357
      %v1401 = vpop.f32.mrb[0].mxu0
      %v1402 = vadd.f32 0.0, %v1401
      %v1403 = vpop.f32.mrb[0].mxu0
      %v1404 = vpop.f32.mrb[0].mxu0
      %v1405 = vadd.f32 0.0, %v1404
      %v1406 = vpop.f32.mrb[0].mxu0
      %1407 = vdwg.mxu0
      %v1408 = vpack.c.bf16 %v1397, %v1394
      %v1409 = vpack.c.bf16 %v1405, %v1402
      %v1410 = vld [vmem:[%s1 + $0xe8] sm:$0xf]
      %v1411 = vld [vmem:[%s1 + $0xec] sm:$0xf]
      %v1412 = vld [vmem:[%s1 + $0xf0] sm:$0xf]
      %v1413 = vld [vmem:[%s1 + $0xf4] sm:$0xf]
      %v1418 = vunpack.c.l.b16 %v1410
      %v1419 = vunpack.c.l.b16 %v1411
      %v1420 = vunpack.c.l.b16 %v1412
      %v1421 = vunpack.c.l.b16 %v1413
      %v1422 = vpack.c.b16 %v1419, %v1418
      %v1423 = vpack.c.b16 %v1421, %v1420
      %v1425 = vsel %vm248, %v1422, 0
      %v1428 = vsel %vm248, %v1423, 0
      %1430 = vmatprep.subr.bf16.mxu0 0
      %1431 = vmatpush1.bf16.msra.mxu0 %v1267
      %1432 = vmatprep.subr.bf16.mxu0 0
      %1433 = vmatpush1.bf16.msra.mxu0 0
      %1434 = vmatprep.subr.bf16.mxu0 0
      %1435 = vmatpush1.bf16.msra.mxu0 0
      %1436 = vmatprep.subr.bf16.mxu0 0
      %1437 = vmatpush1.bf16.msra.mxu0 0
      %1438 = vmatprep.subr.bf16.mxu0 0
      %1439 = vmatpush1.bf16.msra.mxu0 0
      %1440 = vmatprep.subr.bf16.mxu0 0
      %1441 = vmatpush1.bf16.msra.mxu0 0
      %1442 = vmatprep.subr.bf16.mxu0 0
      %1443 = vmatpush1.bf16.msra.mxu0 0
      %1444 = vmatprep.subr.bf16.mxu0 0
      %1445 = vmatpush1.bf16.msra.mxu0 0
      %1446 = vmatprep.subr.bf16.mxu0 0
      %1447 = vmatpush1.bf16.msra.mxu0 0
      %1448 = vmatprep.subr.bf16.mxu0 0
      %1449 = vmatpush1.bf16.msra.mxu0 0
      %1450 = vmatprep.subr.bf16.mxu0 0
      %1451 = vmatpush1.bf16.msra.mxu0 0
      %1452 = vmatprep.subr.bf16.mxu0 0
      %1453 = vmatpush1.bf16.msra.mxu0 0
      %1454 = vmatprep.subr.bf16.mxu0 0
      %1455 = vmatpush1.bf16.msra.mxu0 0
      %1456 = vmatprep.subr.bf16.mxu0 0
      %1457 = vmatpush1.bf16.msra.mxu0 0
      %1458 = vmatprep.subr.bf16.mxu0 0
      %1459 = vmatpush1.bf16.msra.mxu0 0
      %1460 = vmatprep.subr.bf16.mxu0 0
      %1461 = vmatpush1.bf16.msra.mxu0 0
      %1462 = vmatprep.mubr.bf16.mxu0 0
      %1463 = vmatmul.mubr.bf16.gmra.mrb[0].mxu0 %v1425
      %v1464 = vpop.f32.mrb[0].mxu0
      %v1465 = vadd.f32 0.0, %v1464
      %v1466 = vpop.f32.mrb[0].mxu0
      %v1467 = vpop.f32.mrb[0].mxu0
      %v1468 = vadd.f32 0.0, %v1467
      %v1469 = vpop.f32.mrb[0].mxu0
      %1470 = vmatprep.mubr.bf16.mxu0 0
      %1471 = vmatmul.mubr.bf16.gmra.mrb[0].mxu0 %v1428
      %v1472 = vpop.f32.mrb[0].mxu0
      %v1473 = vadd.f32 0.0, %v1472
      %v1474 = vpop.f32.mrb[0].mxu0
      %v1475 = vpop.f32.mrb[0].mxu0
      %v1476 = vadd.f32 0.0, %v1475
      %v1477 = vpop.f32.mrb[0].mxu0
      %1478 = vdwg.mxu0
      %v1479 = vpack.c.bf16 %v1468, %v1465
      %v1480 = vpack.c.bf16 %v1476, %v1473
      %v1481 = vld [vmem:[%s1 + $0xf8] sm:$0xf]
      %v1482 = vld [vmem:[%s1 + $0xfc] sm:$0xf]
      %v1483 = vld [vmem:[%s1 + $0x100] sm:$0xf]
      %v1484 = vld [vmem:[%s1 + $0x104] sm:$0xf]
      %v1485 = vld [vmem:[%s1 + $0x108] sm:$0xf]
      %v1486 = vld [vmem:[%s1 + $0x10c] sm:$0xf]
      %v1487 = vld [vmem:[%s1 + $0x110] sm:$0xf]
      %v1488 = vld [vmem:[%s1 + $0x114] sm:$0xf]
      %v1489 = vld [vmem:[%s1 + $0x118] sm:$0xf]
      %v1490 = vld [vmem:[%s1 + $0x11c] sm:$0xf]
      %v1491 = vld [vmem:[%s1 + $0x120] sm:$0xf]
      %v1492 = vld [vmem:[%s1 + $0x124] sm:$0xf]
      %v1493 = vld [vmem:[%s1 + $0x128] sm:$0xf]
      %v1494 = vld [vmem:[%s1 + $0x12c] sm:$0xf]
      %v1495 = vld [vmem:[%s1 + $0x130] sm:$0xf]
      %v1496 = vld [vmem:[%s1 + $0x134] sm:$0xf]
      %v1505 = vunpack.c.l.b16 %v1489
      %v1506 = vunpack.c.l.b16 %v1490
      %v1507 = vunpack.c.l.b16 %v1491
      %v1508 = vunpack.c.l.b16 %v1492
      %v1509 = vunpack.c.l.b16 %v1493
      %v1510 = vunpack.c.l.b16 %v1494
      %v1511 = vunpack.c.l.b16 %v1495
      %v1512 = vunpack.c.l.b16 %v1496
      %v1513 = vpack.c.b16 %v1506, %v1505
      %v1514 = vpack.c.b16 %v1508, %v1507
      %v1515 = vpack.c.b16 %v1510, %v1509
      %v1516 = vpack.c.b16 %v1512, %v1511
      %vm1521 = vcmask 523264
      %v1523 = vsel %vm1521, %v1408, 0
      %v1526 = vsel %vm1521, %v1409, 0
      %1528 = vmatprep.subr.bf16.mxu0 0
      %1529 = vmatpush1.bf16.msra.mxu0 %v1513
      %1530 = vmatprep.subr.bf16.mxu0 0
      %1531 = vmatpush1.bf16.msra.mxu0 %v1514
      %1532 = vmatprep.subr.bf16.mxu0 0
      %1533 = vmatpush1.bf16.msra.mxu0 %v1515
      %1534 = vmatprep.subr.bf16.mxu0 0
      %1535 = vmatpush1.bf16.msra.mxu0 %v1516
      %1536 = vmatprep.subr.bf16.mxu0 0
      %1537 = vmatpush1.bf16.msra.mxu0 0
      %1538 = vmatprep.subr.bf16.mxu0 0
      %1539 = vmatpush1.bf16.msra.mxu0 0
      %1540 = vmatprep.subr.bf16.mxu0 0
      %1541 = vmatpush1.bf16.msra.mxu0 0
      %1542 = vmatprep.subr.bf16.mxu0 0
      %1543 = vmatpush1.bf16.msra.mxu0 0
      %1544 = vmatprep.subr.bf16.mxu0 0
      %1545 = vmatpush1.bf16.msra.mxu0 0
      %1546 = vmatprep.subr.bf16.mxu0 0
      %1547 = vmatpush1.bf16.msra.mxu0 0
      %1548 = vmatprep.subr.bf16.mxu0 0
      %1549 = vmatpush1.bf16.msra.mxu0 0
      %1550 = vmatprep.subr.bf16.mxu0 0
      %1551 = vmatpush1.bf16.msra.mxu0 0
      %1552 = vmatprep.subr.bf16.mxu0 0
      %1553 = vmatpush1.bf16.msra.mxu0 0
      %1554 = vmatprep.subr.bf16.mxu0 0
      %1555 = vmatpush1.bf16.msra.mxu0 0
      %1556 = vmatprep.subr.bf16.mxu0 0
      %1557 = vmatpush1.bf16.msra.mxu0 0
      %1558 = vmatprep.subr.bf16.mxu0 0
      %1559 = vmatpush1.bf16.msra.mxu0 0
      %1560 = vmatprep.mubr.bf16.mxu0 0
      %1561 = vmatmul.mubr.bf16.gmra.mrb[0].mxu0 %v1523
      %v1562 = vpop.f32.mrb[0].mxu0
      %v1563 = vadd.f32 0.0, %v1562
      %v1564 = vpop.f32.mrb[0].mxu0
      %v1565 = vpop.f32.mrb[0].mxu0
      %v1566 = vadd.f32 0.0, %v1565
      %v1567 = vpop.f32.mrb[0].mxu0
      %1568 = vmatprep.mubr.bf16.mxu0 0
      %1569 = vmatmul.mubr.bf16.gmra.mrb[0].mxu0 %v1526
      %v1570 = vpop.f32.mrb[0].mxu0
      %v1571 = vadd.f32 0.0, %v1570
      %v1572 = vpop.f32.mrb[0].mxu0
      %v1573 = vpop.f32.mrb[0].mxu0
      %v1574 = vadd.f32 0.0, %v1573
      %v1575 = vpop.f32.mrb[0].mxu0
      %1576 = vdwg.mxu0
      %v1585 = vunpack.c.l.b16 %v1481
      %v1586 = vunpack.c.l.b16 %v1482
      %v1587 = vunpack.c.l.b16 %v1483
      %v1588 = vunpack.c.l.b16 %v1484
      %v1589 = vunpack.c.l.b16 %v1485
      %v1590 = vunpack.c.l.b16 %v1486
      %v1591 = vunpack.c.l.b16 %v1487
      %v1592 = vunpack.c.l.b16 %v1488
      %v1593 = vpack.c.b16 %v1586, %v1585
      %v1594 = vpack.c.b16 %v1588, %v1587
      %v1595 = vpack.c.b16 %v1590, %v1589
      %v1596 = vpack.c.b16 %v1592, %v1591
      %v1602 = vsel %vm1521, %v1337, 0
      %v1605 = vsel %vm1521, %v1338, 0
      %1607 = vmatprep.subr.bf16.mxu0 0
      %1608 = vmatpush1.bf16.msra.mxu0 %v1593
      %1609 = vmatprep.subr.bf16.mxu0 0
      %1610 = vmatpush1.bf16.msra.mxu0 %v1594
      %1611 = vmatprep.subr.bf16.mxu0 0
      %1612 = vmatpush1.bf16.msra.mxu0 %v1595
      %1613 = vmatprep.subr.bf16.mxu0 0
      %1614 = vmatpush1.bf16.msra.mxu0 %v1596
      %1615 = vmatprep.subr.bf16.mxu0 0
      %1616 = vmatpush1.bf16.msra.mxu0 0
      %1617 = vmatprep.subr.bf16.mxu0 0
      %1618 = vmatpush1.bf16.msra.mxu0 0
      %1619 = vmatprep.subr.bf16.mxu0 0
      %1620 = vmatpush1.bf16.msra.mxu0 0
      %1621 = vmatprep.subr.bf16.mxu0 0
      %1622 = vmatpush1.bf16.msra.mxu0 0
      %1623 = vmatprep.subr.bf16.mxu0 0
      %1624 = vmatpush1.bf16.msra.mxu0 0
      %1625 = vmatprep.subr.bf16.mxu0 0
      %1626 = vmatpush1.bf16.msra.mxu0 0
      %1627 = vmatprep.subr.bf16.mxu0 0
      %1628 = vmatpush1.bf16.msra.mxu0 0
      %1629 = vmatprep.subr.bf16.mxu0 0
      %1630 = vmatpush1.bf16.msra.mxu0 0
      %1631 = vmatprep.subr.bf16.mxu0 0
      %1632 = vmatpush1.bf16.msra.mxu0 0
      %1633 = vmatprep.subr.bf16.mxu0 0
      %1634 = vmatpush1.bf16.msra.mxu0 0
      %1635 = vmatprep.subr.bf16.mxu0 0
      %1636 = vmatpush1.bf16.msra.mxu0 0
      %1637 = vmatprep.subr.bf16.mxu0 0
      %1638 = vmatpush1.bf16.msra.mxu0 0
      %1639 = vmatprep.mubr.bf16.mxu0 0
      %1640 = vmatmul.mubr.bf16.gmra.mrb[0].mxu0 %v1602
      %v1641 = vpop.f32.mrb[0].mxu0
      %v1642 = vadd.f32 %v1563, %v1641
      %v1643 = vpop.f32.mrb[0].mxu0
      %v1644 = vpop.f32.mrb[0].mxu0
      %v1645 = vadd.f32 %v1566, %v1644
      %v1646 = vpop.f32.mrb[0].mxu0
      %1647 = vmatprep.mubr.bf16.mxu0 0
      %1648 = vmatmul.mubr.bf16.gmra.mrb[0].mxu0 %v1605
      %v1649 = vpop.f32.mrb[0].mxu0
      %v1650 = vadd.f32 %v1571, %v1649
      %v1651 = vpop.f32.mrb[0].mxu0
      %v1652 = vpop.f32.mrb[0].mxu0
      %v1653 = vadd.f32 %v1574, %v1652
      %v1654 = vpop.f32.mrb[0].mxu0
      %1655 = vdwg.mxu0
      %v1656 = vld [vmem:[%s1 + $0x138] sm:$0xf]
      %v1657 = vld [vmem:[%s1 + $0x13c] sm:$0xf]
      %v1658 = vld [vmem:[%s1 + $0x140] sm:$0xf]
      %v1659 = vld [vmem:[%s1 + $0x144] sm:$0xf]
      %v1660 = vld [vmem:[%s1 + $0x148] sm:$0xf]
      %v1661 = vld [vmem:[%s1 + $0x14c] sm:$0xf]
      %v1662 = vld [vmem:[%s1 + $0x150] sm:$0xf]
      %v1663 = vld [vmem:[%s1 + $0x154] sm:$0xf]
      %v1672 = vunpack.c.l.b16 %v1656
      %v1673 = vunpack.c.l.b16 %v1657
      %v1674 = vunpack.c.l.b16 %v1658
      %v1675 = vunpack.c.l.b16 %v1659
      %v1676 = vunpack.c.l.b16 %v1660
      %v1677 = vunpack.c.l.b16 %v1661
      %v1678 = vunpack.c.l.b16 %v1662
      %v1679 = vunpack.c.l.b16 %v1663
      %v1680 = vpack.c.b16 %v1673, %v1672
      %v1681 = vpack.c.b16 %v1675, %v1674
      %v1682 = vpack.c.b16 %v1677, %v1676
      %v1683 = vpack.c.b16 %v1679, %v1678
      %v1689 = vsel %vm1521, %v1479, 0
      %v1692 = vsel %vm1521, %v1480, 0
      %1694 = vmatprep.subr.bf16.mxu0 0
      %1695 = vmatpush1.bf16.msra.mxu0 %v1680
      %1696 = vmatprep.subr.bf16.mxu0 0
      %1697 = vmatpush1.bf16.msra.mxu0 %v1681
      %1698 = vmatprep.subr.bf16.mxu0 0
      %1699 = vmatpush1.bf16.msra.mxu0 %v1682
      %1700 = vmatprep.subr.bf16.mxu0 0
      %1701 = vmatpush1.bf16.msra.mxu0 %v1683
      %1702 = vmatprep.subr.bf16.mxu0 0
      %1703 = vmatpush1.bf16.msra.mxu0 0
      %1704 = vmatprep.subr.bf16.mxu0 0
      %1705 = vmatpush1.bf16.msra.mxu0 0
      %1706 = vmatprep.subr.bf16.mxu0 0
      %1707 = vmatpush1.bf16.msra.mxu0 0
      %1708 = vmatprep.subr.bf16.mxu0 0
      %1709 = vmatpush1.bf16.msra.mxu0 0
      %1710 = vmatprep.subr.bf16.mxu0 0
      %1711 = vmatpush1.bf16.msra.mxu0 0
      %1712 = vmatprep.subr.bf16.mxu0 0
      %1713 = vmatpush1.bf16.msra.mxu0 0
      %1714 = vmatprep.subr.bf16.mxu0 0
      %1715 = vmatpush1.bf16.msra.mxu0 0
      %1716 = vmatprep.subr.bf16.mxu0 0
      %1717 = vmatpush1.bf16.msra.mxu0 0
      %1718 = vmatprep.subr.bf16.mxu0 0
      %1719 = vmatpush1.bf16.msra.mxu0 0
      %1720 = vmatprep.subr.bf16.mxu0 0
      %1721 = vmatpush1.bf16.msra.mxu0 0
      %1722 = vmatprep.subr.bf16.mxu0 0
      %1723 = vmatpush1.bf16.msra.mxu0 0
      %1724 = vmatprep.subr.bf16.mxu0 0
      %1725 = vmatpush1.bf16.msra.mxu0 0
      %1726 = vmatprep.mubr.bf16.mxu0 0
      %1727 = vmatmul.mubr.bf16.gmra.mrb[0].mxu0 %v1689
      %v1728 = vpop.f32.mrb[0].mxu0
      %v1729 = vadd.f32 0.0, %v1728
      %v1730 = vpop.f32.mrb[0].mxu0
      %v1731 = vpop.f32.mrb[0].mxu0
      %v1732 = vadd.f32 0.0, %v1731
      %v1733 = vpop.f32.mrb[0].mxu0
      %1734 = vmatprep.mubr.bf16.mxu0 0
      %1735 = vmatmul.mubr.bf16.gmra.mrb[0].mxu0 %v1692
      %v1736 = vpop.f32.mrb[0].mxu0
      %v1737 = vadd.f32 0.0, %v1736
      %v1738 = vpop.f32.mrb[0].mxu0
      %v1739 = vpop.f32.mrb[0].mxu0
      %v1740 = vadd.f32 0.0, %v1739
      %v1741 = vpop.f32.mrb[0].mxu0
      %1742 = vdwg.mxu0
      %v1743 = vadd.f32 %v1642, %v1729
      %v1744 = vadd.f32 %v1645, %v1732
      %v1745 = vadd.f32 %v1650, %v1737
      %v1746 = vadd.f32 %v1653, %v1740
      %v1747 = vld [vmem:[%s2 + $0x28] sm:$0x1]
      %v1748 = vlaneseq
      %v1749 = vshrl.u32 %v1748, 7
      %v1750 = vsub.s32 0, %v1749
      %v1751 = vrot.slane %v1747, %v1750
      %v1752 = vadd.f32 %v1743, %v1751
      %v1753 = vadd.f32 %v1744, %v1751
      %v1754 = vadd.f32 %v1745, %v1751
      %v1755 = vadd.f32 %v1746, %v1751
      %v1756 = vmul.f32 %v1752, 0.5
      %v1757 = vmul.f32 %v1753, 0.5
      %v1758 = vmul.f32 %v1754, 0.5
      %v1759 = vmul.f32 %v1755, 0.5
      %v1760 = vmul.f32 %v1752, 0.044715
      %v1761 = vmul.f32 %v1753, 0.044715
      %v1762 = vmul.f32 %v1754, 0.044715
      %v1763 = vmul.f32 %v1755, 0.044715
      %v1764 = vmul.f32 %v1760, %v1752
      %v1765 = vmul.f32 %v1761, %v1753
      %v1766 = vmul.f32 %v1762, %v1754
      %v1767 = vmul.f32 %v1763, %v1755
      %v1768 = vmul.f32 %v1764, %v1752
      %v1769 = vmul.f32 %v1765, %v1753
      %v1770 = vmul.f32 %v1766, %v1754
      %v1771 = vmul.f32 %v1767, %v1755
      %v1772 = vadd.f32 %v1752, %v1768
      %v1773 = vadd.f32 %v1753, %v1769
      %v1774 = vadd.f32 %v1754, %v1770
      %v1775 = vadd.f32 %v1755, %v1771
      %v1776 = vmul.f32 %v1772, 0.7978846
      %v1777 = vmul.f32 %v1773, 0.7978846
      %v1778 = vmul.f32 %v1774, 0.7978846
      %v1779 = vmul.f32 %v1775, 0.7978846
      %v1780 = vtanh.pop %v1776
      %v1781 = vtanh.pop %v1777
      %v1782 = vtanh.pop %v1778
      %v1783 = vtanh.pop %v1779
      %v1784 = vadd.f32 %v1780, 1.0
      %v1785 = vadd.f32 %v1781, 1.0
      %v1786 = vadd.f32 %v1782, 1.0
      %v1787 = vadd.f32 %v1783, 1.0
      %v1788 = vmul.f32 %v1756, %v1784
      %v1789 = vmul.f32 %v1757, %v1785
      %v1790 = vmul.f32 %v1758, %v1786
      %v1791 = vmul.f32 %v1759, %v1787
      %v1792 = vpack.c.bf16 %v1789, %v1788
      %v1793 = vpack.c.bf16 %v1791, %v1790
      %v1794 = vld [vmem:[%s1 + $0x158] sm:$0xf]
      %v1795 = vld [vmem:[%s1 + $0x15c] sm:$0xf]
      %v1796 = vld [vmem:[%s1 + $0x160] sm:$0xf]
      %v1797 = vld [vmem:[%s1 + $0x164] sm:$0xf]
      %v1798 = vld [vmem:[%s1 + $0x168] sm:$0xf]
      %v1799 = vld [vmem:[%s1 + $0x16c] sm:$0xf]
      %v1800 = vld [vmem:[%s1 + $0x170] sm:$0xf]
      %v1801 = vld [vmem:[%s1 + $0x174] sm:$0xf]
      %v1810 = vunpack.c.l.b16 %v1794
      %v1811 = vunpack.c.l.b16 %v1795
      %v1812 = vunpack.c.l.b16 %v1796
      %v1813 = vunpack.c.l.b16 %v1797
      %v1814 = vunpack.c.l.b16 %v1798
      %v1815 = vunpack.c.l.b16 %v1799
      %v1816 = vunpack.c.l.b16 %v1800
      %v1817 = vunpack.c.l.b16 %v1801
      %v1818 = vpack.c.b16 %v1811, %v1810
      %v1819 = vpack.c.b16 %v1813, %v1812
      %v1820 = vpack.c.b16 %v1815, %v1814
      %v1821 = vpack.c.b16 %v1817, %v1816
      %v1823 = vsel %vm323, %v1818, 0
      %v1826 = vsel %vm323, %v1819, 0
      %v1829 = vsel %vm323, %v1820, 0
      %v1832 = vsel %vm323, %v1821, 0
      %1834 = vmatprep.subr.bf16.mxu0 0
      %1835 = vmatpush1.bf16.msra.mxu0 %v1792
      %1836 = vmatprep.subr.bf16.mxu0 0
      %1837 = vmatpush1.bf16.msra.mxu0 %v1793
      %1838 = vmatprep.subr.bf16.mxu0 0
      %1839 = vmatpush1.bf16.msra.mxu0 0
      %1840 = vmatprep.subr.bf16.mxu0 0
      %1841 = vmatpush1.bf16.msra.mxu0 0
      %1842 = vmatprep.subr.bf16.mxu0 0
      %1843 = vmatpush1.bf16.msra.mxu0 0
      %1844 = vmatprep.subr.bf16.mxu0 0
      %1845 = vmatpush1.bf16.msra.mxu0 0
      %1846 = vmatprep.subr.bf16.mxu0 0
      %1847 = vmatpush1.bf16.msra.mxu0 0
      %1848 = vmatprep.subr.bf16.mxu0 0
      %1849 = vmatpush1.bf16.msra.mxu0 0
      %1850 = vmatprep.subr.bf16.mxu0 0
      %1851 = vmatpush1.bf16.msra.mxu0 0
      %1852 = vmatprep.subr.bf16.mxu0 0
      %1853 = vmatpush1.bf16.msra.mxu0 0
      %1854 = vmatprep.subr.bf16.mxu0 0
      %1855 = vmatpush1.bf16.msra.mxu0 0
      %1856 = vmatprep.subr.bf16.mxu0 0
      %1857 = vmatpush1.bf16.msra.mxu0 0
      %1858 = vmatprep.subr.bf16.mxu0 0
      %1859 = vmatpush1.bf16.msra.mxu0 0
      %1860 = vmatprep.subr.bf16.mxu0 0
      %1861 = vmatpush1.bf16.msra.mxu0 0
      %1862 = vmatprep.subr.bf16.mxu0 0
      %1863 = vmatpush1.bf16.msra.mxu0 0
      %1864 = vmatprep.subr.bf16.mxu0 0
      %1865 = vmatpush1.bf16.msra.mxu0 0
      %1866 = vmatprep.mubr.bf16.mxu0 0
      %1867 = vmatmul.mubr.bf16.gmra.mrb[0].mxu0 %v1823
      %v1868 = vpop.f32.mrb[0].mxu0
      %v1869 = vadd.f32 0.0, %v1868
      %v1870 = vpop.f32.mrb[0].mxu0
      %v1871 = vpop.f32.mrb[0].mxu0
      %v1872 = vadd.f32 0.0, %v1871
      %v1873 = vpop.f32.mrb[0].mxu0
      %1874 = vmatprep.mubr.bf16.mxu0 0
      %1875 = vmatmul.mubr.bf16.gmra.mrb[0].mxu0 %v1826
      %v1876 = vpop.f32.mrb[0].mxu0
      %v1877 = vadd.f32 0.0, %v1876
      %v1878 = vpop.f32.mrb[0].mxu0
      %v1879 = vpop.f32.mrb[0].mxu0
      %v1880 = vadd.f32 0.0, %v1879
      %v1881 = vpop.f32.mrb[0].mxu0
      %1882 = vmatprep.mubr.bf16.mxu0 0
      %1883 = vmatmul.mubr.bf16.gmra.mrb[0].mxu0 %v1829
      %v1884 = vpop.f32.mrb[0].mxu0
      %v1885 = vadd.f32 0.0, %v1884
      %v1886 = vpop.f32.mrb[0].mxu0
      %v1887 = vpop.f32.mrb[0].mxu0
      %v1888 = vadd.f32 0.0, %v1887
      %v1889 = vpop.f32.mrb[0].mxu0
      %1890 = vmatprep.mubr.bf16.mxu0 0
      %1891 = vmatmul.mubr.bf16.gmra.mrb[0].mxu0 %v1832
      %v1892 = vpop.f32.mrb[0].mxu0
      %v1893 = vadd.f32 0.0, %v1892
      %v1894 = vpop.f32.mrb[0].mxu0
      %v1895 = vpop.f32.mrb[0].mxu0
      %v1896 = vadd.f32 0.0, %v1895
      %v1897 = vpop.f32.mrb[0].mxu0
      %1898 = vdwg.mxu0
      %v1899 = vpack.c.bf16 %v1872, %v1869
      %v1900 = vpack.c.bf16 %v1880, %v1877
      %v1901 = vpack.c.bf16 %v1888, %v1885
      %v1902 = vpack.c.bf16 %v1896, %v1893
      %v1903 = vld [vmem:[%s1 + $0x178] sm:$0xf]
      %v1904 = vld [vmem:[%s1 + $0x17c] sm:$0xf]
      %v1905 = vld [vmem:[%s1 + $0x180] sm:$0xf]
      %v1906 = vld [vmem:[%s1 + $0x184] sm:$0xf]
      %v1907 = vld [vmem:[%s1 + $0x188] sm:$0xf]
      %v1908 = vld [vmem:[%s1 + $0x18c] sm:$0xf]
      %v1909 = vld [vmem:[%s1 + $0x190] sm:$0xf]
      %v1910 = vld [vmem:[%s1 + $0x194] sm:$0xf]
      %v1919 = vunpack.c.l.b16 %v1903
      %v1920 = vunpack.c.l.b16 %v1904
      %v1921 = vunpack.c.l.b16 %v1905
      %v1922 = vunpack.c.l.b16 %v1906
      %v1923 = vunpack.c.l.b16 %v1907
      %v1924 = vunpack.c.l.b16 %v1908
      %v1925 = vunpack.c.l.b16 %v1909
      %v1926 = vunpack.c.l.b16 %v1910
      %v1927 = vpack.c.b16 %v1920, %v1919
      %v1928 = vpack.c.b16 %v1922, %v1921
      %v1929 = vpack.c.b16 %v1924, %v1923
      %v1930 = vpack.c.b16 %v1926, %v1925
      %v1932 = vsel %vm323, %v1927, 0
      %v1935 = vsel %vm323, %v1928, 0
      %v1938 = vsel %vm323, %v1929, 0
      %v1941 = vsel %vm323, %v1930, 0
      %1943 = vmatprep.subr.bf16.mxu0 0
      %1944 = vmatpush1.bf16.msra.mxu0 %v1792
      %1945 = vmatprep.subr.bf16.mxu0 0
      %1946 = vmatpush1.bf16.msra.mxu0 %v1793
      %1947 = vmatprep.subr.bf16.mxu0 0
      %1948 = vmatpush1.bf16.msra.mxu0 0
      %1949 = vmatprep.subr.bf16.mxu0 0
      %1950 = vmatpush1.bf16.msra.mxu0 0
      %1951 = vmatprep.subr.bf16.mxu0 0
      %1952 = vmatpush1.bf16.msra.mxu0 0
      %1953 = vmatprep.subr.bf16.mxu0 0
      %1954 = vmatpush1.bf16.msra.mxu0 0
      %1955 = vmatprep.subr.bf16.mxu0 0
      %1956 = vmatpush1.bf16.msra.mxu0 0
      %1957 = vmatprep.subr.bf16.mxu0 0
      %1958 = vmatpush1.bf16.msra.mxu0 0
      %1959 = vmatprep.subr.bf16.mxu0 0
      %1960 = vmatpush1.bf16.msra.mxu0 0
      %1961 = vmatprep.subr.bf16.mxu0 0
      %1962 = vmatpush1.bf16.msra.mxu0 0
      %1963 = vmatprep.subr.bf16.mxu0 0
      %1964 = vmatpush1.bf16.msra.mxu0 0
      %1965 = vmatprep.subr.bf16.mxu0 0
      %1966 = vmatpush1.bf16.msra.mxu0 0
      %1967 = vmatprep.subr.bf16.mxu0 0
      %1968 = vmatpush1.bf16.msra.mxu0 0
      %1969 = vmatprep.subr.bf16.mxu0 0
      %1970 = vmatpush1.bf16.msra.mxu0 0
      %1971 = vmatprep.subr.bf16.mxu0 0
      %1972 = vmatpush1.bf16.msra.mxu0 0
      %1973 = vmatprep.subr.bf16.mxu0 0
      %1974 = vmatpush1.bf16.msra.mxu0 0
      %1975 = vmatprep.mubr.bf16.mxu0 0
      %1976 = vmatmul.mubr.bf16.gmra.mrb[0].mxu0 %v1932
      %v1977 = vpop.f32.mrb[0].mxu0
      %v1978 = vadd.f32 0.0, %v1977
      %v1979 = vpop.f32.mrb[0].mxu0
      %v1980 = vpop.f32.mrb[0].mxu0
      %v1981 = vadd.f32 0.0, %v1980
      %v1982 = vpop.f32.mrb[0].mxu0
      %1983 = vmatprep.mubr.bf16.mxu0 0
      %1984 = vmatmul.mubr.bf16.gmra.mrb[0].mxu0 %v1935
      %v1985 = vpop.f32.mrb[0].mxu0
      %v1986 = vadd.f32 0.0, %v1985
      %v1987 = vpop.f32.mrb[0].mxu0
      %v1988 = vpop.f32.mrb[0].mxu0
      %v1989 = vadd.f32 0.0, %v1988
      %v1990 = vpop.f32.mrb[0].mxu0
      %1991 = vmatprep.mubr.bf16.mxu0 0
      %1992 = vmatmul.mubr.bf16.gmra.mrb[0].mxu0 %v1938
      %v1993 = vpop.f32.mrb[0].mxu0
      %v1994 = vadd.f32 0.0, %v1993
      %v1995 = vpop.f32.mrb[0].mxu0
      %v1996 = vpop.f32.mrb[0].mxu0
      %v1997 = vadd.f32 0.0, %v1996
      %v1998 = vpop.f32.mrb[0].mxu0
      %1999 = vmatprep.mubr.bf16.mxu0 0
      %2000 = vmatmul.mubr.bf16.gmra.mrb[0].mxu0 %v1941
      %v2001 = vpop.f32.mrb[0].mxu0
      %v2002 = vadd.f32 0.0, %v2001
      %v2003 = vpop.f32.mrb[0].mxu0
      %v2004 = vpop.f32.mrb[0].mxu0
      %v2005 = vadd.f32 0.0, %v2004
      %v2006 = vpop.f32.mrb[0].mxu0
      %2007 = vdwg.mxu0
      %v2008 = vpack.c.bf16 %v1981, %v1978
      %v2009 = vpack.c.bf16 %v1989, %v1986
      %v2010 = vpack.c.bf16 %v1997, %v1994
      %v2011 = vpack.c.bf16 %v2005, %v2002
      %v2012 = vld [vmem:[%s1 + $0x198] sm:$0xf]
      %v2013 = vld [vmem:[%s1 + $0x19c] sm:$0xf]
      %v2014 = vld [vmem:[%s1 + $0x1a0] sm:$0xf]
      %v2015 = vld [vmem:[%s1 + $0x1a4] sm:$0xf]
      %v2016 = vld [vmem:[%s1 + $0x1a8] sm:$0xf]
      %v2017 = vld [vmem:[%s1 + $0x1ac] sm:$0xf]
      %v2018 = vld [vmem:[%s1 + $0x1b0] sm:$0xf]
      %v2019 = vld [vmem:[%s1 + $0x1b4] sm:$0xf]
      %v2028 = vunpack.c.l.b16 %v2012
      %v2029 = vunpack.c.l.b16 %v2013
      %v2030 = vunpack.c.l.b16 %v2014
      %v2031 = vunpack.c.l.b16 %v2015
      %v2032 = vunpack.c.l.b16 %v2016
      %v2033 = vunpack.c.l.b16 %v2017
      %v2034 = vunpack.c.l.b16 %v2018
      %v2035 = vunpack.c.l.b16 %v2019
      %v2036 = vpack.c.b16 %v2029, %v2028
      %v2037 = vpack.c.b16 %v2031, %v2030
      %v2038 = vpack.c.b16 %v2033, %v2032
      %v2039 = vpack.c.b16 %v2035, %v2034
      %v2041 = vsel %vm323, %v2036, 0
      %v2044 = vsel %vm323, %v2037, 0
      %v2047 = vsel %vm323, %v2038, 0
      %v2050 = vsel %vm323, %v2039, 0
      %2052 = vmatprep.subr.bf16.mxu0 0
      %2053 = vmatpush1.bf16.msra.mxu0 %v1792
      %2054 = vmatprep.subr.bf16.mxu0 0
      %2055 = vmatpush1.bf16.msra.mxu0 %v1793
      %2056 = vmatprep.subr.bf16.mxu0 0
      %2057 = vmatpush1.bf16.msra.mxu0 0
      %2058 = vmatprep.subr.bf16.mxu0 0
      %2059 = vmatpush1.bf16.msra.mxu0 0
      %2060 = vmatprep.subr.bf16.mxu0 0
      %2061 = vmatpush1.bf16.msra.mxu0 0
      %2062 = vmatprep.subr.bf16.mxu0 0
      %2063 = vmatpush1.bf16.msra.mxu0 0
      %2064 = vmatprep.subr.bf16.mxu0 0
      %2065 = vmatpush1.bf16.msra.mxu0 0
      %2066 = vmatprep.subr.bf16.mxu0 0
      %2067 = vmatpush1.bf16.msra.mxu0 0
      %2068 = vmatprep.subr.bf16.mxu0 0
      %2069 = vmatpush1.bf16.msra.mxu0 0
      %2070 = vmatprep.subr.bf16.mxu0 0
      %2071 = vmatpush1.bf16.msra.mxu0 0
      %2072 = vmatprep.subr.bf16.mxu0 0
      %2073 = vmatpush1.bf16.msra.mxu0 0
      %2074 = vmatprep.subr.bf16.mxu0 0
      %2075 = vmatpush1.bf16.msra.mxu0 0
      %2076 = vmatprep.subr.bf16.mxu0 0
      %2077 = vmatpush1.bf16.msra.mxu0 0
      %2078 = vmatprep.subr.bf16.mxu0 0
      %2079 = vmatpush1.bf16.msra.mxu0 0
      %2080 = vmatprep.subr.bf16.mxu0 0
      %2081 = vmatpush1.bf16.msra.mxu0 0
      %2082 = vmatprep.subr.bf16.mxu0 0
      %2083 = vmatpush1.bf16.msra.mxu0 0
      %2084 = vmatprep.mubr.bf16.mxu0 0
      %2085 = vmatmul.mubr.bf16.gmra.mrb[0].mxu0 %v2041
      %v2086 = vpop.f32.mrb[0].mxu0
      %v2087 = vadd.f32 0.0, %v2086
      %v2088 = vpop.f32.mrb[0].mxu0
      %v2089 = vpop.f32.mrb[0].mxu0
      %v2090 = vadd.f32 0.0, %v2089
      %v2091 = vpop.f32.mrb[0].mxu0
      %2092 = vmatprep.mubr.bf16.mxu0 0
      %2093 = vmatmul.mubr.bf16.gmra.mrb[0].mxu0 %v2044
      %v2094 = vpop.f32.mrb[0].mxu0
      %v2095 = vadd.f32 0.0, %v2094
      %v2096 = vpop.f32.mrb[0].mxu0
      %v2097 = vpop.f32.mrb[0].mxu0
      %v2098 = vadd.f32 0.0, %v2097
      %v2099 = vpop.f32.mrb[0].mxu0
      %2100 = vmatprep.mubr.bf16.mxu0 0
      %2101 = vmatmul.mubr.bf16.gmra.mrb[0].mxu0 %v2047
      %v2102 = vpop.f32.mrb[0].mxu0
      %v2103 = vadd.f32 0.0, %v2102
      %v2104 = vpop.f32.mrb[0].mxu0
      %v2105 = vpop.f32.mrb[0].mxu0
      %v2106 = vadd.f32 0.0, %v2105
      %v2107 = vpop.f32.mrb[0].mxu0
      %2108 = vmatprep.mubr.bf16.mxu0 0
      %2109 = vmatmul.mubr.bf16.gmra.mrb[0].mxu0 %v2050
      %v2110 = vpop.f32.mrb[0].mxu0
      %v2111 = vadd.f32 0.0, %v2110
      %v2112 = vpop.f32.mrb[0].mxu0
      %v2113 = vpop.f32.mrb[0].mxu0
      %v2114 = vadd.f32 0.0, %v2113
      %v2115 = vpop.f32.mrb[0].mxu0
      %2116 = vdwg.mxu0
      %v2117 = vpack.c.bf16 %v2090, %v2087
      %v2118 = vpack.c.bf16 %v2098, %v2095
      %v2119 = vpack.c.bf16 %v2106, %v2103
      %v2120 = vpack.c.bf16 %v2114, %v2111
      %v2121 = vld [vmem:[%s1 + $0x1b8] sm:$0xf]
      %v2122 = vld [vmem:[%s1 + $0x1bc] sm:$0xf]
      %v2123 = vld [vmem:[%s1 + $0x1c0] sm:$0xf]
      %v2124 = vld [vmem:[%s1 + $0x1c4] sm:$0xf]
      %v2125 = vld [vmem:[%s1 + $0x1c8] sm:$0xf]
      %v2126 = vld [vmem:[%s1 + $0x1cc] sm:$0xf]
      %v2127 = vld [vmem:[%s1 + $0x1d0] sm:$0xf]
      %v2128 = vld [vmem:[%s1 + $0x1d4] sm:$0xf]
      %v2129 = vld [vmem:[%s1 + $0x1d8] sm:$0xf]
      %v2130 = vld [vmem:[%s1 + $0x1dc] sm:$0xf]
      %v2131 = vld [vmem:[%s1 + $0x1e0] sm:$0xf]
      %v2132 = vld [vmem:[%s1 + $0x1e4] sm:$0xf]
      %v2133 = vld [vmem:[%s1 + $0x1e8] sm:$0xf]
      %v2134 = vld [vmem:[%s1 + $0x1ec] sm:$0xf]
      %v2135 = vld [vmem:[%s1 + $0x1f0] sm:$0xf]
      %v2136 = vld [vmem:[%s1 + $0x1f4] sm:$0xf]
      %v2145 = vunpack.c.l.b16 %v2129
      %v2146 = vunpack.c.l.b16 %v2130
      %v2147 = vunpack.c.l.b16 %v2131
      %v2148 = vunpack.c.l.b16 %v2132
      %v2149 = vunpack.c.l.b16 %v2133
      %v2150 = vunpack.c.l.b16 %v2134
      %v2151 = vunpack.c.l.b16 %v2135
      %v2152 = vunpack.c.l.b16 %v2136
      %v2153 = vpack.c.b16 %v2146, %v2145
      %v2154 = vpack.c.b16 %v2148, %v2147
      %v2155 = vpack.c.b16 %v2150, %v2149
      %v2156 = vpack.c.b16 %v2152, %v2151
      %v2162 = vsel %vm1521, %v2008, 0
      %v2165 = vsel %vm1521, %v2009, 0
      %v2168 = vsel %vm1521, %v2010, 0
      %v2171 = vsel %vm1521, %v2011, 0
      %2173 = vmatprep.subr.bf16.mxu0 0
      %2174 = vmatpush1.bf16.msra.mxu0 %v2153
      %2175 = vmatprep.subr.bf16.mxu0 0
      %2176 = vmatpush1.bf16.msra.mxu0 %v2154
      %2177 = vmatprep.subr.bf16.mxu0 0
      %2178 = vmatpush1.bf16.msra.mxu0 %v2155
      %2179 = vmatprep.subr.bf16.mxu0 0
      %2180 = vmatpush1.bf16.msra.mxu0 %v2156
      %2181 = vmatprep.subr.bf16.mxu0 0
      %2182 = vmatpush1.bf16.msra.mxu0 0
      %2183 = vmatprep.subr.bf16.mxu0 0
      %2184 = vmatpush1.bf16.msra.mxu0 0
      %2185 = vmatprep.subr.bf16.mxu0 0
      %2186 = vmatpush1.bf16.msra.mxu0 0
      %2187 = vmatprep.subr.bf16.mxu0 0
      %2188 = vmatpush1.bf16.msra.mxu0 0
      %2189 = vmatprep.subr.bf16.mxu0 0
      %2190 = vmatpush1.bf16.msra.mxu0 0
      %2191 = vmatprep.subr.bf16.mxu0 0
      %2192 = vmatpush1.bf16.msra.mxu0 0
      %2193 = vmatprep.subr.bf16.mxu0 0
      %2194 = vmatpush1.bf16.msra.mxu0 0
      %2195 = vmatprep.subr.bf16.mxu0 0
      %2196 = vmatpush1.bf16.msra.mxu0 0
      %2197 = vmatprep.subr.bf16.mxu0 0
      %2198 = vmatpush1.bf16.msra.mxu0 0
      %2199 = vmatprep.subr.bf16.mxu0 0
      %2200 = vmatpush1.bf16.msra.mxu0 0
      %2201 = vmatprep.subr.bf16.mxu0 0
      %2202 = vmatpush1.bf16.msra.mxu0 0
      %2203 = vmatprep.subr.bf16.mxu0 0
      %2204 = vmatpush1.bf16.msra.mxu0 0
      %2205 = vmatprep.mubr.bf16.mxu0 0
      %2206 = vmatmul.mubr.bf16.gmra.mrb[0].mxu0 %v2162
      %v2207 = vpop.f32.mrb[0].mxu0
      %v2208 = vadd.f32 0.0, %v2207
      %v2209 = vpop.f32.mrb[0].mxu0
      %v2210 = vpop.f32.mrb[0].mxu0
      %v2211 = vadd.f32 0.0, %v2210
      %v2212 = vpop.f32.mrb[0].mxu0
      %2213 = vmatprep.mubr.bf16.mxu0 0
      %2214 = vmatmul.mubr.bf16.gmra.mrb[0].mxu0 %v2165
      %v2215 = vpop.f32.mrb[0].mxu0
      %v2216 = vadd.f32 0.0, %v2215
      %v2217 = vpop.f32.mrb[0].mxu0
      %v2218 = vpop.f32.mrb[0].mxu0
      %v2219 = vadd.f32 0.0, %v2218
      %v2220 = vpop.f32.mrb[0].mxu0
      %2221 = vmatprep.mubr.bf16.mxu0 0
      %2222 = vmatmul.mubr.bf16.gmra.mrb[0].mxu0 %v2168
      %v2223 = vpop.f32.mrb[0].mxu0
      %v2224 = vadd.f32 0.0, %v2223
      %v2225 = vpop.f32.mrb[0].mxu0
      %v2226 = vpop.f32.mrb[0].mxu0
      %v2227 = vadd.f32 0.0, %v2226
      %v2228 = vpop.f32.mrb[0].mxu0
      %2229 = vmatprep.mubr.bf16.mxu0 0
      %2230 = vmatmul.mubr.bf16.gmra.mrb[0].mxu0 %v2171
      %v2231 = vpop.f32.mrb[0].mxu0
      %v2232 = vadd.f32 0.0, %v2231
      %v2233 = vpop.f32.mrb[0].mxu0
      %v2234 = vpop.f32.mrb[0].mxu0
      %v2235 = vadd.f32 0.0, %v2234
      %v2236 = vpop.f32.mrb[0].mxu0
      %2237 = vdwg.mxu0
      %v2246 = vunpack.c.l.b16 %v2121
      %v2247 = vunpack.c.l.b16 %v2122
      %v2248 = vunpack.c.l.b16 %v2123
      %v2249 = vunpack.c.l.b16 %v2124
      %v2250 = vunpack.c.l.b16 %v2125
      %v2251 = vunpack.c.l.b16 %v2126
      %v2252 = vunpack.c.l.b16 %v2127
      %v2253 = vunpack.c.l.b16 %v2128
      %v2254 = vpack.c.b16 %v2247, %v2246
      %v2255 = vpack.c.b16 %v2249, %v2248
      %v2256 = vpack.c.b16 %v2251, %v2250
      %v2257 = vpack.c.b16 %v2253, %v2252
      %v2263 = vsel %vm1521, %v1899, 0
      %v2266 = vsel %vm1521, %v1900, 0
      %v2269 = vsel %vm1521, %v1901, 0
      %v2272 = vsel %vm1521, %v1902, 0
      %2274 = vmatprep.subr.bf16.mxu0 0
      %2275 = vmatpush1.bf16.msra.mxu0 %v2254
      %2276 = vmatprep.subr.bf16.mxu0 0
      %2277 = vmatpush1.bf16.msra.mxu0 %v2255
      %2278 = vmatprep.subr.bf16.mxu0 0
      %2279 = vmatpush1.bf16.msra.mxu0 %v2256
      %2280 = vmatprep.subr.bf16.mxu0 0
      %2281 = vmatpush1.bf16.msra.mxu0 %v2257
      %2282 = vmatprep.subr.bf16.mxu0 0
      %2283 = vmatpush1.bf16.msra.mxu0 0
      %2284 = vmatprep.subr.bf16.mxu0 0
      %2285 = vmatpush1.bf16.msra.mxu0 0
      %2286 = vmatprep.subr.bf16.mxu0 0
      %2287 = vmatpush1.bf16.msra.mxu0 0
      %2288 = vmatprep.subr.bf16.mxu0 0
      %2289 = vmatpush1.bf16.msra.mxu0 0
      %2290 = vmatprep.subr.bf16.mxu0 0
      %2291 = vmatpush1.bf16.msra.mxu0 0
      %2292 = vmatprep.subr.bf16.mxu0 0
      %2293 = vmatpush1.bf16.msra.mxu0 0
      %2294 = vmatprep.subr.bf16.mxu0 0
      %2295 = vmatpush1.bf16.msra.mxu0 0
      %2296 = vmatprep.subr.bf16.mxu0 0
      %2297 = vmatpush1.bf16.msra.mxu0 0
      %2298 = vmatprep.subr.bf16.mxu0 0
      %2299 = vmatpush1.bf16.msra.mxu0 0
      %2300 = vmatprep.subr.bf16.mxu0 0
      %2301 = vmatpush1.bf16.msra.mxu0 0
      %2302 = vmatprep.subr.bf16.mxu0 0
      %2303 = vmatpush1.bf16.msra.mxu0 0
      %2304 = vmatprep.subr.bf16.mxu0 0
      %2305 = vmatpush1.bf16.msra.mxu0 0
      %2306 = vmatprep.mubr.bf16.mxu0 0
      %2307 = vmatmul.mubr.bf16.gmra.mrb[0].mxu0 %v2263
      %v2308 = vpop.f32.mrb[0].mxu0
      %v2309 = vadd.f32 %v2208, %v2308
      %v2310 = vpop.f32.mrb[0].mxu0
      %v2311 = vpop.f32.mrb[0].mxu0
      %v2312 = vadd.f32 %v2211, %v2311
      %v2313 = vpop.f32.mrb[0].mxu0
      %2314 = vmatprep.mubr.bf16.mxu0 0
      %2315 = vmatmul.mubr.bf16.gmra.mrb[0].mxu0 %v2266
      %v2316 = vpop.f32.mrb[0].mxu0
      %v2317 = vadd.f32 %v2216, %v2316
      %v2318 = vpop.f32.mrb[0].mxu0
      %v2319 = vpop.f32.mrb[0].mxu0
      %v2320 = vadd.f32 %v2219, %v2319
      %v2321 = vpop.f32.mrb[0].mxu0
      %2322 = vmatprep.mubr.bf16.mxu0 0
      %2323 = vmatmul.mubr.bf16.gmra.mrb[0].mxu0 %v2269
      %v2324 = vpop.f32.mrb[0].mxu0
      %v2325 = vadd.f32 %v2224, %v2324
      %v2326 = vpop.f32.mrb[0].mxu0
      %v2327 = vpop.f32.mrb[0].mxu0
      %v2328 = vadd.f32 %v2227, %v2327
      %v2329 = vpop.f32.mrb[0].mxu0
      %2330 = vmatprep.mubr.bf16.mxu0 0
      %2331 = vmatmul.mubr.bf16.gmra.mrb[0].mxu0 %v2272
      %v2332 = vpop.f32.mrb[0].mxu0
      %v2333 = vadd.f32 %v2232, %v2332
      %v2334 = vpop.f32.mrb[0].mxu0
      %v2335 = vpop.f32.mrb[0].mxu0
      %v2336 = vadd.f32 %v2235, %v2335
      %v2337 = vpop.f32.mrb[0].mxu0
      %2338 = vdwg.mxu0
      %v2339 = vld [vmem:[%s1 + $0x1f8] sm:$0xf]
      %v2340 = vld [vmem:[%s1 + $0x1fc] sm:$0xf]
      %v2341 = vld [vmem:[%s1 + $0x200] sm:$0xf]
      %v2342 = vld [vmem:[%s1 + $0x204] sm:$0xf]
      %v2343 = vld [vmem:[%s1 + $0x208] sm:$0xf]
      %v2344 = vld [vmem:[%s1 + $0x20c] sm:$0xf]
      %v2345 = vld [vmem:[%s1 + $0x210] sm:$0xf]
      %v2346 = vld [vmem:[%s1 + $0x214] sm:$0xf]
      %v2355 = vunpack.c.l.b16 %v2339
      %v2356 = vunpack.c.l.b16 %v2340
      %v2357 = vunpack.c.l.b16 %v2341
      %v2358 = vunpack.c.l.b16 %v2342
      %v2359 = vunpack.c.l.b16 %v2343
      %v2360 = vunpack.c.l.b16 %v2344
      %v2361 = vunpack.c.l.b16 %v2345
      %v2362 = vunpack.c.l.b16 %v2346
      %v2363 = vpack.c.b16 %v2356, %v2355
      %v2364 = vpack.c.b16 %v2358, %v2357
      %v2365 = vpack.c.b16 %v2360, %v2359
      %v2366 = vpack.c.b16 %v2362, %v2361
      %v2372 = vsel %vm1521, %v2117, 0
      %v2375 = vsel %vm1521, %v2118, 0
      %v2378 = vsel %vm1521, %v2119, 0
      %v2381 = vsel %vm1521, %v2120, 0
      %2383 = vmatprep.subr.bf16.mxu0 0
      %2384 = vmatpush1.bf16.msra.mxu0 %v2363
      %2385 = vmatprep.subr.bf16.mxu0 0
      %2386 = vmatpush1.bf16.msra.mxu0 %v2364
      %2387 = vmatprep.subr.bf16.mxu0 0
      %2388 = vmatpush1.bf16.msra.mxu0 %v2365
      %2389 = vmatprep.subr.bf16.mxu0 0
      %2390 = vmatpush1.bf16.msra.mxu0 %v2366
      %2391 = vmatprep.subr.bf16.mxu0 0
      %2392 = vmatpush1.bf16.msra.mxu0 0
      %2393 = vmatprep.subr.bf16.mxu0 0
      %2394 = vmatpush1.bf16.msra.mxu0 0
      %2395 = vmatprep.subr.bf16.mxu0 0
      %2396 = vmatpush1.bf16.msra.mxu0 0
      %2397 = vmatprep.subr.bf16.mxu0 0
      %2398 = vmatpush1.bf16.msra.mxu0 0
      %2399 = vmatprep.subr.bf16.mxu0 0
      %2400 = vmatpush1.bf16.msra.mxu0 0
      %2401 = vmatprep.subr.bf16.mxu0 0
      %2402 = vmatpush1.bf16.msra.mxu0 0
      %2403 = vmatprep.subr.bf16.mxu0 0
      %2404 = vmatpush1.bf16.msra.mxu0 0
      %2405 = vmatprep.subr.bf16.mxu0 0
      %2406 = vmatpush1.bf16.msra.mxu0 0
      %2407 = vmatprep.subr.bf16.mxu0 0
      %2408 = vmatpush1.bf16.msra.mxu0 0
      %2409 = vmatprep.subr.bf16.mxu0 0
      %2410 = vmatpush1.bf16.msra.mxu0 0
      %2411 = vmatprep.subr.bf16.mxu0 0
      %2412 = vmatpush1.bf16.msra.mxu0 0
      %2413 = vmatprep.subr.bf16.mxu0 0
      %2414 = vmatpush1.bf16.msra.mxu0 0
      %2415 = vmatprep.mubr.bf16.mxu0 0
      %2416 = vmatmul.mubr.bf16.gmra.mrb[0].mxu0 %v2372
      %v2417 = vpop.f32.mrb[0].mxu0
      %v2418 = vadd.f32 0.0, %v2417
      %v2419 = vpop.f32.mrb[0].mxu0
      %v2420 = vpop.f32.mrb[0].mxu0
      %v2421 = vadd.f32 0.0, %v2420
      %v2422 = vpop.f32.mrb[0].mxu0
      %2423 = vmatprep.mubr.bf16.mxu0 0
      %2424 = vmatmul.mubr.bf16.gmra.mrb[0].mxu0 %v2375
      %v2425 = vpop.f32.mrb[0].mxu0
      %v2426 = vadd.f32 0.0, %v2425
      %v2427 = vpop.f32.mrb[0].mxu0
      %v2428 = vpop.f32.mrb[0].mxu0
      %v2429 = vadd.f32 0.0, %v2428
      %v2430 = vpop.f32.mrb[0].mxu0
      %2431 = vmatprep.mubr.bf16.mxu0 0
      %2432 = vmatmul.mubr.bf16.gmra.mrb[0].mxu0 %v2378
      %v2433 = vpop.f32.mrb[0].mxu0
      %v2434 = vadd.f32 0.0, %v2433
      %v2435 = vpop.f32.mrb[0].mxu0
      %v2436 = vpop.f32.mrb[0].mxu0
      %v2437 = vadd.f32 0.0, %v2436
      %v2438 = vpop.f32.mrb[0].mxu0
      %2439 = vmatprep.mubr.bf16.mxu0 0
      %2440 = vmatmul.mubr.bf16.gmra.mrb[0].mxu0 %v2381
      %v2441 = vpop.f32.mrb[0].mxu0
      %v2442 = vadd.f32 0.0, %v2441
      %v2443 = vpop.f32.mrb[0].mxu0
      %v2444 = vpop.f32.mrb[0].mxu0
      %v2445 = vadd.f32 0.0, %v2444
      %v2446 = vpop.f32.mrb[0].mxu0
      %2447 = vdwg.mxu0
      %v2448 = vadd.f32 %v2309, %v2418
      %v2449 = vadd.f32 %v2312, %v2421
      %v2450 = vadd.f32 %v2317, %v2426
      %v2451 = vadd.f32 %v2320, %v2429
      %v2452 = vadd.f32 %v2325, %v2434
      %v2453 = vadd.f32 %v2328, %v2437
      %v2454 = vadd.f32 %v2333, %v2442
      %v2455 = vadd.f32 %v2336, %v2445
      %v2456 = vld [vmem:[%s2 + $0x30] sm:$0x1]
      %v2457 = vlaneseq
      %v2458 = vshrl.u32 %v2457, 7
      %v2459 = vsub.s32 0, %v2458
      %v2460 = vrot.slane %v2456, %v2459
      %v2461 = vadd.f32 %v2448, %v2460
      %v2462 = vadd.f32 %v2449, %v2460
      %v2463 = vadd.f32 %v2450, %v2460
      %v2464 = vadd.f32 %v2451, %v2460
      %v2465 = vadd.f32 %v2452, %v2460
      %v2466 = vadd.f32 %v2453, %v2460
      %v2467 = vadd.f32 %v2454, %v2460
      %v2468 = vadd.f32 %v2455, %v2460
      %v2469 = vmul.f32 %v2461, 0.5
      %v2470 = vmul.f32 %v2462, 0.5
      %v2471 = vmul.f32 %v2463, 0.5
      %v2472 = vmul.f32 %v2464, 0.5
      %v2473 = vmul.f32 %v2465, 0.5
      %v2474 = vmul.f32 %v2466, 0.5
      %v2475 = vmul.f32 %v2467, 0.5
      %v2476 = vmul.f32 %v2468, 0.5
      %v2477 = vmul.f32 %v2461, 0.044715
      %v2478 = vmul.f32 %v2462, 0.044715
      %v2479 = vmul.f32 %v2463, 0.044715
      %v2480 = vmul.f32 %v2464, 0.044715
      %v2481 = vmul.f32 %v2465, 0.044715
      %v2482 = vmul.f32 %v2466, 0.044715
      %v2483 = vmul.f32 %v2467, 0.044715
      %v2484 = vmul.f32 %v2468, 0.044715
      %v2485 = vmul.f32 %v2477, %v2461
      %v2486 = vmul.f32 %v2478, %v2462
      %v2487 = vmul.f32 %v2479, %v2463
      %v2488 = vmul.f32 %v2480, %v2464
      %v2489 = vmul.f32 %v2481, %v2465
      %v2490 = vmul.f32 %v2482, %v2466
      %v2491 = vmul.f32 %v2483, %v2467
      %v2492 = vmul.f32 %v2484, %v2468
      %v2493 = vmul.f32 %v2485, %v2461
      %v2494 = vmul.f32 %v2486, %v2462
      %v2495 = vmul.f32 %v2487, %v2463
      %v2496 = vmul.f32 %v2488, %v2464
      %v2497 = vmul.f32 %v2489, %v2465
      %v2498 = vmul.f32 %v2490, %v2466
      %v2499 = vmul.f32 %v2491, %v2467
      %v2500 = vmul.f32 %v2492, %v2468
      %v2501 = vadd.f32 %v2461, %v2493
      %v2502 = vadd.f32 %v2462, %v2494
      %v2503 = vadd.f32 %v2463, %v2495
      %v2504 = vadd.f32 %v2464, %v2496
      %v2505 = vadd.f32 %v2465, %v2497
      %v2506 = vadd.f32 %v2466, %v2498
      %v2507 = vadd.f32 %v2467, %v2499
      %v2508 = vadd.f32 %v2468, %v2500
      %v2509 = vmul.f32 %v2501, 0.7978846
      %v2510 = vmul.f32 %v2502, 0.7978846
      %v2511 = vmul.f32 %v2503, 0.7978846
      %v2512 = vmul.f32 %v2504, 0.7978846
      %v2513 = vmul.f32 %v2505, 0.7978846
      %v2514 = vmul.f32 %v2506, 0.7978846
      %v2515 = vmul.f32 %v2507, 0.7978846
      %v2516 = vmul.f32 %v2508, 0.7978846
      %v2517 = vtanh.pop %v2509
      %v2518 = vtanh.pop %v2510
      %v2519 = vtanh.pop %v2511
      %v2520 = vtanh.pop %v2512
      %v2521 = vtanh.pop %v2513
      %v2522 = vtanh.pop %v2514
      %v2523 = vtanh.pop %v2515
      %v2524 = vtanh.pop %v2516
      %v2525 = vadd.f32 %v2517, 1.0
      %v2526 = vadd.f32 %v2518, 1.0
      %v2527 = vadd.f32 %v2519, 1.0
      %v2528 = vadd.f32 %v2520, 1.0
      %v2529 = vadd.f32 %v2521, 1.0
      %v2530 = vadd.f32 %v2522, 1.0
      %v2531 = vadd.f32 %v2523, 1.0
      %v2532 = vadd.f32 %v2524, 1.0
      %v2533 = vmul.f32 %v2469, %v2525
      %v2534 = vmul.f32 %v2470, %v2526
      %v2535 = vmul.f32 %v2471, %v2527
      %v2536 = vmul.f32 %v2472, %v2528
      %v2537 = vmul.f32 %v2473, %v2529
      %v2538 = vmul.f32 %v2474, %v2530
      %v2539 = vmul.f32 %v2475, %v2531
      %v2540 = vmul.f32 %v2476, %v2532
      %v2541 = vpack.c.bf16 %v2534, %v2533
      %v2542 = vpack.c.bf16 %v2536, %v2535
      %v2543 = vpack.c.bf16 %v2538, %v2537
      %v2544 = vpack.c.bf16 %v2540, %v2539
      %v2545 = vld [vmem:[%s1 + $0x218] sm:$0xf]
      %v2546 = vld [vmem:[%s1 + $0x21c] sm:$0xf]
      %v2547 = vld [vmem:[%s1 + $0x220] sm:$0xf]
      %v2548 = vld [vmem:[%s1 + $0x224] sm:$0xf]
      %v2549 = vld [vmem:[%s1 + $0x228] sm:$0xf]
      %v2550 = vld [vmem:[%s1 + $0x22c] sm:$0xf]
      %v2551 = vld [vmem:[%s1 + $0x230] sm:$0xf]
      %v2552 = vld [vmem:[%s1 + $0x234] sm:$0xf]
      %v2553 = vld [vmem:[%s1 + $0x238] sm:$0xf]
      %v2554 = vld [vmem:[%s1 + $0x23c] sm:$0xf]
      %v2555 = vld [vmem:[%s1 + $0x240] sm:$0xf]
      %v2556 = vld [vmem:[%s1 + $0x244] sm:$0xf]
      %v2557 = vld [vmem:[%s1 + $0x248] sm:$0xf]
      %v2558 = vld [vmem:[%s1 + $0x24c] sm:$0xf]
      %v2559 = vld [vmem:[%s1 + $0x250] sm:$0xf]
      %v2560 = vld [vmem:[%s1 + $0x254] sm:$0xf]
      %v2577 = vunpack.c.l.b16 %v2545
      %v2578 = vunpack.c.l.b16 %v2546
      %v2579 = vunpack.c.l.b16 %v2547
      %v2580 = vunpack.c.l.b16 %v2548
      %v2581 = vunpack.c.l.b16 %v2549
      %v2582 = vunpack.c.l.b16 %v2550
      %v2583 = vunpack.c.l.b16 %v2551
      %v2584 = vunpack.c.l.b16 %v2552
      %v2585 = vunpack.c.l.b16 %v2553
      %v2586 = vunpack.c.l.b16 %v2554
      %v2587 = vunpack.c.l.b16 %v2555
      %v2588 = vunpack.c.l.b16 %v2556
      %v2589 = vunpack.c.l.b16 %v2557
      %v2590 = vunpack.c.l.b16 %v2558
      %v2591 = vunpack.c.l.b16 %v2559
      %v2592 = vunpack.c.l.b16 %v2560
      %v2593 = vpack.c.b16 %v2578, %v2577
      %v2594 = vpack.c.b16 %v2580, %v2579
      %v2595 = vpack.c.b16 %v2582, %v2581
      %v2596 = vpack.c.b16 %v2584, %v2583
      %v2597 = vpack.c.b16 %v2586, %v2585
      %v2598 = vpack.c.b16 %v2588, %v2587
      %v2599 = vpack.c.b16 %v2590, %v2589
      %v2600 = vpack.c.b16 %v2592, %v2591
      %v2602 = vsel %vm1521, %v2593, 0
      %v2605 = vsel %vm1521, %v2594, 0
      %v2608 = vsel %vm1521, %v2595, 0
      %v2611 = vsel %vm1521, %v2596, 0
      %v2614 = vsel %vm1521, %v2597, 0
      %v2617 = vsel %vm1521, %v2598, 0
      %v2620 = vsel %vm1521, %v2599, 0
      %v2623 = vsel %vm1521, %v2600, 0
      %2625 = vmatprep.subr.bf16.mxu0 0
      %2626 = vmatpush1.bf16.msra.mxu0 %v2541
      %2627 = vmatprep.subr.bf16.mxu0 0
      %2628 = vmatpush1.bf16.msra.mxu0 %v2542
      %2629 = vmatprep.subr.bf16.mxu0 0
      %2630 = vmatpush1.bf16.msra.mxu0 %v2543
      %2631 = vmatprep.subr.bf16.mxu0 0
      %2632 = vmatpush1.bf16.msra.mxu0 %v2544
      %2633 = vmatprep.subr.bf16.mxu0 0
      %2634 = vmatpush1.bf16.msra.mxu0 0
      %2635 = vmatprep.subr.bf16.mxu0 0
      %2636 = vmatpush1.bf16.msra.mxu0 0
      %2637 = vmatprep.subr.bf16.mxu0 0
      %2638 = vmatpush1.bf16.msra.mxu0 0
      %2639 = vmatprep.subr.bf16.mxu0 0
      %2640 = vmatpush1.bf16.msra.mxu0 0
      %2641 = vmatprep.subr.bf16.mxu0 0
      %2642 = vmatpush1.bf16.msra.mxu0 0
      %2643 = vmatprep.subr.bf16.mxu0 0
      %2644 = vmatpush1.bf16.msra.mxu0 0
      %2645 = vmatprep.subr.bf16.mxu0 0
      %2646 = vmatpush1.bf16.msra.mxu0 0
      %2647 = vmatprep.subr.bf16.mxu0 0
      %2648 = vmatpush1.bf16.msra.mxu0 0
      %2649 = vmatprep.subr.bf16.mxu0 0
      %2650 = vmatpush1.bf16.msra.mxu0 0
      %2651 = vmatprep.subr.bf16.mxu0 0
      %2652 = vmatpush1.bf16.msra.mxu0 0
      %2653 = vmatprep.subr.bf16.mxu0 0
      %2654 = vmatpush1.bf16.msra.mxu0 0
      %2655 = vmatprep.subr.bf16.mxu0 0
      %2656 = vmatpush1.bf16.msra.mxu0 0
      %2657 = vmatprep.mubr.bf16.mxu0 0
      %2658 = vmatmul.mubr.bf16.gmra.mrb[0].mxu0 %v2602
      %v2659 = vpop.f32.mrb[0].mxu0
      %v2660 = vadd.f32 0.0, %v2659
      %v2661 = vpop.f32.mrb[0].mxu0
      %v2662 = vpop.f32.mrb[0].mxu0
      %v2663 = vadd.f32 0.0, %v2662
      %v2664 = vpop.f32.mrb[0].mxu0
      %2665 = vmatprep.mubr.bf16.mxu0 0
      %2666 = vmatmul.mubr.bf16.gmra.mrb[0].mxu0 %v2605
      %v2667 = vpop.f32.mrb[0].mxu0
      %v2668 = vadd.f32 0.0, %v2667
      %v2669 = vpop.f32.mrb[0].mxu0
      %v2670 = vpop.f32.mrb[0].mxu0
      %v2671 = vadd.f32 0.0, %v2670
      %v2672 = vpop.f32.mrb[0].mxu0
      %2673 = vmatprep.mubr.bf16.mxu0 0
      %2674 = vmatmul.mubr.bf16.gmra.mrb[0].mxu0 %v2608
      %v2675 = vpop.f32.mrb[0].mxu0
      %v2676 = vadd.f32 0.0, %v2675
      %v2677 = vpop.f32.mrb[0].mxu0
      %v2678 = vpop.f32.mrb[0].mxu0
      %v2679 = vadd.f32 0.0, %v2678
      %v2680 = vpop.f32.mrb[0].mxu0
      %2681 = vmatprep.mubr.bf16.mxu0 0
      %2682 = vmatmul.mubr.bf16.gmra.mrb[0].mxu0 %v2611
      %v2683 = vpop.f32.mrb[0].mxu0
      %v2684 = vadd.f32 0.0, %v2683
      %v2685 = vpop.f32.mrb[0].mxu0
      %v2686 = vpop.f32.mrb[0].mxu0
      %v2687 = vadd.f32 0.0, %v2686
      %v2688 = vpop.f32.mrb[0].mxu0
      %2689 = vmatprep.mubr.bf16.mxu0 0
      %2690 = vmatmul.mubr.bf16.gmra.mrb[0].mxu0 %v2614
      %v2691 = vpop.f32.mrb[0].mxu0
      %v2692 = vadd.f32 0.0, %v2691
      %v2693 = vpop.f32.mrb[0].mxu0
      %v2694 = vpop.f32.mrb[0].mxu0
      %v2695 = vadd.f32 0.0, %v2694
      %v2696 = vpop.f32.mrb[0].mxu0
      %2697 = vmatprep.mubr.bf16.mxu0 0
      %2698 = vmatmul.mubr.bf16.gmra.mrb[0].mxu0 %v2617
      %v2699 = vpop.f32.mrb[0].mxu0
      %v2700 = vadd.f32 0.0, %v2699
      %v2701 = vpop.f32.mrb[0].mxu0
      %v2702 = vpop.f32.mrb[0].mxu0
      %v2703 = vadd.f32 0.0, %v2702
      %v2704 = vpop.f32.mrb[0].mxu0
      %2705 = vmatprep.mubr.bf16.mxu0 0
      %2706 = vmatmul.mubr.bf16.gmra.mrb[0].mxu0 %v2620
      %v2707 = vpop.f32.mrb[0].mxu0
      %v2708 = vadd.f32 0.0, %v2707
      %v2709 = vpop.f32.mrb[0].mxu0
      %v2710 = vpop.f32.mrb[0].mxu0
      %v2711 = vadd.f32 0.0, %v2710
      %v2712 = vpop.f32.mrb[0].mxu0
      %2713 = vmatprep.mubr.bf16.mxu0 0
      %2714 = vmatmul.mubr.bf16.gmra.mrb[0].mxu0 %v2623
      %v2715 = vpop.f32.mrb[0].mxu0
      %v2716 = vadd.f32 0.0, %v2715
      %v2717 = vpop.f32.mrb[0].mxu0
      %v2718 = vpop.f32.mrb[0].mxu0
      %v2719 = vadd.f32 0.0, %v2718
      %v2720 = vpop.f32.mrb[0].mxu0
      %2721 = vdwg.mxu0
      %v2722 = vpack.c.bf16 %v2663, %v2660
      %v2723 = vpack.c.bf16 %v2671, %v2668
      %v2724 = vpack.c.bf16 %v2679, %v2676
      %v2725 = vpack.c.bf16 %v2687, %v2684
      %v2726 = vpack.c.bf16 %v2695, %v2692
      %v2727 = vpack.c.bf16 %v2703, %v2700
      %v2728 = vpack.c.bf16 %v2711, %v2708
      %v2729 = vpack.c.bf16 %v2719, %v2716
      %v2730 = vld [vmem:[%s1 + $0x258] sm:$0xf]
      %v2731 = vld [vmem:[%s1 + $0x25c] sm:$0xf]
      %v2732 = vld [vmem:[%s1 + $0x260] sm:$0xf]
      %v2733 = vld [vmem:[%s1 + $0x264] sm:$0xf]
      %v2734 = vld [vmem:[%s1 + $0x268] sm:$0xf]
      %v2735 = vld [vmem:[%s1 + $0x26c] sm:$0xf]
      %v2736 = vld [vmem:[%s1 + $0x270] sm:$0xf]
      %v2737 = vld [vmem:[%s1 + $0x274] sm:$0xf]
      %v2738 = vld [vmem:[%s1 + $0x278] sm:$0xf]
      %v2739 = vld [vmem:[%s1 + $0x27c] sm:$0xf]
      %v2740 = vld [vmem:[%s1 + $0x280] sm:$0xf]
      %v2741 = vld [vmem:[%s1 + $0x284] sm:$0xf]
      %v2742 = vld [vmem:[%s1 + $0x288] sm:$0xf]
      %v2743 = vld [vmem:[%s1 + $0x28c] sm:$0xf]
      %v2744 = vld [vmem:[%s1 + $0x290] sm:$0xf]
      %v2745 = vld [vmem:[%s1 + $0x294] sm:$0xf]
      %v2762 = vunpack.c.l.b16 %v2730
      %v2763 = vunpack.c.l.b16 %v2731
      %v2764 = vunpack.c.l.b16 %v2732
      %v2765 = vunpack.c.l.b16 %v2733
      %v2766 = vunpack.c.l.b16 %v2734
      %v2767 = vunpack.c.l.b16 %v2735
      %v2768 = vunpack.c.l.b16 %v2736
      %v2769 = vunpack.c.l.b16 %v2737
      %v2770 = vunpack.c.l.b16 %v2738
      %v2771 = vunpack.c.l.b16 %v2739
      %v2772 = vunpack.c.l.b16 %v2740
      %v2773 = vunpack.c.l.b16 %v2741
      %v2774 = vunpack.c.l.b16 %v2742
      %v2775 = vunpack.c.l.b16 %v2743
      %v2776 = vunpack.c.l.b16 %v2744
      %v2777 = vunpack.c.l.b16 %v2745
      %v2778 = vpack.c.b16 %v2763, %v2762
      %v2779 = vpack.c.b16 %v2765, %v2764
      %v2780 = vpack.c.b16 %v2767, %v2766
      %v2781 = vpack.c.b16 %v2769, %v2768
      %v2782 = vpack.c.b16 %v2771, %v2770
      %v2783 = vpack.c.b16 %v2773, %v2772
      %v2784 = vpack.c.b16 %v2775, %v2774
      %v2785 = vpack.c.b16 %v2777, %v2776
      %v2787 = vsel %vm1521, %v2778, 0
      %v2790 = vsel %vm1521, %v2779, 0
      %v2793 = vsel %vm1521, %v2780, 0
      %v2796 = vsel %vm1521, %v2781, 0
      %v2799 = vsel %vm1521, %v2782, 0
      %v2802 = vsel %vm1521, %v2783, 0
      %v2805 = vsel %vm1521, %v2784, 0
      %v2808 = vsel %vm1521, %v2785, 0
      %2810 = vmatprep.subr.bf16.mxu0 0
      %2811 = vmatpush1.bf16.msra.mxu0 %v2541
      %2812 = vmatprep.subr.bf16.mxu0 0
      %2813 = vmatpush1.bf16.msra.mxu0 %v2542
      %2814 = vmatprep.subr.bf16.mxu0 0
      %2815 = vmatpush1.bf16.msra.mxu0 %v2543
      %2816 = vmatprep.subr.bf16.mxu0 0
      %2817 = vmatpush1.bf16.msra.mxu0 %v2544
      %2818 = vmatprep.subr.bf16.mxu0 0
      %2819 = vmatpush1.bf16.msra.mxu0 0
      %2820 = vmatprep.subr.bf16.mxu0 0
      %2821 = vmatpush1.bf16.msra.mxu0 0
      %2822 = vmatprep.subr.bf16.mxu0 0
      %2823 = vmatpush1.bf16.msra.mxu0 0
      %2824 = vmatprep.subr.bf16.mxu0 0
      %2825 = vmatpush1.bf16.msra.mxu0 0
      %2826 = vmatprep.subr.bf16.mxu0 0
      %2827 = vmatpush1.bf16.msra.mxu0 0
      %2828 = vmatprep.subr.bf16.mxu0 0
      %2829 = vmatpush1.bf16.msra.mxu0 0
      %2830 = vmatprep.subr.bf16.mxu0 0
      %2831 = vmatpush1.bf16.msra.mxu0 0
      %2832 = vmatprep.subr.bf16.mxu0 0
      %2833 = vmatpush1.bf16.msra.mxu0 0
      %2834 = vmatprep.subr.bf16.mxu0 0
      %2835 = vmatpush1.bf16.msra.mxu0 0
      %2836 = vmatprep.subr.bf16.mxu0 0
      %2837 = vmatpush1.bf16.msra.mxu0 0
      %2838 = vmatprep.subr.bf16.mxu0 0
      %2839 = vmatpush1.bf16.msra.mxu0 0
      %2840 = vmatprep.subr.bf16.mxu0 0
      %2841 = vmatpush1.bf16.msra.mxu0 0
      %2842 = vmatprep.mubr.bf16.mxu0 0
      %2843 = vmatmul.mubr.bf16.gmra.mrb[0].mxu0 %v2787
      %v2844 = vpop.f32.mrb[0].mxu0
      %v2845 = vadd.f32 0.0, %v2844
      %v2846 = vpop.f32.mrb[0].mxu0
      %v2847 = vpop.f32.mrb[0].mxu0
      %v2848 = vadd.f32 0.0, %v2847
      %v2849 = vpop.f32.mrb[0].mxu0
      %2850 = vmatprep.mubr.bf16.mxu0 0
      %2851 = vmatmul.mubr.bf16.gmra.mrb[0].mxu0 %v2790
      %v2852 = vpop.f32.mrb[0].mxu0
      %v2853 = vadd.f32 0.0, %v2852
      %v2854 = vpop.f32.mrb[0].mxu0
      %v2855 = vpop.f32.mrb[0].mxu0
      %v2856 = vadd.f32 0.0, %v2855
      %v2857 = vpop.f32.mrb[0].mxu0
      %2858 = vmatprep.mubr.bf16.mxu0 0
      %2859 = vmatmul.mubr.bf16.gmra.mrb[0].mxu0 %v2793
      %v2860 = vpop.f32.mrb[0].mxu0
      %v2861 = vadd.f32 0.0, %v2860
      %v2862 = vpop.f32.mrb[0].mxu0
      %v2863 = vpop.f32.mrb[0].mxu0
      %v2864 = vadd.f32 0.0, %v2863
      %v2865 = vpop.f32.mrb[0].mxu0
      %2866 = vmatprep.mubr.bf16.mxu0 0
      %2867 = vmatmul.mubr.bf16.gmra.mrb[0].mxu0 %v2796
      %v2868 = vpop.f32.mrb[0].mxu0
      %v2869 = vadd.f32 0.0, %v2868
      %v2870 = vpop.f32.mrb[0].mxu0
      %v2871 = vpop.f32.mrb[0].mxu0
      %v2872 = vadd.f32 0.0, %v2871
      %v2873 = vpop.f32.mrb[0].mxu0
      %2874 = vmatprep.mubr.bf16.mxu0 0
      %2875 = vmatmul.mubr.bf16.gmra.mrb[0].mxu0 %v2799
      %v2876 = vpop.f32.mrb[0].mxu0
      %v2877 = vadd.f32 0.0, %v2876
      %v2878 = vpop.f32.mrb[0].mxu0
      %v2879 = vpop.f32.mrb[0].mxu0
      %v2880 = vadd.f32 0.0, %v2879
      %v2881 = vpop.f32.mrb[0].mxu0
      %2882 = vmatprep.mubr.bf16.mxu0 0
      %2883 = vmatmul.mubr.bf16.gmra.mrb[0].mxu0 %v2802
      %v2884 = vpop.f32.mrb[0].mxu0
      %v2885 = vadd.f32 0.0, %v2884
      %v2886 = vpop.f32.mrb[0].mxu0
      %v2887 = vpop.f32.mrb[0].mxu0
      %v2888 = vadd.f32 0.0, %v2887
      %v2889 = vpop.f32.mrb[0].mxu0
      %2890 = vmatprep.mubr.bf16.mxu0 0
      %2891 = vmatmul.mubr.bf16.gmra.mrb[0].mxu0 %v2805
      %v2892 = vpop.f32.mrb[0].mxu0
      %v2893 = vadd.f32 0.0, %v2892
      %v2894 = vpop.f32.mrb[0].mxu0
      %v2895 = vpop.f32.mrb[0].mxu0
      %v2896 = vadd.f32 0.0, %v2895
      %v2897 = vpop.f32.mrb[0].mxu0
      %2898 = vmatprep.mubr.bf16.mxu0 0
      %2899 = vmatmul.mubr.bf16.gmra.mrb[0].mxu0 %v2808
      %v2900 = vpop.f32.mrb[0].mxu0
      %v2901 = vadd.f32 0.0, %v2900
      %v2902 = vpop.f32.mrb[0].mxu0
      %v2903 = vpop.f32.mrb[0].mxu0
      %v2904 = vadd.f32 0.0, %v2903
      %v2905 = vpop.f32.mrb[0].mxu0
      %2906 = vdwg.mxu0
      %v2907 = vpack.c.bf16 %v2848, %v2845
      %v2908 = vpack.c.bf16 %v2856, %v2853
      %v2909 = vpack.c.bf16 %v2864, %v2861
      %v2910 = vpack.c.bf16 %v2872, %v2869
      %v2911 = vpack.c.bf16 %v2880, %v2877
      %v2912 = vpack.c.bf16 %v2888, %v2885
      %v2913 = vpack.c.bf16 %v2896, %v2893
      %v2914 = vpack.c.bf16 %v2904, %v2901
      %v2915 = vld [vmem:[%s1 + $0x298] sm:$0xf]
      %v2916 = vld [vmem:[%s1 + $0x29c] sm:$0xf]
      %v2917 = vld [vmem:[%s1 + $0x2a0] sm:$0xf]
      %v2918 = vld [vmem:[%s1 + $0x2a4] sm:$0xf]
      %v2919 = vld [vmem:[%s1 + $0x2a8] sm:$0xf]
      %v2920 = vld [vmem:[%s1 + $0x2ac] sm:$0xf]
      %v2921 = vld [vmem:[%s1 + $0x2b0] sm:$0xf]
      %v2922 = vld [vmem:[%s1 + $0x2b4] sm:$0xf]
      %v2923 = vld [vmem:[%s1 + $0x2b8] sm:$0xf]
      %v2924 = vld [vmem:[%s1 + $0x2bc] sm:$0xf]
      %v2925 = vld [vmem:[%s1 + $0x2c0] sm:$0xf]
      %v2926 = vld [vmem:[%s1 + $0x2c4] sm:$0xf]
      %v2927 = vld [vmem:[%s1 + $0x2c8] sm:$0xf]
      %v2928 = vld [vmem:[%s1 + $0x2cc] sm:$0xf]
      %v2929 = vld [vmem:[%s1 + $0x2d0] sm:$0xf]
      %v2930 = vld [vmem:[%s1 + $0x2d4] sm:$0xf]
      %v2947 = vunpack.c.l.b16 %v2915
      %v2948 = vunpack.c.l.b16 %v2916
      %v2949 = vunpack.c.l.b16 %v2917
      %v2950 = vunpack.c.l.b16 %v2918
      %v2951 = vunpack.c.l.b16 %v2919
      %v2952 = vunpack.c.l.b16 %v2920
      %v2953 = vunpack.c.l.b16 %v2921
      %v2954 = vunpack.c.l.b16 %v2922
      %v2955 = vunpack.c.l.b16 %v2923
      %v2956 = vunpack.c.l.b16 %v2924
      %v2957 = vunpack.c.l.b16 %v2925
      %v2958 = vunpack.c.l.b16 %v2926
      %v2959 = vunpack.c.l.b16 %v2927
      %v2960 = vunpack.c.l.b16 %v2928
      %v2961 = vunpack.c.l.b16 %v2929
      %v2962 = vunpack.c.l.b16 %v2930
      %v2963 = vpack.c.b16 %v2948, %v2947
      %v2964 = vpack.c.b16 %v2950, %v2949
      %v2965 = vpack.c.b16 %v2952, %v2951
      %v2966 = vpack.c.b16 %v2954, %v2953
      %v2967 = vpack.c.b16 %v2956, %v2955
      %v2968 = vpack.c.b16 %v2958, %v2957
      %v2969 = vpack.c.b16 %v2960, %v2959
      %v2970 = vpack.c.b16 %v2962, %v2961
      %v2972 = vsel %vm1521, %v2963, 0
      %v2975 = vsel %vm1521, %v2964, 0
      %v2978 = vsel %vm1521, %v2965, 0
      %v2981 = vsel %vm1521, %v2966, 0
      %v2984 = vsel %vm1521, %v2967, 0
      %v2987 = vsel %vm1521, %v2968, 0
      %v2990 = vsel %vm1521, %v2969, 0
      %v2993 = vsel %vm1521, %v2970, 0
      %2995 = vmatprep.subr.bf16.mxu0 0
      %2996 = vmatpush1.bf16.msra.mxu0 %v2541
      %2997 = vmatprep.subr.bf16.mxu0 0
      %2998 = vmatpush1.bf16.msra.mxu0 %v2542
      %2999 = vmatprep.subr.bf16.mxu0 0
      %3000 = vmatpush1.bf16.msra.mxu0 %v2543
      %3001 = vmatprep.subr.bf16.mxu0 0
      %3002 = vmatpush1.bf16.msra.mxu0 %v2544
      %3003 = vmatprep.subr.bf16.mxu0 0
      %3004 = vmatpush1.bf16.msra.mxu0 0
      %3005 = vmatprep.subr.bf16.mxu0 0
      %3006 = vmatpush1.bf16.msra.mxu0 0
      %3007 = vmatprep.subr.bf16.mxu0 0
      %3008 = vmatpush1.bf16.msra.mxu0 0
      %3009 = vmatprep.subr.bf16.mxu0 0
      %3010 = vmatpush1.bf16.msra.mxu0 0
      %3011 = vmatprep.subr.bf16.mxu0 0
      %3012 = vmatpush1.bf16.msra.mxu0 0
      %3013 = vmatprep.subr.bf16.mxu0 0
      %3014 = vmatpush1.bf16.msra.mxu0 0
      %3015 = vmatprep.subr.bf16.mxu0 0
      %3016 = vmatpush1.bf16.msra.mxu0 0
      %3017 = vmatprep.subr.bf16.mxu0 0
      %3018 = vmatpush1.bf16.msra.mxu0 0
      %3019 = vmatprep.subr.bf16.mxu0 0
      %3020 = vmatpush1.bf16.msra.mxu0 0
      %3021 = vmatprep.subr.bf16.mxu0 0
      %3022 = vmatpush1.bf16.msra.mxu0 0
      %3023 = vmatprep.subr.bf16.mxu0 0
      %3024 = vmatpush1.bf16.msra.mxu0 0
      %3025 = vmatprep.subr.bf16.mxu0 0
      %3026 = vmatpush1.bf16.msra.mxu0 0
      %3027 = vmatprep.mubr.bf16.mxu0 0
      %3028 = vmatmul.mubr.bf16.gmra.mrb[0].mxu0 %v2972
      %v3029 = vpop.f32.mrb[0].mxu0
      %v3030 = vadd.f32 0.0, %v3029
      %v3031 = vpop.f32.mrb[0].mxu0
      %v3032 = vpop.f32.mrb[0].mxu0
      %v3033 = vadd.f32 0.0, %v3032
      %v3034 = vpop.f32.mrb[0].mxu0
      %3035 = vmatprep.mubr.bf16.mxu0 0
      %3036 = vmatmul.mubr.bf16.gmra.mrb[0].mxu0 %v2975
      %v3037 = vpop.f32.mrb[0].mxu0
      %v3038 = vadd.f32 0.0, %v3037
      %v3039 = vpop.f32.mrb[0].mxu0
      %v3040 = vpop.f32.mrb[0].mxu0
      %v3041 = vadd.f32 0.0, %v3040
      %v3042 = vpop.f32.mrb[0].mxu0
      %3043 = vmatprep.mubr.bf16.mxu0 0
      %3044 = vmatmul.mubr.bf16.gmra.mrb[0].mxu0 %v2978
      %v3045 = vpop.f32.mrb[0].mxu0
      %v3046 = vadd.f32 0.0, %v3045
      %v3047 = vpop.f32.mrb[0].mxu0
      %v3048 = vpop.f32.mrb[0].mxu0
      %v3049 = vadd.f32 0.0, %v3048
      %v3050 = vpop.f32.mrb[0].mxu0
      %3051 = vmatprep.mubr.bf16.mxu0 0
      %3052 = vmatmul.mubr.bf16.gmra.mrb[0].mxu0 %v2981
      %v3053 = vpop.f32.mrb[0].mxu0
      %v3054 = vadd.f32 0.0, %v3053
      %v3055 = vpop.f32.mrb[0].mxu0
      %v3056 = vpop.f32.mrb[0].mxu0
      %v3057 = vadd.f32 0.0, %v3056
      %v3058 = vpop.f32.mrb[0].mxu0
      %3059 = vmatprep.mubr.bf16.mxu0 0
      %3060 = vmatmul.mubr.bf16.gmra.mrb[0].mxu0 %v2984
      %v3061 = vpop.f32.mrb[0].mxu0
      %v3062 = vadd.f32 0.0, %v3061
      %v3063 = vpop.f32.mrb[0].mxu0
      %v3064 = vpop.f32.mrb[0].mxu0
      %v3065 = vadd.f32 0.0, %v3064
      %v3066 = vpop.f32.mrb[0].mxu0
      %3067 = vmatprep.mubr.bf16.mxu0 0
      %3068 = vmatmul.mubr.bf16.gmra.mrb[0].mxu0 %v2987
      %v3069 = vpop.f32.mrb[0].mxu0
      %v3070 = vadd.f32 0.0, %v3069
      %v3071 = vpop.f32.mrb[0].mxu0
      %v3072 = vpop.f32.mrb[0].mxu0
      %v3073 = vadd.f32 0.0, %v3072
      %v3074 = vpop.f32.mrb[0].mxu0
      %3075 = vmatprep.mubr.bf16.mxu0 0
      %3076 = vmatmul.mubr.bf16.gmra.mrb[0].mxu0 %v2990
      %v3077 = vpop.f32.mrb[0].mxu0
      %v3078 = vadd.f32 0.0, %v3077
      %v3079 = vpop.f32.mrb[0].mxu0
      %v3080 = vpop.f32.mrb[0].mxu0
      %v3081 = vadd.f32 0.0, %v3080
      %v3082 = vpop.f32.mrb[0].mxu0
      %3083 = vmatprep.mubr.bf16.mxu0 0
      %3084 = vmatmul.mubr.bf16.gmra.mrb[0].mxu0 %v2993
      %v3085 = vpop.f32.mrb[0].mxu0
      %v3086 = vadd.f32 0.0, %v3085
      %v3087 = vpop.f32.mrb[0].mxu0
      %v3088 = vpop.f32.mrb[0].mxu0
      %v3089 = vadd.f32 0.0, %v3088
      %v3090 = vpop.f32.mrb[0].mxu0
      %3091 = vdwg.mxu0
      %v3092 = vpack.c.bf16 %v3033, %v3030
      %v3093 = vpack.c.bf16 %v3041, %v3038
      %v3094 = vpack.c.bf16 %v3049, %v3046
      %v3095 = vpack.c.bf16 %v3057, %v3054
      %v3096 = vpack.c.bf16 %v3065, %v3062
      %v3097 = vpack.c.bf16 %v3073, %v3070
      %v3098 = vpack.c.bf16 %v3081, %v3078
      %v3099 = vpack.c.bf16 %v3089, %v3086
      %v3100 = vld [vmem:[%s1 + $0x2d8] sm:$0xf]
      %v3101 = vld [vmem:[%s1 + $0x2dc] sm:$0xf]
      %v3102 = vld [vmem:[%s1 + $0x2e0] sm:$0xf]
      %v3103 = vld [vmem:[%s1 + $0x2e4] sm:$0xf]
      %v3104 = vld [vmem:[%s1 + $0x2e8] sm:$0xf]
      %v3105 = vld [vmem:[%s1 + $0x2ec] sm:$0xf]
      %v3106 = vld [vmem:[%s1 + $0x2f0] sm:$0xf]
      %v3107 = vld [vmem:[%s1 + $0x2f4] sm:$0xf]
      %v3108 = vld [vmem:[%s1 + $0x2f8] sm:$0xf]
      %v3109 = vld [vmem:[%s1 + $0x2fc] sm:$0xf]
      %v3110 = vld [vmem:[%s1 + $0x300] sm:$0xf]
      %v3111 = vld [vmem:[%s1 + $0x304] sm:$0xf]
      %v3112 = vld [vmem:[%s1 + $0x308] sm:$0xf]
      %v3113 = vld [vmem:[%s1 + $0x30c] sm:$0xf]
      %v3114 = vld [vmem:[%s1 + $0x310] sm:$0xf]
      %v3115 = vld [vmem:[%s1 + $0x314] sm:$0xf]
      %v3116 = vld [vmem:[%s1 + $0x318] sm:$0xf]
      %v3117 = vld [vmem:[%s1 + $0x31c] sm:$0xf]
      %v3118 = vld [vmem:[%s1 + $0x320] sm:$0xf]
      %v3119 = vld [vmem:[%s1 + $0x324] sm:$0xf]
      %v3120 = vld [vmem:[%s1 + $0x328] sm:$0xf]
      %v3121 = vld [vmem:[%s1 + $0x32c] sm:$0xf]
      %v3122 = vld [vmem:[%s1 + $0x330] sm:$0xf]
      %v3123 = vld [vmem:[%s1 + $0x334] sm:$0xf]
      %v3124 = vld [vmem:[%s1 + $0x338] sm:$0xf]
      %v3125 = vld [vmem:[%s1 + $0x33c] sm:$0xf]
      %v3126 = vld [vmem:[%s1 + $0x340] sm:$0xf]
      %v3127 = vld [vmem:[%s1 + $0x344] sm:$0xf]
      %v3128 = vld [vmem:[%s1 + $0x348] sm:$0xf]
      %v3129 = vld [vmem:[%s1 + $0x34c] sm:$0xf]
      %v3130 = vld [vmem:[%s1 + $0x350] sm:$0xf]
      %v3131 = vld [vmem:[%s1 + $0x354] sm:$0xf]
      %v3132 = vld [vmem:[%s1 + $0x358] sm:$0xf]
      %v3133 = vld [vmem:[%s1 + $0x35c] sm:$0xf]
      %v3134 = vld [vmem:[%s1 + $0x360] sm:$0xf]
      %v3135 = vld [vmem:[%s1 + $0x364] sm:$0xf]
      %v3136 = vld [vmem:[%s1 + $0x368] sm:$0xf]
      %v3137 = vld [vmem:[%s1 + $0x36c] sm:$0xf]
      %v3138 = vld [vmem:[%s1 + $0x370] sm:$0xf]
      %v3139 = vld [vmem:[%s1 + $0x374] sm:$0xf]
      %v3140 = vld [vmem:[%s1 + $0x378] sm:$0xf]
      %v3141 = vld [vmem:[%s1 + $0x37c] sm:$0xf]
      %v3142 = vld [vmem:[%s1 + $0x380] sm:$0xf]
      %v3143 = vld [vmem:[%s1 + $0x384] sm:$0xf]
      %v3144 = vld [vmem:[%s1 + $0x388] sm:$0xf]
      %v3145 = vld [vmem:[%s1 + $0x38c] sm:$0xf]
      %v3146 = vld [vmem:[%s1 + $0x390] sm:$0xf]
      %v3147 = vld [vmem:[%s1 + $0x394] sm:$0xf]
      %v3148 = vld [vmem:[%s2 + $0x38] sm:$0x1]
      %v3149 = vlaneseq
      %v3150 = vshrl.u32 %v3149, 7
      %v3151 = vsub.s32 0, %v3150
      %v3152 = vrot.slane %v3148, %v3151
      %v3201 = vunpack.c.l.b16 %v3100
      %v3202 = vunpack.c.l.b16 %v3101
      %v3203 = vunpack.c.l.b16 %v3102
      %v3204 = vunpack.c.l.b16 %v3103
      %v3205 = vunpack.c.l.b16 %v3104
      %v3206 = vunpack.c.l.b16 %v3105
      %v3207 = vunpack.c.l.b16 %v3106
      %v3208 = vunpack.c.l.b16 %v3107
      %v3209 = vunpack.c.l.b16 %v3108
      %v3210 = vunpack.c.l.b16 %v3109
      %v3211 = vunpack.c.l.b16 %v3110
      %v3212 = vunpack.c.l.b16 %v3111
      %v3213 = vunpack.c.l.b16 %v3112
      %v3214 = vunpack.c.l.b16 %v3113
      %v3215 = vunpack.c.l.b16 %v3114
      %v3216 = vunpack.c.l.b16 %v3115
      %v3217 = vunpack.c.l.b16 %v3116
      %v3218 = vunpack.c.l.b16 %v3117
      %v3219 = vunpack.c.l.b16 %v3118
      %v3220 = vunpack.c.l.b16 %v3119
      %v3221 = vunpack.c.l.b16 %v3120
      %v3222 = vunpack.c.l.b16 %v3121
      %v3223 = vunpack.c.l.b16 %v3122
      %v3224 = vunpack.c.l.b16 %v3123
      %v3225 = vunpack.c.l.b16 %v3124
      %v3226 = vunpack.c.l.b16 %v3125
      %v3227 = vunpack.c.l.b16 %v3126
      %v3228 = vunpack.c.l.b16 %v3127
      %v3229 = vunpack.c.l.b16 %v3128
      %v3230 = vunpack.c.l.b16 %v3129
      %v3231 = vunpack.c.l.b16 %v3130
      %v3232 = vunpack.c.l.b16 %v3131
      %v3233 = vunpack.c.l.b16 %v3132
      %v3234 = vunpack.c.l.b16 %v3133
      %v3235 = vunpack.c.l.b16 %v3134
      %v3236 = vunpack.c.l.b16 %v3135
      %v3237 = vunpack.c.l.b16 %v3136
      %v3238 = vunpack.c.l.b16 %v3137
      %v3239 = vunpack.c.l.b16 %v3138
      %v3240 = vunpack.c.l.b16 %v3139
      %v3241 = vunpack.c.l.b16 %v3140
      %v3242 = vunpack.c.l.b16 %v3141
      %v3243 = vunpack.c.l.b16 %v3142
      %v3244 = vunpack.c.l.b16 %v3143
      %v3245 = vunpack.c.l.b16 %v3144
      %v3246 = vunpack.c.l.b16 %v3145
      %v3247 = vunpack.c.l.b16 %v3146
      %v3248 = vunpack.c.l.b16 %v3147
      %v3249 = vpack.c.b16 %v3202, %v3201
      %v3250 = vpack.c.b16 %v3204, %v3203
      %v3251 = vpack.c.b16 %v3206, %v3205
      %v3252 = vpack.c.b16 %v3208, %v3207
      %v3253 = vpack.c.b16 %v3210, %v3209
      %v3254 = vpack.c.b16 %v3212, %v3211
      %v3255 = vpack.c.b16 %v3214, %v3213
      %v3256 = vpack.c.b16 %v3216, %v3215
      %v3257 = vpack.c.b16 %v3218, %v3217
      %v3258 = vpack.c.b16 %v3220, %v3219
      %v3259 = vpack.c.b16 %v3222, %v3221
      %v3260 = vpack.c.b16 %v3224, %v3223
      %v3261 = vpack.c.b16 %v3226, %v3225
      %v3262 = vpack.c.b16 %v3228, %v3227
      %v3263 = vpack.c.b16 %v3230, %v3229
      %v3264 = vpack.c.b16 %v3232, %v3231
      %v3265 = vpack.c.b16 %v3234, %v3233
      %v3266 = vpack.c.b16 %v3236, %v3235
      %v3267 = vpack.c.b16 %v3238, %v3237
      %v3268 = vpack.c.b16 %v3240, %v3239
      %v3269 = vpack.c.b16 %v3242, %v3241
      %v3270 = vpack.c.b16 %v3244, %v3243
      %v3271 = vpack.c.b16 %v3246, %v3245
      %v3272 = vpack.c.b16 %v3248, %v3247
      %3297 = vmatprep.subr.bf16.mxu0 0
      %3298 = vmatpush1.bf16.msra.mxu0 %v3249
      %3299 = vmatprep.subr.bf16.mxu0 0
      %3300 = vmatpush1.bf16.msra.mxu0 %v3250
      %3301 = vmatprep.subr.bf16.mxu0 0
      %3302 = vmatpush1.bf16.msra.mxu0 %v3251
      %3303 = vmatprep.subr.bf16.mxu0 0
      %3304 = vmatpush1.bf16.msra.mxu0 %v3252
      %3305 = vmatprep.subr.bf16.mxu0 0
      %3306 = vmatpush1.bf16.msra.mxu0 %v3253
      %3307 = vmatprep.subr.bf16.mxu0 0
      %3308 = vmatpush1.bf16.msra.mxu0 %v3254
      %3309 = vmatprep.subr.bf16.mxu0 0
      %3310 = vmatpush1.bf16.msra.mxu0 %v3255
      %3311 = vmatprep.subr.bf16.mxu0 0
      %3312 = vmatpush1.bf16.msra.mxu0 %v3256
      %3313 = vmatprep.subr.bf16.mxu0 0
      %3314 = vmatpush1.bf16.msra.mxu0 %v3257
      %3315 = vmatprep.subr.bf16.mxu0 0
      %3316 = vmatpush1.bf16.msra.mxu0 %v3258
      %3317 = vmatprep.subr.bf16.mxu0 0
      %3318 = vmatpush1.bf16.msra.mxu0 %v3259
      %3319 = vmatprep.subr.bf16.mxu0 0
      %3320 = vmatpush1.bf16.msra.mxu0 %v3260
      %3321 = vmatprep.subr.bf16.mxu0 0
      %3322 = vmatpush1.bf16.msra.mxu0 %v3261
      %3323 = vmatprep.subr.bf16.mxu0 0
      %3324 = vmatpush1.bf16.msra.mxu0 %v3262
      %3325 = vmatprep.subr.bf16.mxu0 0
      %3326 = vmatpush1.bf16.msra.mxu0 %v3263
      %3327 = vmatprep.subr.bf16.mxu0 0
      %3328 = vmatpush1.bf16.msra.mxu0 %v3264
      %3329 = vmatprep.mubr.bf16.mxu0 %v2907
      %3330 = vmatmul.mubr.bf16.gmra.mrb[0].mxu0 %v2722
      %v3331 = vpop.f32.mrb[0].mxu0
      %v3332 = vadd.f32 %v3152, %v3331
      %v3333 = vpop.f32.mrb[0].mxu0
      %v3334 = vpop.f32.mrb[0].mxu0
      %v3335 = vadd.f32 %v3152, %v3334
      %v3336 = vpop.f32.mrb[0].mxu0
      %3337 = vmatprep.mubr.bf16.mxu0 %v2908
      %3338 = vmatmul.mubr.bf16.gmra.mrb[0].mxu0 %v2723
      %v3339 = vpop.f32.mrb[0].mxu0
      %v3340 = vadd.f32 %v3152, %v3339
      %v3341 = vpop.f32.mrb[0].mxu0
      %v3342 = vpop.f32.mrb[0].mxu0
      %v3343 = vadd.f32 %v3152, %v3342
      %v3344 = vpop.f32.mrb[0].mxu0
      %3345 = vmatprep.mubr.bf16.mxu0 %v2909
      %3346 = vmatmul.mubr.bf16.gmra.mrb[0].mxu0 %v2724
      %v3347 = vpop.f32.mrb[0].mxu0
      %v3348 = vadd.f32 %v3152, %v3347
      %v3349 = vpop.f32.mrb[0].mxu0
      %v3350 = vpop.f32.mrb[0].mxu0
      %v3351 = vadd.f32 %v3152, %v3350
      %v3352 = vpop.f32.mrb[0].mxu0
      %3353 = vmatprep.mubr.bf16.mxu0 %v2910
      %3354 = vmatmul.mubr.bf16.gmra.mrb[0].mxu0 %v2725
      %v3355 = vpop.f32.mrb[0].mxu0
      %v3356 = vadd.f32 %v3152, %v3355
      %v3357 = vpop.f32.mrb[0].mxu0
      %v3358 = vpop.f32.mrb[0].mxu0
      %v3359 = vadd.f32 %v3152, %v3358
      %v3360 = vpop.f32.mrb[0].mxu0
      %3361 = vmatprep.mubr.bf16.mxu0 %v2911
      %3362 = vmatmul.mubr.bf16.gmra.mrb[0].mxu0 %v2726
      %v3363 = vpop.f32.mrb[0].mxu0
      %v3364 = vadd.f32 %v3152, %v3363
      %v3365 = vpop.f32.mrb[0].mxu0
      %v3366 = vpop.f32.mrb[0].mxu0
      %v3367 = vadd.f32 %v3152, %v3366
      %v3368 = vpop.f32.mrb[0].mxu0
      %3369 = vmatprep.mubr.bf16.mxu0 %v2912
      %3370 = vmatmul.mubr.bf16.gmra.mrb[0].mxu0 %v2727
      %v3371 = vpop.f32.mrb[0].mxu0
      %v3372 = vadd.f32 %v3152, %v3371
      %v3373 = vpop.f32.mrb[0].mxu0
      %v3374 = vpop.f32.mrb[0].mxu0
      %v3375 = vadd.f32 %v3152, %v3374
      %v3376 = vpop.f32.mrb[0].mxu0
      %3377 = vmatprep.mubr.bf16.mxu0 %v2913
      %3378 = vmatmul.mubr.bf16.gmra.mrb[0].mxu0 %v2728
      %v3379 = vpop.f32.mrb[0].mxu0
      %v3380 = vadd.f32 %v3152, %v3379
      %v3381 = vpop.f32.mrb[0].mxu0
      %v3382 = vpop.f32.mrb[0].mxu0
      %v3383 = vadd.f32 %v3152, %v3382
      %v3384 = vpop.f32.mrb[0].mxu0
      %3385 = vmatprep.mubr.bf16.mxu0 %v2914
      %3386 = vmatmul.mubr.bf16.gmra.mrb[0].mxu0 %v2729
      %v3387 = vpop.f32.mrb[0].mxu0
      %v3388 = vadd.f32 %v3152, %v3387
      %v3389 = vpop.f32.mrb[0].mxu0
      %v3390 = vpop.f32.mrb[0].mxu0
      %v3391 = vadd.f32 %v3152, %v3390
      %v3392 = vpop.f32.mrb[0].mxu0
      %3393 = vdwg.mxu0
      %3394 = vmatprep.subr.bf16.mxu0 0
      %3395 = vmatpush1.bf16.msra.mxu0 %v3265
      %3396 = vmatprep.subr.bf16.mxu0 0
      %3397 = vmatpush1.bf16.msra.mxu0 %v3266
      %3398 = vmatprep.subr.bf16.mxu0 0
      %3399 = vmatpush1.bf16.msra.mxu0 %v3267
      %3400 = vmatprep.subr.bf16.mxu0 0
      %3401 = vmatpush1.bf16.msra.mxu0 %v3268
      %3402 = vmatprep.subr.bf16.mxu0 0
      %3403 = vmatpush1.bf16.msra.mxu0 %v3269
      %3404 = vmatprep.subr.bf16.mxu0 0
      %3405 = vmatpush1.bf16.msra.mxu0 %v3270
      %3406 = vmatprep.subr.bf16.mxu0 0
      %3407 = vmatpush1.bf16.msra.mxu0 %v3271
      %3408 = vmatprep.subr.bf16.mxu0 0
      %3409 = vmatpush1.bf16.msra.mxu0 %v3272
      %3410 = vmatprep.subr.bf16.mxu0 0
      %3411 = vmatpush1.bf16.msra.mxu0 0
      %3412 = vmatprep.subr.bf16.mxu0 0
      %3413 = vmatpush1.bf16.msra.mxu0 0
      %3414 = vmatprep.subr.bf16.mxu0 0
      %3415 = vmatpush1.bf16.msra.mxu0 0
      %3416 = vmatprep.subr.bf16.mxu0 0
      %3417 = vmatpush1.bf16.msra.mxu0 0
      %3418 = vmatprep.subr.bf16.mxu0 0
      %3419 = vmatpush1.bf16.msra.mxu0 0
      %3420 = vmatprep.subr.bf16.mxu0 0
      %3421 = vmatpush1.bf16.msra.mxu0 0
      %3422 = vmatprep.subr.bf16.mxu0 0
      %3423 = vmatpush1.bf16.msra.mxu0 0
      %3424 = vmatprep.subr.bf16.mxu0 0
      %3425 = vmatpush1.bf16.msra.mxu0 0
      %3426 = vmatprep.mubr.bf16.mxu0 0
      %3427 = vmatmul.mubr.bf16.gmra.mrb[0].mxu0 %v3092
      %v3428 = vpop.f32.mrb[0].mxu0
      %v3429 = vadd.f32 %v3332, %v3428
      %v3430 = vpop.f32.mrb[0].mxu0
      %v3431 = vpop.f32.mrb[0].mxu0
      %v3432 = vadd.f32 %v3335, %v3431
      %v3433 = vpop.f32.mrb[0].mxu0
      %3434 = vmatprep.mubr.bf16.mxu0 0
      %3435 = vmatmul.mubr.bf16.gmra.mrb[0].mxu0 %v3093
      %v3436 = vpop.f32.mrb[0].mxu0
      %v3437 = vadd.f32 %v3340, %v3436
      %v3438 = vpop.f32.mrb[0].mxu0
      %v3439 = vpop.f32.mrb[0].mxu0
      %v3440 = vadd.f32 %v3343, %v3439
      %v3441 = vpop.f32.mrb[0].mxu0
      %3442 = vmatprep.mubr.bf16.mxu0 0
      %3443 = vmatmul.mubr.bf16.gmra.mrb[0].mxu0 %v3094
      %v3444 = vpop.f32.mrb[0].mxu0
      %v3445 = vadd.f32 %v3348, %v3444
      %v3446 = vpop.f32.mrb[0].mxu0
      %v3447 = vpop.f32.mrb[0].mxu0
      %v3448 = vadd.f32 %v3351, %v3447
      %v3449 = vpop.f32.mrb[0].mxu0
      %3450 = vmatprep.mubr.bf16.mxu0 0
      %3451 = vmatmul.mubr.bf16.gmra.mrb[0].mxu0 %v3095
      %v3452 = vpop.f32.mrb[0].mxu0
      %v3453 = vadd.f32 %v3356, %v3452
      %v3454 = vpop.f32.mrb[0].mxu0
      %v3455 = vpop.f32.mrb[0].mxu0
      %v3456 = vadd.f32 %v3359, %v3455
      %v3457 = vpop.f32.mrb[0].mxu0
      %3458 = vmatprep.mubr.bf16.mxu0 0
      %3459 = vmatmul.mubr.bf16.gmra.mrb[0].mxu0 %v3096
      %v3460 = vpop.f32.mrb[0].mxu0
      %v3461 = vadd.f32 %v3364, %v3460
      %v3462 = vpop.f32.mrb[0].mxu0
      %v3463 = vpop.f32.mrb[0].mxu0
      %v3464 = vadd.f32 %v3367, %v3463
      %v3465 = vpop.f32.mrb[0].mxu0
      %3466 = vmatprep.mubr.bf16.mxu0 0
      %3467 = vmatmul.mubr.bf16.gmra.mrb[0].mxu0 %v3097
      %v3468 = vpop.f32.mrb[0].mxu0
      %v3469 = vadd.f32 %v3372, %v3468
      %v3470 = vpop.f32.mrb[0].mxu0
      %v3471 = vpop.f32.mrb[0].mxu0
      %v3472 = vadd.f32 %v3375, %v3471
      %v3473 = vpop.f32.mrb[0].mxu0
      %3474 = vmatprep.mubr.bf16.mxu0 0
      %3475 = vmatmul.mubr.bf16.gmra.mrb[0].mxu0 %v3098
      %v3476 = vpop.f32.mrb[0].mxu0
      %v3477 = vadd.f32 %v3380, %v3476
      %v3478 = vpop.f32.mrb[0].mxu0
      %v3479 = vpop.f32.mrb[0].mxu0
      %v3480 = vadd.f32 %v3383, %v3479
      %v3481 = vpop.f32.mrb[0].mxu0
      %3482 = vmatprep.mubr.bf16.mxu0 0
      %3483 = vmatmul.mubr.bf16.gmra.mrb[0].mxu0 %v3099
      %v3484 = vpop.f32.mrb[0].mxu0
      %v3485 = vadd.f32 %v3388, %v3484
      %v3486 = vpop.f32.mrb[0].mxu0
      %v3487 = vpop.f32.mrb[0].mxu0
      %v3488 = vadd.f32 %v3391, %v3487
      %v3489 = vpop.f32.mrb[0].mxu0
      %3490 = vdwg.mxu0
      %v3491 = vmul.f32 %v3429, 0.5
      %v3492 = vmul.f32 %v3432, 0.5
      %v3493 = vmul.f32 %v3437, 0.5
      %v3494 = vmul.f32 %v3440, 0.5
      %v3495 = vmul.f32 %v3445, 0.5
      %v3496 = vmul.f32 %v3448, 0.5
      %v3497 = vmul.f32 %v3453, 0.5
      %v3498 = vmul.f32 %v3456, 0.5
      %v3499 = vmul.f32 %v3461, 0.5
      %v3500 = vmul.f32 %v3464, 0.5
      %v3501 = vmul.f32 %v3469, 0.5
      %v3502 = vmul.f32 %v3472, 0.5
      %v3503 = vmul.f32 %v3477, 0.5
      %v3504 = vmul.f32 %v3480, 0.5
      %v3505 = vmul.f32 %v3485, 0.5
      %v3506 = vmul.f32 %v3488, 0.5
      %v3507 = vmul.f32 %v3429, 0.044715
      %v3508 = vmul.f32 %v3432, 0.044715
      %v3509 = vmul.f32 %v3437, 0.044715
      %v3510 = vmul.f32 %v3440, 0.044715
      %v3511 = vmul.f32 %v3445, 0.044715
      %v3512 = vmul.f32 %v3448, 0.044715
      %v3513 = vmul.f32 %v3453, 0.044715
      %v3514 = vmul.f32 %v3456, 0.044715
      %v3515 = vmul.f32 %v3461, 0.044715
      %v3516 = vmul.f32 %v3464, 0.044715
      %v3517 = vmul.f32 %v3469, 0.044715
      %v3518 = vmul.f32 %v3472, 0.044715
      %v3519 = vmul.f32 %v3477, 0.044715
      %v3520 = vmul.f32 %v3480, 0.044715
      %v3521 = vmul.f32 %v3485, 0.044715
      %v3522 = vmul.f32 %v3488, 0.044715
      %v3523 = vmul.f32 %v3507, %v3429
      %v3524 = vmul.f32 %v3508, %v3432
      %v3525 = vmul.f32 %v3509, %v3437
      %v3526 = vmul.f32 %v3510, %v3440
      %v3527 = vmul.f32 %v3511, %v3445
      %v3528 = vmul.f32 %v3512, %v3448
      %v3529 = vmul.f32 %v3513, %v3453
      %v3530 = vmul.f32 %v3514, %v3456
      %v3531 = vmul.f32 %v3515, %v3461
      %v3532 = vmul.f32 %v3516, %v3464
      %v3533 = vmul.f32 %v3517, %v3469
      %v3534 = vmul.f32 %v3518, %v3472
      %v3535 = vmul.f32 %v3519, %v3477
      %v3536 = vmul.f32 %v3520, %v3480
      %v3537 = vmul.f32 %v3521, %v3485
      %v3538 = vmul.f32 %v3522, %v3488
      %v3539 = vmul.f32 %v3523, %v3429
      %v3540 = vmul.f32 %v3524, %v3432
      %v3541 = vmul.f32 %v3525, %v3437
      %v3542 = vmul.f32 %v3526, %v3440
      %v3543 = vmul.f32 %v3527, %v3445
      %v3544 = vmul.f32 %v3528, %v3448
      %v3545 = vmul.f32 %v3529, %v3453
      %v3546 = vmul.f32 %v3530, %v3456
      %v3547 = vmul.f32 %v3531, %v3461
      %v3548 = vmul.f32 %v3532, %v3464
      %v3549 = vmul.f32 %v3533, %v3469
      %v3550 = vmul.f32 %v3534, %v3472
      %v3551 = vmul.f32 %v3535, %v3477
      %v3552 = vmul.f32 %v3536, %v3480
      %v3553 = vmul.f32 %v3537, %v3485
      %v3554 = vmul.f32 %v3538, %v3488
      %v3555 = vadd.f32 %v3429, %v3539
      %v3556 = vadd.f32 %v3432, %v3540
      %v3557 = vadd.f32 %v3437, %v3541
      %v3558 = vadd.f32 %v3440, %v3542
      %v3559 = vadd.f32 %v3445, %v3543
      %v3560 = vadd.f32 %v3448, %v3544
      %v3561 = vadd.f32 %v3453, %v3545
      %v3562 = vadd.f32 %v3456, %v3546
      %v3563 = vadd.f32 %v3461, %v3547
      %v3564 = vadd.f32 %v3464, %v3548
      %v3565 = vadd.f32 %v3469, %v3549
      %v3566 = vadd.f32 %v3472, %v3550
      %v3567 = vadd.f32 %v3477, %v3551
      %v3568 = vadd.f32 %v3480, %v3552
      %v3569 = vadd.f32 %v3485, %v3553
      %v3570 = vadd.f32 %v3488, %v3554
      %v3571 = vmul.f32 %v3555, 0.7978846
      %v3572 = vmul.f32 %v3556, 0.7978846
      %v3573 = vmul.f32 %v3557, 0.7978846
      %v3574 = vmul.f32 %v3558, 0.7978846
      %v3575 = vmul.f32 %v3559, 0.7978846
      %v3576 = vmul.f32 %v3560, 0.7978846
      %v3577 = vmul.f32 %v3561, 0.7978846
      %v3578 = vmul.f32 %v3562, 0.7978846
      %v3579 = vmul.f32 %v3563, 0.7978846
      %v3580 = vmul.f32 %v3564, 0.7978846
      %v3581 = vmul.f32 %v3565, 0.7978846
      %v3582 = vmul.f32 %v3566, 0.7978846
      %v3583 = vmul.f32 %v3567, 0.7978846
      %v3584 = vmul.f32 %v3568, 0.7978846
      %v3585 = vmul.f32 %v3569, 0.7978846
      %v3586 = vmul.f32 %v3570, 0.7978846
      %v3587 = vtanh.pop %v3571
      %v3588 = vtanh.pop %v3572
      %v3589 = vtanh.pop %v3573
      %v3590 = vtanh.pop %v3574
      %v3591 = vtanh.pop %v3575
      %v3592 = vtanh.pop %v3576
      %v3593 = vtanh.pop %v3577
      %v3594 = vtanh.pop %v3578
      %v3595 = vtanh.pop %v3579
      %v3596 = vtanh.pop %v3580
      %v3597 = vtanh.pop %v3581
      %v3598 = vtanh.pop %v3582
      %v3599 = vtanh.pop %v3583
      %v3600 = vtanh.pop %v3584
      %v3601 = vtanh.pop %v3585
      %v3602 = vtanh.pop %v3586
      %v3603 = vadd.f32 %v3587, 1.0
      %v3604 = vadd.f32 %v3588, 1.0
      %v3605 = vadd.f32 %v3589, 1.0
      %v3606 = vadd.f32 %v3590, 1.0
      %v3607 = vadd.f32 %v3591, 1.0
      %v3608 = vadd.f32 %v3592, 1.0
      %v3609 = vadd.f32 %v3593, 1.0
      %v3610 = vadd.f32 %v3594, 1.0
      %v3611 = vadd.f32 %v3595, 1.0
      %v3612 = vadd.f32 %v3596, 1.0
      %v3613 = vadd.f32 %v3597, 1.0
      %v3614 = vadd.f32 %v3598, 1.0
      %v3615 = vadd.f32 %v3599, 1.0
      %v3616 = vadd.f32 %v3600, 1.0
      %v3617 = vadd.f32 %v3601, 1.0
      %v3618 = vadd.f32 %v3602, 1.0
      %v3619 = vmul.f32 %v3491, %v3603
      %v3620 = vmul.f32 %v3492, %v3604
      %v3621 = vmul.f32 %v3493, %v3605
      %v3622 = vmul.f32 %v3494, %v3606
      %v3623 = vmul.f32 %v3495, %v3607
      %v3624 = vmul.f32 %v3496, %v3608
      %v3625 = vmul.f32 %v3497, %v3609
      %v3626 = vmul.f32 %v3498, %v3610
      %v3627 = vmul.f32 %v3499, %v3611
      %v3628 = vmul.f32 %v3500, %v3612
      %v3629 = vmul.f32 %v3501, %v3613
      %v3630 = vmul.f32 %v3502, %v3614
      %v3631 = vmul.f32 %v3503, %v3615
      %v3632 = vmul.f32 %v3504, %v3616
      %v3633 = vmul.f32 %v3505, %v3617
      %v3634 = vmul.f32 %v3506, %v3618
      %v3635 = vpack.c.bf16 %v3620, %v3619
      %v3636 = vpack.c.bf16 %v3622, %v3621
      %v3637 = vpack.c.bf16 %v3624, %v3623
      %v3638 = vpack.c.bf16 %v3626, %v3625
      %v3639 = vpack.c.bf16 %v3628, %v3627
      %v3640 = vpack.c.bf16 %v3630, %v3629
      %v3641 = vpack.c.bf16 %v3632, %v3631
      %v3642 = vpack.c.bf16 %v3634, %v3633
      %v3643 = vrot.slane %v3619, 7
      %v3644 = vrot.slane %v3620, 7
      %v3645 = vrot.slane %v3621, 7
      %v3646 = vrot.slane %v3622, 7
      %v3647 = vrot.slane %v3623, 7
      %v3648 = vrot.slane %v3624, 7
      %v3649 = vrot.slane %v3625, 7
      %v3650 = vrot.slane %v3626, 7
      %v3651 = vrot.slane %v3627, 7
      %v3652 = vrot.slane %v3628, 7
      %v3653 = vrot.slane %v3629, 7
      %v3654 = vrot.slane %v3630, 7
      %v3655 = vrot.slane %v3631, 7
      %v3656 = vrot.slane %v3632, 7
      %v3657 = vrot.slane %v3633, 7
      %v3658 = vrot.slane %v3634, 7
      %v3659 = vlaneseq
      %v3660 = vshrl.u32 %v3659, 7
      %vm3661 = vcmp.lt.s32.totalorder %v3660, 1
      %v3662 = vsel %vm3661, %v3657, %v3658
      %v3663 = vsel %vm3661, %v3656, %v3657
      %v3664 = vsel %vm3661, %v3655, %v3656
      %v3665 = vsel %vm3661, %v3654, %v3655
      %v3666 = vsel %vm3661, %v3653, %v3654
      %v3667 = vsel %vm3661, %v3652, %v3653
      %v3668 = vsel %vm3661, %v3651, %v3652
      %v3669 = vsel %vm3661, %v3650, %v3651
      %v3670 = vsel %vm3661, %v3649, %v3650
      %v3671 = vsel %vm3661, %v3648, %v3649
      %v3672 = vsel %vm3661, %v3647, %v3648
      %v3673 = vsel %vm3661, %v3646, %v3647
      %v3674 = vsel %vm3661, %v3645, %v3646
      %v3675 = vsel %vm3661, %v3644, %v3645
      %v3676 = vsel %vm3661, %v3643, %v3644
      %v3677 = vsel %vm3661, %v3658, %v3643
      %v3678 = vadd.s32 %v3660, 8
      %v3679 = vadd.s32 %v3660, 16
      %v3680 = vadd.s32 %v3660, 24
      %v3681 = vadd.s32 %v3660, 32
      %v3682 = vadd.s32 %v3660, 40
      %v3683 = vadd.s32 %v3660, 48
      %v3684 = vadd.s32 %v3660, 56
      %v3685 = vadd.s32 %v3660, 64
      %v3686 = vadd.s32 %v3660, 72
      %v3687 = vadd.s32 %v3660, 80
      %v3688 = vadd.s32 %v3660, 88
      %v3689 = vadd.s32 %v3660, 96
      %v3690 = vadd.s32 %v3660, 104
      %v3691 = vadd.s32 %v3660, 112
      %v3692 = vadd.s32 %v3660, 120
      %vm3693 = vcmp.lt.s32.totalorder %v3660, 0
      %v3694 = vsub.s32 0, %v3660
      %v3695 = vsel %vm3693, %v3694, %v3660
      %v3696 = vshrl.u32 %v3695, 6
      %v3697 = vand.u32 %v3695, 63
      %v3698 = vsub.s32 0, %v3697
      %v3699 = vsel %vm3693, %v3698, %v3697
      %vm3700 = vcmp.lt.s32.totalorder %v3678, 0
      %v3701 = vsub.s32 0, %v3678
      %v3702 = vsel %vm3700, %v3701, %v3678
      %v3703 = vshrl.u32 %v3702, 6
      %v3704 = vand.u32 %v3702, 63
      %v3705 = vsub.s32 0, %v3704
      %v3706 = vsel %vm3700, %v3705, %v3704
      %vm3707 = vcmp.lt.s32.totalorder %v3679, 0
      %v3708 = vsub.s32 0, %v3679
      %v3709 = vsel %vm3707, %v3708, %v3679
      %v3710 = vshrl.u32 %v3709, 6
      %v3711 = vand.u32 %v3709, 63
      %v3712 = vsub.s32 0, %v3711
      %v3713 = vsel %vm3707, %v3712, %v3711
      %vm3714 = vcmp.lt.s32.totalorder %v3680, 0
      %v3715 = vsub.s32 0, %v3680
      %v3716 = vsel %vm3714, %v3715, %v3680
      %v3717 = vshrl.u32 %v3716, 6
      %v3718 = vand.u32 %v3716, 63
      %v3719 = vsub.s32 0, %v3718
      %v3720 = vsel %vm3714, %v3719, %v3718
      %vm3721 = vcmp.lt.s32.totalorder %v3681, 0
      %v3722 = vsub.s32 0, %v3681
      %v3723 = vsel %vm3721, %v3722, %v3681
      %v3724 = vshrl.u32 %v3723, 6
      %v3725 = vand.u32 %v3723, 63
      %v3726 = vsub.s32 0, %v3725
      %v3727 = vsel %vm3721, %v3726, %v3725
      %vm3728 = vcmp.lt.s32.totalorder %v3682, 0
      %v3729 = vsub.s32 0, %v3682
      %v3730 = vsel %vm3728, %v3729, %v3682
      %v3731 = vshrl.u32 %v3730, 6
      %v3732 = vand.u32 %v3730, 63
      %v3733 = vsub.s32 0, %v3732
      %v3734 = vsel %vm3728, %v3733, %v3732
      %vm3735 = vcmp.lt.s32.totalorder %v3683, 0
      %v3736 = vsub.s32 0, %v3683
      %v3737 = vsel %vm3735, %v3736, %v3683
      %v3738 = vshrl.u32 %v3737, 6
      %v3739 = vand.u32 %v3737, 63
      %v3740 = vsub.s32 0, %v3739
      %v3741 = vsel %vm3735, %v3740, %v3739
      %vm3742 = vcmp.lt.s32.totalorder %v3684, 0
      %v3743 = vsub.s32 0, %v3684
      %v3744 = vsel %vm3742, %v3743, %v3684
      %v3745 = vshrl.u32 %v3744, 6
      %v3746 = vand.u32 %v3744, 63
      %v3747 = vsub.s32 0, %v3746
      %v3748 = vsel %vm3742, %v3747, %v3746
      %vm3749 = vcmp.lt.s32.totalorder %v3685, 0
      %v3750 = vsub.s32 0, %v3685
      %v3751 = vsel %vm3749, %v3750, %v3685
      %v3752 = vshrl.u32 %v3751, 6
      %v3753 = vand.u32 %v3751, 63
      %v3754 = vsub.s32 0, %v3753
      %v3755 = vsel %vm3749, %v3754, %v3753
      %vm3756 = vcmp.lt.s32.totalorder %v3686, 0
      %v3757 = vsub.s32 0, %v3686
      %v3758 = vsel %vm3756, %v3757, %v3686
      %v3759 = vshrl.u32 %v3758, 6
      %v3760 = vand.u32 %v3758, 63
      %v3761 = vsub.s32 0, %v3760
      %v3762 = vsel %vm3756, %v3761, %v3760
      %vm3763 = vcmp.lt.s32.totalorder %v3687, 0
      %v3764 = vsub.s32 0, %v3687
      %v3765 = vsel %vm3763, %v3764, %v3687
      %v3766 = vshrl.u32 %v3765, 6
      %v3767 = vand.u32 %v3765, 63
      %v3768 = vsub.s32 0, %v3767
      %v3769 = vsel %vm3763, %v3768, %v3767
      %vm3770 = vcmp.lt.s32.totalorder %v3688, 0
      %v3771 = vsub.s32 0, %v3688
      %v3772 = vsel %vm3770, %v3771, %v3688
      %v3773 = vshrl.u32 %v3772, 6
      %v3774 = vand.u32 %v3772, 63
      %v3775 = vsub.s32 0, %v3774
      %v3776 = vsel %vm3770, %v3775, %v3774
      %vm3777 = vcmp.lt.s32.totalorder %v3689, 0
      %v3778 = vsub.s32 0, %v3689
      %v3779 = vsel %vm3777, %v3778, %v3689
      %v3780 = vshrl.u32 %v3779, 6
      %v3781 = vand.u32 %v3779, 63
      %v3782 = vsub.s32 0, %v3781
      %v3783 = vsel %vm3777, %v3782, %v3781
      %vm3784 = vcmp.lt.s32.totalorder %v3690, 0
      %v3785 = vsub.s32 0, %v3690
      %v3786 = vsel %vm3784, %v3785, %v3690
      %v3787 = vshrl.u32 %v3786, 6
      %v3788 = vand.u32 %v3786, 63
      %v3789 = vsub.s32 0, %v3788
      %v3790 = vsel %vm3784, %v3789, %v3788
      %vm3791 = vcmp.lt.s32.totalorder %v3691, 0
      %v3792 = vsub.s32 0, %v3691
      %v3793 = vsel %vm3791, %v3792, %v3691
      %v3794 = vshrl.u32 %v3793, 6
      %v3795 = vand.u32 %v3793, 63
      %v3796 = vsub.s32 0, %v3795
      %v3797 = vsel %vm3791, %v3796, %v3795
      %vm3798 = vcmp.lt.s32.totalorder %v3692, 0
      %v3799 = vsub.s32 0, %v3692
      %v3800 = vsel %vm3798, %v3799, %v3692
      %v3801 = vshrl.u32 %v3800, 6
      %v3802 = vand.u32 %v3800, 63
      %v3803 = vsub.s32 0, %v3802
      %v3804 = vsel %vm3798, %v3803, %v3802
      %vm3805 = vcmp.ne.s32.totalorder %v3699, 0
      %vm3806 = vcmp.ne.s32.totalorder %v3706, 0
      %vm3807 = vcmp.ne.s32.totalorder %v3713, 0
      %vm3808 = vcmp.ne.s32.totalorder %v3720, 0
      %vm3809 = vcmp.ne.s32.totalorder %v3727, 0
      %vm3810 = vcmp.ne.s32.totalorder %v3734, 0
      %vm3811 = vcmp.ne.s32.totalorder %v3741, 0
      %vm3812 = vcmp.ne.s32.totalorder %v3748, 0
      %vm3813 = vcmp.ne.s32.totalorder %v3755, 0
      %vm3814 = vcmp.ne.s32.totalorder %v3762, 0
      %vm3815 = vcmp.ne.s32.totalorder %v3769, 0
      %vm3816 = vcmp.ne.s32.totalorder %v3776, 0
      %vm3817 = vcmp.ne.s32.totalorder %v3783, 0
      %vm3818 = vcmp.ne.s32.totalorder %v3790, 0
      %vm3819 = vcmp.ne.s32.totalorder %v3797, 0
      %vm3820 = vcmp.ne.s32.totalorder %v3804, 0
      %vm3821 = vcmp.lt.s32.totalorder %v3699, 0
      %vm3822 = vcmp.lt.s32.totalorder %v3706, 0
      %vm3823 = vcmp.lt.s32.totalorder %v3713, 0
      %vm3824 = vcmp.lt.s32.totalorder %v3720, 0
      %vm3825 = vcmp.lt.s32.totalorder %v3727, 0
      %vm3826 = vcmp.lt.s32.totalorder %v3734, 0
      %vm3827 = vcmp.lt.s32.totalorder %v3741, 0
      %vm3828 = vcmp.lt.s32.totalorder %v3748, 0
      %vm3829 = vcmp.lt.s32.totalorder %v3755, 0
      %vm3830 = vcmp.lt.s32.totalorder %v3762, 0
      %vm3831 = vcmp.lt.s32.totalorder %v3769, 0
      %vm3832 = vcmp.lt.s32.totalorder %v3776, 0
      %vm3833 = vcmp.lt.s32.totalorder %v3783, 0
      %vm3834 = vcmp.lt.s32.totalorder %v3790, 0
      %vm3835 = vcmp.lt.s32.totalorder %v3797, 0
      %vm3836 = vcmp.lt.s32.totalorder %v3804, 0
      %vm3837 = vmand %vm3821, %vm3805
      %vm3838 = vmand %vm3822, %vm3806
      %vm3839 = vmand %vm3823, %vm3807
      %vm3840 = vmand %vm3824, %vm3808
      %vm3841 = vmand %vm3825, %vm3809
      %vm3842 = vmand %vm3826, %vm3810
      %vm3843 = vmand %vm3827, %vm3811
      %vm3844 = vmand %vm3828, %vm3812
      %vm3845 = vmand %vm3829, %vm3813
      %vm3846 = vmand %vm3830, %vm3814
      %vm3847 = vmand %vm3831, %vm3815
      %vm3848 = vmand %vm3832, %vm3816
      %vm3849 = vmand %vm3833, %vm3817
      %vm3850 = vmand %vm3834, %vm3818
      %vm3851 = vmand %vm3835, %vm3819
      %vm3852 = vmand %vm3836, %vm3820
      %v3853 = vadd.s32 %v3699, 64
      %v3854 = vadd.s32 %v3706, 64
      %v3855 = vadd.s32 %v3713, 64
      %v3856 = vadd.s32 %v3720, 64
      %v3857 = vadd.s32 %v3727, 64
      %v3858 = vadd.s32 %v3734, 64
      %v3859 = vadd.s32 %v3741, 64
      %v3860 = vadd.s32 %v3748, 64
      %v3861 = vadd.s32 %v3755, 64
      %v3862 = vadd.s32 %v3762, 64
      %v3863 = vadd.s32 %v3769, 64
      %v3864 = vadd.s32 %v3776, 64
      %v3865 = vadd.s32 %v3783, 64
      %v3866 = vadd.s32 %v3790, 64
      %v3867 = vadd.s32 %v3797, 64
      %v3868 = vadd.s32 %v3804, 64
      %v3869 = vsel %vm3837, %v3853, %v3699
      %v3870 = vsel %vm3838, %v3854, %v3706
      %v3871 = vsel %vm3839, %v3855, %v3713
      %v3872 = vsel %vm3840, %v3856, %v3720
      %v3873 = vsel %vm3841, %v3857, %v3727
      %v3874 = vsel %vm3842, %v3858, %v3734
      %v3875 = vsel %vm3843, %v3859, %v3741
      %v3876 = vsel %vm3844, %v3860, %v3748
      %v3877 = vsel %vm3845, %v3861, %v3755
      %v3878 = vsel %vm3846, %v3862, %v3762
      %v3879 = vsel %vm3847, %v3863, %v3769
      %v3880 = vsel %vm3848, %v3864, %v3776
      %v3881 = vsel %vm3849, %v3865, %v3783
      %v3882 = vsel %vm3850, %v3866, %v3790
      %v3883 = vsel %vm3851, %v3867, %v3797
      %v3884 = vsel %vm3852, %v3868, %v3804
      %vm3885 = vcmp.eq.s32.totalorder %v3869, 0
      %vm3886 = vcmp.eq.s32.totalorder %v3870, 0
      %vm3887 = vcmp.eq.s32.totalorder %v3871, 0
      %vm3888 = vcmp.eq.s32.totalorder %v3872, 0
      %vm3889 = vcmp.eq.s32.totalorder %v3873, 0
      %vm3890 = vcmp.eq.s32.totalorder %v3874, 0
      %vm3891 = vcmp.eq.s32.totalorder %v3875, 0
      %vm3892 = vcmp.eq.s32.totalorder %v3876, 0
      %vm3893 = vcmp.eq.s32.totalorder %v3877, 0
      %vm3894 = vcmp.eq.s32.totalorder %v3878, 0
      %vm3895 = vcmp.eq.s32.totalorder %v3879, 0
      %vm3896 = vcmp.eq.s32.totalorder %v3880, 0
      %vm3897 = vcmp.eq.s32.totalorder %v3881, 0
      %vm3898 = vcmp.eq.s32.totalorder %v3882, 0
      %vm3899 = vcmp.eq.s32.totalorder %v3883, 0
      %vm3900 = vcmp.eq.s32.totalorder %v3884, 0
      %v3901 = vsel %vm3885, 0.0, %v3677
      %v3902 = vsel %vm3886, 0.0, %v3676
      %v3903 = vsel %vm3887, 0.0, %v3675
      %v3904 = vsel %vm3888, 0.0, %v3674
      %v3905 = vsel %vm3889, 0.0, %v3673
      %v3906 = vsel %vm3890, 0.0, %v3672
      %v3907 = vsel %vm3891, 0.0, %v3671
      %v3908 = vsel %vm3892, 0.0, %v3670
      %v3909 = vsel %vm3893, 0.0, %v3669
      %v3910 = vsel %vm3894, 0.0, %v3668
      %v3911 = vsel %vm3895, 0.0, %v3667
      %v3912 = vsel %vm3896, 0.0, %v3666
      %v3913 = vsel %vm3897, 0.0, %v3665
      %v3914 = vsel %vm3898, 0.0, %v3664
      %v3915 = vsel %vm3899, 0.0, %v3663
      %v3916 = vsel %vm3900, 0.0, %v3662
      %v3917 = vpack.c.bf16 %v3902, %v3901
      %v3918 = vpack.c.bf16 %v3904, %v3903
      %v3919 = vpack.c.bf16 %v3906, %v3905
      %v3920 = vpack.c.bf16 %v3908, %v3907
      %v3921 = vpack.c.bf16 %v3910, %v3909
      %v3922 = vpack.c.bf16 %v3912, %v3911
      %v3923 = vpack.c.bf16 %v3914, %v3913
      %v3924 = vpack.c.bf16 %v3916, %v3915
      %v3925 = vrot.slane %v3619, 1
      %v3926 = vrot.slane %v3620, 1
      %v3927 = vrot.slane %v3621, 1
      %v3928 = vrot.slane %v3622, 1
      %v3929 = vrot.slane %v3623, 1
      %v3930 = vrot.slane %v3624, 1
      %v3931 = vrot.slane %v3625, 1
      %v3932 = vrot.slane %v3626, 1
      %v3933 = vrot.slane %v3627, 1
      %v3934 = vrot.slane %v3628, 1
      %v3935 = vrot.slane %v3629, 1
      %v3936 = vrot.slane %v3630, 1
      %v3937 = vrot.slane %v3631, 1
      %v3938 = vrot.slane %v3632, 1
      %v3939 = vrot.slane %v3633, 1
      %v3940 = vrot.slane %v3634, 1
      %vm3941 = vcmp.lt.s32.totalorder %v3660, 7
      %v3942 = vsel %vm3941, %v3939, %v3940
      %v3943 = vsel %vm3941, %v3938, %v3939
      %v3944 = vsel %vm3941, %v3937, %v3938
      %v3945 = vsel %vm3941, %v3936, %v3937
      %v3946 = vsel %vm3941, %v3935, %v3936
      %v3947 = vsel %vm3941, %v3934, %v3935
      %v3948 = vsel %vm3941, %v3933, %v3934
      %v3949 = vsel %vm3941, %v3932, %v3933
      %v3950 = vsel %vm3941, %v3931, %v3932
      %v3951 = vsel %vm3941, %v3930, %v3931
      %v3952 = vsel %vm3941, %v3929, %v3930
      %v3953 = vsel %vm3941, %v3928, %v3929
      %v3954 = vsel %vm3941, %v3927, %v3928
      %v3955 = vsel %vm3941, %v3926, %v3927
      %v3956 = vsel %vm3941, %v3925, %v3926
      %v3957 = vsel %vm3941, %v3940, %v3925
      %vm3958 = vcmp.eq.s32.totalorder %v3869, 63
      %vm3959 = vcmp.eq.s32.totalorder %v3870, 63
      %vm3960 = vcmp.eq.s32.totalorder %v3871, 63
      %vm3961 = vcmp.eq.s32.totalorder %v3872, 63
      %vm3962 = vcmp.eq.s32.totalorder %v3873, 63
      %vm3963 = vcmp.eq.s32.totalorder %v3874, 63
      %vm3964 = vcmp.eq.s32.totalorder %v3875, 63
      %vm3965 = vcmp.eq.s32.totalorder %v3876, 63
      %vm3966 = vcmp.eq.s32.totalorder %v3877, 63
      %vm3967 = vcmp.eq.s32.totalorder %v3878, 63
      %vm3968 = vcmp.eq.s32.totalorder %v3879, 63
      %vm3969 = vcmp.eq.s32.totalorder %v3880, 63
      %vm3970 = vcmp.eq.s32.totalorder %v3881, 63
      %vm3971 = vcmp.eq.s32.totalorder %v3882, 63
      %vm3972 = vcmp.eq.s32.totalorder %v3883, 63
      %vm3973 = vcmp.eq.s32.totalorder %v3884, 63
      %v3974 = vsel %vm3958, 0.0, %v3956
      %v3975 = vsel %vm3959, 0.0, %v3955
      %v3976 = vsel %vm3960, 0.0, %v3954
      %v3977 = vsel %vm3961, 0.0, %v3953
      %v3978 = vsel %vm3962, 0.0, %v3952
      %v3979 = vsel %vm3963, 0.0, %v3951
      %v3980 = vsel %vm3964, 0.0, %v3950
      %v3981 = vsel %vm3965, 0.0, %v3949
      %v3982 = vsel %vm3966, 0.0, %v3948
      %v3983 = vsel %vm3967, 0.0, %v3947
      %v3984 = vsel %vm3968, 0.0, %v3946
      %v3985 = vsel %vm3969, 0.0, %v3945
      %v3986 = vsel %vm3970, 0.0, %v3944
      %v3987 = vsel %vm3971, 0.0, %v3943
      %v3988 = vsel %vm3972, 0.0, %v3942
      %v3989 = vsel %vm3973, 0.0, %v3957
      %v3990 = vpack.c.bf16 %v3975, %v3974
      %v3991 = vpack.c.bf16 %v3977, %v3976
      %v3992 = vpack.c.bf16 %v3979, %v3978
      %v3993 = vpack.c.bf16 %v3981, %v3980
      %v3994 = vpack.c.bf16 %v3983, %v3982
      %v3995 = vpack.c.bf16 %v3985, %v3984
      %v3996 = vpack.c.bf16 %v3987, %v3986
      %v3997 = vpack.c.bf16 %v3989, %v3988
      %v3998 = vld [vmem:[%s1 + $0x398] sm:$0xf]
      %v3999 = vld [vmem:[%s1 + $0x39c] sm:$0xf]
      %v4000 = vld [vmem:[%s1 + $0x3a0] sm:$0xf]
      %v4001 = vld [vmem:[%s1 + $0x3a4] sm:$0xf]
      %v4002 = vld [vmem:[%s1 + $0x3a8] sm:$0xf]
      %v4003 = vld [vmem:[%s1 + $0x3ac] sm:$0xf]
      %v4004 = vld [vmem:[%s1 + $0x3b0] sm:$0xf]
      %v4005 = vld [vmem:[%s1 + $0x3b4] sm:$0xf]
      %v4006 = vld [vmem:[%s1 + $0x3b8] sm:$0xf]
      %v4007 = vld [vmem:[%s1 + $0x3bc] sm:$0xf]
      %v4008 = vld [vmem:[%s1 + $0x3c0] sm:$0xf]
      %v4009 = vld [vmem:[%s1 + $0x3c4] sm:$0xf]
      %v4010 = vld [vmem:[%s1 + $0x3c8] sm:$0xf]
      %v4011 = vld [vmem:[%s1 + $0x3cc] sm:$0xf]
      %v4012 = vld [vmem:[%s1 + $0x3d0] sm:$0xf]
      %v4013 = vld [vmem:[%s1 + $0x3d4] sm:$0xf]
      %v4014 = vld [vmem:[%s1 + $0x3d8] sm:$0xf]
      %v4015 = vld [vmem:[%s1 + $0x3dc] sm:$0xf]
      %v4016 = vld [vmem:[%s1 + $0x3e0] sm:$0xf]
      %v4017 = vld [vmem:[%s1 + $0x3e4] sm:$0xf]
      %v4018 = vld [vmem:[%s1 + $0x3e8] sm:$0xf]
      %v4019 = vld [vmem:[%s1 + $0x3ec] sm:$0xf]
      %v4020 = vld [vmem:[%s1 + $0x3f0] sm:$0xf]
      %v4021 = vld [vmem:[%s1 + $0x3f4] sm:$0xf]
      %v4022 = vld [vmem:[%s1 + $0x3f8] sm:$0xf]
      %v4023 = vld [vmem:[%s1 + $0x3fc] sm:$0xf]
      %v4024 = vld [vmem:[%s1 + $0x400] sm:$0xf]
      %v4025 = vld [vmem:[%s1 + $0x404] sm:$0xf]
      %v4026 = vld [vmem:[%s1 + $0x408] sm:$0xf]
      %v4027 = vld [vmem:[%s1 + $0x40c] sm:$0xf]
      %v4028 = vld [vmem:[%s1 + $0x410] sm:$0xf]
      %v4029 = vld [vmem:[%s1 + $0x414] sm:$0xf]
      %v4030 = vld [vmem:[%s1 + $0x418] sm:$0xf]
      %v4031 = vld [vmem:[%s1 + $0x41c] sm:$0xf]
      %v4032 = vld [vmem:[%s1 + $0x420] sm:$0xf]
      %v4033 = vld [vmem:[%s1 + $0x424] sm:$0xf]
      %v4034 = vld [vmem:[%s1 + $0x428] sm:$0xf]
      %v4035 = vld [vmem:[%s1 + $0x42c] sm:$0xf]
      %v4036 = vld [vmem:[%s1 + $0x430] sm:$0xf]
      %v4037 = vld [vmem:[%s1 + $0x434] sm:$0xf]
      %v4038 = vld [vmem:[%s1 + $0x438] sm:$0xf]
      %v4039 = vld [vmem:[%s1 + $0x43c] sm:$0xf]
      %v4040 = vld [vmem:[%s1 + $0x440] sm:$0xf]
      %v4041 = vld [vmem:[%s1 + $0x444] sm:$0xf]
      %v4042 = vld [vmem:[%s1 + $0x448] sm:$0xf]
      %v4043 = vld [vmem:[%s1 + $0x44c] sm:$0xf]
      %v4044 = vld [vmem:[%s1 + $0x450] sm:$0xf]
      %v4045 = vld [vmem:[%s1 + $0x454] sm:$0xf]
      %v4094 = vunpack.c.l.b16 %v3998
      %v4095 = vunpack.c.l.b16 %v3999
      %v4096 = vunpack.c.l.b16 %v4000
      %v4097 = vunpack.c.l.b16 %v4001
      %v4098 = vunpack.c.l.b16 %v4002
      %v4099 = vunpack.c.l.b16 %v4003
      %v4100 = vunpack.c.l.b16 %v4004
      %v4101 = vunpack.c.l.b16 %v4005
      %v4102 = vunpack.c.l.b16 %v4006
      %v4103 = vunpack.c.l.b16 %v4007
      %v4104 = vunpack.c.l.b16 %v4008
      %v4105 = vunpack.c.l.b16 %v4009
      %v4106 = vunpack.c.l.b16 %v4010
      %v4107 = vunpack.c.l.b16 %v4011
      %v4108 = vunpack.c.l.b16 %v4012
      %v4109 = vunpack.c.l.b16 %v4013
      %v4110 = vunpack.c.l.b16 %v4014
      %v4111 = vunpack.c.l.b16 %v4015
      %v4112 = vunpack.c.l.b16 %v4016
      %v4113 = vunpack.c.l.b16 %v4017
      %v4114 = vunpack.c.l.b16 %v4018
      %v4115 = vunpack.c.l.b16 %v4019
      %v4116 = vunpack.c.l.b16 %v4020
      %v4117 = vunpack.c.l.b16 %v4021
      %v4118 = vunpack.c.l.b16 %v4022
      %v4119 = vunpack.c.l.b16 %v4023
      %v4120 = vunpack.c.l.b16 %v4024
      %v4121 = vunpack.c.l.b16 %v4025
      %v4122 = vunpack.c.l.b16 %v4026
      %v4123 = vunpack.c.l.b16 %v4027
      %v4124 = vunpack.c.l.b16 %v4028
      %v4125 = vunpack.c.l.b16 %v4029
      %v4126 = vunpack.c.l.b16 %v4030
      %v4127 = vunpack.c.l.b16 %v4031
      %v4128 = vunpack.c.l.b16 %v4032
      %v4129 = vunpack.c.l.b16 %v4033
      %v4130 = vunpack.c.l.b16 %v4034
      %v4131 = vunpack.c.l.b16 %v4035
      %v4132 = vunpack.c.l.b16 %v4036
      %v4133 = vunpack.c.l.b16 %v4037
      %v4134 = vunpack.c.l.b16 %v4038
      %v4135 = vunpack.c.l.b16 %v4039
      %v4136 = vunpack.c.l.b16 %v4040
      %v4137 = vunpack.c.l.b16 %v4041
      %v4138 = vunpack.c.l.b16 %v4042
      %v4139 = vunpack.c.l.b16 %v4043
      %v4140 = vunpack.c.l.b16 %v4044
      %v4141 = vunpack.c.l.b16 %v4045
      %v4142 = vpack.c.b16 %v4095, %v4094
      %v4143 = vpack.c.b16 %v4097, %v4096
      %v4144 = vpack.c.b16 %v4099, %v4098
      %v4145 = vpack.c.b16 %v4101, %v4100
      %v4146 = vpack.c.b16 %v4103, %v4102
      %v4147 = vpack.c.b16 %v4105, %v4104
      %v4148 = vpack.c.b16 %v4107, %v4106
      %v4149 = vpack.c.b16 %v4109, %v4108
      %v4150 = vpack.c.b16 %v4111, %v4110
      %v4151 = vpack.c.b16 %v4113, %v4112
      %v4152 = vpack.c.b16 %v4115, %v4114
      %v4153 = vpack.c.b16 %v4117, %v4116
      %v4154 = vpack.c.b16 %v4119, %v4118
      %v4155 = vpack.c.b16 %v4121, %v4120
      %v4156 = vpack.c.b16 %v4123, %v4122
      %v4157 = vpack.c.b16 %v4125, %v4124
      %v4158 = vpack.c.b16 %v4127, %v4126
      %v4159 = vpack.c.b16 %v4129, %v4128
      %v4160 = vpack.c.b16 %v4131, %v4130
      %v4161 = vpack.c.b16 %v4133, %v4132
      %v4162 = vpack.c.b16 %v4135, %v4134
      %v4163 = vpack.c.b16 %v4137, %v4136
      %v4164 = vpack.c.b16 %v4139, %v4138
      %v4165 = vpack.c.b16 %v4141, %v4140
      %4190 = vmatprep.subr.bf16.mxu0 0
      %4191 = vmatpush1.bf16.msra.mxu0 %v4142
      %4192 = vmatprep.subr.bf16.mxu0 0
      %4193 = vmatpush1.bf16.msra.mxu0 %v4143
      %4194 = vmatprep.subr.bf16.mxu0 0
      %4195 = vmatpush1.bf16.msra.mxu0 %v4144
      %4196 = vmatprep.subr.bf16.mxu0 0
      %4197 = vmatpush1.bf16.msra.mxu0 %v4145
      %4198 = vmatprep.subr.bf16.mxu0 0
      %4199 = vmatpush1.bf16.msra.mxu0 %v4146
      %4200 = vmatprep.subr.bf16.mxu0 0
      %4201 = vmatpush1.bf16.msra.mxu0 %v4147
      %4202 = vmatprep.subr.bf16.mxu0 0
      %4203 = vmatpush1.bf16.msra.mxu0 %v4148
      %4204 = vmatprep.subr.bf16.mxu0 0
      %4205 = vmatpush1.bf16.msra.mxu0 %v4149
      %4206 = vmatprep.subr.bf16.mxu0 0
      %4207 = vmatpush1.bf16.msra.mxu0 %v4150
      %4208 = vmatprep.subr.bf16.mxu0 0
      %4209 = vmatpush1.bf16.msra.mxu0 %v4151
      %4210 = vmatprep.subr.bf16.mxu0 0
      %4211 = vmatpush1.bf16.msra.mxu0 %v4152
      %4212 = vmatprep.subr.bf16.mxu0 0
      %4213 = vmatpush1.bf16.msra.mxu0 %v4153
      %4214 = vmatprep.subr.bf16.mxu0 0
      %4215 = vmatpush1.bf16.msra.mxu0 %v4154
      %4216 = vmatprep.subr.bf16.mxu0 0
      %4217 = vmatpush1.bf16.msra.mxu0 %v4155
      %4218 = vmatprep.subr.bf16.mxu0 0
      %4219 = vmatpush1.bf16.msra.mxu0 %v4156
      %4220 = vmatprep.subr.bf16.mxu0 0
      %4221 = vmatpush1.bf16.msra.mxu0 %v4157
      %4222 = vmatprep.mubr.bf16.mxu0 %v3635
      %4223 = vmatmul.mubr.bf16.gmra.mrb[0].mxu0 %v3917
      %v4224 = vpop.f32.mrb[0].mxu0
      %v4225 = vadd.f32 0.0, %v4224
      %v4226 = vpop.f32.mrb[0].mxu0
      %v4227 = vpop.f32.mrb[0].mxu0
      %v4228 = vadd.f32 0.0, %v4227
      %v4229 = vpop.f32.mrb[0].mxu0
      %4230 = vmatprep.mubr.bf16.mxu0 %v3636
      %4231 = vmatmul.mubr.bf16.gmra.mrb[0].mxu0 %v3918
      %v4232 = vpop.f32.mrb[0].mxu0
      %v4233 = vadd.f32 0.0, %v4232
      %v4234 = vpop.f32.mrb[0].mxu0
      %v4235 = vpop.f32.mrb[0].mxu0
      %v4236 = vadd.f32 0.0, %v4235
      %v4237 = vpop.f32.mrb[0].mxu0
      %4238 = vmatprep.mubr.bf16.mxu0 %v3637
      %4239 = vmatmul.mubr.bf16.gmra.mrb[0].mxu0 %v3919
      %v4240 = vpop.f32.mrb[0].mxu0
      %v4241 = vadd.f32 0.0, %v4240
      %v4242 = vpop.f32.mrb[0].mxu0
      %v4243 = vpop.f32.mrb[0].mxu0
      %v4244 = vadd.f32 0.0, %v4243
      %v4245 = vpop.f32.mrb[0].mxu0
      %4246 = vmatprep.mubr.bf16.mxu0 %v3638
      %4247 = vmatmul.mubr.bf16.gmra.mrb[0].mxu0 %v3920
      %v4248 = vpop.f32.mrb[0].mxu0
      %v4249 = vadd.f32 0.0, %v4248
      %v4250 = vpop.f32.mrb[0].mxu0
      %v4251 = vpop.f32.mrb[0].mxu0
      %v4252 = vadd.f32 0.0, %v4251
      %v4253 = vpop.f32.mrb[0].mxu0
      %4254 = vmatprep.mubr.bf16.mxu0 %v3639
      %4255 = vmatmul.mubr.bf16.gmra.mrb[0].mxu0 %v3921
      %v4256 = vpop.f32.mrb[0].mxu0
      %v4257 = vadd.f32 0.0, %v4256
      %v4258 = vpop.f32.mrb[0].mxu0
      %v4259 = vpop.f32.mrb[0].mxu0
      %v4260 = vadd.f32 0.0, %v4259
      %v4261 = vpop.f32.mrb[0].mxu0
      %4262 = vmatprep.mubr.bf16.mxu0 %v3640
      %4263 = vmatmul.mubr.bf16.gmra.mrb[0].mxu0 %v3922
      %v4264 = vpop.f32.mrb[0].mxu0
      %v4265 = vadd.f32 0.0, %v4264
      %v4266 = vpop.f32.mrb[0].mxu0
      %v4267 = vpop.f32.mrb[0].mxu0
      %v4268 = vadd.f32 0.0, %v4267
      %v4269 = vpop.f32.mrb[0].mxu0
      %4270 = vmatprep.mubr.bf16.mxu0 %v3641
      %4271 = vmatmul.mubr.bf16.gmra.mrb[0].mxu0 %v3923
      %v4272 = vpop.f32.mrb[0].mxu0
      %v4273 = vadd.f32 0.0, %v4272
      %v4274 = vpop.f32.mrb[0].mxu0
      %v4275 = vpop.f32.mrb[0].mxu0
      %v4276 = vadd.f32 0.0, %v4275
      %v4277 = vpop.f32.mrb[0].mxu0
      %4278 = vmatprep.mubr.bf16.mxu0 %v3642
      %4279 = vmatmul.mubr.bf16.gmra.mrb[0].mxu0 %v3924
      %v4280 = vpop.f32.mrb[0].mxu0
      %v4281 = vadd.f32 0.0, %v4280
      %v4282 = vpop.f32.mrb[0].mxu0
      %v4283 = vpop.f32.mrb[0].mxu0
      %v4284 = vadd.f32 0.0, %v4283
      %v4285 = vpop.f32.mrb[0].mxu0
      %4286 = vdwg.mxu0
      %4287 = vmatprep.subr.bf16.mxu0 0
      %4288 = vmatpush1.bf16.msra.mxu0 %v4158
      %4289 = vmatprep.subr.bf16.mxu0 0
      %4290 = vmatpush1.bf16.msra.mxu0 %v4159
      %4291 = vmatprep.subr.bf16.mxu0 0
      %4292 = vmatpush1.bf16.msra.mxu0 %v4160
      %4293 = vmatprep.subr.bf16.mxu0 0
      %4294 = vmatpush1.bf16.msra.mxu0 %v4161
      %4295 = vmatprep.subr.bf16.mxu0 0
      %4296 = vmatpush1.bf16.msra.mxu0 %v4162
      %4297 = vmatprep.subr.bf16.mxu0 0
      %4298 = vmatpush1.bf16.msra.mxu0 %v4163
      %4299 = vmatprep.subr.bf16.mxu0 0
      %4300 = vmatpush1.bf16.msra.mxu0 %v4164
      %4301 = vmatprep.subr.bf16.mxu0 0
      %4302 = vmatpush1.bf16.msra.mxu0 %v4165
      %4303 = vmatprep.subr.bf16.mxu0 0
      %4304 = vmatpush1.bf16.msra.mxu0 0
      %4305 = vmatprep.subr.bf16.mxu0 0
      %4306 = vmatpush1.bf16.msra.mxu0 0
      %4307 = vmatprep.subr.bf16.mxu0 0
      %4308 = vmatpush1.bf16.msra.mxu0 0
      %4309 = vmatprep.subr.bf16.mxu0 0
      %4310 = vmatpush1.bf16.msra.mxu0 0
      %4311 = vmatprep.subr.bf16.mxu0 0
      %4312 = vmatpush1.bf16.msra.mxu0 0
      %4313 = vmatprep.subr.bf16.mxu0 0
      %4314 = vmatpush1.bf16.msra.mxu0 0
      %4315 = vmatprep.subr.bf16.mxu0 0
      %4316 = vmatpush1.bf16.msra.mxu0 0
      %4317 = vmatprep.subr.bf16.mxu0 0
      %4318 = vmatpush1.bf16.msra.mxu0 0
      %4319 = vmatprep.mubr.bf16.mxu0 0
      %4320 = vmatmul.mubr.bf16.gmra.mrb[0].mxu0 %v3990
      %v4321 = vpop.f32.mrb[0].mxu0
      %v4322 = vadd.f32 %v4225, %v4321
      %v4323 = vpop.f32.mrb[0].mxu0
      %v4324 = vpop.f32.mrb[0].mxu0
      %v4325 = vadd.f32 %v4228, %v4324
      %v4326 = vpop.f32.mrb[0].mxu0
      %4327 = vmatprep.mubr.bf16.mxu0 0
      %4328 = vmatmul.mubr.bf16.gmra.mrb[0].mxu0 %v3991
      %v4329 = vpop.f32.mrb[0].mxu0
      %v4330 = vadd.f32 %v4233, %v4329
      %v4331 = vpop.f32.mrb[0].mxu0
      %v4332 = vpop.f32.mrb[0].mxu0
      %v4333 = vadd.f32 %v4236, %v4332
      %v4334 = vpop.f32.mrb[0].mxu0
      %4335 = vmatprep.mubr.bf16.mxu0 0
      %4336 = vmatmul.mubr.bf16.gmra.mrb[0].mxu0 %v3992
      %v4337 = vpop.f32.mrb[0].mxu0
      %v4338 = vadd.f32 %v4241, %v4337
      %v4339 = vpop.f32.mrb[0].mxu0
      %v4340 = vpop.f32.mrb[0].mxu0
      %v4341 = vadd.f32 %v4244, %v4340
      %v4342 = vpop.f32.mrb[0].mxu0
      %4343 = vmatprep.mubr.bf16.mxu0 0
      %4344 = vmatmul.mubr.bf16.gmra.mrb[0].mxu0 %v3993
      %v4345 = vpop.f32.mrb[0].mxu0
      %v4346 = vadd.f32 %v4249, %v4345
      %v4347 = vpop.f32.mrb[0].mxu0
      %v4348 = vpop.f32.mrb[0].mxu0
      %v4349 = vadd.f32 %v4252, %v4348
      %v4350 = vpop.f32.mrb[0].mxu0
      %4351 = vmatprep.mubr.bf16.mxu0 0
      %4352 = vmatmul.mubr.bf16.gmra.mrb[0].mxu0 %v3994
      %v4353 = vpop.f32.mrb[0].mxu0
      %v4354 = vadd.f32 %v4257, %v4353
      %v4355 = vpop.f32.mrb[0].mxu0
      %v4356 = vpop.f32.mrb[0].mxu0
      %v4357 = vadd.f32 %v4260, %v4356
      %v4358 = vpop.f32.mrb[0].mxu0
      %4359 = vmatprep.mubr.bf16.mxu0 0
      %4360 = vmatmul.mubr.bf16.gmra.mrb[0].mxu0 %v3995
      %v4361 = vpop.f32.mrb[0].mxu0
      %v4362 = vadd.f32 %v4265, %v4361
      %v4363 = vpop.f32.mrb[0].mxu0
      %v4364 = vpop.f32.mrb[0].mxu0
      %v4365 = vadd.f32 %v4268, %v4364
      %v4366 = vpop.f32.mrb[0].mxu0
      %4367 = vmatprep.mubr.bf16.mxu0 0
      %4368 = vmatmul.mubr.bf16.gmra.mrb[0].mxu0 %v3996
      %v4369 = vpop.f32.mrb[0].mxu0
      %v4370 = vadd.f32 %v4273, %v4369
      %v4371 = vpop.f32.mrb[0].mxu0
      %v4372 = vpop.f32.mrb[0].mxu0
      %v4373 = vadd.f32 %v4276, %v4372
      %v4374 = vpop.f32.mrb[0].mxu0
      %4375 = vmatprep.mubr.bf16.mxu0 0
      %4376 = vmatmul.mubr.bf16.gmra.mrb[0].mxu0 %v3997
      %v4377 = vpop.f32.mrb[0].mxu0
      %v4378 = vadd.f32 %v4281, %v4377
      %v4379 = vpop.f32.mrb[0].mxu0
      %v4380 = vpop.f32.mrb[0].mxu0
      %v4381 = vadd.f32 %v4284, %v4380
      %v4382 = vpop.f32.mrb[0].mxu0
      %4383 = vdwg.mxu0
      %4384 = vst [vmem:[%s167] sm:$0xff] %v4322
      %4385 = vst [vmem:[%s167 + $0x8] sm:$0xff] %v4325
      %4386 = vst [vmem:[%s167 + $0x10] sm:$0xff] %v4330
      %4387 = vst [vmem:[%s167 + $0x18] sm:$0xff] %v4333
      %4388 = vst [vmem:[%s167 + $0x20] sm:$0xff] %v4338
      %4389 = vst [vmem:[%s167 + $0x28] sm:$0xff] %v4341
      %4390 = vst [vmem:[%s167 + $0x30] sm:$0xff] %v4346
      %4391 = vst [vmem:[%s167 + $0x38] sm:$0xff] %v4349
      %4392 = vst [vmem:[%s167 + $0x40] sm:$0xff] %v4354
      %4393 = vst [vmem:[%s167 + $0x48] sm:$0xff] %v4357
      %4394 = vst [vmem:[%s167 + $0x50] sm:$0xff] %v4362
      %4395 = vst [vmem:[%s167 + $0x58] sm:$0xff] %v4365
      %4396 = vst [vmem:[%s167 + $0x60] sm:$0xff] %v4370
      %4397 = vst [vmem:[%s167 + $0x68] sm:$0xff] %v4373
      %4398 = vst [vmem:[%s167 + $0x70] sm:$0xff] %v4378
      %4399 = vst [vmem:[%s167 + $0x78] sm:$0xff] %v4381
      %p4400 = scmp.lt.s32.totalorder %s14, 1
      %s4401 = scalar_select %p4400, %s14, 1
      %s4402 = smul.addr %s4401, 16
      %s4403 = smul.addr %s4402, 8
      %s4404 = scalar_lea.vmem %s3, %s4403
      // Predicated region
      $region33: #{parameter_gan_forward.2} parent=31 // pred_check
        %p4405 = pneg %p100
      $region34: #{parameter_gan_forward.2} parent=31 // pred_check_branch
        %4407 = sbr.rel (%p4405) target = $region36
      $region35: #{parameter_gan_forward.2} parent=31 // pred_region
        _
      $region36: #{parameter_gan_forward.2} parent=31 // pred_fallthru
        _
    $region32: #{parameter_gan_forward.2} parent=5 // pred_fallthru
      _
    %p4408 = scmp.le.s32.totalorder 2, %s9
    // Predicated region
    $region37: #{parameter_gan_forward.2} parent=5 // pred_check
      %p4409 = pneg %p4408
    $region38: #{parameter_gan_forward.2} parent=5 // pred_check_branch
      %4411 = sbr.rel (%p4409) target = $region40
    $region39: #{parameter_gan_forward.2} parent=5 // pred_region
      %s4412 = ssub.s32 %s9, 2
      // Predicated region
      $region41: #{parameter_gan_forward.2} parent=39 // pred_check
        %p4413 = pneg %p106
      $region42: #{parameter_gan_forward.2} parent=39 // pred_check_branch
        %4415 = sbr.rel (%p4413) target = $region44
      $region43: #{parameter_gan_forward.2} parent=39 // pred_region
        %p4416 = scmp.lt.s32.totalorder %s15, 1
        %s4417 = scalar_select %p4416, %s15, 1
        %s4418 = smul.addr %s4417, 16
        %s4419 = smul.addr %s4418, 8
        %s4420 = scalar_lea.vmem %s3, %s4419
      $region44: #{parameter_gan_forward.2} parent=39 // pred_fallthru
        _
    $region40: #{parameter_gan_forward.2} parent=5 // pred_fallthru
      _
  $region6: #{parameter_gan_forward.2} parent=0 // loop_footer
    %s13 = sadd.s32 1, %s9
  $region7: #{parameter_gan_forward.2} parent=0 // loop_footer_branch
    %8 = sbr.rel target = $region3
  $region8: #{parameter_gan_forward.2} parent=0 // loop_exit
    _

// kernel: tile.98
$region0: #{tile.98}
  #allocation0 [shape = 's32[1]{0}', space=sflag, size = 0x4, scoped, tag = 'scoped memory for tile.98']
  %s0 = inlined_call_operand.vmem [shape: f32[16], index: 0, kind: input, shape index: {}]
  %s1 = inlined_call_operand.vmem [shape: f32[2,16], index: 1, kind: output, shape index: {}]
  // Predicated region
  $region2: #{tile.98} parent=0 // pred_check
    _
  $region3: #{tile.98} parent=0 // pred_check_branch
    %3 = sbr.rel (0) target = $region5
  $region4: #{tile.98} parent=0 // pred_region
    _
  $region5: #{tile.98} parent=0 // pred_fallthru
    _
  %v4 = vld [vmem:[%s0] ss:$0 sm:$0xff]
  %5 = vst [vmem:[%s1] sm:$0x3] %v4

// kernel: tile.99
$region0: #{tile.99}
  %s0 = inlined_call_operand.vmem [shape: f32[2,16], index: 0, kind: input, shape index: {}]
  %s1 = inlined_call_operand.vmem [shape: f32[1,32], index: 1, kind: output, shape index: {}]
  $region1: #{tile.99} parent=0
    #allocation0 [shape = 'u8[4096]{0}', space=vmem, size = 0x1000, scoped, tag = 'scoped mem for output reshape']
    #allocation1 [shape = 'u8[4096]{0}', space=vmem, size = 0x1000, scoped, tag = 'scoped mem for input reshape']
    %s3 = sshllo.u32 0, 2
    %v4 = vld [vmem:[%s0] sm:%s3]
    %5 = vst [vmem:[#allocation1] sm:%s3] %v4
    %v6 = vld [vmem:[#allocation1] sm:$0x1]
    %vm7 = vcmask 130048
    %8 = vst.msk [vmem:[#allocation0] sm:$0x1] %vm7, %v6
    %s9 = scalar_lea.vmem [#allocation1], 1
    %v10 = vld [vmem:[%s9] sm:$0x1]
    %11 = vrot.lane.b32.xlu0 %v10, 16
    %v12 = vpop.permute.xlu0 %11
    %vm13 = vcmask 261248
    %14 = vst.msk [vmem:[#allocation0] sm:$0x1] %vm13, %v12
    %s16 = sshllo.u32 0, 1
    %v18 = vld [vmem:[#allocation0] sm:%s16]
    %s19 = sshllo.u32 0, 1
    %20 = vst [vmem:[%s1] sm:%s19] %v18

// kernel: parameter_gan_forward.3
$region0: #{parameter_gan_forward.3}
  #allocation0 [shape = 'u32[]', space=smem, size = 0x4, offset = 0x4, fixed_abs, tag = 'smem constant byte address 0x4 - core index']
  #allocation1 [shape = 'u32[144,128]{1,0:T(1,128)}', space=vmem, size = 0x12000, scoped, tag = 'internal scratch']
  %s0 = inlined_call_operand.vmem [shape: f32[4,128,128], index: 0, kind: input, shape index: {}]
  %s1 = inlined_call_operand.vmem [shape: bf16[3456,128], index: 1, kind: input, shape index: {}]
  %s2 = inlined_call_operand.vmem [shape: f32[64,128], index: 2, kind: input, shape index: {}]
  %s3 = inlined_call_operand.vmem [shape: f32[4,2,1], index: 3, kind: output, shape index: {}]
  %s4 = sld [smem:[#allocation0]]
  $region45: #{parameter_gan_forward.3} parent=0
    _
  %s6 = ssub.s32 1, %s4
  %s7 = scalar_select 0, %s6, %s4
  loop: start=0, step=1, limit=6
  $region2: #{parameter_gan_forward.3} parent=0 // loop_pre_header
    _
  $region3: #{parameter_gan_forward.3} parent=0 // loop_header
    %s9 = sphi 0, %s13
    %p10 = scmp.ge.s32.totalorder %s9, 6
    %s19 = sphi 0, %s21
    %s22 = sphi 0, %s19
    %s23 = sphi 0, %s22
    %s39 = sphi 0, %s23
    %s43 = sphi 0, %s43
    %s45 = sphi 0, %s43
    %s46 = sphi 0, %s45
    %s60 = sphi 0, %s46
    %s64 = sphi 0, %s64
    %s66 = sphi 0, %s64
    %s67 = sphi 0, %s66
    %s81 = sphi 0, %s67
    %s87 = sphi 0, %s89
    %s90 = sphi 0, %s87
    %s91 = sphi 0, %s90
    %s107 = sphi 0, %s91
  $region4: #{parameter_gan_forward.3} parent=0 // loop_header_branch
    %12 = sbr.rel (%p10) target = $region8
  $region5: #{parameter_gan_forward.3} parent=0 // loop_body
    %s14 = ssub.s32 %s9, 1
    %s15 = ssub.s32 %s9, 2
    %s16 = sadd.s32 %s9, 1
    %s17 = ssub.s32 %s9, %s16
    %p18 = scmp.eq.s32.totalorder %s17, 0
    %s20 = sadd.s32 %s19, 1
    %s21 = scalar_select %p18, %s19, %s20
    %p24 = pneg %p18
    %p25 = scmp.eq.s32.totalorder %s9, 3
    %p26 = por %p24, %p25
    %p27 = scmp.ne.s32.totalorder %s19, %s22
    %p28 = scmp.eq.s32.totalorder %s9, 0
    %p29 = por %p27, %p28
    %p30 = scmp.ne.s32.totalorder %s19, %s22
    %p31 = scmp.eq.s32.totalorder %s14, 3
    %p32 = por %p30, %p31
    %p33 = scmp.ne.s32.totalorder %s22, %s23
    %p34 = scmp.eq.s32.totalorder %s14, 0
    %p35 = por %p33, %p34
    %p36 = scmp.ne.s32.totalorder %s22, %s23
    %p37 = scmp.eq.s32.totalorder %s15, 3
    %p38 = por %p36, %p37
    %p40 = scmp.ne.s32.totalorder %s23, %s39
    %p41 = scmp.eq.s32.totalorder %s15, 0
    %p42 = por %p40, %p41
    %s44 = sadd.s32 %s43, 1
    %p47 = scmp.eq.s32.totalorder %s9, 3
    %p48 = scmp.ne.s32.totalorder %s43, %s45
    %p49 = scmp.eq.s32.totalorder %s9, 0
    %p50 = por %p48, %p49
    %p51 = scmp.ne.s32.totalorder %s43, %s45
    %p52 = scmp.eq.s32.totalorder %s14, 3
    %p53 = por %p51, %p52
    %p54 = scmp.ne.s32.totalorder %s45, %s46
    %p55 = scmp.eq.s32.totalorder %s14, 0
    %p56 = por %p54, %p55
    %p57 = scmp.ne.s32.totalorder %s45, %s46
    %p58 = scmp.eq.s32.totalorder %s15, 3
    %p59 = por %p57, %p58
    %p61 = scmp.ne.s32.totalorder %s46, %s60
    %p62 = scmp.eq.s32.totalorder %s15, 0
    %p63 = por %p61, %p62
    %s65 = sadd.s32 %s64, 1
    %p68 = scmp.eq.s32.totalorder %s9, 3
    %p69 = scmp.ne.s32.totalorder %s64, %s66
    %p70 = scmp.eq.s32.totalorder %s9, 0
    %p71 = por %p69, %p70
    %p72 = scmp.ne.s32.totalorder %s64, %s66
    %p73 = scmp.eq.s32.totalorder %s14, 3
    %p74 = por %p72, %p73
    %p75 = scmp.ne.s32.totalorder %s66, %s67
    %p76 = scmp.eq.s32.totalorder %s14, 0
    %p77 = por %p75, %p76
    %p78 = scmp.ne.s32.totalorder %s66, %s67
    %p79 = scmp.eq.s32.totalorder %s15, 3
    %p80 = por %p78, %p79
    %p82 = scmp.ne.s32.totalorder %s67, %s81
    %p83 = scmp.eq.s32.totalorder %s15, 0
    %p84 = por %p82, %p83
    %s85 = ssub.s32 %s9, %s16
    %p86 = scmp.eq.s32.totalorder %s85, 0
    %s88 = sadd.s32 %s87, 1
    %s89 = scalar_select %p86, %s87, %s88
    %p92 = pneg %p86
    %p93 = scmp.eq.s32.totalorder %s9, 3
    %p94 = por %p92, %p93
    %p95 = scmp.ne.s32.totalorder %s87, %s90
    %p96 = scmp.eq.s32.totalorder %s9, 0
    %p97 = por %p95, %p96
    %p98 = scmp.ne.s32.totalorder %s87, %s90
    %p99 = scmp.eq.s32.totalorder %s14, 3
    %p100 = por %p98, %p99
    %p101 = scmp.ne.s32.totalorder %s90, %s91
    %p102 = scmp.eq.s32.totalorder %s14, 0
    %p103 = por %p101, %p102
    %p104 = scmp.ne.s32.totalorder %s90, %s91
    %p105 = scmp.eq.s32.totalorder %s15, 3
    %p106 = por %p104, %p105
    %p108 = scmp.ne.s32.totalorder %s91, %s107
    %p109 = scmp.eq.s32.totalorder %s15, 0
    %p110 = por %p108, %p109
    %p111 = scmp.le.s32.totalorder 1, %s9
    %p112 = scmp.lt.s32.totalorder %s9, 5
    %p113 = pnand %p111, %p112
    %p114 = pneg %p113
    // Predicated region
    $region9: #{parameter_gan_forward.3} parent=5 // pred_check
      _
    $region10: #{parameter_gan_forward.3} parent=5 // pred_check_branch
      %116 = sbr.rel (%p113) target = $region12
    $region11: #{parameter_gan_forward.3} parent=5 // pred_region
      %s117 = ssub.s32 %s9, 1
      // Predicated region
      $region13: #{parameter_gan_forward.3} parent=11 // pred_check
        %p118 = pneg %p56
      $region14: #{parameter_gan_forward.3} parent=11 // pred_check_branch
        %120 = sbr.rel (%p118) target = $region16
      $region15: #{parameter_gan_forward.3} parent=11 // pred_region
        _
      $region16: #{parameter_gan_forward.3} parent=11 // pred_fallthru
        _
      // Predicated region
      $region17: #{parameter_gan_forward.3} parent=11 // pred_check
        %p121 = pneg %p77
      $region18: #{parameter_gan_forward.3} parent=11 // pred_check_branch
        %123 = sbr.rel (%p121) target = $region20
      $region19: #{parameter_gan_forward.3} parent=11 // pred_region
        _
      $region20: #{parameter_gan_forward.3} parent=11 // pred_fallthru
        _
    $region12: #{parameter_gan_forward.3} parent=5 // pred_fallthru
      _
    %p124 = scmp.lt.s32.totalorder %s9, 4
    // Predicated region
    $region21: #{parameter_gan_forward.3} parent=5 // pred_check
      %p125 = pneg %p124
    $region22: #{parameter_gan_forward.3} parent=5 // pred_check_branch
      %127 = sbr.rel (%p125) target = $region24
    $region23: #{parameter_gan_forward.3} parent=5 // pred_region
      // Predicated region
      $region25: #{parameter_gan_forward.3} parent=23 // pred_check
        %p128 = pneg %p29
      $region26: #{parameter_gan_forward.3} parent=23 // pred_check_branch
        %130 = sbr.rel (%p128) target = $region28
      $region27: #{parameter_gan_forward.3} parent=23 // pred_region
        %p131 = scmp.lt.s32.totalorder %s9, 3
        %s132 = scalar_select %p131, %s9, 3
        %s133 = smul.addr %s132, 16
        %s134 = smul.addr %s133, 8
        %s135 = scalar_lea.vmem %s0, %s134
      $region28: #{parameter_gan_forward.3} parent=23 // pred_fallthru
        _
    $region24: #{parameter_gan_forward.3} parent=5 // pred_fallthru
      _
    %p136 = scmp.le.s32.totalorder 1, %s9
    %p137 = scmp.lt.s32.totalorder %s9, 5
    %p138 = pnand %p136, %p137
    %p139 = pneg %p138
    // Predicated region
    $region29: #{parameter_gan_forward.3} parent=5 // pred_check
      _
    $region30: #{parameter_gan_forward.3} parent=5 // pred_check_branch
      %141 = sbr.rel (%p138) target = $region32
    $region31: #{parameter_gan_forward.3} parent=5 // pred_region
      %s142 = ssub.s32 %s9, 1
      %p143 = scmp.lt.s32.totalorder %s14, 3
      %s144 = scalar_select %p143, %s14, 3
      %s145 = smul.addr %s144, 16
      %s146 = smul.addr %s145, 8
      %s147 = scalar_lea.vmem %s0, %s146
      %p148 = pneg %p35
      %p149 = pneg %p32
      %p150 = pneg %p56
      %p151 = pneg %p53
      %p152 = pneg %p77
      %p153 = pneg %p74
      %p154 = pneg %p103
      %p155 = pneg %p100
      %p156 = scmp.lt.s32.totalorder %s14, 3
      %s157 = scalar_select %p156, %s14, 3
      %s158 = smul.addr %s157, 2
      %s159 = scalar_lea.vmem %s3, %s158
      %p160 = scmp.lt.s32.totalorder %s14, 3
      %s161 = scalar_select %p160, %s14, 3
      %s162 = smul.addr %s161, 16
      %s163 = smul.addr %s162, 8
      %s164 = scalar_lea.vmem %s0, %s163
      %p165 = scmp.lt.s32.totalorder %s14, 3
      %s166 = scalar_select %p165, %s14, 3
      %s167 = smul.addr %s166, 2
      %s168 = scalar_lea.vmem %s3, %s167
      %v170 = vld [vmem:[%s164] sm:$0xff]
      %v171 = vld [vmem:[%s164 + $0x8] sm:$0xff]
      %v172 = vld [vmem:[%s164 + $0x10] sm:$0xff]
      %v173 = vld [vmem:[%s164 + $0x18] sm:$0xff]
      %v174 = vld [vmem:[%s164 + $0x20] sm:$0xff]
      %v175 = vld [vmem:[%s164 + $0x28] sm:$0xff]
      %v176 = vld [vmem:[%s164 + $0x30] sm:$0xff]
      %v177 = vld [vmem:[%s164 + $0x38] sm:$0xff]
      %v178 = vld [vmem:[%s164 + $0x40] sm:$0xff]
      %v179 = vld [vmem:[%s164 + $0x48] sm:$0xff]
      %v180 = vld [vmem:[%s164 + $0x50] sm:$0xff]
      %v181 = vld [vmem:[%s164 + $0x58] sm:$0xff]
      %v182 = vld [vmem:[%s164 + $0x60] sm:$0xff]
      %v183 = vld [vmem:[%s164 + $0x68] sm:$0xff]
      %v184 = vld [vmem:[%s164 + $0x70] sm:$0xff]
      %v185 = vld [vmem:[%s164 + $0x78] sm:$0xff]
      %v186 = vpack.c.bf16 %v171, %v170
      %v187 = vpack.c.bf16 %v173, %v172
      %v188 = vpack.c.bf16 %v175, %v174
      %v189 = vpack.c.bf16 %v177, %v176
      %v190 = vpack.c.bf16 %v179, %v178
      %v191 = vpack.c.bf16 %v181, %v180
      %v192 = vpack.c.bf16 %v183, %v182
      %v193 = vpack.c.bf16 %v185, %v184
      %v194 = vld [vmem:[%s1] sm:$0xf]
      %v195 = vld [vmem:[%s1 + $0x4] sm:$0xf]
      %v196 = vld [vmem:[%s1 + $0x8] sm:$0xf]
      %v197 = vld [vmem:[%s1 + $0xc] sm:$0xf]
      %v198 = vld [vmem:[%s1 + $0x10] sm:$0xf]
      %v199 = vld [vmem:[%s1 + $0x14] sm:$0xf]
      %v200 = vld [vmem:[%s1 + $0x18] sm:$0xf]
      %v201 = vld [vmem:[%s1 + $0x1c] sm:$0xf]
      %v202 = vld [vmem:[%s1 + $0x20] sm:$0xf]
      %v203 = vld [vmem:[%s1 + $0x24] sm:$0xf]
      %v204 = vld [vmem:[%s1 + $0x28] sm:$0xf]
      %v205 = vld [vmem:[%s1 + $0x2c] sm:$0xf]
      %v206 = vld [vmem:[%s1 + $0x30] sm:$0xf]
      %v207 = vld [vmem:[%s1 + $0x34] sm:$0xf]
      %v208 = vld [vmem:[%s1 + $0x38] sm:$0xf]
      %v209 = vld [vmem:[%s1 + $0x3c] sm:$0xf]
      %v226 = vunpack.c.l.b16 %v194
      %v227 = vunpack.c.l.b16 %v195
      %v228 = vunpack.c.l.b16 %v196
      %v229 = vunpack.c.l.b16 %v197
      %v230 = vunpack.c.l.b16 %v198
      %v231 = vunpack.c.l.b16 %v199
      %v232 = vunpack.c.l.b16 %v200
      %v233 = vunpack.c.l.b16 %v201
      %v234 = vunpack.c.l.b16 %v202
      %v235 = vunpack.c.l.b16 %v203
      %v236 = vunpack.c.l.b16 %v204
      %v237 = vunpack.c.l.b16 %v205
      %v238 = vunpack.c.l.b16 %v206
      %v239 = vunpack.c.l.b16 %v207
      %v240 = vunpack.c.l.b16 %v208
      %v241 = vunpack.c.l.b16 %v209
      %v242 = vpack.c.b16 %v227, %v226
      %v243 = vpack.c.b16 %v229, %v228
      %v244 = vpack.c.b16 %v231, %v230
      %v245 = vpack.c.b16 %v233, %v232
      %v246 = vpack.c.b16 %v235, %v234
      %v247 = vpack.c.b16 %v237, %v236
      %v248 = vpack.c.b16 %v239, %v238
      %v249 = vpack.c.b16 %v241, %v240
      %258 = vmatprep.subr.bf16.mxu0 0
      %259 = vmatpush1.bf16.msra.mxu0 %v186
      %260 = vmatprep.subr.bf16.mxu0 0
      %261 = vmatpush1.bf16.msra.mxu0 %v187
      %262 = vmatprep.subr.bf16.mxu0 0
      %263 = vmatpush1.bf16.msra.mxu0 %v188
      %264 = vmatprep.subr.bf16.mxu0 0
      %265 = vmatpush1.bf16.msra.mxu0 %v189
      %266 = vmatprep.subr.bf16.mxu0 0
      %267 = vmatpush1.bf16.msra.mxu0 %v190
      %268 = vmatprep.subr.bf16.mxu0 0
      %269 = vmatpush1.bf16.msra.mxu0 %v191
      %270 = vmatprep.subr.bf16.mxu0 0
      %271 = vmatpush1.bf16.msra.mxu0 %v192
      %272 = vmatprep.subr.bf16.mxu0 0
      %273 = vmatpush1.bf16.msra.mxu0 %v193
      %274 = vmatprep.subr.bf16.mxu0 0
      %275 = vmatpush1.bf16.msra.mxu0 0
      %276 = vmatprep.subr.bf16.mxu0 0
      %277 = vmatpush1.bf16.msra.mxu0 0
      %278 = vmatprep.subr.bf16.mxu0 0
      %279 = vmatpush1.bf16.msra.mxu0 0
      %280 = vmatprep.subr.bf16.mxu0 0
      %281 = vmatpush1.bf16.msra.mxu0 0
      %282 = vmatprep.subr.bf16.mxu0 0
      %283 = vmatpush1.bf16.msra.mxu0 0
      %284 = vmatprep.subr.bf16.mxu0 0
      %285 = vmatpush1.bf16.msra.mxu0 0
      %286 = vmatprep.subr.bf16.mxu0 0
      %287 = vmatpush1.bf16.msra.mxu0 0
      %288 = vmatprep.subr.bf16.mxu0 0
      %289 = vmatpush1.bf16.msra.mxu0 0
      %290 = vmatprep.mubr.bf16.mxu0 0
      %291 = vmatmul.mubr.bf16.gmra.mrb[0].mxu0 %v242
      %v292 = vpop.f32.mrb[0].mxu0
      %v293 = vadd.f32 0.0, %v292
      %v294 = vpop.f32.mrb[0].mxu0
      %v295 = vpop.f32.mrb[0].mxu0
      %v296 = vadd.f32 0.0, %v295
      %v297 = vpop.f32.mrb[0].mxu0
      %298 = vmatprep.mubr.bf16.mxu0 0
      %299 = vmatmul.mubr.bf16.gmra.mrb[0].mxu0 %v243
      %v300 = vpop.f32.mrb[0].mxu0
      %v301 = vadd.f32 0.0, %v300
      %v302 = vpop.f32.mrb[0].mxu0
      %v303 = vpop.f32.mrb[0].mxu0
      %v304 = vadd.f32 0.0, %v303
      %v305 = vpop.f32.mrb[0].mxu0
      %306 = vmatprep.mubr.bf16.mxu0 0
      %307 = vmatmul.mubr.bf16.gmra.mrb[0].mxu0 %v244
      %v308 = vpop.f32.mrb[0].mxu0
      %v309 = vadd.f32 0.0, %v308
      %v310 = vpop.f32.mrb[0].mxu0
      %v311 = vpop.f32.mrb[0].mxu0
      %v312 = vadd.f32 0.0, %v311
      %v313 = vpop.f32.mrb[0].mxu0
      %314 = vmatprep.mubr.bf16.mxu0 0
      %315 = vmatmul.mubr.bf16.gmra.mrb[0].mxu0 %v245
      %v316 = vpop.f32.mrb[0].mxu0
      %v317 = vadd.f32 0.0, %v316
      %v318 = vpop.f32.mrb[0].mxu0
      %v319 = vpop.f32.mrb[0].mxu0
      %v320 = vadd.f32 0.0, %v319
      %v321 = vpop.f32.mrb[0].mxu0
      %322 = vmatprep.mubr.bf16.mxu0 0
      %323 = vmatmul.mubr.bf16.gmra.mrb[0].mxu0 %v246
      %v324 = vpop.f32.mrb[0].mxu0
      %v325 = vadd.f32 0.0, %v324
      %v326 = vpop.f32.mrb[0].mxu0
      %v327 = vpop.f32.mrb[0].mxu0
      %v328 = vadd.f32 0.0, %v327
      %v329 = vpop.f32.mrb[0].mxu0
      %330 = vmatprep.mubr.bf16.mxu0 0
      %331 = vmatmul.mubr.bf16.gmra.mrb[0].mxu0 %v247
      %v332 = vpop.f32.mrb[0].mxu0
      %v333 = vadd.f32 0.0, %v332
      %v334 = vpop.f32.mrb[0].mxu0
      %v335 = vpop.f32.mrb[0].mxu0
      %v336 = vadd.f32 0.0, %v335
      %v337 = vpop.f32.mrb[0].mxu0
      %338 = vmatprep.mubr.bf16.mxu0 0
      %339 = vmatmul.mubr.bf16.gmra.mrb[0].mxu0 %v248
      %v340 = vpop.f32.mrb[0].mxu0
      %v341 = vadd.f32 0.0, %v340
      %v342 = vpop.f32.mrb[0].mxu0
      %v343 = vpop.f32.mrb[0].mxu0
      %v344 = vadd.f32 0.0, %v343
      %v345 = vpop.f32.mrb[0].mxu0
      %346 = vmatprep.mubr.bf16.mxu0 0
      %347 = vmatmul.mubr.bf16.gmra.mrb[0].mxu0 %v249
      %v348 = vpop.f32.mrb[0].mxu0
      %v349 = vadd.f32 0.0, %v348
      %v350 = vpop.f32.mrb[0].mxu0
      %v351 = vpop.f32.mrb[0].mxu0
      %v352 = vadd.f32 0.0, %v351
      %v353 = vpop.f32.mrb[0].mxu0
      %354 = vdwg.mxu0
      %v355 = vpack.c.bf16 %v296, %v293
      %v356 = vpack.c.bf16 %v304, %v301
      %v357 = vpack.c.bf16 %v312, %v309
      %v358 = vpack.c.bf16 %v320, %v317
      %v359 = vpack.c.bf16 %v328, %v325
      %v360 = vpack.c.bf16 %v336, %v333
      %v361 = vpack.c.bf16 %v344, %v341
      %v362 = vpack.c.bf16 %v352, %v349
      %v363 = vld [vmem:[%s1 + $0x40] sm:$0xf]
      %v364 = vld [vmem:[%s1 + $0x44] sm:$0xf]
      %v365 = vld [vmem:[%s1 + $0x48] sm:$0xf]
      %v366 = vld [vmem:[%s1 + $0x4c] sm:$0xf]
      %v367 = vld [vmem:[%s1 + $0x50] sm:$0xf]
      %v368 = vld [vmem:[%s1 + $0x54] sm:$0xf]
      %v369 = vld [vmem:[%s1 + $0x58] sm:$0xf]
      %v370 = vld [vmem:[%s1 + $0x5c] sm:$0xf]
      %v371 = vld [vmem:[%s1 + $0x60] sm:$0xf]
      %v372 = vld [vmem:[%s1 + $0x64] sm:$0xf]
      %v373 = vld [vmem:[%s1 + $0x68] sm:$0xf]
      %v374 = vld [vmem:[%s1 + $0x6c] sm:$0xf]
      %v375 = vld [vmem:[%s1 + $0x70] sm:$0xf]
      %v376 = vld [vmem:[%s1 + $0x74] sm:$0xf]
      %v377 = vld [vmem:[%s1 + $0x78] sm:$0xf]
      %v378 = vld [vmem:[%s1 + $0x7c] sm:$0xf]
      %v395 = vunpack.c.l.b16 %v363
      %v396 = vunpack.c.l.b16 %v364
      %v397 = vunpack.c.l.b16 %v365
      %v398 = vunpack.c.l.b16 %v366
      %v399 = vunpack.c.l.b16 %v367
      %v400 = vunpack.c.l.b16 %v368
      %v401 = vunpack.c.l.b16 %v369
      %v402 = vunpack.c.l.b16 %v370
      %v403 = vunpack.c.l.b16 %v371
      %v404 = vunpack.c.l.b16 %v372
      %v405 = vunpack.c.l.b16 %v373
      %v406 = vunpack.c.l.b16 %v374
      %v407 = vunpack.c.l.b16 %v375
      %v408 = vunpack.c.l.b16 %v376
      %v409 = vunpack.c.l.b16 %v377
      %v410 = vunpack.c.l.b16 %v378
      %v411 = vpack.c.b16 %v396, %v395
      %v412 = vpack.c.b16 %v398, %v397
      %v413 = vpack.c.b16 %v400, %v399
      %v414 = vpack.c.b16 %v402, %v401
      %v415 = vpack.c.b16 %v404, %v403
      %v416 = vpack.c.b16 %v406, %v405
      %v417 = vpack.c.b16 %v408, %v407
      %v418 = vpack.c.b16 %v410, %v409
      %427 = vmatprep.subr.bf16.mxu0 0
      %428 = vmatpush1.bf16.msra.mxu0 %v186
      %429 = vmatprep.subr.bf16.mxu0 0
      %430 = vmatpush1.bf16.msra.mxu0 %v187
      %431 = vmatprep.subr.bf16.mxu0 0
      %432 = vmatpush1.bf16.msra.mxu0 %v188
      %433 = vmatprep.subr.bf16.mxu0 0
      %434 = vmatpush1.bf16.msra.mxu0 %v189
      %435 = vmatprep.subr.bf16.mxu0 0
      %436 = vmatpush1.bf16.msra.mxu0 %v190
      %437 = vmatprep.subr.bf16.mxu0 0
      %438 = vmatpush1.bf16.msra.mxu0 %v191
      %439 = vmatprep.subr.bf16.mxu0 0
      %440 = vmatpush1.bf16.msra.mxu0 %v192
      %441 = vmatprep.subr.bf16.mxu0 0
      %442 = vmatpush1.bf16.msra.mxu0 %v193
      %443 = vmatprep.subr.bf16.mxu0 0
      %444 = vmatpush1.bf16.msra.mxu0 0
      %445 = vmatprep.subr.bf16.mxu0 0
      %446 = vmatpush1.bf16.msra.mxu0 0
      %447 = vmatprep.subr.bf16.mxu0 0
      %448 = vmatpush1.bf16.msra.mxu0 0
      %449 = vmatprep.subr.bf16.mxu0 0
      %450 = vmatpush1.bf16.msra.mxu0 0
      %451 = vmatprep.subr.bf16.mxu0 0
      %452 = vmatpush1.bf16.msra.mxu0 0
      %453 = vmatprep.subr.bf16.mxu0 0
      %454 = vmatpush1.bf16.msra.mxu0 0
      %455 = vmatprep.subr.bf16.mxu0 0
      %456 = vmatpush1.bf16.msra.mxu0 0
      %457 = vmatprep.subr.bf16.mxu0 0
      %458 = vmatpush1.bf16.msra.mxu0 0
      %459 = vmatprep.mubr.bf16.mxu0 0
      %460 = vmatmul.mubr.bf16.gmra.mrb[0].mxu0 %v411
      %v461 = vpop.f32.mrb[0].mxu0
      %v462 = vadd.f32 0.0, %v461
      %v463 = vpop.f32.mrb[0].mxu0
      %v464 = vpop.f32.mrb[0].mxu0
      %v465 = vadd.f32 0.0, %v464
      %v466 = vpop.f32.mrb[0].mxu0
      %467 = vmatprep.mubr.bf16.mxu0 0
      %468 = vmatmul.mubr.bf16.gmra.mrb[0].mxu0 %v412
      %v469 = vpop.f32.mrb[0].mxu0
      %v470 = vadd.f32 0.0, %v469
      %v471 = vpop.f32.mrb[0].mxu0
      %v472 = vpop.f32.mrb[0].mxu0
      %v473 = vadd.f32 0.0, %v472
      %v474 = vpop.f32.mrb[0].mxu0
      %475 = vmatprep.mubr.bf16.mxu0 0
      %476 = vmatmul.mubr.bf16.gmra.mrb[0].mxu0 %v413
      %v477 = vpop.f32.mrb[0].mxu0
      %v478 = vadd.f32 0.0, %v477
      %v479 = vpop.f32.mrb[0].mxu0
      %v480 = vpop.f32.mrb[0].mxu0
      %v481 = vadd.f32 0.0, %v480
      %v482 = vpop.f32.mrb[0].mxu0
      %483 = vmatprep.mubr.bf16.mxu0 0
      %484 = vmatmul.mubr.bf16.gmra.mrb[0].mxu0 %v414
      %v485 = vpop.f32.mrb[0].mxu0
      %v486 = vadd.f32 0.0, %v485
      %v487 = vpop.f32.mrb[0].mxu0
      %v488 = vpop.f32.mrb[0].mxu0
      %v489 = vadd.f32 0.0, %v488
      %v490 = vpop.f32.mrb[0].mxu0
      %491 = vmatprep.mubr.bf16.mxu0 0
      %492 = vmatmul.mubr.bf16.gmra.mrb[0].mxu0 %v415
      %v493 = vpop.f32.mrb[0].mxu0
      %v494 = vadd.f32 0.0, %v493
      %v495 = vpop.f32.mrb[0].mxu0
      %v496 = vpop.f32.mrb[0].mxu0
      %v497 = vadd.f32 0.0, %v496
      %v498 = vpop.f32.mrb[0].mxu0
      %499 = vmatprep.mubr.bf16.mxu0 0
      %500 = vmatmul.mubr.bf16.gmra.mrb[0].mxu0 %v416
      %v501 = vpop.f32.mrb[0].mxu0
      %v502 = vadd.f32 0.0, %v501
      %v503 = vpop.f32.mrb[0].mxu0
      %v504 = vpop.f32.mrb[0].mxu0
      %v505 = vadd.f32 0.0, %v504
      %v506 = vpop.f32.mrb[0].mxu0
      %507 = vmatprep.mubr.bf16.mxu0 0
      %508 = vmatmul.mubr.bf16.gmra.mrb[0].mxu0 %v417
      %v509 = vpop.f32.mrb[0].mxu0
      %v510 = vadd.f32 0.0, %v509
      %v511 = vpop.f32.mrb[0].mxu0
      %v512 = vpop.f32.mrb[0].mxu0
      %v513 = vadd.f32 0.0, %v512
      %v514 = vpop.f32.mrb[0].mxu0
      %515 = vmatprep.mubr.bf16.mxu0 0
      %516 = vmatmul.mubr.bf16.gmra.mrb[0].mxu0 %v418
      %v517 = vpop.f32.mrb[0].mxu0
      %v518 = vadd.f32 0.0, %v517
      %v519 = vpop.f32.mrb[0].mxu0
      %v520 = vpop.f32.mrb[0].mxu0
      %v521 = vadd.f32 0.0, %v520
      %v522 = vpop.f32.mrb[0].mxu0
      %523 = vdwg.mxu0
      %v524 = vpack.c.bf16 %v465, %v462
      %v525 = vpack.c.bf16 %v473, %v470
      %v526 = vpack.c.bf16 %v481, %v478
      %v527 = vpack.c.bf16 %v489, %v486
      %v528 = vpack.c.bf16 %v497, %v494
      %v529 = vpack.c.bf16 %v505, %v502
      %v530 = vpack.c.bf16 %v513, %v510
      %v531 = vpack.c.bf16 %v521, %v518
      %v532 = vld [vmem:[%s1 + $0x80] sm:$0xf]
      %v533 = vld [vmem:[%s1 + $0x84] sm:$0xf]
      %v534 = vld [vmem:[%s1 + $0x88] sm:$0xf]
      %v535 = vld [vmem:[%s1 + $0x8c] sm:$0xf]
      %v536 = vld [vmem:[%s1 + $0x90] sm:$0xf]
      %v537 = vld [vmem:[%s1 + $0x94] sm:$0xf]
      %v538 = vld [vmem:[%s1 + $0x98] sm:$0xf]
      %v539 = vld [vmem:[%s1 + $0x9c] sm:$0xf]
      %v540 = vld [vmem:[%s1 + $0xa0] sm:$0xf]
      %v541 = vld [vmem:[%s1 + $0xa4] sm:$0xf]
      %v542 = vld [vmem:[%s1 + $0xa8] sm:$0xf]
      %v543 = vld [vmem:[%s1 + $0xac] sm:$0xf]
      %v544 = vld [vmem:[%s1 + $0xb0] sm:$0xf]
      %v545 = vld [vmem:[%s1 + $0xb4] sm:$0xf]
      %v546 = vld [vmem:[%s1 + $0xb8] sm:$0xf]
      %v547 = vld [vmem:[%s1 + $0xbc] sm:$0xf]
      %v564 = vunpack.c.l.b16 %v532
      %v565 = vunpack.c.l.b16 %v533
      %v566 = vunpack.c.l.b16 %v534
      %v567 = vunpack.c.l.b16 %v535
      %v568 = vunpack.c.l.b16 %v536
      %v569 = vunpack.c.l.b16 %v537
      %v570 = vunpack.c.l.b16 %v538
      %v571 = vunpack.c.l.b16 %v539
      %v572 = vunpack.c.l.b16 %v540
      %v573 = vunpack.c.l.b16 %v541
      %v574 = vunpack.c.l.b16 %v542
      %v575 = vunpack.c.l.b16 %v543
      %v576 = vunpack.c.l.b16 %v544
      %v577 = vunpack.c.l.b16 %v545
      %v578 = vunpack.c.l.b16 %v546
      %v579 = vunpack.c.l.b16 %v547
      %v580 = vpack.c.b16 %v565, %v564
      %v581 = vpack.c.b16 %v567, %v566
      %v582 = vpack.c.b16 %v569, %v568
      %v583 = vpack.c.b16 %v571, %v570
      %v584 = vpack.c.b16 %v573, %v572
      %v585 = vpack.c.b16 %v575, %v574
      %v586 = vpack.c.b16 %v577, %v576
      %v587 = vpack.c.b16 %v579, %v578
      %596 = vmatprep.subr.bf16.mxu0 0
      %597 = vmatpush1.bf16.msra.mxu0 %v186
      %598 = vmatprep.subr.bf16.mxu0 0
      %599 = vmatpush1.bf16.msra.mxu0 %v187
      %600 = vmatprep.subr.bf16.mxu0 0
      %601 = vmatpush1.bf16.msra.mxu0 %v188
      %602 = vmatprep.subr.bf16.mxu0 0
      %603 = vmatpush1.bf16.msra.mxu0 %v189
      %604 = vmatprep.subr.bf16.mxu0 0
      %605 = vmatpush1.bf16.msra.mxu0 %v190
      %606 = vmatprep.subr.bf16.mxu0 0
      %607 = vmatpush1.bf16.msra.mxu0 %v191
      %608 = vmatprep.subr.bf16.mxu0 0
      %609 = vmatpush1.bf16.msra.mxu0 %v192
      %610 = vmatprep.subr.bf16.mxu0 0
      %611 = vmatpush1.bf16.msra.mxu0 %v193
      %612 = vmatprep.subr.bf16.mxu0 0
      %613 = vmatpush1.bf16.msra.mxu0 0
      %614 = vmatprep.subr.bf16.mxu0 0
      %615 = vmatpush1.bf16.msra.mxu0 0
      %616 = vmatprep.subr.bf16.mxu0 0
      %617 = vmatpush1.bf16.msra.mxu0 0
      %618 = vmatprep.subr.bf16.mxu0 0
      %619 = vmatpush1.bf16.msra.mxu0 0
      %620 = vmatprep.subr.bf16.mxu0 0
      %621 = vmatpush1.bf16.msra.mxu0 0
      %622 = vmatprep.subr.bf16.mxu0 0
      %623 = vmatpush1.bf16.msra.mxu0 0
      %624 = vmatprep.subr.bf16.mxu0 0
      %625 = vmatpush1.bf16.msra.mxu0 0
      %626 = vmatprep.subr.bf16.mxu0 0
      %627 = vmatpush1.bf16.msra.mxu0 0
      %628 = vmatprep.mubr.bf16.mxu0 0
      %629 = vmatmul.mubr.bf16.gmra.mrb[0].mxu0 %v580
      %v630 = vpop.f32.mrb[0].mxu0
      %v631 = vadd.f32 0.0, %v630
      %v632 = vpop.f32.mrb[0].mxu0
      %v633 = vpop.f32.mrb[0].mxu0
      %v634 = vadd.f32 0.0, %v633
      %v635 = vpop.f32.mrb[0].mxu0
      %636 = vmatprep.mubr.bf16.mxu0 0
      %637 = vmatmul.mubr.bf16.gmra.mrb[0].mxu0 %v581
      %v638 = vpop.f32.mrb[0].mxu0
      %v639 = vadd.f32 0.0, %v638
      %v640 = vpop.f32.mrb[0].mxu0
      %v641 = vpop.f32.mrb[0].mxu0
      %v642 = vadd.f32 0.0, %v641
      %v643 = vpop.f32.mrb[0].mxu0
      %644 = vmatprep.mubr.bf16.mxu0 0
      %645 = vmatmul.mubr.bf16.gmra.mrb[0].mxu0 %v582
      %v646 = vpop.f32.mrb[0].mxu0
      %v647 = vadd.f32 0.0, %v646
      %v648 = vpop.f32.mrb[0].mxu0
      %v649 = vpop.f32.mrb[0].mxu0
      %v650 = vadd.f32 0.0, %v649
      %v651 = vpop.f32.mrb[0].mxu0
      %652 = vmatprep.mubr.bf16.mxu0 0
      %653 = vmatmul.mubr.bf16.gmra.mrb[0].mxu0 %v583
      %v654 = vpop.f32.mrb[0].mxu0
      %v655 = vadd.f32 0.0, %v654
      %v656 = vpop.f32.mrb[0].mxu0
      %v657 = vpop.f32.mrb[0].mxu0
      %v658 = vadd.f32 0.0, %v657
      %v659 = vpop.f32.mrb[0].mxu0
      %660 = vmatprep.mubr.bf16.mxu0 0
      %661 = vmatmul.mubr.bf16.gmra.mrb[0].mxu0 %v584
      %v662 = vpop.f32.mrb[0].mxu0
      %v663 = vadd.f32 0.0, %v662
      %v664 = vpop.f32.mrb[0].mxu0
      %v665 = vpop.f32.mrb[0].mxu0
      %v666 = vadd.f32 0.0, %v665
      %v667 = vpop.f32.mrb[0].mxu0
      %668 = vmatprep.mubr.bf16.mxu0 0
      %669 = vmatmul.mubr.bf16.gmra.mrb[0].mxu0 %v585
      %v670 = vpop.f32.mrb[0].mxu0
      %v671 = vadd.f32 0.0, %v670
      %v672 = vpop.f32.mrb[0].mxu0
      %v673 = vpop.f32.mrb[0].mxu0
      %v674 = vadd.f32 0.0, %v673
      %v675 = vpop.f32.mrb[0].mxu0
      %676 = vmatprep.mubr.bf16.mxu0 0
      %677 = vmatmul.mubr.bf16.gmra.mrb[0].mxu0 %v586
      %v678 = vpop.f32.mrb[0].mxu0
      %v679 = vadd.f32 0.0, %v678
      %v680 = vpop.f32.mrb[0].mxu0
      %v681 = vpop.f32.mrb[0].mxu0
      %v682 = vadd.f32 0.0, %v681
      %v683 = vpop.f32.mrb[0].mxu0
      %684 = vmatprep.mubr.bf16.mxu0 0
      %685 = vmatmul.mubr.bf16.gmra.mrb[0].mxu0 %v587
      %v686 = vpop.f32.mrb[0].mxu0
      %v687 = vadd.f32 0.0, %v686
      %v688 = vpop.f32.mrb[0].mxu0
      %v689 = vpop.f32.mrb[0].mxu0
      %v690 = vadd.f32 0.0, %v689
      %v691 = vpop.f32.mrb[0].mxu0
      %692 = vdwg.mxu0
      %v693 = vpack.c.bf16 %v634, %v631
      %v694 = vpack.c.bf16 %v642, %v639
      %v695 = vpack.c.bf16 %v650, %v647
      %v696 = vpack.c.bf16 %v658, %v655
      %v697 = vpack.c.bf16 %v666, %v663
      %v698 = vpack.c.bf16 %v674, %v671
      %v699 = vpack.c.bf16 %v682, %v679
      %v700 = vpack.c.bf16 %v690, %v687
      %v701 = vld [vmem:[%s1 + $0xc0] sm:$0xf]
      %v702 = vld [vmem:[%s1 + $0xc4] sm:$0xf]
      %v703 = vld [vmem:[%s1 + $0xc8] sm:$0xf]
      %v704 = vld [vmem:[%s1 + $0xcc] sm:$0xf]
      %v705 = vld [vmem:[%s1 + $0xd0] sm:$0xf]
      %v706 = vld [vmem:[%s1 + $0xd4] sm:$0xf]
      %v707 = vld [vmem:[%s1 + $0xd8] sm:$0xf]
      %v708 = vld [vmem:[%s1 + $0xdc] sm:$0xf]
      %v709 = vld [vmem:[%s1 + $0xe0] sm:$0xf]
      %v710 = vld [vmem:[%s1 + $0xe4] sm:$0xf]
      %v711 = vld [vmem:[%s1 + $0xe8] sm:$0xf]
      %v712 = vld [vmem:[%s1 + $0xec] sm:$0xf]
      %v713 = vld [vmem:[%s1 + $0xf0] sm:$0xf]
      %v714 = vld [vmem:[%s1 + $0xf4] sm:$0xf]
      %v715 = vld [vmem:[%s1 + $0xf8] sm:$0xf]
      %v716 = vld [vmem:[%s1 + $0xfc] sm:$0xf]
      %v717 = vld [vmem:[%s1 + $0x100] sm:$0xf]
      %v718 = vld [vmem:[%s1 + $0x104] sm:$0xf]
      %v719 = vld [vmem:[%s1 + $0x108] sm:$0xf]
      %v720 = vld [vmem:[%s1 + $0x10c] sm:$0xf]
      %v721 = vld [vmem:[%s1 + $0x110] sm:$0xf]
      %v722 = vld [vmem:[%s1 + $0x114] sm:$0xf]
      %v723 = vld [vmem:[%s1 + $0x118] sm:$0xf]
      %v724 = vld [vmem:[%s1 + $0x11c] sm:$0xf]
      %v725 = vld [vmem:[%s1 + $0x120] sm:$0xf]
      %v726 = vld [vmem:[%s1 + $0x124] sm:$0xf]
      %v727 = vld [vmem:[%s1 + $0x128] sm:$0xf]
      %v728 = vld [vmem:[%s1 + $0x12c] sm:$0xf]
      %v729 = vld [vmem:[%s1 + $0x130] sm:$0xf]
      %v730 = vld [vmem:[%s1 + $0x134] sm:$0xf]
      %v731 = vld [vmem:[%s1 + $0x138] sm:$0xf]
      %v732 = vld [vmem:[%s1 + $0x13c] sm:$0xf]
      %v733 = vld [vmem:[%s1 + $0x140] sm:$0xf]
      %v734 = vld [vmem:[%s1 + $0x144] sm:$0xf]
      %v735 = vld [vmem:[%s1 + $0x148] sm:$0xf]
      %v736 = vld [vmem:[%s1 + $0x14c] sm:$0xf]
      %v737 = vld [vmem:[%s1 + $0x150] sm:$0xf]
      %v738 = vld [vmem:[%s1 + $0x154] sm:$0xf]
      %v739 = vld [vmem:[%s1 + $0x158] sm:$0xf]
      %v740 = vld [vmem:[%s1 + $0x15c] sm:$0xf]
      %v741 = vld [vmem:[%s1 + $0x160] sm:$0xf]
      %v742 = vld [vmem:[%s1 + $0x164] sm:$0xf]
      %v743 = vld [vmem:[%s1 + $0x168] sm:$0xf]
      %v744 = vld [vmem:[%s1 + $0x16c] sm:$0xf]
      %v745 = vld [vmem:[%s1 + $0x170] sm:$0xf]
      %v746 = vld [vmem:[%s1 + $0x174] sm:$0xf]
      %v747 = vld [vmem:[%s1 + $0x178] sm:$0xf]
      %v748 = vld [vmem:[%s1 + $0x17c] sm:$0xf]
      %v797 = vunpack.c.l.b16 %v701
      %v798 = vunpack.c.l.b16 %v702
      %v799 = vunpack.c.l.b16 %v703
      %v800 = vunpack.c.l.b16 %v704
      %v801 = vunpack.c.l.b16 %v705
      %v802 = vunpack.c.l.b16 %v706
      %v803 = vunpack.c.l.b16 %v707
      %v804 = vunpack.c.l.b16 %v708
      %v805 = vunpack.c.l.b16 %v709
      %v806 = vunpack.c.l.b16 %v710
      %v807 = vunpack.c.l.b16 %v711
      %v808 = vunpack.c.l.b16 %v712
      %v809 = vunpack.c.l.b16 %v713
      %v810 = vunpack.c.l.b16 %v714
      %v811 = vunpack.c.l.b16 %v715
      %v812 = vunpack.c.l.b16 %v716
      %v813 = vunpack.c.l.b16 %v717
      %v814 = vunpack.c.l.b16 %v718
      %v815 = vunpack.c.l.b16 %v719
      %v816 = vunpack.c.l.b16 %v720
      %v817 = vunpack.c.l.b16 %v721
      %v818 = vunpack.c.l.b16 %v722
      %v819 = vunpack.c.l.b16 %v723
      %v820 = vunpack.c.l.b16 %v724
      %v821 = vunpack.c.l.b16 %v725
      %v822 = vunpack.c.l.b16 %v726
      %v823 = vunpack.c.l.b16 %v727
      %v824 = vunpack.c.l.b16 %v728
      %v825 = vunpack.c.l.b16 %v729
      %v826 = vunpack.c.l.b16 %v730
      %v827 = vunpack.c.l.b16 %v731
      %v828 = vunpack.c.l.b16 %v732
      %v829 = vunpack.c.l.b16 %v733
      %v830 = vunpack.c.l.b16 %v734
      %v831 = vunpack.c.l.b16 %v735
      %v832 = vunpack.c.l.b16 %v736
      %v833 = vunpack.c.l.b16 %v737
      %v834 = vunpack.c.l.b16 %v738
      %v835 = vunpack.c.l.b16 %v739
      %v836 = vunpack.c.l.b16 %v740
      %v837 = vunpack.c.l.b16 %v741
      %v838 = vunpack.c.l.b16 %v742
      %v839 = vunpack.c.l.b16 %v743
      %v840 = vunpack.c.l.b16 %v744
      %v841 = vunpack.c.l.b16 %v745
      %v842 = vunpack.c.l.b16 %v746
      %v843 = vunpack.c.l.b16 %v747
      %v844 = vunpack.c.l.b16 %v748
      %v845 = vpack.c.b16 %v798, %v797
      %v846 = vpack.c.b16 %v800, %v799
      %v847 = vpack.c.b16 %v802, %v801
      %v848 = vpack.c.b16 %v804, %v803
      %v849 = vpack.c.b16 %v806, %v805
      %v850 = vpack.c.b16 %v808, %v807
      %v851 = vpack.c.b16 %v810, %v809
      %v852 = vpack.c.b16 %v812, %v811
      %v853 = vpack.c.b16 %v814, %v813
      %v854 = vpack.c.b16 %v816, %v815
      %v855 = vpack.c.b16 %v818, %v817
      %v856 = vpack.c.b16 %v820, %v819
      %v857 = vpack.c.b16 %v822, %v821
      %v858 = vpack.c.b16 %v824, %v823
      %v859 = vpack.c.b16 %v826, %v825
      %v860 = vpack.c.b16 %v828, %v827
      %v861 = vpack.c.b16 %v830, %v829
      %v862 = vpack.c.b16 %v832, %v831
      %v863 = vpack.c.b16 %v834, %v833
      %v864 = vpack.c.b16 %v836, %v835
      %v865 = vpack.c.b16 %v838, %v837
      %v866 = vpack.c.b16 %v840, %v839
      %v867 = vpack.c.b16 %v842, %v841
      %v868 = vpack.c.b16 %v844, %v843
      %893 = vmatprep.subr.bf16.mxu0 0
      %894 = vmatpush1.bf16.msra.mxu0 %v845
      %895 = vmatprep.subr.bf16.mxu0 0
      %896 = vmatpush1.bf16.msra.mxu0 %v846
      %897 = vmatprep.subr.bf16.mxu0 0
      %898 = vmatpush1.bf16.msra.mxu0 %v847
      %899 = vmatprep.subr.bf16.mxu0 0
      %900 = vmatpush1.bf16.msra.mxu0 %v848
      %901 = vmatprep.subr.bf16.mxu0 0
      %902 = vmatpush1.bf16.msra.mxu0 %v849
      %903 = vmatprep.subr.bf16.mxu0 0
      %904 = vmatpush1.bf16.msra.mxu0 %v850
      %905 = vmatprep.subr.bf16.mxu0 0
      %906 = vmatpush1.bf16.msra.mxu0 %v851
      %907 = vmatprep.subr.bf16.mxu0 0
      %908 = vmatpush1.bf16.msra.mxu0 %v852
      %909 = vmatprep.subr.bf16.mxu0 0
      %910 = vmatpush1.bf16.msra.mxu0 %v853
      %911 = vmatprep.subr.bf16.mxu0 0
      %912 = vmatpush1.bf16.msra.mxu0 %v854
      %913 = vmatprep.subr.bf16.mxu0 0
      %914 = vmatpush1.bf16.msra.mxu0 %v855
      %915 = vmatprep.subr.bf16.mxu0 0
      %916 = vmatpush1.bf16.msra.mxu0 %v856
      %917 = vmatprep.subr.bf16.mxu0 0
      %918 = vmatpush1.bf16.msra.mxu0 %v857
      %919 = vmatprep.subr.bf16.mxu0 0
      %920 = vmatpush1.bf16.msra.mxu0 %v858
      %921 = vmatprep.subr.bf16.mxu0 0
      %922 = vmatpush1.bf16.msra.mxu0 %v859
      %923 = vmatprep.subr.bf16.mxu0 0
      %924 = vmatpush1.bf16.msra.mxu0 %v860
      %925 = vmatprep.mubr.bf16.mxu0 %v524
      %926 = vmatmul.mubr.bf16.gmra.mrb[0].mxu0 %v355
      %v927 = vpop.f32.mrb[0].mxu0
      %v928 = vadd.f32 0.0, %v927
      %v929 = vpop.f32.mrb[0].mxu0
      %v930 = vpop.f32.mrb[0].mxu0
      %v931 = vadd.f32 0.0, %v930
      %v932 = vpop.f32.mrb[0].mxu0
      %933 = vmatprep.mubr.bf16.mxu0 %v525
      %934 = vmatmul.mubr.bf16.gmra.mrb[0].mxu0 %v356
      %v935 = vpop.f32.mrb[0].mxu0
      %v936 = vadd.f32 0.0, %v935
      %v937 = vpop.f32.mrb[0].mxu0
      %v938 = vpop.f32.mrb[0].mxu0
      %v939 = vadd.f32 0.0, %v938
      %v940 = vpop.f32.mrb[0].mxu0
      %941 = vmatprep.mubr.bf16.mxu0 %v526
      %942 = vmatmul.mubr.bf16.gmra.mrb[0].mxu0 %v357
      %v943 = vpop.f32.mrb[0].mxu0
      %v944 = vadd.f32 0.0, %v943
      %v945 = vpop.f32.mrb[0].mxu0
      %v946 = vpop.f32.mrb[0].mxu0
      %v947 = vadd.f32 0.0, %v946
      %v948 = vpop.f32.mrb[0].mxu0
      %949 = vmatprep.mubr.bf16.mxu0 %v527
      %950 = vmatmul.mubr.bf16.gmra.mrb[0].mxu0 %v358
      %v951 = vpop.f32.mrb[0].mxu0
      %v952 = vadd.f32 0.0, %v951
      %v953 = vpop.f32.mrb[0].mxu0
      %v954 = vpop.f32.mrb[0].mxu0
      %v955 = vadd.f32 0.0, %v954
      %v956 = vpop.f32.mrb[0].mxu0
      %957 = vmatprep.mubr.bf16.mxu0 %v528
      %958 = vmatmul.mubr.bf16.gmra.mrb[0].mxu0 %v359
      %v959 = vpop.f32.mrb[0].mxu0
      %v960 = vadd.f32 0.0, %v959
      %v961 = vpop.f32.mrb[0].mxu0
      %v962 = vpop.f32.mrb[0].mxu0
      %v963 = vadd.f32 0.0, %v962
      %v964 = vpop.f32.mrb[0].mxu0
      %965 = vmatprep.mubr.bf16.mxu0 %v529
      %966 = vmatmul.mubr.bf16.gmra.mrb[0].mxu0 %v360
      %v967 = vpop.f32.mrb[0].mxu0
      %v968 = vadd.f32 0.0, %v967
      %v969 = vpop.f32.mrb[0].mxu0
      %v970 = vpop.f32.mrb[0].mxu0
      %v971 = vadd.f32 0.0, %v970
      %v972 = vpop.f32.mrb[0].mxu0
      %973 = vmatprep.mubr.bf16.mxu0 %v530
      %974 = vmatmul.mubr.bf16.gmra.mrb[0].mxu0 %v361
      %v975 = vpop.f32.mrb[0].mxu0
      %v976 = vadd.f32 0.0, %v975
      %v977 = vpop.f32.mrb[0].mxu0
      %v978 = vpop.f32.mrb[0].mxu0
      %v979 = vadd.f32 0.0, %v978
      %v980 = vpop.f32.mrb[0].mxu0
      %981 = vmatprep.mubr.bf16.mxu0 %v531
      %982 = vmatmul.mubr.bf16.gmra.mrb[0].mxu0 %v362
      %v983 = vpop.f32.mrb[0].mxu0
      %v984 = vadd.f32 0.0, %v983
      %v985 = vpop.f32.mrb[0].mxu0
      %v986 = vpop.f32.mrb[0].mxu0
      %v987 = vadd.f32 0.0, %v986
      %v988 = vpop.f32.mrb[0].mxu0
      %989 = vdwg.mxu0
      %990 = vmatprep.subr.bf16.mxu0 0
      %991 = vmatpush1.bf16.msra.mxu0 %v861
      %992 = vmatprep.subr.bf16.mxu0 0
      %993 = vmatpush1.bf16.msra.mxu0 %v862
      %994 = vmatprep.subr.bf16.mxu0 0
      %995 = vmatpush1.bf16.msra.mxu0 %v863
      %996 = vmatprep.subr.bf16.mxu0 0
      %997 = vmatpush1.bf16.msra.mxu0 %v864
      %998 = vmatprep.subr.bf16.mxu0 0
      %999 = vmatpush1.bf16.msra.mxu0 %v865
      %1000 = vmatprep.subr.bf16.mxu0 0
      %1001 = vmatpush1.bf16.msra.mxu0 %v866
      %1002 = vmatprep.subr.bf16.mxu0 0
      %1003 = vmatpush1.bf16.msra.mxu0 %v867
      %1004 = vmatprep.subr.bf16.mxu0 0
      %1005 = vmatpush1.bf16.msra.mxu0 %v868
      %1006 = vmatprep.subr.bf16.mxu0 0
      %1007 = vmatpush1.bf16.msra.mxu0 0
      %1008 = vmatprep.subr.bf16.mxu0 0
      %1009 = vmatpush1.bf16.msra.mxu0 0
      %1010 = vmatprep.subr.bf16.mxu0 0
      %1011 = vmatpush1.bf16.msra.mxu0 0
      %1012 = vmatprep.subr.bf16.mxu0 0
      %1013 = vmatpush1.bf16.msra.mxu0 0
      %1014 = vmatprep.subr.bf16.mxu0 0
      %1015 = vmatpush1.bf16.msra.mxu0 0
      %1016 = vmatprep.subr.bf16.mxu0 0
      %1017 = vmatpush1.bf16.msra.mxu0 0
      %1018 = vmatprep.subr.bf16.mxu0 0
      %1019 = vmatpush1.bf16.msra.mxu0 0
      %1020 = vmatprep.subr.bf16.mxu0 0
      %1021 = vmatpush1.bf16.msra.mxu0 0
      %1022 = vmatprep.mubr.bf16.mxu0 0
      %1023 = vmatmul.mubr.bf16.gmra.mrb[0].mxu0 %v693
      %v1024 = vpop.f32.mrb[0].mxu0
      %v1025 = vadd.f32 %v928, %v1024
      %v1026 = vpop.f32.mrb[0].mxu0
      %v1027 = vpop.f32.mrb[0].mxu0
      %v1028 = vadd.f32 %v931, %v1027
      %v1029 = vpop.f32.mrb[0].mxu0
      %1030 = vmatprep.mubr.bf16.mxu0 0
      %1031 = vmatmul.mubr.bf16.gmra.mrb[0].mxu0 %v694
      %v1032 = vpop.f32.mrb[0].mxu0
      %v1033 = vadd.f32 %v936, %v1032
      %v1034 = vpop.f32.mrb[0].mxu0
      %v1035 = vpop.f32.mrb[0].mxu0
      %v1036 = vadd.f32 %v939, %v1035
      %v1037 = vpop.f32.mrb[0].mxu0
      %1038 = vmatprep.mubr.bf16.mxu0 0
      %1039 = vmatmul.mubr.bf16.gmra.mrb[0].mxu0 %v695
      %v1040 = vpop.f32.mrb[0].mxu0
      %v1041 = vadd.f32 %v944, %v1040
      %v1042 = vpop.f32.mrb[0].mxu0
      %v1043 = vpop.f32.mrb[0].mxu0
      %v1044 = vadd.f32 %v947, %v1043
      %v1045 = vpop.f32.mrb[0].mxu0
      %1046 = vmatprep.mubr.bf16.mxu0 0
      %1047 = vmatmul.mubr.bf16.gmra.mrb[0].mxu0 %v696
      %v1048 = vpop.f32.mrb[0].mxu0
      %v1049 = vadd.f32 %v952, %v1048
      %v1050 = vpop.f32.mrb[0].mxu0
      %v1051 = vpop.f32.mrb[0].mxu0
      %v1052 = vadd.f32 %v955, %v1051
      %v1053 = vpop.f32.mrb[0].mxu0
      %1054 = vmatprep.mubr.bf16.mxu0 0
      %1055 = vmatmul.mubr.bf16.gmra.mrb[0].mxu0 %v697
      %v1056 = vpop.f32.mrb[0].mxu0
      %v1057 = vadd.f32 %v960, %v1056
      %v1058 = vpop.f32.mrb[0].mxu0
      %v1059 = vpop.f32.mrb[0].mxu0
      %v1060 = vadd.f32 %v963, %v1059
      %v1061 = vpop.f32.mrb[0].mxu0
      %1062 = vmatprep.mubr.bf16.mxu0 0
      %1063 = vmatmul.mubr.bf16.gmra.mrb[0].mxu0 %v698
      %v1064 = vpop.f32.mrb[0].mxu0
      %v1065 = vadd.f32 %v968, %v1064
      %v1066 = vpop.f32.mrb[0].mxu0
      %v1067 = vpop.f32.mrb[0].mxu0
      %v1068 = vadd.f32 %v971, %v1067
      %v1069 = vpop.f32.mrb[0].mxu0
      %1070 = vmatprep.mubr.bf16.mxu0 0
      %1071 = vmatmul.mubr.bf16.gmra.mrb[0].mxu0 %v699
      %v1072 = vpop.f32.mrb[0].mxu0
      %v1073 = vadd.f32 %v976, %v1072
      %v1074 = vpop.f32.mrb[0].mxu0
      %v1075 = vpop.f32.mrb[0].mxu0
      %v1076 = vadd.f32 %v979, %v1075
      %v1077 = vpop.f32.mrb[0].mxu0
      %1078 = vmatprep.mubr.bf16.mxu0 0
      %1079 = vmatmul.mubr.bf16.gmra.mrb[0].mxu0 %v700
      %v1080 = vpop.f32.mrb[0].mxu0
      %v1081 = vadd.f32 %v984, %v1080
      %v1082 = vpop.f32.mrb[0].mxu0
      %v1083 = vpop.f32.mrb[0].mxu0
      %v1084 = vadd.f32 %v987, %v1083
      %v1085 = vpop.f32.mrb[0].mxu0
      %1086 = vdwg.mxu0
      %v1087 = vld [vmem:[%s1 + $0x180] sm:$0xf]
      %v1088 = vld [vmem:[%s1 + $0x184] sm:$0xf]
      %v1089 = vld [vmem:[%s1 + $0x188] sm:$0xf]
      %v1090 = vld [vmem:[%s1 + $0x18c] sm:$0xf]
      %v1091 = vld [vmem:[%s1 + $0x190] sm:$0xf]
      %v1092 = vld [vmem:[%s1 + $0x194] sm:$0xf]
      %v1093 = vld [vmem:[%s1 + $0x198] sm:$0xf]
      %v1094 = vld [vmem:[%s1 + $0x19c] sm:$0xf]
      %v1095 = vld [vmem:[%s1 + $0x1a0] sm:$0xf]
      %v1096 = vld [vmem:[%s1 + $0x1a4] sm:$0xf]
      %v1097 = vld [vmem:[%s1 + $0x1a8] sm:$0xf]
      %v1098 = vld [vmem:[%s1 + $0x1ac] sm:$0xf]
      %v1099 = vld [vmem:[%s1 + $0x1b0] sm:$0xf]
      %v1100 = vld [vmem:[%s1 + $0x1b4] sm:$0xf]
      %v1101 = vld [vmem:[%s1 + $0x1b8] sm:$0xf]
      %v1102 = vld [vmem:[%s1 + $0x1bc] sm:$0xf]
      %v1103 = vld [vmem:[%s1 + $0x1c0] sm:$0xf]
      %v1104 = vld [vmem:[%s1 + $0x1c4] sm:$0xf]
      %v1105 = vld [vmem:[%s1 + $0x1c8] sm:$0xf]
      %v1106 = vld [vmem:[%s1 + $0x1cc] sm:$0xf]
      %v1107 = vld [vmem:[%s1 + $0x1d0] sm:$0xf]
      %v1108 = vld [vmem:[%s1 + $0x1d4] sm:$0xf]
      %v1109 = vld [vmem:[%s1 + $0x1d8] sm:$0xf]
      %v1110 = vld [vmem:[%s1 + $0x1dc] sm:$0xf]
      %v1111 = vld [vmem:[%s1 + $0x1e0] sm:$0xf]
      %v1112 = vld [vmem:[%s1 + $0x1e4] sm:$0xf]
      %v1113 = vld [vmem:[%s1 + $0x1e8] sm:$0xf]
      %v1114 = vld [vmem:[%s1 + $0x1ec] sm:$0xf]
      %v1115 = vld [vmem:[%s1 + $0x1f0] sm:$0xf]
      %v1116 = vld [vmem:[%s1 + $0x1f4] sm:$0xf]
      %v1117 = vld [vmem:[%s1 + $0x1f8] sm:$0xf]
      %v1118 = vld [vmem:[%s1 + $0x1fc] sm:$0xf]
      %v1119 = vld [vmem:[%s1 + $0x200] sm:$0xf]
      %v1120 = vld [vmem:[%s1 + $0x204] sm:$0xf]
      %v1121 = vld [vmem:[%s1 + $0x208] sm:$0xf]
      %v1122 = vld [vmem:[%s1 + $0x20c] sm:$0xf]
      %v1123 = vld [vmem:[%s1 + $0x210] sm:$0xf]
      %v1124 = vld [vmem:[%s1 + $0x214] sm:$0xf]
      %v1125 = vld [vmem:[%s1 + $0x218] sm:$0xf]
      %v1126 = vld [vmem:[%s1 + $0x21c] sm:$0xf]
      %v1127 = vld [vmem:[%s1 + $0x220] sm:$0xf]
      %v1128 = vld [vmem:[%s1 + $0x224] sm:$0xf]
      %v1129 = vld [vmem:[%s1 + $0x228] sm:$0xf]
      %v1130 = vld [vmem:[%s1 + $0x22c] sm:$0xf]
      %v1131 = vld [vmem:[%s1 + $0x230] sm:$0xf]
      %v1132 = vld [vmem:[%s1 + $0x234] sm:$0xf]
      %v1133 = vld [vmem:[%s1 + $0x238] sm:$0xf]
      %v1134 = vld [vmem:[%s1 + $0x23c] sm:$0xf]
      %v1183 = vunpack.c.l.b16 %v1087
      %v1184 = vunpack.c.l.b16 %v1088
      %v1185 = vunpack.c.l.b16 %v1089
      %v1186 = vunpack.c.l.b16 %v1090
      %v1187 = vunpack.c.l.b16 %v1091
      %v1188 = vunpack.c.l.b16 %v1092
      %v1189 = vunpack.c.l.b16 %v1093
      %v1190 = vunpack.c.l.b16 %v1094
      %v1191 = vunpack.c.l.b16 %v1095
      %v1192 = vunpack.c.l.b16 %v1096
      %v1193 = vunpack.c.l.b16 %v1097
      %v1194 = vunpack.c.l.b16 %v1098
      %v1195 = vunpack.c.l.b16 %v1099
      %v1196 = vunpack.c.l.b16 %v1100
      %v1197 = vunpack.c.l.b16 %v1101
      %v1198 = vunpack.c.l.b16 %v1102
      %v1199 = vunpack.c.l.b16 %v1103
      %v1200 = vunpack.c.l.b16 %v1104
      %v1201 = vunpack.c.l.b16 %v1105
      %v1202 = vunpack.c.l.b16 %v1106
      %v1203 = vunpack.c.l.b16 %v1107
      %v1204 = vunpack.c.l.b16 %v1108
      %v1205 = vunpack.c.l.b16 %v1109
      %v1206 = vunpack.c.l.b16 %v1110
      %v1207 = vunpack.c.l.b16 %v1111
      %v1208 = vunpack.c.l.b16 %v1112
      %v1209 = vunpack.c.l.b16 %v1113
      %v1210 = vunpack.c.l.b16 %v1114
      %v1211 = vunpack.c.l.b16 %v1115
      %v1212 = vunpack.c.l.b16 %v1116
      %v1213 = vunpack.c.l.b16 %v1117
      %v1214 = vunpack.c.l.b16 %v1118
      %v1215 = vunpack.c.l.b16 %v1119
      %v1216 = vunpack.c.l.b16 %v1120
      %v1217 = vunpack.c.l.b16 %v1121
      %v1218 = vunpack.c.l.b16 %v1122
      %v1219 = vunpack.c.l.b16 %v1123
      %v1220 = vunpack.c.l.b16 %v1124
      %v1221 = vunpack.c.l.b16 %v1125
      %v1222 = vunpack.c.l.b16 %v1126
      %v1223 = vunpack.c.l.b16 %v1127
      %v1224 = vunpack.c.l.b16 %v1128
      %v1225 = vunpack.c.l.b16 %v1129
      %v1226 = vunpack.c.l.b16 %v1130
      %v1227 = vunpack.c.l.b16 %v1131
      %v1228 = vunpack.c.l.b16 %v1132
      %v1229 = vunpack.c.l.b16 %v1133
      %v1230 = vunpack.c.l.b16 %v1134
      %v1231 = vpack.c.b16 %v1184, %v1183
      %v1232 = vpack.c.b16 %v1186, %v1185
      %v1233 = vpack.c.b16 %v1188, %v1187
      %v1234 = vpack.c.b16 %v1190, %v1189
      %v1235 = vpack.c.b16 %v1192, %v1191
      %v1236 = vpack.c.b16 %v1194, %v1193
      %v1237 = vpack.c.b16 %v1196, %v1195
      %v1238 = vpack.c.b16 %v1198, %v1197
      %v1239 = vpack.c.b16 %v1200, %v1199
      %v1240 = vpack.c.b16 %v1202, %v1201
      %v1241 = vpack.c.b16 %v1204, %v1203
      %v1242 = vpack.c.b16 %v1206, %v1205
      %v1243 = vpack.c.b16 %v1208, %v1207
      %v1244 = vpack.c.b16 %v1210, %v1209
      %v1245 = vpack.c.b16 %v1212, %v1211
      %v1246 = vpack.c.b16 %v1214, %v1213
      %v1247 = vpack.c.b16 %v1216, %v1215
      %v1248 = vpack.c.b16 %v1218, %v1217
      %v1249 = vpack.c.b16 %v1220, %v1219
      %v1250 = vpack.c.b16 %v1222, %v1221
      %v1251 = vpack.c.b16 %v1224, %v1223
      %v1252 = vpack.c.b16 %v1226, %v1225
      %v1253 = vpack.c.b16 %v1228, %v1227
      %v1254 = vpack.c.b16 %v1230, %v1229
      %1279 = vmatprep.subr.bf16.mxu0 0
      %1280 = vmatpush1.bf16.msra.mxu0 %v1231
      %1281 = vmatprep.subr.bf16.mxu0 0
      %1282 = vmatpush1.bf16.msra.mxu0 %v1232
      %1283 = vmatprep.subr.bf16.mxu0 0
      %1284 = vmatpush1.bf16.msra.mxu0 %v1233
      %1285 = vmatprep.subr.bf16.mxu0 0
      %1286 = vmatpush1.bf16.msra.mxu0 %v1234
      %1287 = vmatprep.subr.bf16.mxu0 0
      %1288 = vmatpush1.bf16.msra.mxu0 %v1235
      %1289 = vmatprep.subr.bf16.mxu0 0
      %1290 = vmatpush1.bf16.msra.mxu0 %v1236
      %1291 = vmatprep.subr.bf16.mxu0 0
      %1292 = vmatpush1.bf16.msra.mxu0 %v1237
      %1293 = vmatprep.subr.bf16.mxu0 0
      %1294 = vmatpush1.bf16.msra.mxu0 %v1238
      %1295 = vmatprep.subr.bf16.mxu0 0
      %1296 = vmatpush1.bf16.msra.mxu0 %v1239
      %1297 = vmatprep.subr.bf16.mxu0 0
      %1298 = vmatpush1.bf16.msra.mxu0 %v1240
      %1299 = vmatprep.subr.bf16.mxu0 0
      %1300 = vmatpush1.bf16.msra.mxu0 %v1241
      %1301 = vmatprep.subr.bf16.mxu0 0
      %1302 = vmatpush1.bf16.msra.mxu0 %v1242
      %1303 = vmatprep.subr.bf16.mxu0 0
      %1304 = vmatpush1.bf16.msra.mxu0 %v1243
      %1305 = vmatprep.subr.bf16.mxu0 0
      %1306 = vmatpush1.bf16.msra.mxu0 %v1244
      %1307 = vmatprep.subr.bf16.mxu0 0
      %1308 = vmatpush1.bf16.msra.mxu0 %v1245
      %1309 = vmatprep.subr.bf16.mxu0 0
      %1310 = vmatpush1.bf16.msra.mxu0 %v1246
      %1311 = vmatprep.mubr.bf16.mxu0 %v524
      %1312 = vmatmul.mubr.bf16.gmra.mrb[0].mxu0 %v355
      %v1313 = vpop.f32.mrb[0].mxu0
      %v1314 = vadd.f32 0.0, %v1313
      %v1315 = vpop.f32.mrb[0].mxu0
      %v1316 = vpop.f32.mrb[0].mxu0
      %v1317 = vadd.f32 0.0, %v1316
      %v1318 = vpop.f32.mrb[0].mxu0
      %1319 = vmatprep.mubr.bf16.mxu0 %v525
      %1320 = vmatmul.mubr.bf16.gmra.mrb[0].mxu0 %v356
      %v1321 = vpop.f32.mrb[0].mxu0
      %v1322 = vadd.f32 0.0, %v1321
      %v1323 = vpop.f32.mrb[0].mxu0
      %v1324 = vpop.f32.mrb[0].mxu0
      %v1325 = vadd.f32 0.0, %v1324
      %v1326 = vpop.f32.mrb[0].mxu0
      %1327 = vmatprep.mubr.bf16.mxu0 %v526
      %1328 = vmatmul.mubr.bf16.gmra.mrb[0].mxu0 %v357
      %v1329 = vpop.f32.mrb[0].mxu0
      %v1330 = vadd.f32 0.0, %v1329
      %v1331 = vpop.f32.mrb[0].mxu0
      %v1332 = vpop.f32.mrb[0].mxu0
      %v1333 = vadd.f32 0.0, %v1332
      %v1334 = vpop.f32.mrb[0].mxu0
      %1335 = vmatprep.mubr.bf16.mxu0 %v527
      %1336 = vmatmul.mubr.bf16.gmra.mrb[0].mxu0 %v358
      %v1337 = vpop.f32.mrb[0].mxu0
      %v1338 = vadd.f32 0.0, %v1337
      %v1339 = vpop.f32.mrb[0].mxu0
      %v1340 = vpop.f32.mrb[0].mxu0
      %v1341 = vadd.f32 0.0, %v1340
      %v1342 = vpop.f32.mrb[0].mxu0
      %1343 = vmatprep.mubr.bf16.mxu0 %v528
      %1344 = vmatmul.mubr.bf16.gmra.mrb[0].mxu0 %v359
      %v1345 = vpop.f32.mrb[0].mxu0
      %v1346 = vadd.f32 0.0, %v1345
      %v1347 = vpop.f32.mrb[0].mxu0
      %v1348 = vpop.f32.mrb[0].mxu0
      %v1349 = vadd.f32 0.0, %v1348
      %v1350 = vpop.f32.mrb[0].mxu0
      %1351 = vmatprep.mubr.bf16.mxu0 %v529
      %1352 = vmatmul.mubr.bf16.gmra.mrb[0].mxu0 %v360
      %v1353 = vpop.f32.mrb[0].mxu0
      %v1354 = vadd.f32 0.0, %v1353
      %v1355 = vpop.f32.mrb[0].mxu0
      %v1356 = vpop.f32.mrb[0].mxu0
      %v1357 = vadd.f32 0.0, %v1356
      %v1358 = vpop.f32.mrb[0].mxu0
      %1359 = vmatprep.mubr.bf16.mxu0 %v530
      %1360 = vmatmul.mubr.bf16.gmra.mrb[0].mxu0 %v361
      %v1361 = vpop.f32.mrb[0].mxu0
      %v1362 = vadd.f32 0.0, %v1361
      %v1363 = vpop.f32.mrb[0].mxu0
      %v1364 = vpop.f32.mrb[0].mxu0
      %v1365 = vadd.f32 0.0, %v1364
      %v1366 = vpop.f32.mrb[0].mxu0
      %1367 = vmatprep.mubr.bf16.mxu0 %v531
      %1368 = vmatmul.mubr.bf16.gmra.mrb[0].mxu0 %v362
      %v1369 = vpop.f32.mrb[0].mxu0
      %v1370 = vadd.f32 0.0, %v1369
      %v1371 = vpop.f32.mrb[0].mxu0
      %v1372 = vpop.f32.mrb[0].mxu0
      %v1373 = vadd.f32 0.0, %v1372
      %v1374 = vpop.f32.mrb[0].mxu0
      %1375 = vdwg.mxu0
      %1376 = vmatprep.subr.bf16.mxu0 0
      %1377 = vmatpush1.bf16.msra.mxu0 %v1247
      %1378 = vmatprep.subr.bf16.mxu0 0
      %1379 = vmatpush1.bf16.msra.mxu0 %v1248
      %1380 = vmatprep.subr.bf16.mxu0 0
      %1381 = vmatpush1.bf16.msra.mxu0 %v1249
      %1382 = vmatprep.subr.bf16.mxu0 0
      %1383 = vmatpush1.bf16.msra.mxu0 %v1250
      %1384 = vmatprep.subr.bf16.mxu0 0
      %1385 = vmatpush1.bf16.msra.mxu0 %v1251
      %1386 = vmatprep.subr.bf16.mxu0 0
      %1387 = vmatpush1.bf16.msra.mxu0 %v1252
      %1388 = vmatprep.subr.bf16.mxu0 0
      %1389 = vmatpush1.bf16.msra.mxu0 %v1253
      %1390 = vmatprep.subr.bf16.mxu0 0
      %1391 = vmatpush1.bf16.msra.mxu0 %v1254
      %1392 = vmatprep.subr.bf16.mxu0 0
      %1393 = vmatpush1.bf16.msra.mxu0 0
      %1394 = vmatprep.subr.bf16.mxu0 0
      %1395 = vmatpush1.bf16.msra.mxu0 0
      %1396 = vmatprep.subr.bf16.mxu0 0
      %1397 = vmatpush1.bf16.msra.mxu0 0
      %1398 = vmatprep.subr.bf16.mxu0 0
      %1399 = vmatpush1.bf16.msra.mxu0 0
      %1400 = vmatprep.subr.bf16.mxu0 0
      %1401 = vmatpush1.bf16.msra.mxu0 0
      %1402 = vmatprep.subr.bf16.mxu0 0
      %1403 = vmatpush1.bf16.msra.mxu0 0
      %1404 = vmatprep.subr.bf16.mxu0 0
      %1405 = vmatpush1.bf16.msra.mxu0 0
      %1406 = vmatprep.subr.bf16.mxu0 0
      %1407 = vmatpush1.bf16.msra.mxu0 0
      %1408 = vmatprep.mubr.bf16.mxu0 0
      %1409 = vmatmul.mubr.bf16.gmra.mrb[0].mxu0 %v693
      %v1410 = vpop.f32.mrb[0].mxu0
      %v1411 = vadd.f32 %v1314, %v1410
      %v1412 = vpop.f32.mrb[0].mxu0
      %v1413 = vpop.f32.mrb[0].mxu0
      %v1414 = vadd.f32 %v1317, %v1413
      %v1415 = vpop.f32.mrb[0].mxu0
      %1416 = vmatprep.mubr.bf16.mxu0 0
      %1417 = vmatmul.mubr.bf16.gmra.mrb[0].mxu0 %v694
      %v1418 = vpop.f32.mrb[0].mxu0
      %v1419 = vadd.f32 %v1322, %v1418
      %v1420 = vpop.f32.mrb[0].mxu0
      %v1421 = vpop.f32.mrb[0].mxu0
      %v1422 = vadd.f32 %v1325, %v1421
      %v1423 = vpop.f32.mrb[0].mxu0
      %1424 = vmatprep.mubr.bf16.mxu0 0
      %1425 = vmatmul.mubr.bf16.gmra.mrb[0].mxu0 %v695
      %v1426 = vpop.f32.mrb[0].mxu0
      %v1427 = vadd.f32 %v1330, %v1426
      %v1428 = vpop.f32.mrb[0].mxu0
      %v1429 = vpop.f32.mrb[0].mxu0
      %v1430 = vadd.f32 %v1333, %v1429
      %v1431 = vpop.f32.mrb[0].mxu0
      %1432 = vmatprep.mubr.bf16.mxu0 0
      %1433 = vmatmul.mubr.bf16.gmra.mrb[0].mxu0 %v696
      %v1434 = vpop.f32.mrb[0].mxu0
      %v1435 = vadd.f32 %v1338, %v1434
      %v1436 = vpop.f32.mrb[0].mxu0
      %v1437 = vpop.f32.mrb[0].mxu0
      %v1438 = vadd.f32 %v1341, %v1437
      %v1439 = vpop.f32.mrb[0].mxu0
      %1440 = vmatprep.mubr.bf16.mxu0 0
      %1441 = vmatmul.mubr.bf16.gmra.mrb[0].mxu0 %v697
      %v1442 = vpop.f32.mrb[0].mxu0
      %v1443 = vadd.f32 %v1346, %v1442
      %v1444 = vpop.f32.mrb[0].mxu0
      %v1445 = vpop.f32.mrb[0].mxu0
      %v1446 = vadd.f32 %v1349, %v1445
      %v1447 = vpop.f32.mrb[0].mxu0
      %1448 = vmatprep.mubr.bf16.mxu0 0
      %1449 = vmatmul.mubr.bf16.gmra.mrb[0].mxu0 %v698
      %v1450 = vpop.f32.mrb[0].mxu0
      %v1451 = vadd.f32 %v1354, %v1450
      %v1452 = vpop.f32.mrb[0].mxu0
      %v1453 = vpop.f32.mrb[0].mxu0
      %v1454 = vadd.f32 %v1357, %v1453
      %v1455 = vpop.f32.mrb[0].mxu0
      %1456 = vmatprep.mubr.bf16.mxu0 0
      %1457 = vmatmul.mubr.bf16.gmra.mrb[0].mxu0 %v699
      %v1458 = vpop.f32.mrb[0].mxu0
      %v1459 = vadd.f32 %v1362, %v1458
      %v1460 = vpop.f32.mrb[0].mxu0
      %v1461 = vpop.f32.mrb[0].mxu0
      %v1462 = vadd.f32 %v1365, %v1461
      %v1463 = vpop.f32.mrb[0].mxu0
      %1464 = vmatprep.mubr.bf16.mxu0 0
      %1465 = vmatmul.mubr.bf16.gmra.mrb[0].mxu0 %v700
      %v1466 = vpop.f32.mrb[0].mxu0
      %v1467 = vadd.f32 %v1370, %v1466
      %v1468 = vpop.f32.mrb[0].mxu0
      %v1469 = vpop.f32.mrb[0].mxu0
      %v1470 = vadd.f32 %v1373, %v1469
      %v1471 = vpop.f32.mrb[0].mxu0
      %1472 = vdwg.mxu0
      %v1473 = vmax.f32 %v1025, %v1411
      %v1474 = vmax.f32 %v1028, %v1414
      %v1475 = vmax.f32 %v1033, %v1419
      %v1476 = vmax.f32 %v1036, %v1422
      %v1477 = vmax.f32 %v1041, %v1427
      %v1478 = vmax.f32 %v1044, %v1430
      %v1479 = vmax.f32 %v1049, %v1435
      %v1480 = vmax.f32 %v1052, %v1438
      %v1481 = vmax.f32 %v1057, %v1443
      %v1482 = vmax.f32 %v1060, %v1446
      %v1483 = vmax.f32 %v1065, %v1451
      %v1484 = vmax.f32 %v1068, %v1454
      %v1485 = vmax.f32 %v1073, %v1459
      %v1486 = vmax.f32 %v1076, %v1462
      %v1487 = vmax.f32 %v1081, %v1467
      %v1488 = vmax.f32 %v1084, %v1470
      %v1489 = vmax.f32 %v1473, %v1481
      %v1490 = vmax.f32 %v1474, %v1482
      %v1491 = vmax.f32 %v1475, %v1483
      %v1492 = vmax.f32 %v1476, %v1484
      %v1493 = vmax.f32 %v1477, %v1485
      %v1494 = vmax.f32 %v1478, %v1486
      %v1495 = vmax.f32 %v1479, %v1487
      %v1496 = vmax.f32 %v1480, %v1488
      %v1497 = vld [vmem:[%s2] sm:$0x1]
      %v1498 = vlaneseq
      %v1499 = vshrl.u32 %v1498, 7
      %v1500 = vsub.s32 0, %v1499
      %v1501 = vrot.slane %v1497, %v1500
      %v1502 = vadd.f32 %v1489, %v1501
      %v1503 = vadd.f32 %v1490, %v1501
      %v1504 = vadd.f32 %v1491, %v1501
      %v1505 = vadd.f32 %v1492, %v1501
      %v1506 = vadd.f32 %v1493, %v1501
      %v1507 = vadd.f32 %v1494, %v1501
      %v1508 = vadd.f32 %v1495, %v1501
      %v1509 = vadd.f32 %v1496, %v1501
      %v1510 = vmul.f32 %v1502, 0.5
      %v1511 = vmul.f32 %v1503, 0.5
      %v1512 = vmul.f32 %v1504, 0.5
      %v1513 = vmul.f32 %v1505, 0.5
      %v1514 = vmul.f32 %v1506, 0.5
      %v1515 = vmul.f32 %v1507, 0.5
      %v1516 = vmul.f32 %v1508, 0.5
      %v1517 = vmul.f32 %v1509, 0.5
      %v1518 = vmul.f32 %v1502, 0.044715
      %v1519 = vmul.f32 %v1503, 0.044715
      %v1520 = vmul.f32 %v1504, 0.044715
      %v1521 = vmul.f32 %v1505, 0.044715
      %v1522 = vmul.f32 %v1506, 0.044715
      %v1523 = vmul.f32 %v1507, 0.044715
      %v1524 = vmul.f32 %v1508, 0.044715
      %v1525 = vmul.f32 %v1509, 0.044715
      %v1526 = vmul.f32 %v1518, %v1502
      %v1527 = vmul.f32 %v1519, %v1503
      %v1528 = vmul.f32 %v1520, %v1504
      %v1529 = vmul.f32 %v1521, %v1505
      %v1530 = vmul.f32 %v1522, %v1506
      %v1531 = vmul.f32 %v1523, %v1507
      %v1532 = vmul.f32 %v1524, %v1508
      %v1533 = vmul.f32 %v1525, %v1509
      %v1534 = vmul.f32 %v1526, %v1502
      %v1535 = vmul.f32 %v1527, %v1503
      %v1536 = vmul.f32 %v1528, %v1504
      %v1537 = vmul.f32 %v1529, %v1505
      %v1538 = vmul.f32 %v1530, %v1506
      %v1539 = vmul.f32 %v1531, %v1507
      %v1540 = vmul.f32 %v1532, %v1508
      %v1541 = vmul.f32 %v1533, %v1509
      %v1542 = vadd.f32 %v1502, %v1534
      %v1543 = vadd.f32 %v1503, %v1535
      %v1544 = vadd.f32 %v1504, %v1536
      %v1545 = vadd.f32 %v1505, %v1537
      %v1546 = vadd.f32 %v1506, %v1538
      %v1547 = vadd.f32 %v1507, %v1539
      %v1548 = vadd.f32 %v1508, %v1540
      %v1549 = vadd.f32 %v1509, %v1541
      %v1550 = vmul.f32 %v1542, 0.7978846
      %v1551 = vmul.f32 %v1543, 0.7978846
      %v1552 = vmul.f32 %v1544, 0.7978846
      %v1553 = vmul.f32 %v1545, 0.7978846
      %v1554 = vmul.f32 %v1546, 0.7978846
      %v1555 = vmul.f32 %v1547, 0.7978846
      %v1556 = vmul.f32 %v1548, 0.7978846
      %v1557 = vmul.f32 %v1549, 0.7978846
      %v1558 = vtanh.pop %v1550
      %v1559 = vtanh.pop %v1551
      %v1560 = vtanh.pop %v1552
      %v1561 = vtanh.pop %v1553
      %v1562 = vtanh.pop %v1554
      %v1563 = vtanh.pop %v1555
      %v1564 = vtanh.pop %v1556
      %v1565 = vtanh.pop %v1557
      %v1566 = vadd.f32 %v1558, 1.0
      %v1567 = vadd.f32 %v1559, 1.0
      %v1568 = vadd.f32 %v1560, 1.0
      %v1569 = vadd.f32 %v1561, 1.0
      %v1570 = vadd.f32 %v1562, 1.0
      %v1571 = vadd.f32 %v1563, 1.0
      %v1572 = vadd.f32 %v1564, 1.0
      %v1573 = vadd.f32 %v1565, 1.0
      %v1574 = vmul.f32 %v1510, %v1566
      %v1575 = vmul.f32 %v1511, %v1567
      %v1576 = vmul.f32 %v1512, %v1568
      %v1577 = vmul.f32 %v1513, %v1569
      %v1578 = vmul.f32 %v1514, %v1570
      %v1579 = vmul.f32 %v1515, %v1571
      %v1580 = vmul.f32 %v1516, %v1572
      %v1581 = vmul.f32 %v1517, %v1573
      %v1582 = vpack.c.bf16 %v1575, %v1574
      %v1583 = vpack.c.bf16 %v1577, %v1576
      %v1584 = vpack.c.bf16 %v1579, %v1578
      %v1585 = vpack.c.bf16 %v1581, %v1580
      %v1586 = vld [vmem:[%s1 + $0x240] sm:$0xf]
      %v1587 = vld [vmem:[%s1 + $0x244] sm:$0xf]
      %v1588 = vld [vmem:[%s1 + $0x248] sm:$0xf]
      %v1589 = vld [vmem:[%s1 + $0x24c] sm:$0xf]
      %v1590 = vld [vmem:[%s1 + $0x250] sm:$0xf]
      %v1591 = vld [vmem:[%s1 + $0x254] sm:$0xf]
      %v1592 = vld [vmem:[%s1 + $0x258] sm:$0xf]
      %v1593 = vld [vmem:[%s1 + $0x25c] sm:$0xf]
      %v1602 = vunpack.c.l.b16 %v1586
      %v1603 = vunpack.c.l.b16 %v1587
      %v1604 = vunpack.c.l.b16 %v1588
      %v1605 = vunpack.c.l.b16 %v1589
      %v1606 = vunpack.c.l.b16 %v1590
      %v1607 = vunpack.c.l.b16 %v1591
      %v1608 = vunpack.c.l.b16 %v1592
      %v1609 = vunpack.c.l.b16 %v1593
      %v1610 = vpack.c.b16 %v1603, %v1602
      %v1611 = vpack.c.b16 %v1605, %v1604
      %v1612 = vpack.c.b16 %v1607, %v1606
      %v1613 = vpack.c.b16 %v1609, %v1608
      %vm1614 = vcmask 523264
      %v1616 = vsel %vm1614, %v1610, 0
      %v1619 = vsel %vm1614, %v1611, 0
      %v1622 = vsel %vm1614, %v1612, 0
      %v1625 = vsel %vm1614, %v1613, 0
      %1627 = vmatprep.subr.bf16.mxu0 0
      %1628 = vmatpush1.bf16.msra.mxu0 %v1582
      %1629 = vmatprep.subr.bf16.mxu0 0
      %1630 = vmatpush1.bf16.msra.mxu0 %v1583
      %1631 = vmatprep.subr.bf16.mxu0 0
      %1632 = vmatpush1.bf16.msra.mxu0 %v1584
      %1633 = vmatprep.subr.bf16.mxu0 0
      %1634 = vmatpush1.bf16.msra.mxu0 %v1585
      %1635 = vmatprep.subr.bf16.mxu0 0
      %1636 = vmatpush1.bf16.msra.mxu0 0
      %1637 = vmatprep.subr.bf16.mxu0 0
      %1638 = vmatpush1.bf16.msra.mxu0 0
      %1639 = vmatprep.subr.bf16.mxu0 0
      %1640 = vmatpush1.bf16.msra.mxu0 0
      %1641 = vmatprep.subr.bf16.mxu0 0
      %1642 = vmatpush1.bf16.msra.mxu0 0
      %1643 = vmatprep.subr.bf16.mxu0 0
      %1644 = vmatpush1.bf16.msra.mxu0 0
      %1645 = vmatprep.subr.bf16.mxu0 0
      %1646 = vmatpush1.bf16.msra.mxu0 0
      %1647 = vmatprep.subr.bf16.mxu0 0
      %1648 = vmatpush1.bf16.msra.mxu0 0
      %1649 = vmatprep.subr.bf16.mxu0 0
      %1650 = vmatpush1.bf16.msra.mxu0 0
      %1651 = vmatprep.subr.bf16.mxu0 0
      %1652 = vmatpush1.bf16.msra.mxu0 0
      %1653 = vmatprep.subr.bf16.mxu0 0
      %1654 = vmatpush1.bf16.msra.mxu0 0
      %1655 = vmatprep.subr.bf16.mxu0 0
      %1656 = vmatpush1.bf16.msra.mxu0 0
      %1657 = vmatprep.subr.bf16.mxu0 0
      %1658 = vmatpush1.bf16.msra.mxu0 0
      %1659 = vmatprep.mubr.bf16.mxu0 0
      %1660 = vmatmul.mubr.bf16.gmra.mrb[0].mxu0 %v1616
      %v1661 = vpop.f32.mrb[0].mxu0
      %v1662 = vadd.f32 0.0, %v1661
      %v1663 = vpop.f32.mrb[0].mxu0
      %v1664 = vpop.f32.mrb[0].mxu0
      %v1665 = vadd.f32 0.0, %v1664
      %v1666 = vpop.f32.mrb[0].mxu0
      %1667 = vmatprep.mubr.bf16.mxu0 0
      %1668 = vmatmul.mubr.bf16.gmra.mrb[0].mxu0 %v1619
      %v1669 = vpop.f32.mrb[0].mxu0
      %v1670 = vadd.f32 0.0, %v1669
      %v1671 = vpop.f32.mrb[0].mxu0
      %v1672 = vpop.f32.mrb[0].mxu0
      %v1673 = vadd.f32 0.0, %v1672
      %v1674 = vpop.f32.mrb[0].mxu0
      %1675 = vmatprep.mubr.bf16.mxu0 0
      %1676 = vmatmul.mubr.bf16.gmra.mrb[0].mxu0 %v1622
      %v1677 = vpop.f32.mrb[0].mxu0
      %v1678 = vadd.f32 0.0, %v1677
      %v1679 = vpop.f32.mrb[0].mxu0
      %v1680 = vpop.f32.mrb[0].mxu0
      %v1681 = vadd.f32 0.0, %v1680
      %v1682 = vpop.f32.mrb[0].mxu0
      %1683 = vmatprep.mubr.bf16.mxu0 0
      %1684 = vmatmul.mubr.bf16.gmra.mrb[0].mxu0 %v1625
      %v1685 = vpop.f32.mrb[0].mxu0
      %v1686 = vadd.f32 0.0, %v1685
      %v1687 = vpop.f32.mrb[0].mxu0
      %v1688 = vpop.f32.mrb[0].mxu0
      %v1689 = vadd.f32 0.0, %v1688
      %v1690 = vpop.f32.mrb[0].mxu0
      %1691 = vdwg.mxu0
      %v1692 = vpack.c.bf16 %v1665, %v1662
      %v1693 = vpack.c.bf16 %v1673, %v1670
      %v1694 = vpack.c.bf16 %v1681, %v1678
      %v1695 = vpack.c.bf16 %v1689, %v1686
      %v1696 = vld [vmem:[%s1 + $0x260] sm:$0xf]
      %v1697 = vld [vmem:[%s1 + $0x264] sm:$0xf]
      %v1698 = vld [vmem:[%s1 + $0x268] sm:$0xf]
      %v1699 = vld [vmem:[%s1 + $0x26c] sm:$0xf]
      %v1700 = vld [vmem:[%s1 + $0x270] sm:$0xf]
      %v1701 = vld [vmem:[%s1 + $0x274] sm:$0xf]
      %v1702 = vld [vmem:[%s1 + $0x278] sm:$0xf]
      %v1703 = vld [vmem:[%s1 + $0x27c] sm:$0xf]
      %v1712 = vunpack.c.l.b16 %v1696
      %v1713 = vunpack.c.l.b16 %v1697
      %v1714 = vunpack.c.l.b16 %v1698
      %v1715 = vunpack.c.l.b16 %v1699
      %v1716 = vunpack.c.l.b16 %v1700
      %v1717 = vunpack.c.l.b16 %v1701
      %v1718 = vunpack.c.l.b16 %v1702
      %v1719 = vunpack.c.l.b16 %v1703
      %v1720 = vpack.c.b16 %v1713, %v1712
      %v1721 = vpack.c.b16 %v1715, %v1714
      %v1722 = vpack.c.b16 %v1717, %v1716
      %v1723 = vpack.c.b16 %v1719, %v1718
      %v1725 = vsel %vm1614, %v1720, 0
      %v1728 = vsel %vm1614, %v1721, 0
      %v1731 = vsel %vm1614, %v1722, 0
      %v1734 = vsel %vm1614, %v1723, 0
      %1736 = vmatprep.subr.bf16.mxu0 0
      %1737 = vmatpush1.bf16.msra.mxu0 %v1582
      %1738 = vmatprep.subr.bf16.mxu0 0
      %1739 = vmatpush1.bf16.msra.mxu0 %v1583
      %1740 = vmatprep.subr.bf16.mxu0 0
      %1741 = vmatpush1.bf16.msra.mxu0 %v1584
      %1742 = vmatprep.subr.bf16.mxu0 0
      %1743 = vmatpush1.bf16.msra.mxu0 %v1585
      %1744 = vmatprep.subr.bf16.mxu0 0
      %1745 = vmatpush1.bf16.msra.mxu0 0
      %1746 = vmatprep.subr.bf16.mxu0 0
      %1747 = vmatpush1.bf16.msra.mxu0 0
      %1748 = vmatprep.subr.bf16.mxu0 0
      %1749 = vmatpush1.bf16.msra.mxu0 0
      %1750 = vmatprep.subr.bf16.mxu0 0
      %1751 = vmatpush1.bf16.msra.mxu0 0
      %1752 = vmatprep.subr.bf16.mxu0 0
      %1753 = vmatpush1.bf16.msra.mxu0 0
      %1754 = vmatprep.subr.bf16.mxu0 0
      %1755 = vmatpush1.bf16.msra.mxu0 0
      %1756 = vmatprep.subr.bf16.mxu0 0
      %1757 = vmatpush1.bf16.msra.mxu0 0
      %1758 = vmatprep.subr.bf16.mxu0 0
      %1759 = vmatpush1.bf16.msra.mxu0 0
      %1760 = vmatprep.subr.bf16.mxu0 0
      %1761 = vmatpush1.bf16.msra.mxu0 0
      %1762 = vmatprep.subr.bf16.mxu0 0
      %1763 = vmatpush1.bf16.msra.mxu0 0
      %1764 = vmatprep.subr.bf16.mxu0 0
      %1765 = vmatpush1.bf16.msra.mxu0 0
      %1766 = vmatprep.subr.bf16.mxu0 0
      %1767 = vmatpush1.bf16.msra.mxu0 0
      %1768 = vmatprep.mubr.bf16.mxu0 0
      %1769 = vmatmul.mubr.bf16.gmra.mrb[0].mxu0 %v1725
      %v1770 = vpop.f32.mrb[0].mxu0
      %v1771 = vadd.f32 0.0, %v1770
      %v1772 = vpop.f32.mrb[0].mxu0
      %v1773 = vpop.f32.mrb[0].mxu0
      %v1774 = vadd.f32 0.0, %v1773
      %v1775 = vpop.f32.mrb[0].mxu0
      %1776 = vmatprep.mubr.bf16.mxu0 0
      %1777 = vmatmul.mubr.bf16.gmra.mrb[0].mxu0 %v1728
      %v1778 = vpop.f32.mrb[0].mxu0
      %v1779 = vadd.f32 0.0, %v1778
      %v1780 = vpop.f32.mrb[0].mxu0
      %v1781 = vpop.f32.mrb[0].mxu0
      %v1782 = vadd.f32 0.0, %v1781
      %v1783 = vpop.f32.mrb[0].mxu0
      %1784 = vmatprep.mubr.bf16.mxu0 0
      %1785 = vmatmul.mubr.bf16.gmra.mrb[0].mxu0 %v1731
      %v1786 = vpop.f32.mrb[0].mxu0
      %v1787 = vadd.f32 0.0, %v1786
      %v1788 = vpop.f32.mrb[0].mxu0
      %v1789 = vpop.f32.mrb[0].mxu0
      %v1790 = vadd.f32 0.0, %v1789
      %v1791 = vpop.f32.mrb[0].mxu0
      %1792 = vmatprep.mubr.bf16.mxu0 0
      %1793 = vmatmul.mubr.bf16.gmra.mrb[0].mxu0 %v1734
      %v1794 = vpop.f32.mrb[0].mxu0
      %v1795 = vadd.f32 0.0, %v1794
      %v1796 = vpop.f32.mrb[0].mxu0
      %v1797 = vpop.f32.mrb[0].mxu0
      %v1798 = vadd.f32 0.0, %v1797
      %v1799 = vpop.f32.mrb[0].mxu0
      %1800 = vdwg.mxu0
      %v1801 = vpack.c.bf16 %v1774, %v1771
      %v1802 = vpack.c.bf16 %v1782, %v1779
      %v1803 = vpack.c.bf16 %v1790, %v1787
      %v1804 = vpack.c.bf16 %v1798, %v1795
      %v1805 = vld [vmem:[%s1 + $0x280] sm:$0xf]
      %v1806 = vld [vmem:[%s1 + $0x284] sm:$0xf]
      %v1807 = vld [vmem:[%s1 + $0x288] sm:$0xf]
      %v1808 = vld [vmem:[%s1 + $0x28c] sm:$0xf]
      %v1809 = vld [vmem:[%s1 + $0x290] sm:$0xf]
      %v1810 = vld [vmem:[%s1 + $0x294] sm:$0xf]
      %v1811 = vld [vmem:[%s1 + $0x298] sm:$0xf]
      %v1812 = vld [vmem:[%s1 + $0x29c] sm:$0xf]
      %v1821 = vunpack.c.l.b16 %v1805
      %v1822 = vunpack.c.l.b16 %v1806
      %v1823 = vunpack.c.l.b16 %v1807
      %v1824 = vunpack.c.l.b16 %v1808
      %v1825 = vunpack.c.l.b16 %v1809
      %v1826 = vunpack.c.l.b16 %v1810
      %v1827 = vunpack.c.l.b16 %v1811
      %v1828 = vunpack.c.l.b16 %v1812
      %v1829 = vpack.c.b16 %v1822, %v1821
      %v1830 = vpack.c.b16 %v1824, %v1823
      %v1831 = vpack.c.b16 %v1826, %v1825
      %v1832 = vpack.c.b16 %v1828, %v1827
      %v1834 = vsel %vm1614, %v1829, 0
      %v1837 = vsel %vm1614, %v1830, 0
      %v1840 = vsel %vm1614, %v1831, 0
      %v1843 = vsel %vm1614, %v1832, 0
      %1845 = vmatprep.subr.bf16.mxu0 0
      %1846 = vmatpush1.bf16.msra.mxu0 %v1582
      %1847 = vmatprep.subr.bf16.mxu0 0
      %1848 = vmatpush1.bf16.msra.mxu0 %v1583
      %1849 = vmatprep.subr.bf16.mxu0 0
      %1850 = vmatpush1.bf16.msra.mxu0 %v1584
      %1851 = vmatprep.subr.bf16.mxu0 0
      %1852 = vmatpush1.bf16.msra.mxu0 %v1585
      %1853 = vmatprep.subr.bf16.mxu0 0
      %1854 = vmatpush1.bf16.msra.mxu0 0
      %1855 = vmatprep.subr.bf16.mxu0 0
      %1856 = vmatpush1.bf16.msra.mxu0 0
      %1857 = vmatprep.subr.bf16.mxu0 0
      %1858 = vmatpush1.bf16.msra.mxu0 0
      %1859 = vmatprep.subr.bf16.mxu0 0
      %1860 = vmatpush1.bf16.msra.mxu0 0
      %1861 = vmatprep.subr.bf16.mxu0 0
      %1862 = vmatpush1.bf16.msra.mxu0 0
      %1863 = vmatprep.subr.bf16.mxu0 0
      %1864 = vmatpush1.bf16.msra.mxu0 0
      %1865 = vmatprep.subr.bf16.mxu0 0
      %1866 = vmatpush1.bf16.msra.mxu0 0
      %1867 = vmatprep.subr.bf16.mxu0 0
      %1868 = vmatpush1.bf16.msra.mxu0 0
      %1869 = vmatprep.subr.bf16.mxu0 0
      %1870 = vmatpush1.bf16.msra.mxu0 0
      %1871 = vmatprep.subr.bf16.mxu0 0
      %1872 = vmatpush1.bf16.msra.mxu0 0
      %1873 = vmatprep.subr.bf16.mxu0 0
      %1874 = vmatpush1.bf16.msra.mxu0 0
      %1875 = vmatprep.subr.bf16.mxu0 0
      %1876 = vmatpush1.bf16.msra.mxu0 0
      %1877 = vmatprep.mubr.bf16.mxu0 0
      %1878 = vmatmul.mubr.bf16.gmra.mrb[0].mxu0 %v1834
      %v1879 = vpop.f32.mrb[0].mxu0
      %v1880 = vadd.f32 0.0, %v1879
      %v1881 = vpop.f32.mrb[0].mxu0
      %v1882 = vpop.f32.mrb[0].mxu0
      %v1883 = vadd.f32 0.0, %v1882
      %v1884 = vpop.f32.mrb[0].mxu0
      %1885 = vmatprep.mubr.bf16.mxu0 0
      %1886 = vmatmul.mubr.bf16.gmra.mrb[0].mxu0 %v1837
      %v1887 = vpop.f32.mrb[0].mxu0
      %v1888 = vadd.f32 0.0, %v1887
      %v1889 = vpop.f32.mrb[0].mxu0
      %v1890 = vpop.f32.mrb[0].mxu0
      %v1891 = vadd.f32 0.0, %v1890
      %v1892 = vpop.f32.mrb[0].mxu0
      %1893 = vmatprep.mubr.bf16.mxu0 0
      %1894 = vmatmul.mubr.bf16.gmra.mrb[0].mxu0 %v1840
      %v1895 = vpop.f32.mrb[0].mxu0
      %v1896 = vadd.f32 0.0, %v1895
      %v1897 = vpop.f32.mrb[0].mxu0
      %v1898 = vpop.f32.mrb[0].mxu0
      %v1899 = vadd.f32 0.0, %v1898
      %v1900 = vpop.f32.mrb[0].mxu0
      %1901 = vmatprep.mubr.bf16.mxu0 0
      %1902 = vmatmul.mubr.bf16.gmra.mrb[0].mxu0 %v1843
      %v1903 = vpop.f32.mrb[0].mxu0
      %v1904 = vadd.f32 0.0, %v1903
      %v1905 = vpop.f32.mrb[0].mxu0
      %v1906 = vpop.f32.mrb[0].mxu0
      %v1907 = vadd.f32 0.0, %v1906
      %v1908 = vpop.f32.mrb[0].mxu0
      %1909 = vdwg.mxu0
      %v1910 = vpack.c.bf16 %v1883, %v1880
      %v1911 = vpack.c.bf16 %v1891, %v1888
      %v1912 = vpack.c.bf16 %v1899, %v1896
      %v1913 = vpack.c.bf16 %v1907, %v1904
      %v1914 = vld [vmem:[%s1 + $0x2a0] sm:$0xf]
      %v1915 = vld [vmem:[%s1 + $0x2a4] sm:$0xf]
      %v1916 = vld [vmem:[%s1 + $0x2a8] sm:$0xf]
      %v1917 = vld [vmem:[%s1 + $0x2ac] sm:$0xf]
      %v1918 = vld [vmem:[%s1 + $0x2b0] sm:$0xf]
      %v1919 = vld [vmem:[%s1 + $0x2b4] sm:$0xf]
      %v1920 = vld [vmem:[%s1 + $0x2b8] sm:$0xf]
      %v1921 = vld [vmem:[%s1 + $0x2bc] sm:$0xf]
      %v1922 = vld [vmem:[%s1 + $0x2c0] sm:$0xf]
      %v1923 = vld [vmem:[%s1 + $0x2c4] sm:$0xf]
      %v1924 = vld [vmem:[%s1 + $0x2c8] sm:$0xf]
      %v1925 = vld [vmem:[%s1 + $0x2cc] sm:$0xf]
      %v1926 = vld [vmem:[%s1 + $0x2d0] sm:$0xf]
      %v1927 = vld [vmem:[%s1 + $0x2d4] sm:$0xf]
      %v1928 = vld [vmem:[%s1 + $0x2d8] sm:$0xf]
      %v1929 = vld [vmem:[%s1 + $0x2dc] sm:$0xf]
      %v1930 = vld [vmem:[%s1 + $0x2e0] sm:$0xf]
      %v1931 = vld [vmem:[%s1 + $0x2e4] sm:$0xf]
      %v1932 = vld [vmem:[%s1 + $0x2e8] sm:$0xf]
      %v1933 = vld [vmem:[%s1 + $0x2ec] sm:$0xf]
      %v1934 = vld [vmem:[%s1 + $0x2f0] sm:$0xf]
      %v1935 = vld [vmem:[%s1 + $0x2f4] sm:$0xf]
      %v1936 = vld [vmem:[%s1 + $0x2f8] sm:$0xf]
      %v1937 = vld [vmem:[%s1 + $0x2fc] sm:$0xf]
      %v1938 = vld [vmem:[%s1 + $0x300] sm:$0xf]
      %v1939 = vld [vmem:[%s1 + $0x304] sm:$0xf]
      %v1940 = vld [vmem:[%s1 + $0x308] sm:$0xf]
      %v1941 = vld [vmem:[%s1 + $0x30c] sm:$0xf]
      %v1942 = vld [vmem:[%s1 + $0x310] sm:$0xf]
      %v1943 = vld [vmem:[%s1 + $0x314] sm:$0xf]
      %v1944 = vld [vmem:[%s1 + $0x318] sm:$0xf]
      %v1945 = vld [vmem:[%s1 + $0x31c] sm:$0xf]
      %v1946 = vld [vmem:[%s1 + $0x320] sm:$0xf]
      %v1947 = vld [vmem:[%s1 + $0x324] sm:$0xf]
      %v1948 = vld [vmem:[%s1 + $0x328] sm:$0xf]
      %v1949 = vld [vmem:[%s1 + $0x32c] sm:$0xf]
      %v1950 = vld [vmem:[%s1 + $0x330] sm:$0xf]
      %v1951 = vld [vmem:[%s1 + $0x334] sm:$0xf]
      %v1952 = vld [vmem:[%s1 + $0x338] sm:$0xf]
      %v1953 = vld [vmem:[%s1 + $0x33c] sm:$0xf]
      %v1954 = vld [vmem:[%s1 + $0x340] sm:$0xf]
      %v1955 = vld [vmem:[%s1 + $0x344] sm:$0xf]
      %v1956 = vld [vmem:[%s1 + $0x348] sm:$0xf]
      %v1957 = vld [vmem:[%s1 + $0x34c] sm:$0xf]
      %v1958 = vld [vmem:[%s1 + $0x350] sm:$0xf]
      %v1959 = vld [vmem:[%s1 + $0x354] sm:$0xf]
      %v1960 = vld [vmem:[%s1 + $0x358] sm:$0xf]
      %v1961 = vld [vmem:[%s1 + $0x35c] sm:$0xf]
      %v2010 = vunpack.c.l.b16 %v1914
      %v2011 = vunpack.c.l.b16 %v1915
      %v2012 = vunpack.c.l.b16 %v1916
      %v2013 = vunpack.c.l.b16 %v1917
      %v2014 = vunpack.c.l.b16 %v1918
      %v2015 = vunpack.c.l.b16 %v1919
      %v2016 = vunpack.c.l.b16 %v1920
      %v2017 = vunpack.c.l.b16 %v1921
      %v2018 = vunpack.c.l.b16 %v1922
      %v2019 = vunpack.c.l.b16 %v1923
      %v2020 = vunpack.c.l.b16 %v1924
      %v2021 = vunpack.c.l.b16 %v1925
      %v2022 = vunpack.c.l.b16 %v1926
      %v2023 = vunpack.c.l.b16 %v1927
      %v2024 = vunpack.c.l.b16 %v1928
      %v2025 = vunpack.c.l.b16 %v1929
      %v2026 = vunpack.c.l.b16 %v1930
      %v2027 = vunpack.c.l.b16 %v1931
      %v2028 = vunpack.c.l.b16 %v1932
      %v2029 = vunpack.c.l.b16 %v1933
      %v2030 = vunpack.c.l.b16 %v1934
      %v2031 = vunpack.c.l.b16 %v1935
      %v2032 = vunpack.c.l.b16 %v1936
      %v2033 = vunpack.c.l.b16 %v1937
      %v2034 = vunpack.c.l.b16 %v1938
      %v2035 = vunpack.c.l.b16 %v1939
      %v2036 = vunpack.c.l.b16 %v1940
      %v2037 = vunpack.c.l.b16 %v1941
      %v2038 = vunpack.c.l.b16 %v1942
      %v2039 = vunpack.c.l.b16 %v1943
      %v2040 = vunpack.c.l.b16 %v1944
      %v2041 = vunpack.c.l.b16 %v1945
      %v2042 = vunpack.c.l.b16 %v1946
      %v2043 = vunpack.c.l.b16 %v1947
      %v2044 = vunpack.c.l.b16 %v1948
      %v2045 = vunpack.c.l.b16 %v1949
      %v2046 = vunpack.c.l.b16 %v1950
      %v2047 = vunpack.c.l.b16 %v1951
      %v2048 = vunpack.c.l.b16 %v1952
      %v2049 = vunpack.c.l.b16 %v1953
      %v2050 = vunpack.c.l.b16 %v1954
      %v2051 = vunpack.c.l.b16 %v1955
      %v2052 = vunpack.c.l.b16 %v1956
      %v2053 = vunpack.c.l.b16 %v1957
      %v2054 = vunpack.c.l.b16 %v1958
      %v2055 = vunpack.c.l.b16 %v1959
      %v2056 = vunpack.c.l.b16 %v1960
      %v2057 = vunpack.c.l.b16 %v1961
      %v2058 = vpack.c.b16 %v2011, %v2010
      %v2059 = vpack.c.b16 %v2013, %v2012
      %v2060 = vpack.c.b16 %v2015, %v2014
      %v2061 = vpack.c.b16 %v2017, %v2016
      %v2062 = vpack.c.b16 %v2019, %v2018
      %v2063 = vpack.c.b16 %v2021, %v2020
      %v2064 = vpack.c.b16 %v2023, %v2022
      %v2065 = vpack.c.b16 %v2025, %v2024
      %v2066 = vpack.c.b16 %v2027, %v2026
      %v2067 = vpack.c.b16 %v2029, %v2028
      %v2068 = vpack.c.b16 %v2031, %v2030
      %v2069 = vpack.c.b16 %v2033, %v2032
      %v2070 = vpack.c.b16 %v2035, %v2034
      %v2071 = vpack.c.b16 %v2037, %v2036
      %v2072 = vpack.c.b16 %v2039, %v2038
      %v2073 = vpack.c.b16 %v2041, %v2040
      %v2074 = vpack.c.b16 %v2043, %v2042
      %v2075 = vpack.c.b16 %v2045, %v2044
      %v2076 = vpack.c.b16 %v2047, %v2046
      %v2077 = vpack.c.b16 %v2049, %v2048
      %v2078 = vpack.c.b16 %v2051, %v2050
      %v2079 = vpack.c.b16 %v2053, %v2052
      %v2080 = vpack.c.b16 %v2055, %v2054
      %v2081 = vpack.c.b16 %v2057, %v2056
      %2106 = vmatprep.subr.bf16.mxu0 0
      %2107 = vmatpush1.bf16.msra.mxu0 %v2058
      %2108 = vmatprep.subr.bf16.mxu0 0
      %2109 = vmatpush1.bf16.msra.mxu0 %v2059
      %2110 = vmatprep.subr.bf16.mxu0 0
      %2111 = vmatpush1.bf16.msra.mxu0 %v2060
      %2112 = vmatprep.subr.bf16.mxu0 0
      %2113 = vmatpush1.bf16.msra.mxu0 %v2061
      %2114 = vmatprep.subr.bf16.mxu0 0
      %2115 = vmatpush1.bf16.msra.mxu0 %v2062
      %2116 = vmatprep.subr.bf16.mxu0 0
      %2117 = vmatpush1.bf16.msra.mxu0 %v2063
      %2118 = vmatprep.subr.bf16.mxu0 0
      %2119 = vmatpush1.bf16.msra.mxu0 %v2064
      %2120 = vmatprep.subr.bf16.mxu0 0
      %2121 = vmatpush1.bf16.msra.mxu0 %v2065
      %2122 = vmatprep.subr.bf16.mxu0 0
      %2123 = vmatpush1.bf16.msra.mxu0 %v2066
      %2124 = vmatprep.subr.bf16.mxu0 0
      %2125 = vmatpush1.bf16.msra.mxu0 %v2067
      %2126 = vmatprep.subr.bf16.mxu0 0
      %2127 = vmatpush1.bf16.msra.mxu0 %v2068
      %2128 = vmatprep.subr.bf16.mxu0 0
      %2129 = vmatpush1.bf16.msra.mxu0 %v2069
      %2130 = vmatprep.subr.bf16.mxu0 0
      %2131 = vmatpush1.bf16.msra.mxu0 %v2070
      %2132 = vmatprep.subr.bf16.mxu0 0
      %2133 = vmatpush1.bf16.msra.mxu0 %v2071
      %2134 = vmatprep.subr.bf16.mxu0 0
      %2135 = vmatpush1.bf16.msra.mxu0 %v2072
      %2136 = vmatprep.subr.bf16.mxu0 0
      %2137 = vmatpush1.bf16.msra.mxu0 %v2073
      %2138 = vmatprep.mubr.bf16.mxu0 %v1801
      %2139 = vmatmul.mubr.bf16.gmra.mrb[0].mxu0 %v1692
      %v2140 = vpop.f32.mrb[0].mxu0
      %v2141 = vadd.f32 0.0, %v2140
      %v2142 = vpop.f32.mrb[0].mxu0
      %v2143 = vpop.f32.mrb[0].mxu0
      %v2144 = vadd.f32 0.0, %v2143
      %v2145 = vpop.f32.mrb[0].mxu0
      %2146 = vmatprep.mubr.bf16.mxu0 %v1802
      %2147 = vmatmul.mubr.bf16.gmra.mrb[0].mxu0 %v1693
      %v2148 = vpop.f32.mrb[0].mxu0
      %v2149 = vadd.f32 0.0, %v2148
      %v2150 = vpop.f32.mrb[0].mxu0
      %v2151 = vpop.f32.mrb[0].mxu0
      %v2152 = vadd.f32 0.0, %v2151
      %v2153 = vpop.f32.mrb[0].mxu0
      %2154 = vmatprep.mubr.bf16.mxu0 %v1803
      %2155 = vmatmul.mubr.bf16.gmra.mrb[0].mxu0 %v1694
      %v2156 = vpop.f32.mrb[0].mxu0
      %v2157 = vadd.f32 0.0, %v2156
      %v2158 = vpop.f32.mrb[0].mxu0
      %v2159 = vpop.f32.mrb[0].mxu0
      %v2160 = vadd.f32 0.0, %v2159
      %v2161 = vpop.f32.mrb[0].mxu0
      %2162 = vmatprep.mubr.bf16.mxu0 %v1804
      %2163 = vmatmul.mubr.bf16.gmra.mrb[0].mxu0 %v1695
      %v2164 = vpop.f32.mrb[0].mxu0
      %v2165 = vadd.f32 0.0, %v2164
      %v2166 = vpop.f32.mrb[0].mxu0
      %v2167 = vpop.f32.mrb[0].mxu0
      %v2168 = vadd.f32 0.0, %v2167
      %v2169 = vpop.f32.mrb[0].mxu0
      %2170 = vdwg.mxu0
      %2171 = vmatprep.subr.bf16.mxu0 0
      %2172 = vmatpush1.bf16.msra.mxu0 %v2074
      %2173 = vmatprep.subr.bf16.mxu0 0
      %2174 = vmatpush1.bf16.msra.mxu0 %v2075
      %2175 = vmatprep.subr.bf16.mxu0 0
      %2176 = vmatpush1.bf16.msra.mxu0 %v2076
      %2177 = vmatprep.subr.bf16.mxu0 0
      %2178 = vmatpush1.bf16.msra.mxu0 %v2077
      %2179 = vmatprep.subr.bf16.mxu0 0
      %2180 = vmatpush1.bf16.msra.mxu0 %v2078
      %2181 = vmatprep.subr.bf16.mxu0 0
      %2182 = vmatpush1.bf16.msra.mxu0 %v2079
      %2183 = vmatprep.subr.bf16.mxu0 0
      %2184 = vmatpush1.bf16.msra.mxu0 %v2080
      %2185 = vmatprep.subr.bf16.mxu0 0
      %2186 = vmatpush1.bf16.msra.mxu0 %v2081
      %2187 = vmatprep.subr.bf16.mxu0 0
      %2188 = vmatpush1.bf16.msra.mxu0 0
      %2189 = vmatprep.subr.bf16.mxu0 0
      %2190 = vmatpush1.bf16.msra.mxu0 0
      %2191 = vmatprep.subr.bf16.mxu0 0
      %2192 = vmatpush1.bf16.msra.mxu0 0
      %2193 = vmatprep.subr.bf16.mxu0 0
      %2194 = vmatpush1.bf16.msra.mxu0 0
      %2195 = vmatprep.subr.bf16.mxu0 0
      %2196 = vmatpush1.bf16.msra.mxu0 0
      %2197 = vmatprep.subr.bf16.mxu0 0
      %2198 = vmatpush1.bf16.msra.mxu0 0
      %2199 = vmatprep.subr.bf16.mxu0 0
      %2200 = vmatpush1.bf16.msra.mxu0 0
      %2201 = vmatprep.subr.bf16.mxu0 0
      %2202 = vmatpush1.bf16.msra.mxu0 0
      %2203 = vmatprep.mubr.bf16.mxu0 0
      %2204 = vmatmul.mubr.bf16.gmra.mrb[0].mxu0 %v1910
      %v2205 = vpop.f32.mrb[0].mxu0
      %v2206 = vadd.f32 %v2141, %v2205
      %v2207 = vpop.f32.mrb[0].mxu0
      %v2208 = vpop.f32.mrb[0].mxu0
      %v2209 = vadd.f32 %v2144, %v2208
      %v2210 = vpop.f32.mrb[0].mxu0
      %2211 = vmatprep.mubr.bf16.mxu0 0
      %2212 = vmatmul.mubr.bf16.gmra.mrb[0].mxu0 %v1911
      %v2213 = vpop.f32.mrb[0].mxu0
      %v2214 = vadd.f32 %v2149, %v2213
      %v2215 = vpop.f32.mrb[0].mxu0
      %v2216 = vpop.f32.mrb[0].mxu0
      %v2217 = vadd.f32 %v2152, %v2216
      %v2218 = vpop.f32.mrb[0].mxu0
      %2219 = vmatprep.mubr.bf16.mxu0 0
      %2220 = vmatmul.mubr.bf16.gmra.mrb[0].mxu0 %v1912
      %v2221 = vpop.f32.mrb[0].mxu0
      %v2222 = vadd.f32 %v2157, %v2221
      %v2223 = vpop.f32.mrb[0].mxu0
      %v2224 = vpop.f32.mrb[0].mxu0
      %v2225 = vadd.f32 %v2160, %v2224
      %v2226 = vpop.f32.mrb[0].mxu0
      %2227 = vmatprep.mubr.bf16.mxu0 0
      %2228 = vmatmul.mubr.bf16.gmra.mrb[0].mxu0 %v1913
      %v2229 = vpop.f32.mrb[0].mxu0
      %v2230 = vadd.f32 %v2165, %v2229
      %v2231 = vpop.f32.mrb[0].mxu0
      %v2232 = vpop.f32.mrb[0].mxu0
      %v2233 = vadd.f32 %v2168, %v2232
      %v2234 = vpop.f32.mrb[0].mxu0
      %2235 = vdwg.mxu0
      %v2236 = vld [vmem:[%s1 + $0x360] sm:$0xf]
      %v2237 = vld [vmem:[%s1 + $0x364] sm:$0xf]
      %v2238 = vld [vmem:[%s1 + $0x368] sm:$0xf]
      %v2239 = vld [vmem:[%s1 + $0x36c] sm:$0xf]
      %v2240 = vld [vmem:[%s1 + $0x370] sm:$0xf]
      %v2241 = vld [vmem:[%s1 + $0x374] sm:$0xf]
      %v2242 = vld [vmem:[%s1 + $0x378] sm:$0xf]
      %v2243 = vld [vmem:[%s1 + $0x37c] sm:$0xf]
      %v2244 = vld [vmem:[%s1 + $0x380] sm:$0xf]
      %v2245 = vld [vmem:[%s1 + $0x384] sm:$0xf]
      %v2246 = vld [vmem:[%s1 + $0x388] sm:$0xf]
      %v2247 = vld [vmem:[%s1 + $0x38c] sm:$0xf]
      %v2248 = vld [vmem:[%s1 + $0x390] sm:$0xf]
      %v2249 = vld [vmem:[%s1 + $0x394] sm:$0xf]
      %v2250 = vld [vmem:[%s1 + $0x398] sm:$0xf]
      %v2251 = vld [vmem:[%s1 + $0x39c] sm:$0xf]
      %v2252 = vld [vmem:[%s1 + $0x3a0] sm:$0xf]
      %v2253 = vld [vmem:[%s1 + $0x3a4] sm:$0xf]
      %v2254 = vld [vmem:[%s1 + $0x3a8] sm:$0xf]
      %v2255 = vld [vmem:[%s1 + $0x3ac] sm:$0xf]
      %v2256 = vld [vmem:[%s1 + $0x3b0] sm:$0xf]
      %v2257 = vld [vmem:[%s1 + $0x3b4] sm:$0xf]
      %v2258 = vld [vmem:[%s1 + $0x3b8] sm:$0xf]
      %v2259 = vld [vmem:[%s1 + $0x3bc] sm:$0xf]
      %v2260 = vld [vmem:[%s1 + $0x3c0] sm:$0xf]
      %v2261 = vld [vmem:[%s1 + $0x3c4] sm:$0xf]
      %v2262 = vld [vmem:[%s1 + $0x3c8] sm:$0xf]
      %v2263 = vld [vmem:[%s1 + $0x3cc] sm:$0xf]
      %v2264 = vld [vmem:[%s1 + $0x3d0] sm:$0xf]
      %v2265 = vld [vmem:[%s1 + $0x3d4] sm:$0xf]
      %v2266 = vld [vmem:[%s1 + $0x3d8] sm:$0xf]
      %v2267 = vld [vmem:[%s1 + $0x3dc] sm:$0xf]
      %v2268 = vld [vmem:[%s1 + $0x3e0] sm:$0xf]
      %v2269 = vld [vmem:[%s1 + $0x3e4] sm:$0xf]
      %v2270 = vld [vmem:[%s1 + $0x3e8] sm:$0xf]
      %v2271 = vld [vmem:[%s1 + $0x3ec] sm:$0xf]
      %v2272 = vld [vmem:[%s1 + $0x3f0] sm:$0xf]
      %v2273 = vld [vmem:[%s1 + $0x3f4] sm:$0xf]
      %v2274 = vld [vmem:[%s1 + $0x3f8] sm:$0xf]
      %v2275 = vld [vmem:[%s1 + $0x3fc] sm:$0xf]
      %v2276 = vld [vmem:[%s1 + $0x400] sm:$0xf]
      %v2277 = vld [vmem:[%s1 + $0x404] sm:$0xf]
      %v2278 = vld [vmem:[%s1 + $0x408] sm:$0xf]
      %v2279 = vld [vmem:[%s1 + $0x40c] sm:$0xf]
      %v2280 = vld [vmem:[%s1 + $0x410] sm:$0xf]
      %v2281 = vld [vmem:[%s1 + $0x414] sm:$0xf]
      %v2282 = vld [vmem:[%s1 + $0x418] sm:$0xf]
      %v2283 = vld [vmem:[%s1 + $0x41c] sm:$0xf]
      %v2332 = vunpack.c.l.b16 %v2236
      %v2333 = vunpack.c.l.b16 %v2237
      %v2334 = vunpack.c.l.b16 %v2238
      %v2335 = vunpack.c.l.b16 %v2239
      %v2336 = vunpack.c.l.b16 %v2240
      %v2337 = vunpack.c.l.b16 %v2241
      %v2338 = vunpack.c.l.b16 %v2242
      %v2339 = vunpack.c.l.b16 %v2243
      %v2340 = vunpack.c.l.b16 %v2244
      %v2341 = vunpack.c.l.b16 %v2245
      %v2342 = vunpack.c.l.b16 %v2246
      %v2343 = vunpack.c.l.b16 %v2247
      %v2344 = vunpack.c.l.b16 %v2248
      %v2345 = vunpack.c.l.b16 %v2249
      %v2346 = vunpack.c.l.b16 %v2250
      %v2347 = vunpack.c.l.b16 %v2251
      %v2348 = vunpack.c.l.b16 %v2252
      %v2349 = vunpack.c.l.b16 %v2253
      %v2350 = vunpack.c.l.b16 %v2254
      %v2351 = vunpack.c.l.b16 %v2255
      %v2352 = vunpack.c.l.b16 %v2256
      %v2353 = vunpack.c.l.b16 %v2257
      %v2354 = vunpack.c.l.b16 %v2258
      %v2355 = vunpack.c.l.b16 %v2259
      %v2356 = vunpack.c.l.b16 %v2260
      %v2357 = vunpack.c.l.b16 %v2261
      %v2358 = vunpack.c.l.b16 %v2262
      %v2359 = vunpack.c.l.b16 %v2263
      %v2360 = vunpack.c.l.b16 %v2264
      %v2361 = vunpack.c.l.b16 %v2265
      %v2362 = vunpack.c.l.b16 %v2266
      %v2363 = vunpack.c.l.b16 %v2267
      %v2364 = vunpack.c.l.b16 %v2268
      %v2365 = vunpack.c.l.b16 %v2269
      %v2366 = vunpack.c.l.b16 %v2270
      %v2367 = vunpack.c.l.b16 %v2271
      %v2368 = vunpack.c.l.b16 %v2272
      %v2369 = vunpack.c.l.b16 %v2273
      %v2370 = vunpack.c.l.b16 %v2274
      %v2371 = vunpack.c.l.b16 %v2275
      %v2372 = vunpack.c.l.b16 %v2276
      %v2373 = vunpack.c.l.b16 %v2277
      %v2374 = vunpack.c.l.b16 %v2278
      %v2375 = vunpack.c.l.b16 %v2279
      %v2376 = vunpack.c.l.b16 %v2280
      %v2377 = vunpack.c.l.b16 %v2281
      %v2378 = vunpack.c.l.b16 %v2282
      %v2379 = vunpack.c.l.b16 %v2283
      %v2380 = vpack.c.b16 %v2333, %v2332
      %v2381 = vpack.c.b16 %v2335, %v2334
      %v2382 = vpack.c.b16 %v2337, %v2336
      %v2383 = vpack.c.b16 %v2339, %v2338
      %v2384 = vpack.c.b16 %v2341, %v2340
      %v2385 = vpack.c.b16 %v2343, %v2342
      %v2386 = vpack.c.b16 %v2345, %v2344
      %v2387 = vpack.c.b16 %v2347, %v2346
      %v2388 = vpack.c.b16 %v2349, %v2348
      %v2389 = vpack.c.b16 %v2351, %v2350
      %v2390 = vpack.c.b16 %v2353, %v2352
      %v2391 = vpack.c.b16 %v2355, %v2354
      %v2392 = vpack.c.b16 %v2357, %v2356
      %v2393 = vpack.c.b16 %v2359, %v2358
      %v2394 = vpack.c.b16 %v2361, %v2360
      %v2395 = vpack.c.b16 %v2363, %v2362
      %v2396 = vpack.c.b16 %v2365, %v2364
      %v2397 = vpack.c.b16 %v2367, %v2366
      %v2398 = vpack.c.b16 %v2369, %v2368
      %v2399 = vpack.c.b16 %v2371, %v2370
      %v2400 = vpack.c.b16 %v2373, %v2372
      %v2401 = vpack.c.b16 %v2375, %v2374
      %v2402 = vpack.c.b16 %v2377, %v2376
      %v2403 = vpack.c.b16 %v2379, %v2378
      %2428 = vmatprep.subr.bf16.mxu0 0
      %2429 = vmatpush1.bf16.msra.mxu0 %v2380
      %2430 = vmatprep.subr.bf16.mxu0 0
      %2431 = vmatpush1.bf16.msra.mxu0 %v2381
      %2432 = vmatprep.subr.bf16.mxu0 0
      %2433 = vmatpush1.bf16.msra.mxu0 %v2382
      %2434 = vmatprep.subr.bf16.mxu0 0
      %2435 = vmatpush1.bf16.msra.mxu0 %v2383
      %2436 = vmatprep.subr.bf16.mxu0 0
      %2437 = vmatpush1.bf16.msra.mxu0 %v2384
      %2438 = vmatprep.subr.bf16.mxu0 0
      %2439 = vmatpush1.bf16.msra.mxu0 %v2385
      %2440 = vmatprep.subr.bf16.mxu0 0
      %2441 = vmatpush1.bf16.msra.mxu0 %v2386
      %2442 = vmatprep.subr.bf16.mxu0 0
      %2443 = vmatpush1.bf16.msra.mxu0 %v2387
      %2444 = vmatprep.subr.bf16.mxu0 0
      %2445 = vmatpush1.bf16.msra.mxu0 %v2388
      %2446 = vmatprep.subr.bf16.mxu0 0
      %2447 = vmatpush1.bf16.msra.mxu0 %v2389
      %2448 = vmatprep.subr.bf16.mxu0 0
      %2449 = vmatpush1.bf16.msra.mxu0 %v2390
      %2450 = vmatprep.subr.bf16.mxu0 0
      %2451 = vmatpush1.bf16.msra.mxu0 %v2391
      %2452 = vmatprep.subr.bf16.mxu0 0
      %2453 = vmatpush1.bf16.msra.mxu0 %v2392
      %2454 = vmatprep.subr.bf16.mxu0 0
      %2455 = vmatpush1.bf16.msra.mxu0 %v2393
      %2456 = vmatprep.subr.bf16.mxu0 0
      %2457 = vmatpush1.bf16.msra.mxu0 %v2394
      %2458 = vmatprep.subr.bf16.mxu0 0
      %2459 = vmatpush1.bf16.msra.mxu0 %v2395
      %2460 = vmatprep.mubr.bf16.mxu0 %v1801
      %2461 = vmatmul.mubr.bf16.gmra.mrb[0].mxu0 %v1692
      %v2462 = vpop.f32.mrb[0].mxu0
      %v2463 = vadd.f32 0.0, %v2462
      %v2464 = vpop.f32.mrb[0].mxu0
      %v2465 = vpop.f32.mrb[0].mxu0
      %v2466 = vadd.f32 0.0, %v2465
      %v2467 = vpop.f32.mrb[0].mxu0
      %2468 = vmatprep.mubr.bf16.mxu0 %v1802
      %2469 = vmatmul.mubr.bf16.gmra.mrb[0].mxu0 %v1693
      %v2470 = vpop.f32.mrb[0].mxu0
      %v2471 = vadd.f32 0.0, %v2470
      %v2472 = vpop.f32.mrb[0].mxu0
      %v2473 = vpop.f32.mrb[0].mxu0
      %v2474 = vadd.f32 0.0, %v2473
      %v2475 = vpop.f32.mrb[0].mxu0
      %2476 = vmatprep.mubr.bf16.mxu0 %v1803
      %2477 = vmatmul.mubr.bf16.gmra.mrb[0].mxu0 %v1694
      %v2478 = vpop.f32.mrb[0].mxu0
      %v2479 = vadd.f32 0.0, %v2478
      %v2480 = vpop.f32.mrb[0].mxu0
      %v2481 = vpop.f32.mrb[0].mxu0
      %v2482 = vadd.f32 0.0, %v2481
      %v2483 = vpop.f32.mrb[0].mxu0
      %2484 = vmatprep.mubr.bf16.mxu0 %v1804
      %2485 = vmatmul.mubr.bf16.gmra.mrb[0].mxu0 %v1695
      %v2486 = vpop.f32.mrb[0].mxu0
      %v2487 = vadd.f32 0.0, %v2486
      %v2488 = vpop.f32.mrb[0].mxu0
      %v2489 = vpop.f32.mrb[0].mxu0
      %v2490 = vadd.f32 0.0, %v2489
      %v2491 = vpop.f32.mrb[0].mxu0
      %2492 = vdwg.mxu0
      %2493 = vmatprep.subr.bf16.mxu0 0
      %2494 = vmatpush1.bf16.msra.mxu0 %v2396
      %2495 = vmatprep.subr.bf16.mxu0 0
      %2496 = vmatpush1.bf16.msra.mxu0 %v2397
      %2497 = vmatprep.subr.bf16.mxu0 0
      %2498 = vmatpush1.bf16.msra.mxu0 %v2398
      %2499 = vmatprep.subr.bf16.mxu0 0
      %2500 = vmatpush1.bf16.msra.mxu0 %v2399
      %2501 = vmatprep.subr.bf16.mxu0 0
      %2502 = vmatpush1.bf16.msra.mxu0 %v2400
      %2503 = vmatprep.subr.bf16.mxu0 0
      %2504 = vmatpush1.bf16.msra.mxu0 %v2401
      %2505 = vmatprep.subr.bf16.mxu0 0
      %2506 = vmatpush1.bf16.msra.mxu0 %v2402
      %2507 = vmatprep.subr.bf16.mxu0 0
      %2508 = vmatpush1.bf16.msra.mxu0 %v2403
      %2509 = vmatprep.subr.bf16.mxu0 0
      %2510 = vmatpush1.bf16.msra.mxu0 0
      %2511 = vmatprep.subr.bf16.mxu0 0
      %2512 = vmatpush1.bf16.msra.mxu0 0
      %2513 = vmatprep.subr.bf16.mxu0 0
      %2514 = vmatpush1.bf16.msra.mxu0 0
      %2515 = vmatprep.subr.bf16.mxu0 0
      %2516 = vmatpush1.bf16.msra.mxu0 0
      %2517 = vmatprep.subr.bf16.mxu0 0
      %2518 = vmatpush1.bf16.msra.mxu0 0
      %2519 = vmatprep.subr.bf16.mxu0 0
      %2520 = vmatpush1.bf16.msra.mxu0 0
      %2521 = vmatprep.subr.bf16.mxu0 0
      %2522 = vmatpush1.bf16.msra.mxu0 0
      %2523 = vmatprep.subr.bf16.mxu0 0
      %2524 = vmatpush1.bf16.msra.mxu0 0
      %2525 = vmatprep.mubr.bf16.mxu0 0
      %2526 = vmatmul.mubr.bf16.gmra.mrb[0].mxu0 %v1910
      %v2527 = vpop.f32.mrb[0].mxu0
      %v2528 = vadd.f32 %v2463, %v2527
      %v2529 = vpop.f32.mrb[0].mxu0
      %v2530 = vpop.f32.mrb[0].mxu0
      %v2531 = vadd.f32 %v2466, %v2530
      %v2532 = vpop.f32.mrb[0].mxu0
      %2533 = vmatprep.mubr.bf16.mxu0 0
      %2534 = vmatmul.mubr.bf16.gmra.mrb[0].mxu0 %v1911
      %v2535 = vpop.f32.mrb[0].mxu0
      %v2536 = vadd.f32 %v2471, %v2535
      %v2537 = vpop.f32.mrb[0].mxu0
      %v2538 = vpop.f32.mrb[0].mxu0
      %v2539 = vadd.f32 %v2474, %v2538
      %v2540 = vpop.f32.mrb[0].mxu0
      %2541 = vmatprep.mubr.bf16.mxu0 0
      %2542 = vmatmul.mubr.bf16.gmra.mrb[0].mxu0 %v1912
      %v2543 = vpop.f32.mrb[0].mxu0
      %v2544 = vadd.f32 %v2479, %v2543
      %v2545 = vpop.f32.mrb[0].mxu0
      %v2546 = vpop.f32.mrb[0].mxu0
      %v2547 = vadd.f32 %v2482, %v2546
      %v2548 = vpop.f32.mrb[0].mxu0
      %2549 = vmatprep.mubr.bf16.mxu0 0
      %2550 = vmatmul.mubr.bf16.gmra.mrb[0].mxu0 %v1913
      %v2551 = vpop.f32.mrb[0].mxu0
      %v2552 = vadd.f32 %v2487, %v2551
      %v2553 = vpop.f32.mrb[0].mxu0
      %v2554 = vpop.f32.mrb[0].mxu0
      %v2555 = vadd.f32 %v2490, %v2554
      %v2556 = vpop.f32.mrb[0].mxu0
      %2557 = vdwg.mxu0
      %v2558 = vmax.f32 %v2206, %v2528
      %v2559 = vmax.f32 %v2209, %v2531
      %v2560 = vmax.f32 %v2214, %v2536
      %v2561 = vmax.f32 %v2217, %v2539
      %v2562 = vmax.f32 %v2222, %v2544
      %v2563 = vmax.f32 %v2225, %v2547
      %v2564 = vmax.f32 %v2230, %v2552
      %v2565 = vmax.f32 %v2233, %v2555
      %v2566 = vmax.f32 %v2558, %v2562
      %v2567 = vmax.f32 %v2559, %v2563
      %v2568 = vmax.f32 %v2560, %v2564
      %v2569 = vmax.f32 %v2561, %v2565
      %v2570 = vld [vmem:[%s2 + $0x8] sm:$0x1]
      %v2571 = vlaneseq
      %v2572 = vshrl.u32 %v2571, 7
      %v2573 = vsub.s32 0, %v2572
      %v2574 = vrot.slane %v2570, %v2573
      %v2575 = vadd.f32 %v2566, %v2574
      %v2576 = vadd.f32 %v2567, %v2574
      %v2577 = vadd.f32 %v2568, %v2574
      %v2578 = vadd.f32 %v2569, %v2574
      %v2579 = vmul.f32 %v2575, 0.5
      %v2580 = vmul.f32 %v2576, 0.5
      %v2581 = vmul.f32 %v2577, 0.5
      %v2582 = vmul.f32 %v2578, 0.5
      %v2583 = vmul.f32 %v2575, 0.044715
      %v2584 = vmul.f32 %v2576, 0.044715
      %v2585 = vmul.f32 %v2577, 0.044715
      %v2586 = vmul.f32 %v2578, 0.044715
      %v2587 = vmul.f32 %v2583, %v2575
      %v2588 = vmul.f32 %v2584, %v2576
      %v2589 = vmul.f32 %v2585, %v2577
      %v2590 = vmul.f32 %v2586, %v2578
      %v2591 = vmul.f32 %v2587, %v2575
      %v2592 = vmul.f32 %v2588, %v2576
      %v2593 = vmul.f32 %v2589, %v2577
      %v2594 = vmul.f32 %v2590, %v2578
      %v2595 = vadd.f32 %v2575, %v2591
      %v2596 = vadd.f32 %v2576, %v2592
      %v2597 = vadd.f32 %v2577, %v2593
      %v2598 = vadd.f32 %v2578, %v2594
      %v2599 = vmul.f32 %v2595, 0.7978846
      %v2600 = vmul.f32 %v2596, 0.7978846
      %v2601 = vmul.f32 %v2597, 0.7978846
      %v2602 = vmul.f32 %v2598, 0.7978846
      %v2603 = vtanh.pop %v2599
      %v2604 = vtanh.pop %v2600
      %v2605 = vtanh.pop %v2601
      %v2606 = vtanh.pop %v2602
      %v2607 = vadd.f32 %v2603, 1.0
      %v2608 = vadd.f32 %v2604, 1.0
      %v2609 = vadd.f32 %v2605, 1.0
      %v2610 = vadd.f32 %v2606, 1.0
      %v2611 = vmul.f32 %v2579, %v2607
      %v2612 = vmul.f32 %v2580, %v2608
      %v2613 = vmul.f32 %v2581, %v2609
      %v2614 = vmul.f32 %v2582, %v2610
      %v2615 = vpack.c.bf16 %v2612, %v2611
      %v2616 = vpack.c.bf16 %v2614, %v2613
      %v2617 = vld [vmem:[%s1 + $0x420] sm:$0xf]
      %v2618 = vld [vmem:[%s1 + $0x424] sm:$0xf]
      %v2619 = vld [vmem:[%s1 + $0x428] sm:$0xf]
      %v2620 = vld [vmem:[%s1 + $0x42c] sm:$0xf]
      %v2625 = vunpack.c.l.b16 %v2617
      %v2626 = vunpack.c.l.b16 %v2618
      %v2627 = vunpack.c.l.b16 %v2619
      %v2628 = vunpack.c.l.b16 %v2620
      %v2629 = vpack.c.b16 %v2626, %v2625
      %v2630 = vpack.c.b16 %v2628, %v2627
      %vm2631 = vcmask 261120
      %v2633 = vsel %vm2631, %v2629, 0
      %v2636 = vsel %vm2631, %v2630, 0
      %2638 = vmatprep.subr.bf16.mxu0 0
      %2639 = vmatpush1.bf16.msra.mxu0 %v2615
      %2640 = vmatprep.subr.bf16.mxu0 0
      %2641 = vmatpush1.bf16.msra.mxu0 %v2616
      %2642 = vmatprep.subr.bf16.mxu0 0
      %2643 = vmatpush1.bf16.msra.mxu0 0
      %2644 = vmatprep.subr.bf16.mxu0 0
      %2645 = vmatpush1.bf16.msra.mxu0 0
      %2646 = vmatprep.subr.bf16.mxu0 0
      %2647 = vmatpush1.bf16.msra.mxu0 0
      %2648 = vmatprep.subr.bf16.mxu0 0
      %2649 = vmatpush1.bf16.msra.mxu0 0
      %2650 = vmatprep.subr.bf16.mxu0 0
      %2651 = vmatpush1.bf16.msra.mxu0 0
      %2652 = vmatprep.subr.bf16.mxu0 0
      %2653 = vmatpush1.bf16.msra.mxu0 0
      %2654 = vmatprep.subr.bf16.mxu0 0
      %2655 = vmatpush1.bf16.msra.mxu0 0
      %2656 = vmatprep.subr.bf16.mxu0 0
      %2657 = vmatpush1.bf16.msra.mxu0 0
      %2658 = vmatprep.subr.bf16.mxu0 0
      %2659 = vmatpush1.bf16.msra.mxu0 0
      %2660 = vmatprep.subr.bf16.mxu0 0
      %2661 = vmatpush1.bf16.msra.mxu0 0
      %2662 = vmatprep.subr.bf16.mxu0 0
      %2663 = vmatpush1.bf16.msra.mxu0 0
      %2664 = vmatprep.subr.bf16.mxu0 0
      %2665 = vmatpush1.bf16.msra.mxu0 0
      %2666 = vmatprep.subr.bf16.mxu0 0
      %2667 = vmatpush1.bf16.msra.mxu0 0
      %2668 = vmatprep.subr.bf16.mxu0 0
      %2669 = vmatpush1.bf16.msra.mxu0 0
      %2670 = vmatprep.mubr.bf16.mxu0 0
      %2671 = vmatmul.mubr.bf16.gmra.mrb[0].mxu0 %v2633
      %v2672 = vpop.f32.mrb[0].mxu0
      %v2673 = vadd.f32 0.0, %v2672
      %v2674 = vpop.f32.mrb[0].mxu0
      %v2675 = vpop.f32.mrb[0].mxu0
      %v2676 = vadd.f32 0.0, %v2675
      %v2677 = vpop.f32.mrb[0].mxu0
      %2678 = vmatprep.mubr.bf16.mxu0 0
      %2679 = vmatmul.mubr.bf16.gmra.mrb[0].mxu0 %v2636
      %v2680 = vpop.f32.mrb[0].mxu0
      %v2681 = vadd.f32 0.0, %v2680
      %v2682 = vpop.f32.mrb[0].mxu0
      %v2683 = vpop.f32.mrb[0].mxu0
      %v2684 = vadd.f32 0.0, %v2683
      %v2685 = vpop.f32.mrb[0].mxu0
      %2686 = vdwg.mxu0
      %v2687 = vpack.c.bf16 %v2676, %v2673
      %v2688 = vpack.c.bf16 %v2684, %v2681
      %v2689 = vld [vmem:[%s1 + $0x430] sm:$0xf]
      %v2690 = vld [vmem:[%s1 + $0x434] sm:$0xf]
      %v2691 = vld [vmem:[%s1 + $0x438] sm:$0xf]
      %v2692 = vld [vmem:[%s1 + $0x43c] sm:$0xf]
      %v2697 = vunpack.c.l.b16 %v2689
      %v2698 = vunpack.c.l.b16 %v2690
      %v2699 = vunpack.c.l.b16 %v2691
      %v2700 = vunpack.c.l.b16 %v2692
      %v2701 = vpack.c.b16 %v2698, %v2697
      %v2702 = vpack.c.b16 %v2700, %v2699
      %v2704 = vsel %vm2631, %v2701, 0
      %v2707 = vsel %vm2631, %v2702, 0
      %2709 = vmatprep.subr.bf16.mxu0 0
      %2710 = vmatpush1.bf16.msra.mxu0 %v2615
      %2711 = vmatprep.subr.bf16.mxu0 0
      %2712 = vmatpush1.bf16.msra.mxu0 %v2616
      %2713 = vmatprep.subr.bf16.mxu0 0
      %2714 = vmatpush1.bf16.msra.mxu0 0
      %2715 = vmatprep.subr.bf16.mxu0 0
      %2716 = vmatpush1.bf16.msra.mxu0 0
      %2717 = vmatprep.subr.bf16.mxu0 0
      %2718 = vmatpush1.bf16.msra.mxu0 0
      %2719 = vmatprep.subr.bf16.mxu0 0
      %2720 = vmatpush1.bf16.msra.mxu0 0
      %2721 = vmatprep.subr.bf16.mxu0 0
      %2722 = vmatpush1.bf16.msra.mxu0 0
      %2723 = vmatprep.subr.bf16.mxu0 0
      %2724 = vmatpush1.bf16.msra.mxu0 0
      %2725 = vmatprep.subr.bf16.mxu0 0
      %2726 = vmatpush1.bf16.msra.mxu0 0
      %2727 = vmatprep.subr.bf16.mxu0 0
      %2728 = vmatpush1.bf16.msra.mxu0 0
      %2729 = vmatprep.subr.bf16.mxu0 0
      %2730 = vmatpush1.bf16.msra.mxu0 0
      %2731 = vmatprep.subr.bf16.mxu0 0
      %2732 = vmatpush1.bf16.msra.mxu0 0
      %2733 = vmatprep.subr.bf16.mxu0 0
      %2734 = vmatpush1.bf16.msra.mxu0 0
      %2735 = vmatprep.subr.bf16.mxu0 0
      %2736 = vmatpush1.bf16.msra.mxu0 0
      %2737 = vmatprep.subr.bf16.mxu0 0
      %2738 = vmatpush1.bf16.msra.mxu0 0
      %2739 = vmatprep.subr.bf16.mxu0 0
      %2740 = vmatpush1.bf16.msra.mxu0 0
      %2741 = vmatprep.mubr.bf16.mxu0 0
      %2742 = vmatmul.mubr.bf16.gmra.mrb[0].mxu0 %v2704
      %v2743 = vpop.f32.mrb[0].mxu0
      %v2744 = vadd.f32 0.0, %v2743
      %v2745 = vpop.f32.mrb[0].mxu0
      %v2746 = vpop.f32.mrb[0].mxu0
      %v2747 = vadd.f32 0.0, %v2746
      %v2748 = vpop.f32.mrb[0].mxu0
      %2749 = vmatprep.mubr.bf16.mxu0 0
      %2750 = vmatmul.mubr.bf16.gmra.mrb[0].mxu0 %v2707
      %v2751 = vpop.f32.mrb[0].mxu0
      %v2752 = vadd.f32 0.0, %v2751
      %v2753 = vpop.f32.mrb[0].mxu0
      %v2754 = vpop.f32.mrb[0].mxu0
      %v2755 = vadd.f32 0.0, %v2754
      %v2756 = vpop.f32.mrb[0].mxu0
      %2757 = vdwg.mxu0
      %v2758 = vpack.c.bf16 %v2747, %v2744
      %v2759 = vpack.c.bf16 %v2755, %v2752
      %v2760 = vld [vmem:[%s1 + $0x440] sm:$0xf]
      %v2761 = vld [vmem:[%s1 + $0x444] sm:$0xf]
      %v2762 = vld [vmem:[%s1 + $0x448] sm:$0xf]
      %v2763 = vld [vmem:[%s1 + $0x44c] sm:$0xf]
      %v2768 = vunpack.c.l.b16 %v2760
      %v2769 = vunpack.c.l.b16 %v2761
      %v2770 = vunpack.c.l.b16 %v2762
      %v2771 = vunpack.c.l.b16 %v2763
      %v2772 = vpack.c.b16 %v2769, %v2768
      %v2773 = vpack.c.b16 %v2771, %v2770
      %v2775 = vsel %vm2631, %v2772, 0
      %v2778 = vsel %vm2631, %v2773, 0
      %2780 = vmatprep.subr.bf16.mxu0 0
      %2781 = vmatpush1.bf16.msra.mxu0 %v2615
      %2782 = vmatprep.subr.bf16.mxu0 0
      %2783 = vmatpush1.bf16.msra.mxu0 %v2616
      %2784 = vmatprep.subr.bf16.mxu0 0
      %2785 = vmatpush1.bf16.msra.mxu0 0
      %2786 = vmatprep.subr.bf16.mxu0 0
      %2787 = vmatpush1.bf16.msra.mxu0 0
      %2788 = vmatprep.subr.bf16.mxu0 0
      %2789 = vmatpush1.bf16.msra.mxu0 0
      %2790 = vmatprep.subr.bf16.mxu0 0
      %2791 = vmatpush1.bf16.msra.mxu0 0
      %2792 = vmatprep.subr.bf16.mxu0 0
      %2793 = vmatpush1.bf16.msra.mxu0 0
      %2794 = vmatprep.subr.bf16.mxu0 0
      %2795 = vmatpush1.bf16.msra.mxu0 0
      %2796 = vmatprep.subr.bf16.mxu0 0
      %2797 = vmatpush1.bf16.msra.mxu0 0
      %2798 = vmatprep.subr.bf16.mxu0 0
      %2799 = vmatpush1.bf16.msra.mxu0 0
      %2800 = vmatprep.subr.bf16.mxu0 0
      %2801 = vmatpush1.bf16.msra.mxu0 0
      %2802 = vmatprep.subr.bf16.mxu0 0
      %2803 = vmatpush1.bf16.msra.mxu0 0
      %2804 = vmatprep.subr.bf16.mxu0 0
      %2805 = vmatpush1.bf16.msra.mxu0 0
      %2806 = vmatprep.subr.bf16.mxu0 0
      %2807 = vmatpush1.bf16.msra.mxu0 0
      %2808 = vmatprep.subr.bf16.mxu0 0
      %2809 = vmatpush1.bf16.msra.mxu0 0
      %2810 = vmatprep.subr.bf16.mxu0 0
      %2811 = vmatpush1.bf16.msra.mxu0 0
      %2812 = vmatprep.mubr.bf16.mxu0 0
      %2813 = vmatmul.mubr.bf16.gmra.mrb[0].mxu0 %v2775
      %v2814 = vpop.f32.mrb[0].mxu0
      %v2815 = vadd.f32 0.0, %v2814
      %v2816 = vpop.f32.mrb[0].mxu0
      %v2817 = vpop.f32.mrb[0].mxu0
      %v2818 = vadd.f32 0.0, %v2817
      %v2819 = vpop.f32.mrb[0].mxu0
      %2820 = vmatprep.mubr.bf16.mxu0 0
      %2821 = vmatmul.mubr.bf16.gmra.mrb[0].mxu0 %v2778
      %v2822 = vpop.f32.mrb[0].mxu0
      %v2823 = vadd.f32 0.0, %v2822
      %v2824 = vpop.f32.mrb[0].mxu0
      %v2825 = vpop.f32.mrb[0].mxu0
      %v2826 = vadd.f32 0.0, %v2825
      %v2827 = vpop.f32.mrb[0].mxu0
      %2828 = vdwg.mxu0
      %v2829 = vpack.c.bf16 %v2818, %v2815
      %v2830 = vpack.c.bf16 %v2826, %v2823
      %v2831 = vld [vmem:[%s1 + $0x450] sm:$0xf]
      %v2832 = vld [vmem:[%s1 + $0x454] sm:$0xf]
      %v2833 = vld [vmem:[%s1 + $0x458] sm:$0xf]
      %v2834 = vld [vmem:[%s1 + $0x45c] sm:$0xf]
      %v2835 = vld [vmem:[%s1 + $0x460] sm:$0xf]
      %v2836 = vld [vmem:[%s1 + $0x464] sm:$0xf]
      %v2837 = vld [vmem:[%s1 + $0x468] sm:$0xf]
      %v2838 = vld [vmem:[%s1 + $0x46c] sm:$0xf]
      %v2839 = vld [vmem:[%s1 + $0x470] sm:$0xf]
      %v2840 = vld [vmem:[%s1 + $0x474] sm:$0xf]
      %v2841 = vld [vmem:[%s1 + $0x478] sm:$0xf]
      %v2842 = vld [vmem:[%s1 + $0x47c] sm:$0xf]
      %v2843 = vld [vmem:[%s1 + $0x480] sm:$0xf]
      %v2844 = vld [vmem:[%s1 + $0x484] sm:$0xf]
      %v2845 = vld [vmem:[%s1 + $0x488] sm:$0xf]
      %v2846 = vld [vmem:[%s1 + $0x48c] sm:$0xf]
      %v2855 = vunpack.c.l.b16 %v2839
      %v2856 = vunpack.c.l.b16 %v2840
      %v2857 = vunpack.c.l.b16 %v2841
      %v2858 = vunpack.c.l.b16 %v2842
      %v2859 = vunpack.c.l.b16 %v2843
      %v2860 = vunpack.c.l.b16 %v2844
      %v2861 = vunpack.c.l.b16 %v2845
      %v2862 = vunpack.c.l.b16 %v2846
      %v2863 = vpack.c.b16 %v2856, %v2855
      %v2864 = vpack.c.b16 %v2858, %v2857
      %v2865 = vpack.c.b16 %v2860, %v2859
      %v2866 = vpack.c.b16 %v2862, %v2861
      %v2872 = vsel %vm1614, %v2758, 0
      %v2875 = vsel %vm1614, %v2759, 0
      %2877 = vmatprep.subr.bf16.mxu0 0
      %2878 = vmatpush1.bf16.msra.mxu0 %v2863
      %2879 = vmatprep.subr.bf16.mxu0 0
      %2880 = vmatpush1.bf16.msra.mxu0 %v2864
      %2881 = vmatprep.subr.bf16.mxu0 0
      %2882 = vmatpush1.bf16.msra.mxu0 %v2865
      %2883 = vmatprep.subr.bf16.mxu0 0
      %2884 = vmatpush1.bf16.msra.mxu0 %v2866
      %2885 = vmatprep.subr.bf16.mxu0 0
      %2886 = vmatpush1.bf16.msra.mxu0 0
      %2887 = vmatprep.subr.bf16.mxu0 0
      %2888 = vmatpush1.bf16.msra.mxu0 0
      %2889 = vmatprep.subr.bf16.mxu0 0
      %2890 = vmatpush1.bf16.msra.mxu0 0
      %2891 = vmatprep.subr.bf16.mxu0 0
      %2892 = vmatpush1.bf16.msra.mxu0 0
      %2893 = vmatprep.subr.bf16.mxu0 0
      %2894 = vmatpush1.bf16.msra.mxu0 0
      %2895 = vmatprep.subr.bf16.mxu0 0
      %2896 = vmatpush1.bf16.msra.mxu0 0
      %2897 = vmatprep.subr.bf16.mxu0 0
      %2898 = vmatpush1.bf16.msra.mxu0 0
      %2899 = vmatprep.subr.bf16.mxu0 0
      %2900 = vmatpush1.bf16.msra.mxu0 0
      %2901 = vmatprep.subr.bf16.mxu0 0
      %2902 = vmatpush1.bf16.msra.mxu0 0
      %2903 = vmatprep.subr.bf16.mxu0 0
      %2904 = vmatpush1.bf16.msra.mxu0 0
      %2905 = vmatprep.subr.bf16.mxu0 0
      %2906 = vmatpush1.bf16.msra.mxu0 0
      %2907 = vmatprep.subr.bf16.mxu0 0
      %2908 = vmatpush1.bf16.msra.mxu0 0
      %2909 = vmatprep.mubr.bf16.mxu0 0
      %2910 = vmatmul.mubr.bf16.gmra.mrb[0].mxu0 %v2872
      %v2911 = vpop.f32.mrb[0].mxu0
      %v2912 = vadd.f32 0.0, %v2911
      %v2913 = vpop.f32.mrb[0].mxu0
      %v2914 = vpop.f32.mrb[0].mxu0
      %v2915 = vadd.f32 0.0, %v2914
      %v2916 = vpop.f32.mrb[0].mxu0
      %2917 = vmatprep.mubr.bf16.mxu0 0
      %2918 = vmatmul.mubr.bf16.gmra.mrb[0].mxu0 %v2875
      %v2919 = vpop.f32.mrb[0].mxu0
      %v2920 = vadd.f32 0.0, %v2919
      %v2921 = vpop.f32.mrb[0].mxu0
      %v2922 = vpop.f32.mrb[0].mxu0
      %v2923 = vadd.f32 0.0, %v2922
      %v2924 = vpop.f32.mrb[0].mxu0
      %2925 = vdwg.mxu0
      %v2934 = vunpack.c.l.b16 %v2831
      %v2935 = vunpack.c.l.b16 %v2832
      %v2936 = vunpack.c.l.b16 %v2833
      %v2937 = vunpack.c.l.b16 %v2834
      %v2938 = vunpack.c.l.b16 %v2835
      %v2939 = vunpack.c.l.b16 %v2836
      %v2940 = vunpack.c.l.b16 %v2837
      %v2941 = vunpack.c.l.b16 %v2838
      %v2942 = vpack.c.b16 %v2935, %v2934
      %v2943 = vpack.c.b16 %v2937, %v2936
      %v2944 = vpack.c.b16 %v2939, %v2938
      %v2945 = vpack.c.b16 %v2941, %v2940
      %v2951 = vsel %vm1614, %v2687, 0
      %v2954 = vsel %vm1614, %v2688, 0
      %2956 = vmatprep.subr.bf16.mxu0 0
      %2957 = vmatpush1.bf16.msra.mxu0 %v2942
      %2958 = vmatprep.subr.bf16.mxu0 0
      %2959 = vmatpush1.bf16.msra.mxu0 %v2943
      %2960 = vmatprep.subr.bf16.mxu0 0
      %2961 = vmatpush1.bf16.msra.mxu0 %v2944
      %2962 = vmatprep.subr.bf16.mxu0 0
      %2963 = vmatpush1.bf16.msra.mxu0 %v2945
      %2964 = vmatprep.subr.bf16.mxu0 0
      %2965 = vmatpush1.bf16.msra.mxu0 0
      %2966 = vmatprep.subr.bf16.mxu0 0
      %2967 = vmatpush1.bf16.msra.mxu0 0
      %2968 = vmatprep.subr.bf16.mxu0 0
      %2969 = vmatpush1.bf16.msra.mxu0 0
      %2970 = vmatprep.subr.bf16.mxu0 0
      %2971 = vmatpush1.bf16.msra.mxu0 0
      %2972 = vmatprep.subr.bf16.mxu0 0
      %2973 = vmatpush1.bf16.msra.mxu0 0
      %2974 = vmatprep.subr.bf16.mxu0 0
      %2975 = vmatpush1.bf16.msra.mxu0 0
      %2976 = vmatprep.subr.bf16.mxu0 0
      %2977 = vmatpush1.bf16.msra.mxu0 0
      %2978 = vmatprep.subr.bf16.mxu0 0
      %2979 = vmatpush1.bf16.msra.mxu0 0
      %2980 = vmatprep.subr.bf16.mxu0 0
      %2981 = vmatpush1.bf16.msra.mxu0 0
      %2982 = vmatprep.subr.bf16.mxu0 0
      %2983 = vmatpush1.bf16.msra.mxu0 0
      %2984 = vmatprep.subr.bf16.mxu0 0
      %2985 = vmatpush1.bf16.msra.mxu0 0
      %2986 = vmatprep.subr.bf16.mxu0 0
      %2987 = vmatpush1.bf16.msra.mxu0 0
      %2988 = vmatprep.mubr.bf16.mxu0 0
      %2989 = vmatmul.mubr.bf16.gmra.mrb[0].mxu0 %v2951
      %v2990 = vpop.f32.mrb[0].mxu0
      %v2991 = vadd.f32 %v2912, %v2990
      %v2992 = vpop.f32.mrb[0].mxu0
      %v2993 = vpop.f32.mrb[0].mxu0
      %v2994 = vadd.f32 %v2915, %v2993
      %v2995 = vpop.f32.mrb[0].mxu0
      %2996 = vmatprep.mubr.bf16.mxu0 0
      %2997 = vmatmul.mubr.bf16.gmra.mrb[0].mxu0 %v2954
      %v2998 = vpop.f32.mrb[0].mxu0
      %v2999 = vadd.f32 %v2920, %v2998
      %v3000 = vpop.f32.mrb[0].mxu0
      %v3001 = vpop.f32.mrb[0].mxu0
      %v3002 = vadd.f32 %v2923, %v3001
      %v3003 = vpop.f32.mrb[0].mxu0
      %3004 = vdwg.mxu0
      %v3005 = vld [vmem:[%s1 + $0x490] sm:$0xf]
      %v3006 = vld [vmem:[%s1 + $0x494] sm:$0xf]
      %v3007 = vld [vmem:[%s1 + $0x498] sm:$0xf]
      %v3008 = vld [vmem:[%s1 + $0x49c] sm:$0xf]
      %v3009 = vld [vmem:[%s1 + $0x4a0] sm:$0xf]
      %v3010 = vld [vmem:[%s1 + $0x4a4] sm:$0xf]
      %v3011 = vld [vmem:[%s1 + $0x4a8] sm:$0xf]
      %v3012 = vld [vmem:[%s1 + $0x4ac] sm:$0xf]
      %v3021 = vunpack.c.l.b16 %v3005
      %v3022 = vunpack.c.l.b16 %v3006
      %v3023 = vunpack.c.l.b16 %v3007
      %v3024 = vunpack.c.l.b16 %v3008
      %v3025 = vunpack.c.l.b16 %v3009
      %v3026 = vunpack.c.l.b16 %v3010
      %v3027 = vunpack.c.l.b16 %v3011
      %v3028 = vunpack.c.l.b16 %v3012
      %v3029 = vpack.c.b16 %v3022, %v3021
      %v3030 = vpack.c.b16 %v3024, %v3023
      %v3031 = vpack.c.b16 %v3026, %v3025
      %v3032 = vpack.c.b16 %v3028, %v3027
      %v3038 = vsel %vm1614, %v2829, 0
      %v3041 = vsel %vm1614, %v2830, 0
      %3043 = vmatprep.subr.bf16.mxu0 0
      %3044 = vmatpush1.bf16.msra.mxu0 %v3029
      %3045 = vmatprep.subr.bf16.mxu0 0
      %3046 = vmatpush1.bf16.msra.mxu0 %v3030
      %3047 = vmatprep.subr.bf16.mxu0 0
      %3048 = vmatpush1.bf16.msra.mxu0 %v3031
      %3049 = vmatprep.subr.bf16.mxu0 0
      %3050 = vmatpush1.bf16.msra.mxu0 %v3032
      %3051 = vmatprep.subr.bf16.mxu0 0
      %3052 = vmatpush1.bf16.msra.mxu0 0
      %3053 = vmatprep.subr.bf16.mxu0 0
      %3054 = vmatpush1.bf16.msra.mxu0 0
      %3055 = vmatprep.subr.bf16.mxu0 0
      %3056 = vmatpush1.bf16.msra.mxu0 0
      %3057 = vmatprep.subr.bf16.mxu0 0
      %3058 = vmatpush1.bf16.msra.mxu0 0
      %3059 = vmatprep.subr.bf16.mxu0 0
      %3060 = vmatpush1.bf16.msra.mxu0 0
      %3061 = vmatprep.subr.bf16.mxu0 0
      %3062 = vmatpush1.bf16.msra.mxu0 0
      %3063 = vmatprep.subr.bf16.mxu0 0
      %3064 = vmatpush1.bf16.msra.mxu0 0
      %3065 = vmatprep.subr.bf16.mxu0 0
      %3066 = vmatpush1.bf16.msra.mxu0 0
      %3067 = vmatprep.subr.bf16.mxu0 0
      %3068 = vmatpush1.bf16.msra.mxu0 0
      %3069 = vmatprep.subr.bf16.mxu0 0
      %3070 = vmatpush1.bf16.msra.mxu0 0
      %3071 = vmatprep.subr.bf16.mxu0 0
      %3072 = vmatpush1.bf16.msra.mxu0 0
      %3073 = vmatprep.subr.bf16.mxu0 0
      %3074 = vmatpush1.bf16.msra.mxu0 0
      %3075 = vmatprep.mubr.bf16.mxu0 0
      %3076 = vmatmul.mubr.bf16.gmra.mrb[0].mxu0 %v3038
      %v3077 = vpop.f32.mrb[0].mxu0
      %v3078 = vadd.f32 0.0, %v3077
      %v3079 = vpop.f32.mrb[0].mxu0
      %v3080 = vpop.f32.mrb[0].mxu0
      %v3081 = vadd.f32 0.0, %v3080
      %v3082 = vpop.f32.mrb[0].mxu0
      %3083 = vmatprep.mubr.bf16.mxu0 0
      %3084 = vmatmul.mubr.bf16.gmra.mrb[0].mxu0 %v3041
      %v3085 = vpop.f32.mrb[0].mxu0
      %v3086 = vadd.f32 0.0, %v3085
      %v3087 = vpop.f32.mrb[0].mxu0
      %v3088 = vpop.f32.mrb[0].mxu0
      %v3089 = vadd.f32 0.0, %v3088
      %v3090 = vpop.f32.mrb[0].mxu0
      %3091 = vdwg.mxu0
      %v3092 = vadd.f32 %v2991, %v3078
      %v3093 = vadd.f32 %v2994, %v3081
      %v3094 = vadd.f32 %v2999, %v3086
      %v3095 = vadd.f32 %v3002, %v3089
      %v3096 = vld [vmem:[%s1 + $0x4b0] sm:$0xf]
      %v3097 = vld [vmem:[%s1 + $0x4b4] sm:$0xf]
      %v3098 = vld [vmem:[%s1 + $0x4b8] sm:$0xf]
      %v3099 = vld [vmem:[%s1 + $0x4bc] sm:$0xf]
      %v3100 = vld [vmem:[%s1 + $0x4c0] sm:$0xf]
      %v3101 = vld [vmem:[%s1 + $0x4c4] sm:$0xf]
      %v3102 = vld [vmem:[%s1 + $0x4c8] sm:$0xf]
      %v3103 = vld [vmem:[%s1 + $0x4cc] sm:$0xf]
      %v3104 = vld [vmem:[%s1 + $0x4d0] sm:$0xf]
      %v3105 = vld [vmem:[%s1 + $0x4d4] sm:$0xf]
      %v3106 = vld [vmem:[%s1 + $0x4d8] sm:$0xf]
      %v3107 = vld [vmem:[%s1 + $0x4dc] sm:$0xf]
      %v3108 = vld [vmem:[%s1 + $0x4e0] sm:$0xf]
      %v3109 = vld [vmem:[%s1 + $0x4e4] sm:$0xf]
      %v3110 = vld [vmem:[%s1 + $0x4e8] sm:$0xf]
      %v3111 = vld [vmem:[%s1 + $0x4ec] sm:$0xf]
      %v3120 = vunpack.c.l.b16 %v3104
      %v3121 = vunpack.c.l.b16 %v3105
      %v3122 = vunpack.c.l.b16 %v3106
      %v3123 = vunpack.c.l.b16 %v3107
      %v3124 = vunpack.c.l.b16 %v3108
      %v3125 = vunpack.c.l.b16 %v3109
      %v3126 = vunpack.c.l.b16 %v3110
      %v3127 = vunpack.c.l.b16 %v3111
      %v3128 = vpack.c.b16 %v3121, %v3120
      %v3129 = vpack.c.b16 %v3123, %v3122
      %v3130 = vpack.c.b16 %v3125, %v3124
      %v3131 = vpack.c.b16 %v3127, %v3126
      %3136 = vmatprep.subr.bf16.mxu0 0
      %3137 = vmatpush1.bf16.msra.mxu0 %v3128
      %3138 = vmatprep.subr.bf16.mxu0 0
      %3139 = vmatpush1.bf16.msra.mxu0 %v3129
      %3140 = vmatprep.subr.bf16.mxu0 0
      %3141 = vmatpush1.bf16.msra.mxu0 %v3130
      %3142 = vmatprep.subr.bf16.mxu0 0
      %3143 = vmatpush1.bf16.msra.mxu0 %v3131
      %3144 = vmatprep.subr.bf16.mxu0 0
      %3145 = vmatpush1.bf16.msra.mxu0 0
      %3146 = vmatprep.subr.bf16.mxu0 0
      %3147 = vmatpush1.bf16.msra.mxu0 0
      %3148 = vmatprep.subr.bf16.mxu0 0
      %3149 = vmatpush1.bf16.msra.mxu0 0
      %3150 = vmatprep.subr.bf16.mxu0 0
      %3151 = vmatpush1.bf16.msra.mxu0 0
      %3152 = vmatprep.subr.bf16.mxu0 0
      %3153 = vmatpush1.bf16.msra.mxu0 0
      %3154 = vmatprep.subr.bf16.mxu0 0
      %3155 = vmatpush1.bf16.msra.mxu0 0
      %3156 = vmatprep.subr.bf16.mxu0 0
      %3157 = vmatpush1.bf16.msra.mxu0 0
      %3158 = vmatprep.subr.bf16.mxu0 0
      %3159 = vmatpush1.bf16.msra.mxu0 0
      %3160 = vmatprep.subr.bf16.mxu0 0
      %3161 = vmatpush1.bf16.msra.mxu0 0
      %3162 = vmatprep.subr.bf16.mxu0 0
      %3163 = vmatpush1.bf16.msra.mxu0 0
      %3164 = vmatprep.subr.bf16.mxu0 0
      %3165 = vmatpush1.bf16.msra.mxu0 0
      %3166 = vmatprep.subr.bf16.mxu0 0
      %3167 = vmatpush1.bf16.msra.mxu0 0
      %3168 = vmatprep.mubr.bf16.mxu0 0
      %3169 = vmatmul.mubr.bf16.gmra.mrb[0].mxu0 %v2872
      %v3170 = vpop.f32.mrb[0].mxu0
      %v3171 = vadd.f32 0.0, %v3170
      %v3172 = vpop.f32.mrb[0].mxu0
      %v3173 = vpop.f32.mrb[0].mxu0
      %v3174 = vadd.f32 0.0, %v3173
      %v3175 = vpop.f32.mrb[0].mxu0
      %3176 = vmatprep.mubr.bf16.mxu0 0
      %3177 = vmatmul.mubr.bf16.gmra.mrb[0].mxu0 %v2875
      %v3178 = vpop.f32.mrb[0].mxu0
      %v3179 = vadd.f32 0.0, %v3178
      %v3180 = vpop.f32.mrb[0].mxu0
      %v3181 = vpop.f32.mrb[0].mxu0
      %v3182 = vadd.f32 0.0, %v3181
      %v3183 = vpop.f32.mrb[0].mxu0
      %3184 = vdwg.mxu0
      %v3193 = vunpack.c.l.b16 %v3096
      %v3194 = vunpack.c.l.b16 %v3097
      %v3195 = vunpack.c.l.b16 %v3098
      %v3196 = vunpack.c.l.b16 %v3099
      %v3197 = vunpack.c.l.b16 %v3100
      %v3198 = vunpack.c.l.b16 %v3101
      %v3199 = vunpack.c.l.b16 %v3102
      %v3200 = vunpack.c.l.b16 %v3103
      %v3201 = vpack.c.b16 %v3194, %v3193
      %v3202 = vpack.c.b16 %v3196, %v3195
      %v3203 = vpack.c.b16 %v3198, %v3197
      %v3204 = vpack.c.b16 %v3200, %v3199
      %3209 = vmatprep.subr.bf16.mxu0 0
      %3210 = vmatpush1.bf16.msra.mxu0 %v3201
      %3211 = vmatprep.subr.bf16.mxu0 0
      %3212 = vmatpush1.bf16.msra.mxu0 %v3202
      %3213 = vmatprep.subr.bf16.mxu0 0
      %3214 = vmatpush1.bf16.msra.mxu0 %v3203
      %3215 = vmatprep.subr.bf16.mxu0 0
      %3216 = vmatpush1.bf16.msra.mxu0 %v3204
      %3217 = vmatprep.subr.bf16.mxu0 0
      %3218 = vmatpush1.bf16.msra.mxu0 0
      %3219 = vmatprep.subr.bf16.mxu0 0
      %3220 = vmatpush1.bf16.msra.mxu0 0
      %3221 = vmatprep.subr.bf16.mxu0 0
      %3222 = vmatpush1.bf16.msra.mxu0 0
      %3223 = vmatprep.subr.bf16.mxu0 0
      %3224 = vmatpush1.bf16.msra.mxu0 0
      %3225 = vmatprep.subr.bf16.mxu0 0
      %3226 = vmatpush1.bf16.msra.mxu0 0
      %3227 = vmatprep.subr.bf16.mxu0 0
      %3228 = vmatpush1.bf16.msra.mxu0 0
      %3229 = vmatprep.subr.bf16.mxu0 0
      %3230 = vmatpush1.bf16.msra.mxu0 0
      %3231 = vmatprep.subr.bf16.mxu0 0
      %3232 = vmatpush1.bf16.msra.mxu0 0
      %3233 = vmatprep.subr.bf16.mxu0 0
      %3234 = vmatpush1.bf16.msra.mxu0 0
      %3235 = vmatprep.subr.bf16.mxu0 0
      %3236 = vmatpush1.bf16.msra.mxu0 0
      %3237 = vmatprep.subr.bf16.mxu0 0
      %3238 = vmatpush1.bf16.msra.mxu0 0
      %3239 = vmatprep.subr.bf16.mxu0 0
      %3240 = vmatpush1.bf16.msra.mxu0 0
      %3241 = vmatprep.mubr.bf16.mxu0 0
      %3242 = vmatmul.mubr.bf16.gmra.mrb[0].mxu0 %v2951
      %v3243 = vpop.f32.mrb[0].mxu0
      %v3244 = vadd.f32 %v3171, %v3243
      %v3245 = vpop.f32.mrb[0].mxu0
      %v3246 = vpop.f32.mrb[0].mxu0
      %v3247 = vadd.f32 %v3174, %v3246
      %v3248 = vpop.f32.mrb[0].mxu0
      %3249 = vmatprep.mubr.bf16.mxu0 0
      %3250 = vmatmul.mubr.bf16.gmra.mrb[0].mxu0 %v2954
      %v3251 = vpop.f32.mrb[0].mxu0
      %v3252 = vadd.f32 %v3179, %v3251
      %v3253 = vpop.f32.mrb[0].mxu0
      %v3254 = vpop.f32.mrb[0].mxu0
      %v3255 = vadd.f32 %v3182, %v3254
      %v3256 = vpop.f32.mrb[0].mxu0
      %3257 = vdwg.mxu0
      %v3258 = vld [vmem:[%s1 + $0x4f0] sm:$0xf]
      %v3259 = vld [vmem:[%s1 + $0x4f4] sm:$0xf]
      %v3260 = vld [vmem:[%s1 + $0x4f8] sm:$0xf]
      %v3261 = vld [vmem:[%s1 + $0x4fc] sm:$0xf]
      %v3262 = vld [vmem:[%s1 + $0x500] sm:$0xf]
      %v3263 = vld [vmem:[%s1 + $0x504] sm:$0xf]
      %v3264 = vld [vmem:[%s1 + $0x508] sm:$0xf]
      %v3265 = vld [vmem:[%s1 + $0x50c] sm:$0xf]
      %v3274 = vunpack.c.l.b16 %v3258
      %v3275 = vunpack.c.l.b16 %v3259
      %v3276 = vunpack.c.l.b16 %v3260
      %v3277 = vunpack.c.l.b16 %v3261
      %v3278 = vunpack.c.l.b16 %v3262
      %v3279 = vunpack.c.l.b16 %v3263
      %v3280 = vunpack.c.l.b16 %v3264
      %v3281 = vunpack.c.l.b16 %v3265
      %v3282 = vpack.c.b16 %v3275, %v3274
      %v3283 = vpack.c.b16 %v3277, %v3276
      %v3284 = vpack.c.b16 %v3279, %v3278
      %v3285 = vpack.c.b16 %v3281, %v3280
      %3290 = vmatprep.subr.bf16.mxu0 0
      %3291 = vmatpush1.bf16.msra.mxu0 %v3282
      %3292 = vmatprep.subr.bf16.mxu0 0
      %3293 = vmatpush1.bf16.msra.mxu0 %v3283
      %3294 = vmatprep.subr.bf16.mxu0 0
      %3295 = vmatpush1.bf16.msra.mxu0 %v3284
      %3296 = vmatprep.subr.bf16.mxu0 0
      %3297 = vmatpush1.bf16.msra.mxu0 %v3285
      %3298 = vmatprep.subr.bf16.mxu0 0
      %3299 = vmatpush1.bf16.msra.mxu0 0
      %3300 = vmatprep.subr.bf16.mxu0 0
      %3301 = vmatpush1.bf16.msra.mxu0 0
      %3302 = vmatprep.subr.bf16.mxu0 0
      %3303 = vmatpush1.bf16.msra.mxu0 0
      %3304 = vmatprep.subr.bf16.mxu0 0
      %3305 = vmatpush1.bf16.msra.mxu0 0
      %3306 = vmatprep.subr.bf16.mxu0 0
      %3307 = vmatpush1.bf16.msra.mxu0 0
      %3308 = vmatprep.subr.bf16.mxu0 0
      %3309 = vmatpush1.bf16.msra.mxu0 0
      %3310 = vmatprep.subr.bf16.mxu0 0
      %3311 = vmatpush1.bf16.msra.mxu0 0
      %3312 = vmatprep.subr.bf16.mxu0 0
      %3313 = vmatpush1.bf16.msra.mxu0 0
      %3314 = vmatprep.subr.bf16.mxu0 0
      %3315 = vmatpush1.bf16.msra.mxu0 0
      %3316 = vmatprep.subr.bf16.mxu0 0
      %3317 = vmatpush1.bf16.msra.mxu0 0
      %3318 = vmatprep.subr.bf16.mxu0 0
      %3319 = vmatpush1.bf16.msra.mxu0 0
      %3320 = vmatprep.subr.bf16.mxu0 0
      %3321 = vmatpush1.bf16.msra.mxu0 0
      %3322 = vmatprep.mubr.bf16.mxu0 0
      %3323 = vmatmul.mubr.bf16.gmra.mrb[0].mxu0 %v3038
      %v3324 = vpop.f32.mrb[0].mxu0
      %v3325 = vadd.f32 0.0, %v3324
      %v3326 = vpop.f32.mrb[0].mxu0
      %v3327 = vpop.f32.mrb[0].mxu0
      %v3328 = vadd.f32 0.0, %v3327
      %v3329 = vpop.f32.mrb[0].mxu0
      %3330 = vmatprep.mubr.bf16.mxu0 0
      %3331 = vmatmul.mubr.bf16.gmra.mrb[0].mxu0 %v3041
      %v3332 = vpop.f32.mrb[0].mxu0
      %v3333 = vadd.f32 0.0, %v3332
      %v3334 = vpop.f32.mrb[0].mxu0
      %v3335 = vpop.f32.mrb[0].mxu0
      %v3336 = vadd.f32 0.0, %v3335
      %v3337 = vpop.f32.mrb[0].mxu0
      %3338 = vdwg.mxu0
      %v3339 = vadd.f32 %v3244, %v3325
      %v3340 = vadd.f32 %v3247, %v3328
      %v3341 = vadd.f32 %v3252, %v3333
      %v3342 = vadd.f32 %v3255, %v3336
      %v3343 = vmax.f32 %v3092, %v3339
      %v3344 = vmax.f32 %v3093, %v3340
      %v3345 = vmax.f32 %v3094, %v3341
      %v3346 = vmax.f32 %v3095, %v3342
      %v3347 = vmax.f32 %v3343, %v3345
      %v3348 = vmax.f32 %v3344, %v3346
      %v3349 = vld [vmem:[%s2 + $0x10] sm:$0x1]
      %v3350 = vlaneseq
      %v3351 = vshrl.u32 %v3350, 7
      %v3352 = vsub.s32 0, %v3351
      %v3353 = vrot.slane %v3349, %v3352
      %v3354 = vadd.f32 %v3347, %v3353
      %v3355 = vadd.f32 %v3348, %v3353
      %v3356 = vmul.f32 %v3354, 0.5
      %v3357 = vmul.f32 %v3355, 0.5
      %v3358 = vmul.f32 %v3354, 0.044715
      %v3359 = vmul.f32 %v3355, 0.044715
      %v3360 = vmul.f32 %v3358, %v3354
      %v3361 = vmul.f32 %v3359, %v3355
      %v3362 = vmul.f32 %v3360, %v3354
      %v3363 = vmul.f32 %v3361, %v3355
      %v3364 = vadd.f32 %v3354, %v3362
      %v3365 = vadd.f32 %v3355, %v3363
      %v3366 = vmul.f32 %v3364, 0.7978846
      %v3367 = vmul.f32 %v3365, 0.7978846
      %v3368 = vtanh.pop %v3366
      %v3369 = vtanh.pop %v3367
      %v3370 = vadd.f32 %v3368, 1.0
      %v3371 = vadd.f32 %v3369, 1.0
      %v3372 = vmul.f32 %v3356, %v3370
      %v3373 = vmul.f32 %v3357, %v3371
      %v3374 = vpack.c.bf16 %v3373, %v3372
      %v3375 = vld [vmem:[%s1 + $0x510] sm:$0xf]
      %v3376 = vld [vmem:[%s1 + $0x514] sm:$0xf]
      %v3379 = vunpack.c.l.b16 %v3375
      %v3380 = vunpack.c.l.b16 %v3376
      %v3381 = vpack.c.b16 %v3380, %v3379
      %vm3382 = vcmask 130048
      %v3384 = vsel %vm3382, %v3381, 0
      %3386 = vmatprep.subr.bf16.mxu0 0
      %3387 = vmatpush1.bf16.msra.mxu0 %v3374
      %3388 = vmatprep.subr.bf16.mxu0 0
      %3389 = vmatpush1.bf16.msra.mxu0 0
      %3390 = vmatprep.subr.bf16.mxu0 0
      %3391 = vmatpush1.bf16.msra.mxu0 0
      %3392 = vmatprep.subr.bf16.mxu0 0
      %3393 = vmatpush1.bf16.msra.mxu0 0
      %3394 = vmatprep.subr.bf16.mxu0 0
      %3395 = vmatpush1.bf16.msra.mxu0 0
      %3396 = vmatprep.subr.bf16.mxu0 0
      %3397 = vmatpush1.bf16.msra.mxu0 0
      %3398 = vmatprep.subr.bf16.mxu0 0
      %3399 = vmatpush1.bf16.msra.mxu0 0
      %3400 = vmatprep.subr.bf16.mxu0 0
      %3401 = vmatpush1.bf16.msra.mxu0 0
      %3402 = vmatprep.subr.bf16.mxu0 0
      %3403 = vmatpush1.bf16.msra.mxu0 0
      %3404 = vmatprep.subr.bf16.mxu0 0
      %3405 = vmatpush1.bf16.msra.mxu0 0
      %3406 = vmatprep.subr.bf16.mxu0 0
      %3407 = vmatpush1.bf16.msra.mxu0 0
      %3408 = vmatprep.subr.bf16.mxu0 0
      %3409 = vmatpush1.bf16.msra.mxu0 0
      %3410 = vmatprep.subr.bf16.mxu0 0
      %3411 = vmatpush1.bf16.msra.mxu0 0
      %3412 = vmatprep.subr.bf16.mxu0 0
      %3413 = vmatpush1.bf16.msra.mxu0 0
      %3414 = vmatprep.subr.bf16.mxu0 0
      %3415 = vmatpush1.bf16.msra.mxu0 0
      %3416 = vmatprep.subr.bf16.mxu0 0
      %3417 = vmatpush1.bf16.msra.mxu0 0
      %3418 = vmatprep.mubr.bf16.mxu0 0
      %3419 = vmatmul.mubr.bf16.gmra.mrb[0].mxu0 %v3384
      %v3420 = vpop.f32.mrb[0].mxu0
      %v3421 = vadd.f32 0.0, %v3420
      %v3422 = vpop.f32.mrb[0].mxu0
      %v3423 = vpop.f32.mrb[0].mxu0
      %v3424 = vadd.f32 0.0, %v3423
      %v3425 = vpop.f32.mrb[0].mxu0
      %3426 = vdwg.mxu0
      %v3427 = vpack.c.bf16 %v3424, %v3421
      %v3428 = vld [vmem:[%s1 + $0x518] sm:$0xf]
      %v3429 = vld [vmem:[%s1 + $0x51c] sm:$0xf]
      %v3432 = vunpack.c.l.b16 %v3428
      %v3433 = vunpack.c.l.b16 %v3429
      %v3434 = vpack.c.b16 %v3433, %v3432
      %v3436 = vsel %vm3382, %v3434, 0
      %3438 = vmatprep.subr.bf16.mxu0 0
      %3439 = vmatpush1.bf16.msra.mxu0 %v3374
      %3440 = vmatprep.subr.bf16.mxu0 0
      %3441 = vmatpush1.bf16.msra.mxu0 0
      %3442 = vmatprep.subr.bf16.mxu0 0
      %3443 = vmatpush1.bf16.msra.mxu0 0
      %3444 = vmatprep.subr.bf16.mxu0 0
      %3445 = vmatpush1.bf16.msra.mxu0 0
      %3446 = vmatprep.subr.bf16.mxu0 0
      %3447 = vmatpush1.bf16.msra.mxu0 0
      %3448 = vmatprep.subr.bf16.mxu0 0
      %3449 = vmatpush1.bf16.msra.mxu0 0
      %3450 = vmatprep.subr.bf16.mxu0 0
      %3451 = vmatpush1.bf16.msra.mxu0 0
      %3452 = vmatprep.subr.bf16.mxu0 0
      %3453 = vmatpush1.bf16.msra.mxu0 0
      %3454 = vmatprep.subr.bf16.mxu0 0
      %3455 = vmatpush1.bf16.msra.mxu0 0
      %3456 = vmatprep.subr.bf16.mxu0 0
      %3457 = vmatpush1.bf16.msra.mxu0 0
      %3458 = vmatprep.subr.bf16.mxu0 0
      %3459 = vmatpush1.bf16.msra.mxu0 0
      %3460 = vmatprep.subr.bf16.mxu0 0
      %3461 = vmatpush1.bf16.msra.mxu0 0
      %3462 = vmatprep.subr.bf16.mxu0 0
      %3463 = vmatpush1.bf16.msra.mxu0 0
      %3464 = vmatprep.subr.bf16.mxu0 0
      %3465 = vmatpush1.bf16.msra.mxu0 0
      %3466 = vmatprep.subr.bf16.mxu0 0
      %3467 = vmatpush1.bf16.msra.mxu0 0
      %3468 = vmatprep.subr.bf16.mxu0 0
      %3469 = vmatpush1.bf16.msra.mxu0 0
      %3470 = vmatprep.mubr.bf16.mxu0 0
      %3471 = vmatmul.mubr.bf16.gmra.mrb[0].mxu0 %v3436
      %v3472 = vpop.f32.mrb[0].mxu0
      %v3473 = vadd.f32 0.0, %v3472
      %v3474 = vpop.f32.mrb[0].mxu0
      %v3475 = vpop.f32.mrb[0].mxu0
      %v3476 = vadd.f32 0.0, %v3475
      %v3477 = vpop.f32.mrb[0].mxu0
      %3478 = vdwg.mxu0
      %v3479 = vpack.c.bf16 %v3476, %v3473
      %v3480 = vld [vmem:[%s1 + $0x520] sm:$0xf]
      %v3481 = vld [vmem:[%s1 + $0x524] sm:$0xf]
      %v3484 = vunpack.c.l.b16 %v3480
      %v3485 = vunpack.c.l.b16 %v3481
      %v3486 = vpack.c.b16 %v3485, %v3484
      %v3488 = vsel %vm3382, %v3486, 0
      %3490 = vmatprep.subr.bf16.mxu0 0
      %3491 = vmatpush1.bf16.msra.mxu0 %v3374
      %3492 = vmatprep.subr.bf16.mxu0 0
      %3493 = vmatpush1.bf16.msra.mxu0 0
      %3494 = vmatprep.subr.bf16.mxu0 0
      %3495 = vmatpush1.bf16.msra.mxu0 0
      %3496 = vmatprep.subr.bf16.mxu0 0
      %3497 = vmatpush1.bf16.msra.mxu0 0
      %3498 = vmatprep.subr.bf16.mxu0 0
      %3499 = vmatpush1.bf16.msra.mxu0 0
      %3500 = vmatprep.subr.bf16.mxu0 0
      %3501 = vmatpush1.bf16.msra.mxu0 0
      %3502 = vmatprep.subr.bf16.mxu0 0
      %3503 = vmatpush1.bf16.msra.mxu0 0
      %3504 = vmatprep.subr.bf16.mxu0 0
      %3505 = vmatpush1.bf16.msra.mxu0 0
      %3506 = vmatprep.subr.bf16.mxu0 0
      %3507 = vmatpush1.bf16.msra.mxu0 0
      %3508 = vmatprep.subr.bf16.mxu0 0
      %3509 = vmatpush1.bf16.msra.mxu0 0
      %3510 = vmatprep.subr.bf16.mxu0 0
      %3511 = vmatpush1.bf16.msra.mxu0 0
      %3512 = vmatprep.subr.bf16.mxu0 0
      %3513 = vmatpush1.bf16.msra.mxu0 0
      %3514 = vmatprep.subr.bf16.mxu0 0
      %3515 = vmatpush1.bf16.msra.mxu0 0
      %3516 = vmatprep.subr.bf16.mxu0 0
      %3517 = vmatpush1.bf16.msra.mxu0 0
      %3518 = vmatprep.subr.bf16.mxu0 0
      %3519 = vmatpush1.bf16.msra.mxu0 0
      %3520 = vmatprep.subr.bf16.mxu0 0
      %3521 = vmatpush1.bf16.msra.mxu0 0
      %3522 = vmatprep.mubr.bf16.mxu0 0
      %3523 = vmatmul.mubr.bf16.gmra.mrb[0].mxu0 %v3488
      %v3524 = vpop.f32.mrb[0].mxu0
      %v3525 = vadd.f32 0.0, %v3524
      %v3526 = vpop.f32.mrb[0].mxu0
      %v3527 = vpop.f32.mrb[0].mxu0
      %v3528 = vadd.f32 0.0, %v3527
      %v3529 = vpop.f32.mrb[0].mxu0
      %3530 = vdwg.mxu0
      %v3531 = vpack.c.bf16 %v3528, %v3525
      %v3532 = vld [vmem:[%s1 + $0x528] sm:$0xf]
      %v3533 = vld [vmem:[%s1 + $0x52c] sm:$0xf]
      %v3534 = vld [vmem:[%s1 + $0x530] sm:$0xf]
      %v3535 = vld [vmem:[%s1 + $0x534] sm:$0xf]
      %v3536 = vld [vmem:[%s1 + $0x538] sm:$0xf]
      %v3537 = vld [vmem:[%s1 + $0x53c] sm:$0xf]
      %v3538 = vld [vmem:[%s1 + $0x540] sm:$0xf]
      %v3539 = vld [vmem:[%s1 + $0x544] sm:$0xf]
      %v3540 = vld [vmem:[%s1 + $0x548] sm:$0xf]
      %v3541 = vld [vmem:[%s1 + $0x54c] sm:$0xf]
      %v3542 = vld [vmem:[%s1 + $0x550] sm:$0xf]
      %v3543 = vld [vmem:[%s1 + $0x554] sm:$0xf]
      %v3544 = vld [vmem:[%s1 + $0x558] sm:$0xf]
      %v3545 = vld [vmem:[%s1 + $0x55c] sm:$0xf]
      %v3546 = vld [vmem:[%s1 + $0x560] sm:$0xf]
      %v3547 = vld [vmem:[%s1 + $0x564] sm:$0xf]
      %v3556 = vunpack.c.l.b16 %v3540
      %v3557 = vunpack.c.l.b16 %v3541
      %v3558 = vunpack.c.l.b16 %v3542
      %v3559 = vunpack.c.l.b16 %v3543
      %v3560 = vunpack.c.l.b16 %v3544
      %v3561 = vunpack.c.l.b16 %v3545
      %v3562 = vunpack.c.l.b16 %v3546
      %v3563 = vunpack.c.l.b16 %v3547
      %v3564 = vpack.c.b16 %v3557, %v3556
      %v3565 = vpack.c.b16 %v3559, %v3558
      %v3566 = vpack.c.b16 %v3561, %v3560
      %v3567 = vpack.c.b16 %v3563, %v3562
      %v3573 = vsel %vm1614, %v3479, 0
      %3575 = vmatprep.subr.bf16.mxu0 0
      %3576 = vmatpush1.bf16.msra.mxu0 %v3564
      %3577 = vmatprep.subr.bf16.mxu0 0
      %3578 = vmatpush1.bf16.msra.mxu0 %v3565
      %3579 = vmatprep.subr.bf16.mxu0 0
      %3580 = vmatpush1.bf16.msra.mxu0 %v3566
      %3581 = vmatprep.subr.bf16.mxu0 0
      %3582 = vmatpush1.bf16.msra.mxu0 %v3567
      %3583 = vmatprep.subr.bf16.mxu0 0
      %3584 = vmatpush1.bf16.msra.mxu0 0
      %3585 = vmatprep.subr.bf16.mxu0 0
      %3586 = vmatpush1.bf16.msra.mxu0 0
      %3587 = vmatprep.subr.bf16.mxu0 0
      %3588 = vmatpush1.bf16.msra.mxu0 0
      %3589 = vmatprep.subr.bf16.mxu0 0
      %3590 = vmatpush1.bf16.msra.mxu0 0
      %3591 = vmatprep.subr.bf16.mxu0 0
      %3592 = vmatpush1.bf16.msra.mxu0 0
      %3593 = vmatprep.subr.bf16.mxu0 0
      %3594 = vmatpush1.bf16.msra.mxu0 0
      %3595 = vmatprep.subr.bf16.mxu0 0
      %3596 = vmatpush1.bf16.msra.mxu0 0
      %3597 = vmatprep.subr.bf16.mxu0 0
      %3598 = vmatpush1.bf16.msra.mxu0 0
      %3599 = vmatprep.subr.bf16.mxu0 0
      %3600 = vmatpush1.bf16.msra.mxu0 0
      %3601 = vmatprep.subr.bf16.mxu0 0
      %3602 = vmatpush1.bf16.msra.mxu0 0
      %3603 = vmatprep.subr.bf16.mxu0 0
      %3604 = vmatpush1.bf16.msra.mxu0 0
      %3605 = vmatprep.subr.bf16.mxu0 0
      %3606 = vmatpush1.bf16.msra.mxu0 0
      %3607 = vmatprep.mubr.bf16.mxu0 0
      %3608 = vmatmul.mubr.bf16.gmra.mrb[0].mxu0 %v3573
      %v3609 = vpop.f32.mrb[0].mxu0
      %v3610 = vadd.f32 0.0, %v3609
      %v3611 = vpop.f32.mrb[0].mxu0
      %v3612 = vpop.f32.mrb[0].mxu0
      %v3613 = vadd.f32 0.0, %v3612
      %v3614 = vpop.f32.mrb[0].mxu0
      %3615 = vdwg.mxu0
      %v3624 = vunpack.c.l.b16 %v3532
      %v3625 = vunpack.c.l.b16 %v3533
      %v3626 = vunpack.c.l.b16 %v3534
      %v3627 = vunpack.c.l.b16 %v3535
      %v3628 = vunpack.c.l.b16 %v3536
      %v3629 = vunpack.c.l.b16 %v3537
      %v3630 = vunpack.c.l.b16 %v3538
      %v3631 = vunpack.c.l.b16 %v3539
      %v3632 = vpack.c.b16 %v3625, %v3624
      %v3633 = vpack.c.b16 %v3627, %v3626
      %v3634 = vpack.c.b16 %v3629, %v3628
      %v3635 = vpack.c.b16 %v3631, %v3630
      %v3641 = vsel %vm1614, %v3427, 0
      %3643 = vmatprep.subr.bf16.mxu0 0
      %3644 = vmatpush1.bf16.msra.mxu0 %v3632
      %3645 = vmatprep.subr.bf16.mxu0 0
      %3646 = vmatpush1.bf16.msra.mxu0 %v3633
      %3647 = vmatprep.subr.bf16.mxu0 0
      %3648 = vmatpush1.bf16.msra.mxu0 %v3634
      %3649 = vmatprep.subr.bf16.mxu0 0
      %3650 = vmatpush1.bf16.msra.mxu0 %v3635
      %3651 = vmatprep.subr.bf16.mxu0 0
      %3652 = vmatpush1.bf16.msra.mxu0 0
      %3653 = vmatprep.subr.bf16.mxu0 0
      %3654 = vmatpush1.bf16.msra.mxu0 0
      %3655 = vmatprep.subr.bf16.mxu0 0
      %3656 = vmatpush1.bf16.msra.mxu0 0
      %3657 = vmatprep.subr.bf16.mxu0 0
      %3658 = vmatpush1.bf16.msra.mxu0 0
      %3659 = vmatprep.subr.bf16.mxu0 0
      %3660 = vmatpush1.bf16.msra.mxu0 0
      %3661 = vmatprep.subr.bf16.mxu0 0
      %3662 = vmatpush1.bf16.msra.mxu0 0
      %3663 = vmatprep.subr.bf16.mxu0 0
      %3664 = vmatpush1.bf16.msra.mxu0 0
      %3665 = vmatprep.subr.bf16.mxu0 0
      %3666 = vmatpush1.bf16.msra.mxu0 0
      %3667 = vmatprep.subr.bf16.mxu0 0
      %3668 = vmatpush1.bf16.msra.mxu0 0
      %3669 = vmatprep.subr.bf16.mxu0 0
      %3670 = vmatpush1.bf16.msra.mxu0 0
      %3671 = vmatprep.subr.bf16.mxu0 0
      %3672 = vmatpush1.bf16.msra.mxu0 0
      %3673 = vmatprep.subr.bf16.mxu0 0
      %3674 = vmatpush1.bf16.msra.mxu0 0
      %3675 = vmatprep.mubr.bf16.mxu0 0
      %3676 = vmatmul.mubr.bf16.gmra.mrb[0].mxu0 %v3641
      %v3677 = vpop.f32.mrb[0].mxu0
      %v3678 = vadd.f32 %v3610, %v3677
      %v3679 = vpop.f32.mrb[0].mxu0
      %v3680 = vpop.f32.mrb[0].mxu0
      %v3681 = vadd.f32 %v3613, %v3680
      %v3682 = vpop.f32.mrb[0].mxu0
      %3683 = vdwg.mxu0
      %v3684 = vld [vmem:[%s1 + $0x568] sm:$0xf]
      %v3685 = vld [vmem:[%s1 + $0x56c] sm:$0xf]
      %v3686 = vld [vmem:[%s1 + $0x570] sm:$0xf]
      %v3687 = vld [vmem:[%s1 + $0x574] sm:$0xf]
      %v3688 = vld [vmem:[%s1 + $0x578] sm:$0xf]
      %v3689 = vld [vmem:[%s1 + $0x57c] sm:$0xf]
      %v3690 = vld [vmem:[%s1 + $0x580] sm:$0xf]
      %v3691 = vld [vmem:[%s1 + $0x584] sm:$0xf]
      %v3700 = vunpack.c.l.b16 %v3684
      %v3701 = vunpack.c.l.b16 %v3685
      %v3702 = vunpack.c.l.b16 %v3686
      %v3703 = vunpack.c.l.b16 %v3687
      %v3704 = vunpack.c.l.b16 %v3688
      %v3705 = vunpack.c.l.b16 %v3689
      %v3706 = vunpack.c.l.b16 %v3690
      %v3707 = vunpack.c.l.b16 %v3691
      %v3708 = vpack.c.b16 %v3701, %v3700
      %v3709 = vpack.c.b16 %v3703, %v3702
      %v3710 = vpack.c.b16 %v3705, %v3704
      %v3711 = vpack.c.b16 %v3707, %v3706
      %v3717 = vsel %vm1614, %v3531, 0
      %3719 = vmatprep.subr.bf16.mxu0 0
      %3720 = vmatpush1.bf16.msra.mxu0 %v3708
      %3721 = vmatprep.subr.bf16.mxu0 0
      %3722 = vmatpush1.bf16.msra.mxu0 %v3709
      %3723 = vmatprep.subr.bf16.mxu0 0
      %3724 = vmatpush1.bf16.msra.mxu0 %v3710
      %3725 = vmatprep.subr.bf16.mxu0 0
      %3726 = vmatpush1.bf16.msra.mxu0 %v3711
      %3727 = vmatprep.subr.bf16.mxu0 0
      %3728 = vmatpush1.bf16.msra.mxu0 0
      %3729 = vmatprep.subr.bf16.mxu0 0
      %3730 = vmatpush1.bf16.msra.mxu0 0
      %3731 = vmatprep.subr.bf16.mxu0 0
      %3732 = vmatpush1.bf16.msra.mxu0 0
      %3733 = vmatprep.subr.bf16.mxu0 0
      %3734 = vmatpush1.bf16.msra.mxu0 0
      %3735 = vmatprep.subr.bf16.mxu0 0
      %3736 = vmatpush1.bf16.msra.mxu0 0
      %3737 = vmatprep.subr.bf16.mxu0 0
      %3738 = vmatpush1.bf16.msra.mxu0 0
      %3739 = vmatprep.subr.bf16.mxu0 0
      %3740 = vmatpush1.bf16.msra.mxu0 0
      %3741 = vmatprep.subr.bf16.mxu0 0
      %3742 = vmatpush1.bf16.msra.mxu0 0
      %3743 = vmatprep.subr.bf16.mxu0 0
      %3744 = vmatpush1.bf16.msra.mxu0 0
      %3745 = vmatprep.subr.bf16.mxu0 0
      %3746 = vmatpush1.bf16.msra.mxu0 0
      %3747 = vmatprep.subr.bf16.mxu0 0
      %3748 = vmatpush1.bf16.msra.mxu0 0
      %3749 = vmatprep.subr.bf16.mxu0 0
      %3750 = vmatpush1.bf16.msra.mxu0 0
      %3751 = vmatprep.mubr.bf16.mxu0 0
      %3752 = vmatmul.mubr.bf16.gmra.mrb[0].mxu0 %v3717
      %v3753 = vpop.f32.mrb[0].mxu0
      %v3754 = vadd.f32 0.0, %v3753
      %v3755 = vpop.f32.mrb[0].mxu0
      %v3756 = vpop.f32.mrb[0].mxu0
      %v3757 = vadd.f32 0.0, %v3756
      %v3758 = vpop.f32.mrb[0].mxu0
      %3759 = vdwg.mxu0
      %v3760 = vadd.f32 %v3678, %v3754
      %v3761 = vadd.f32 %v3681, %v3757
      %v3762 = vld [vmem:[%s1 + $0x588] sm:$0xf]
      %v3763 = vld [vmem:[%s1 + $0x58c] sm:$0xf]
      %v3764 = vld [vmem:[%s1 + $0x590] sm:$0xf]
      %v3765 = vld [vmem:[%s1 + $0x594] sm:$0xf]
      %v3766 = vld [vmem:[%s1 + $0x598] sm:$0xf]
      %v3767 = vld [vmem:[%s1 + $0x59c] sm:$0xf]
      %v3768 = vld [vmem:[%s1 + $0x5a0] sm:$0xf]
      %v3769 = vld [vmem:[%s1 + $0x5a4] sm:$0xf]
      %v3770 = vld [vmem:[%s1 + $0x5a8] sm:$0xf]
      %v3771 = vld [vmem:[%s1 + $0x5ac] sm:$0xf]
      %v3772 = vld [vmem:[%s1 + $0x5b0] sm:$0xf]
      %v3773 = vld [vmem:[%s1 + $0x5b4] sm:$0xf]
      %v3774 = vld [vmem:[%s1 + $0x5b8] sm:$0xf]
      %v3775 = vld [vmem:[%s1 + $0x5bc] sm:$0xf]
      %v3776 = vld [vmem:[%s1 + $0x5c0] sm:$0xf]
      %v3777 = vld [vmem:[%s1 + $0x5c4] sm:$0xf]
      %v3786 = vunpack.c.l.b16 %v3770
      %v3787 = vunpack.c.l.b16 %v3771
      %v3788 = vunpack.c.l.b16 %v3772
      %v3789 = vunpack.c.l.b16 %v3773
      %v3790 = vunpack.c.l.b16 %v3774
      %v3791 = vunpack.c.l.b16 %v3775
      %v3792 = vunpack.c.l.b16 %v3776
      %v3793 = vunpack.c.l.b16 %v3777
      %v3794 = vpack.c.b16 %v3787, %v3786
      %v3795 = vpack.c.b16 %v3789, %v3788
      %v3796 = vpack.c.b16 %v3791, %v3790
      %v3797 = vpack.c.b16 %v3793, %v3792
      %3802 = vmatprep.subr.bf16.mxu0 0
      %3803 = vmatpush1.bf16.msra.mxu0 %v3794
      %3804 = vmatprep.subr.bf16.mxu0 0
      %3805 = vmatpush1.bf16.msra.mxu0 %v3795
      %3806 = vmatprep.subr.bf16.mxu0 0
      %3807 = vmatpush1.bf16.msra.mxu0 %v3796
      %3808 = vmatprep.subr.bf16.mxu0 0
      %3809 = vmatpush1.bf16.msra.mxu0 %v3797
      %3810 = vmatprep.subr.bf16.mxu0 0
      %3811 = vmatpush1.bf16.msra.mxu0 0
      %3812 = vmatprep.subr.bf16.mxu0 0
      %3813 = vmatpush1.bf16.msra.mxu0 0
      %3814 = vmatprep.subr.bf16.mxu0 0
      %3815 = vmatpush1.bf16.msra.mxu0 0
      %3816 = vmatprep.subr.bf16.mxu0 0
      %3817 = vmatpush1.bf16.msra.mxu0 0
      %3818 = vmatprep.subr.bf16.mxu0 0
      %3819 = vmatpush1.bf16.msra.mxu0 0
      %3820 = vmatprep.subr.bf16.mxu0 0
      %3821 = vmatpush1.bf16.msra.mxu0 0
      %3822 = vmatprep.subr.bf16.mxu0 0
      %3823 = vmatpush1.bf16.msra.mxu0 0
      %3824 = vmatprep.subr.bf16.mxu0 0
      %3825 = vmatpush1.bf16.msra.mxu0 0
      %3826 = vmatprep.subr.bf16.mxu0 0
      %3827 = vmatpush1.bf16.msra.mxu0 0
      %3828 = vmatprep.subr.bf16.mxu0 0
      %3829 = vmatpush1.bf16.msra.mxu0 0
      %3830 = vmatprep.subr.bf16.mxu0 0
      %3831 = vmatpush1.bf16.msra.mxu0 0
      %3832 = vmatprep.subr.bf16.mxu0 0
      %3833 = vmatpush1.bf16.msra.mxu0 0
      %3834 = vmatprep.mubr.bf16.mxu0 0
      %3835 = vmatmul.mubr.bf16.gmra.mrb[0].mxu0 %v3573
      %v3836 = vpop.f32.mrb[0].mxu0
      %v3837 = vadd.f32 0.0, %v3836
      %v3838 = vpop.f32.mrb[0].mxu0
      %v3839 = vpop.f32.mrb[0].mxu0
      %v3840 = vadd.f32 0.0, %v3839
      %v3841 = vpop.f32.mrb[0].mxu0
      %3842 = vdwg.mxu0
      %v3851 = vunpack.c.l.b16 %v3762
      %v3852 = vunpack.c.l.b16 %v3763
      %v3853 = vunpack.c.l.b16 %v3764
      %v3854 = vunpack.c.l.b16 %v3765
      %v3855 = vunpack.c.l.b16 %v3766
      %v3856 = vunpack.c.l.b16 %v3767
      %v3857 = vunpack.c.l.b16 %v3768
      %v3858 = vunpack.c.l.b16 %v3769
      %v3859 = vpack.c.b16 %v3852, %v3851
      %v3860 = vpack.c.b16 %v3854, %v3853
      %v3861 = vpack.c.b16 %v3856, %v3855
      %v3862 = vpack.c.b16 %v3858, %v3857
      %3867 = vmatprep.subr.bf16.mxu0 0
      %3868 = vmatpush1.bf16.msra.mxu0 %v3859
      %3869 = vmatprep.subr.bf16.mxu0 0
      %3870 = vmatpush1.bf16.msra.mxu0 %v3860
      %3871 = vmatprep.subr.bf16.mxu0 0
      %3872 = vmatpush1.bf16.msra.mxu0 %v3861
      %3873 = vmatprep.subr.bf16.mxu0 0
      %3874 = vmatpush1.bf16.msra.mxu0 %v3862
      %3875 = vmatprep.subr.bf16.mxu0 0
      %3876 = vmatpush1.bf16.msra.mxu0 0
      %3877 = vmatprep.subr.bf16.mxu0 0
      %3878 = vmatpush1.bf16.msra.mxu0 0
      %3879 = vmatprep.subr.bf16.mxu0 0
      %3880 = vmatpush1.bf16.msra.mxu0 0
      %3881 = vmatprep.subr.bf16.mxu0 0
      %3882 = vmatpush1.bf16.msra.mxu0 0
      %3883 = vmatprep.subr.bf16.mxu0 0
      %3884 = vmatpush1.bf16.msra.mxu0 0
      %3885 = vmatprep.subr.bf16.mxu0 0
      %3886 = vmatpush1.bf16.msra.mxu0 0
      %3887 = vmatprep.subr.bf16.mxu0 0
      %3888 = vmatpush1.bf16.msra.mxu0 0
      %3889 = vmatprep.subr.bf16.mxu0 0
      %3890 = vmatpush1.bf16.msra.mxu0 0
      %3891 = vmatprep.subr.bf16.mxu0 0
      %3892 = vmatpush1.bf16.msra.mxu0 0
      %3893 = vmatprep.subr.bf16.mxu0 0
      %3894 = vmatpush1.bf16.msra.mxu0 0
      %3895 = vmatprep.subr.bf16.mxu0 0
      %3896 = vmatpush1.bf16.msra.mxu0 0
      %3897 = vmatprep.subr.bf16.mxu0 0
      %3898 = vmatpush1.bf16.msra.mxu0 0
      %3899 = vmatprep.mubr.bf16.mxu0 0
      %3900 = vmatmul.mubr.bf16.gmra.mrb[0].mxu0 %v3641
      %v3901 = vpop.f32.mrb[0].mxu0
      %v3902 = vadd.f32 %v3837, %v3901
      %v3903 = vpop.f32.mrb[0].mxu0
      %v3904 = vpop.f32.mrb[0].mxu0
      %v3905 = vadd.f32 %v3840, %v3904
      %v3906 = vpop.f32.mrb[0].mxu0
      %3907 = vdwg.mxu0
      %v3908 = vld [vmem:[%s1 + $0x5c8] sm:$0xf]
      %v3909 = vld [vmem:[%s1 + $0x5cc] sm:$0xf]
      %v3910 = vld [vmem:[%s1 + $0x5d0] sm:$0xf]
      %v3911 = vld [vmem:[%s1 + $0x5d4] sm:$0xf]
      %v3912 = vld [vmem:[%s1 + $0x5d8] sm:$0xf]
      %v3913 = vld [vmem:[%s1 + $0x5dc] sm:$0xf]
      %v3914 = vld [vmem:[%s1 + $0x5e0] sm:$0xf]
      %v3915 = vld [vmem:[%s1 + $0x5e4] sm:$0xf]
      %v3924 = vunpack.c.l.b16 %v3908
      %v3925 = vunpack.c.l.b16 %v3909
      %v3926 = vunpack.c.l.b16 %v3910
      %v3927 = vunpack.c.l.b16 %v3911
      %v3928 = vunpack.c.l.b16 %v3912
      %v3929 = vunpack.c.l.b16 %v3913
      %v3930 = vunpack.c.l.b16 %v3914
      %v3931 = vunpack.c.l.b16 %v3915
      %v3932 = vpack.c.b16 %v3925, %v3924
      %v3933 = vpack.c.b16 %v3927, %v3926
      %v3934 = vpack.c.b16 %v3929, %v3928
      %v3935 = vpack.c.b16 %v3931, %v3930
      %3940 = vmatprep.subr.bf16.mxu0 0
      %3941 = vmatpush1.bf16.msra.mxu0 %v3932
      %3942 = vmatprep.subr.bf16.mxu0 0
      %3943 = vmatpush1.bf16.msra.mxu0 %v3933
      %3944 = vmatprep.subr.bf16.mxu0 0
      %3945 = vmatpush1.bf16.msra.mxu0 %v3934
      %3946 = vmatprep.subr.bf16.mxu0 0
      %3947 = vmatpush1.bf16.msra.mxu0 %v3935
      %3948 = vmatprep.subr.bf16.mxu0 0
      %3949 = vmatpush1.bf16.msra.mxu0 0
      %3950 = vmatprep.subr.bf16.mxu0 0
      %3951 = vmatpush1.bf16.msra.mxu0 0
      %3952 = vmatprep.subr.bf16.mxu0 0
      %3953 = vmatpush1.bf16.msra.mxu0 0
      %3954 = vmatprep.subr.bf16.mxu0 0
      %3955 = vmatpush1.bf16.msra.mxu0 0
      %3956 = vmatprep.subr.bf16.mxu0 0
      %3957 = vmatpush1.bf16.msra.mxu0 0
      %3958 = vmatprep.subr.bf16.mxu0 0
      %3959 = vmatpush1.bf16.msra.mxu0 0
      %3960 = vmatprep.subr.bf16.mxu0 0
      %3961 = vmatpush1.bf16.msra.mxu0 0
      %3962 = vmatprep.subr.bf16.mxu0 0
      %3963 = vmatpush1.bf16.msra.mxu0 0
      %3964 = vmatprep.subr.bf16.mxu0 0
      %3965 = vmatpush1.bf16.msra.mxu0 0
      %3966 = vmatprep.subr.bf16.mxu0 0
      %3967 = vmatpush1.bf16.msra.mxu0 0
      %3968 = vmatprep.subr.bf16.mxu0 0
      %3969 = vmatpush1.bf16.msra.mxu0 0
      %3970 = vmatprep.subr.bf16.mxu0 0
      %3971 = vmatpush1.bf16.msra.mxu0 0
      %3972 = vmatprep.mubr.bf16.mxu0 0
      %3973 = vmatmul.mubr.bf16.gmra.mrb[0].mxu0 %v3717
      %v3974 = vpop.f32.mrb[0].mxu0
      %v3975 = vadd.f32 0.0, %v3974
      %v3976 = vpop.f32.mrb[0].mxu0
      %v3977 = vpop.f32.mrb[0].mxu0
      %v3978 = vadd.f32 0.0, %v3977
      %v3979 = vpop.f32.mrb[0].mxu0
      %3980 = vdwg.mxu0
      %v3981 = vadd.f32 %v3902, %v3975
      %v3982 = vadd.f32 %v3905, %v3978
      %v3983 = vmax.f32 %v3760, %v3981
      %v3984 = vmax.f32 %v3761, %v3982
      %v3985 = vmax.f32 %v3983, %v3984
      %v3986 = vld [vmem:[%s2 + $0x18] sm:$0x1]
      %v3987 = vlaneseq
      %v3988 = vshrl.u32 %v3987, 7
      %v3989 = vsub.s32 0, %v3988
      %v3990 = vrot.slane %v3986, %v3989
      %v3991 = vadd.f32 %v3985, %v3990
      %v3992 = vmul.f32 %v3991, 0.5
      %v3993 = vmul.f32 %v3991, 0.044715
      %v3994 = vmul.f32 %v3993, %v3991
      %v3995 = vmul.f32 %v3994, %v3991
      %v3996 = vadd.f32 %v3991, %v3995
      %v3997 = vmul.f32 %v3996, 0.7978846
      %v3998 = vtanh.pop %v3997
      %v3999 = vadd.f32 %v3998, 1.0
      %v4000 = vmul.f32 %v3992, %v3999
      %v4001 = vpack.c.bf16 %v4000, %v4000
      %v4002 = vld [vmem:[%s1 + $0x5e8] sm:$0x3]
      %vm4003 = vcmask 64512
      %v4005 = vsel %vm4003, %v4002, 0
      %vm4007 = vcmask 1043456
      %v4009 = vsel %vm4007, %v4001, 0
      %4011 = vmatprep.subr.bf16.mxu0 0
      %4012 = vmatpush1.bf16.msra.mxu0 %v4009
      %4013 = vmatprep.subr.bf16.mxu0 0
      %4014 = vmatpush1.bf16.msra.mxu0 0
      %4015 = vmatprep.subr.bf16.mxu0 0
      %4016 = vmatpush1.bf16.msra.mxu0 0
      %4017 = vmatprep.subr.bf16.mxu0 0
      %4018 = vmatpush1.bf16.msra.mxu0 0
      %4019 = vmatprep.subr.bf16.mxu0 0
      %4020 = vmatpush1.bf16.msra.mxu0 0
      %4021 = vmatprep.subr.bf16.mxu0 0
      %4022 = vmatpush1.bf16.msra.mxu0 0
      %4023 = vmatprep.subr.bf16.mxu0 0
      %4024 = vmatpush1.bf16.msra.mxu0 0
      %4025 = vmatprep.subr.bf16.mxu0 0
      %4026 = vmatpush1.bf16.msra.mxu0 0
      %4027 = vmatprep.subr.bf16.mxu0 0
      %4028 = vmatpush1.bf16.msra.mxu0 0
      %4029 = vmatprep.subr.bf16.mxu0 0
      %4030 = vmatpush1.bf16.msra.mxu0 0
      %4031 = vmatprep.subr.bf16.mxu0 0
      %4032 = vmatpush1.bf16.msra.mxu0 0
      %4033 = vmatprep.subr.bf16.mxu0 0
      %4034 = vmatpush1.bf16.msra.mxu0 0
      %4035 = vmatprep.subr.bf16.mxu0 0
      %4036 = vmatpush1.bf16.msra.mxu0 0
      %4037 = vmatprep.subr.bf16.mxu0 0
      %4038 = vmatpush1.bf16.msra.mxu0 0
      %4039 = vmatprep.subr.bf16.mxu0 0
      %4040 = vmatpush1.bf16.msra.mxu0 0
      %4041 = vmatprep.subr.bf16.mxu0 0
      %4042 = vmatpush1.bf16.msra.mxu0 0
      %4043 = vmatprep.mubr.bf16.mxu0 0
      %4044 = vmatmul.mubr.bf16.gmra.mrb[0].mxu0 %v4005
      %v4045 = vpop.f32.mrb[0].mxu0
      %v4046 = vadd.f32 0.0, %v4045
      %v4047 = vpop.f32.mrb[0].mxu0
      %v4048 = vpop.f32.mrb[0].mxu0
      %v4049 = vpop.f32.mrb[0].mxu0
      %4050 = vdwg.mxu0
      %v4051 = vpack.c.bf16 %v4046, %v4046
      %v4052 = vld [vmem:[%s1 + $0x5f0] sm:$0x3]
      %v4054 = vsel %vm4003, %v4052, 0
      %4056 = vmatprep.subr.bf16.mxu0 0
      %4057 = vmatpush1.bf16.msra.mxu0 %v4009
      %4058 = vmatprep.subr.bf16.mxu0 0
      %4059 = vmatpush1.bf16.msra.mxu0 0
      %4060 = vmatprep.subr.bf16.mxu0 0
      %4061 = vmatpush1.bf16.msra.mxu0 0
      %4062 = vmatprep.subr.bf16.mxu0 0
      %4063 = vmatpush1.bf16.msra.mxu0 0
      %4064 = vmatprep.subr.bf16.mxu0 0
      %4065 = vmatpush1.bf16.msra.mxu0 0
      %4066 = vmatprep.subr.bf16.mxu0 0
      %4067 = vmatpush1.bf16.msra.mxu0 0
      %4068 = vmatprep.subr.bf16.mxu0 0
      %4069 = vmatpush1.bf16.msra.mxu0 0
      %4070 = vmatprep.subr.bf16.mxu0 0
      %4071 = vmatpush1.bf16.msra.mxu0 0
      %4072 = vmatprep.subr.bf16.mxu0 0
      %4073 = vmatpush1.bf16.msra.mxu0 0
      %4074 = vmatprep.subr.bf16.mxu0 0
      %4075 = vmatpush1.bf16.msra.mxu0 0
      %4076 = vmatprep.subr.bf16.mxu0 0
      %4077 = vmatpush1.bf16.msra.mxu0 0
      %4078 = vmatprep.subr.bf16.mxu0 0
      %4079 = vmatpush1.bf16.msra.mxu0 0
      %4080 = vmatprep.subr.bf16.mxu0 0
      %4081 = vmatpush1.bf16.msra.mxu0 0
      %4082 = vmatprep.subr.bf16.mxu0 0
      %4083 = vmatpush1.bf16.msra.mxu0 0
      %4084 = vmatprep.subr.bf16.mxu0 0
      %4085 = vmatpush1.bf16.msra.mxu0 0
      %4086 = vmatprep.subr.bf16.mxu0 0
      %4087 = vmatpush1.bf16.msra.mxu0 0
      %4088 = vmatprep.mubr.bf16.mxu0 0
      %4089 = vmatmul.mubr.bf16.gmra.mrb[0].mxu0 %v4054
      %v4090 = vpop.f32.mrb[0].mxu0
      %v4091 = vadd.f32 0.0, %v4090
      %v4092 = vpop.f32.mrb[0].mxu0
      %v4093 = vpop.f32.mrb[0].mxu0
      %v4094 = vpop.f32.mrb[0].mxu0
      %4095 = vdwg.mxu0
      %v4096 = vpack.c.bf16 %v4091, %v4091
      %v4097 = vld [vmem:[%s1 + $0x5f8] sm:$0x3]
      %v4099 = vsel %vm4003, %v4097, 0
      %4101 = vmatprep.subr.bf16.mxu0 0
      %4102 = vmatpush1.bf16.msra.mxu0 %v4009
      %4103 = vmatprep.subr.bf16.mxu0 0
      %4104 = vmatpush1.bf16.msra.mxu0 0
      %4105 = vmatprep.subr.bf16.mxu0 0
      %4106 = vmatpush1.bf16.msra.mxu0 0
      %4107 = vmatprep.subr.bf16.mxu0 0
      %4108 = vmatpush1.bf16.msra.mxu0 0
      %4109 = vmatprep.subr.bf16.mxu0 0
      %4110 = vmatpush1.bf16.msra.mxu0 0
      %4111 = vmatprep.subr.bf16.mxu0 0
      %4112 = vmatpush1.bf16.msra.mxu0 0
      %4113 = vmatprep.subr.bf16.mxu0 0
      %4114 = vmatpush1.bf16.msra.mxu0 0
      %4115 = vmatprep.subr.bf16.mxu0 0
      %4116 = vmatpush1.bf16.msra.mxu0 0
      %4117 = vmatprep.subr.bf16.mxu0 0
      %4118 = vmatpush1.bf16.msra.mxu0 0
      %4119 = vmatprep.subr.bf16.mxu0 0
      %4120 = vmatpush1.bf16.msra.mxu0 0
      %4121 = vmatprep.subr.bf16.mxu0 0
      %4122 = vmatpush1.bf16.msra.mxu0 0
      %4123 = vmatprep.subr.bf16.mxu0 0
      %4124 = vmatpush1.bf16.msra.mxu0 0
      %4125 = vmatprep.subr.bf16.mxu0 0
      %4126 = vmatpush1.bf16.msra.mxu0 0
      %4127 = vmatprep.subr.bf16.mxu0 0
      %4128 = vmatpush1.bf16.msra.mxu0 0
      %4129 = vmatprep.subr.bf16.mxu0 0
      %4130 = vmatpush1.bf16.msra.mxu0 0
      %4131 = vmatprep.subr.bf16.mxu0 0
      %4132 = vmatpush1.bf16.msra.mxu0 0
      %4133 = vmatprep.mubr.bf16.mxu0 0
      %4134 = vmatmul.mubr.bf16.gmra.mrb[0].mxu0 %v4099
      %v4135 = vpop.f32.mrb[0].mxu0
      %v4136 = vadd.f32 0.0, %v4135
      %v4137 = vpop.f32.mrb[0].mxu0
      %v4138 = vpop.f32.mrb[0].mxu0
      %v4139 = vpop.f32.mrb[0].mxu0
      %4140 = vdwg.mxu0
      %v4141 = vpack.c.bf16 %v4136, %v4136
      %v4142 = vld [vmem:[%s1 + $0x618] sm:$0xf]
      %v4143 = vld [vmem:[%s1 + $0x61c] sm:$0xf]
      %v4144 = vld [vmem:[%s1 + $0x620] sm:$0xf]
      %v4145 = vld [vmem:[%s1 + $0x624] sm:$0xf]
      %v4146 = vld [vmem:[%s1 + $0x628] sm:$0xf]
      %v4147 = vld [vmem:[%s1 + $0x62c] sm:$0xf]
      %v4148 = vld [vmem:[%s1 + $0x630] sm:$0xf]
      %v4149 = vld [vmem:[%s1 + $0x634] sm:$0xf]
      %v4154 = vunpack.c.l.b16 %v4146
      %v4155 = vunpack.c.l.b16 %v4147
      %v4156 = vunpack.c.l.b16 %v4148
      %v4157 = vunpack.c.l.b16 %v4149
      %v4158 = vpack.c.b16 %v4155, %v4154
      %v4159 = vpack.c.b16 %v4157, %v4156
      %v4163 = vsel %vm2631, %v4096, 0
      %4165 = vmatprep.subr.bf16.mxu0 0
      %4166 = vmatpush1.bf16.msra.mxu0 %v4158
      %4167 = vmatprep.subr.bf16.mxu0 0
      %4168 = vmatpush1.bf16.msra.mxu0 %v4159
      %4169 = vmatprep.subr.bf16.mxu0 0
      %4170 = vmatpush1.bf16.msra.mxu0 0
      %4171 = vmatprep.subr.bf16.mxu0 0
      %4172 = vmatpush1.bf16.msra.mxu0 0
      %4173 = vmatprep.subr.bf16.mxu0 0
      %4174 = vmatpush1.bf16.msra.mxu0 0
      %4175 = vmatprep.subr.bf16.mxu0 0
      %4176 = vmatpush1.bf16.msra.mxu0 0
      %4177 = vmatprep.subr.bf16.mxu0 0
      %4178 = vmatpush1.bf16.msra.mxu0 0
      %4179 = vmatprep.subr.bf16.mxu0 0
      %4180 = vmatpush1.bf16.msra.mxu0 0
      %4181 = vmatprep.subr.bf16.mxu0 0
      %4182 = vmatpush1.bf16.msra.mxu0 0
      %4183 = vmatprep.subr.bf16.mxu0 0
      %4184 = vmatpush1.bf16.msra.mxu0 0
      %4185 = vmatprep.subr.bf16.mxu0 0
      %4186 = vmatpush1.bf16.msra.mxu0 0
      %4187 = vmatprep.subr.bf16.mxu0 0
      %4188 = vmatpush1.bf16.msra.mxu0 0
      %4189 = vmatprep.subr.bf16.mxu0 0
      %4190 = vmatpush1.bf16.msra.mxu0 0
      %4191 = vmatprep.subr.bf16.mxu0 0
      %4192 = vmatpush1.bf16.msra.mxu0 0
      %4193 = vmatprep.subr.bf16.mxu0 0
      %4194 = vmatpush1.bf16.msra.mxu0 0
      %4195 = vmatprep.subr.bf16.mxu0 0
      %4196 = vmatpush1.bf16.msra.mxu0 0
      %4197 = vmatprep.mubr.bf16.mxu0 0
      %4198 = vmatmul.mubr.bf16.gmra.mrb[0].mxu0 %v4163
      %v4199 = vpop.f32.mrb[0].mxu0
      %v4200 = vadd.f32 0.0, %v4199
      %v4201 = vpop.f32.mrb[0].mxu0
      %v4202 = vpop.f32.mrb[0].mxu0
      %v4203 = vpop.f32.mrb[0].mxu0
      %4204 = vdwg.mxu0
      %v4209 = vunpack.c.l.b16 %v4142
      %v4210 = vunpack.c.l.b16 %v4143
      %v4211 = vunpack.c.l.b16 %v4144
      %v4212 = vunpack.c.l.b16 %v4145
      %v4213 = vpack.c.b16 %v4210, %v4209
      %v4214 = vpack.c.b16 %v4212, %v4211
      %v4218 = vsel %vm2631, %v4051, 0
      %4220 = vmatprep.subr.bf16.mxu0 0
      %4221 = vmatpush1.bf16.msra.mxu0 %v4213
      %4222 = vmatprep.subr.bf16.mxu0 0
      %4223 = vmatpush1.bf16.msra.mxu0 %v4214
      %4224 = vmatprep.subr.bf16.mxu0 0
      %4225 = vmatpush1.bf16.msra.mxu0 0
      %4226 = vmatprep.subr.bf16.mxu0 0
      %4227 = vmatpush1.bf16.msra.mxu0 0
      %4228 = vmatprep.subr.bf16.mxu0 0
      %4229 = vmatpush1.bf16.msra.mxu0 0
      %4230 = vmatprep.subr.bf16.mxu0 0
      %4231 = vmatpush1.bf16.msra.mxu0 0
      %4232 = vmatprep.subr.bf16.mxu0 0
      %4233 = vmatpush1.bf16.msra.mxu0 0
      %4234 = vmatprep.subr.bf16.mxu0 0
      %4235 = vmatpush1.bf16.msra.mxu0 0
      %4236 = vmatprep.subr.bf16.mxu0 0
      %4237 = vmatpush1.bf16.msra.mxu0 0
      %4238 = vmatprep.subr.bf16.mxu0 0
      %4239 = vmatpush1.bf16.msra.mxu0 0
      %4240 = vmatprep.subr.bf16.mxu0 0
      %4241 = vmatpush1.bf16.msra.mxu0 0
      %4242 = vmatprep.subr.bf16.mxu0 0
      %4243 = vmatpush1.bf16.msra.mxu0 0
      %4244 = vmatprep.subr.bf16.mxu0 0
      %4245 = vmatpush1.bf16.msra.mxu0 0
      %4246 = vmatprep.subr.bf16.mxu0 0
      %4247 = vmatpush1.bf16.msra.mxu0 0
      %4248 = vmatprep.subr.bf16.mxu0 0
      %4249 = vmatpush1.bf16.msra.mxu0 0
      %4250 = vmatprep.subr.bf16.mxu0 0
      %4251 = vmatpush1.bf16.msra.mxu0 0
      %4252 = vmatprep.mubr.bf16.mxu0 0
      %4253 = vmatmul.mubr.bf16.gmra.mrb[0].mxu0 %v4218
      %v4254 = vpop.f32.mrb[0].mxu0
      %v4255 = vadd.f32 %v4200, %v4254
      %v4256 = vpop.f32.mrb[0].mxu0
      %v4257 = vpop.f32.mrb[0].mxu0
      %v4258 = vpop.f32.mrb[0].mxu0
      %4259 = vdwg.mxu0
      %v4260 = vld [vmem:[%s1 + $0x638] sm:$0xf]
      %v4261 = vld [vmem:[%s1 + $0x63c] sm:$0xf]
      %v4262 = vld [vmem:[%s1 + $0x640] sm:$0xf]
      %v4263 = vld [vmem:[%s1 + $0x644] sm:$0xf]
      %v4268 = vunpack.c.l.b16 %v4260
      %v4269 = vunpack.c.l.b16 %v4261
      %v4270 = vunpack.c.l.b16 %v4262
      %v4271 = vunpack.c.l.b16 %v4263
      %v4272 = vpack.c.b16 %v4269, %v4268
      %v4273 = vpack.c.b16 %v4271, %v4270
      %v4277 = vsel %vm2631, %v4141, 0
      %4279 = vmatprep.subr.bf16.mxu0 0
      %4280 = vmatpush1.bf16.msra.mxu0 %v4272
      %4281 = vmatprep.subr.bf16.mxu0 0
      %4282 = vmatpush1.bf16.msra.mxu0 %v4273
      %4283 = vmatprep.subr.bf16.mxu0 0
      %4284 = vmatpush1.bf16.msra.mxu0 0
      %4285 = vmatprep.subr.bf16.mxu0 0
      %4286 = vmatpush1.bf16.msra.mxu0 0
      %4287 = vmatprep.subr.bf16.mxu0 0
      %4288 = vmatpush1.bf16.msra.mxu0 0
      %4289 = vmatprep.subr.bf16.mxu0 0
      %4290 = vmatpush1.bf16.msra.mxu0 0
      %4291 = vmatprep.subr.bf16.mxu0 0
      %4292 = vmatpush1.bf16.msra.mxu0 0
      %4293 = vmatprep.subr.bf16.mxu0 0
      %4294 = vmatpush1.bf16.msra.mxu0 0
      %4295 = vmatprep.subr.bf16.mxu0 0
      %4296 = vmatpush1.bf16.msra.mxu0 0
      %4297 = vmatprep.subr.bf16.mxu0 0
      %4298 = vmatpush1.bf16.msra.mxu0 0
      %4299 = vmatprep.subr.bf16.mxu0 0
      %4300 = vmatpush1.bf16.msra.mxu0 0
      %4301 = vmatprep.subr.bf16.mxu0 0
      %4302 = vmatpush1.bf16.msra.mxu0 0
      %4303 = vmatprep.subr.bf16.mxu0 0
      %4304 = vmatpush1.bf16.msra.mxu0 0
      %4305 = vmatprep.subr.bf16.mxu0 0
      %4306 = vmatpush1.bf16.msra.mxu0 0
      %4307 = vmatprep.subr.bf16.mxu0 0
      %4308 = vmatpush1.bf16.msra.mxu0 0
      %4309 = vmatprep.subr.bf16.mxu0 0
      %4310 = vmatpush1.bf16.msra.mxu0 0
      %4311 = vmatprep.mubr.bf16.mxu0 0
      %4312 = vmatmul.mubr.bf16.gmra.mrb[0].mxu0 %v4277
      %v4313 = vpop.f32.mrb[0].mxu0
      %v4314 = vadd.f32 0.0, %v4313
      %v4315 = vpop.f32.mrb[0].mxu0
      %v4316 = vpop.f32.mrb[0].mxu0
      %v4317 = vpop.f32.mrb[0].mxu0
      %4318 = vdwg.mxu0
      %v4319 = vadd.f32 %v4255, %v4314
      %v4320 = vld [vmem:[%s1 + $0x648] sm:$0xf]
      %v4321 = vld [vmem:[%s1 + $0x64c] sm:$0xf]
      %v4322 = vld [vmem:[%s1 + $0x650] sm:$0xf]
      %v4323 = vld [vmem:[%s1 + $0x654] sm:$0xf]
      %v4324 = vld [vmem:[%s1 + $0x658] sm:$0xf]
      %v4325 = vld [vmem:[%s1 + $0x65c] sm:$0xf]
      %v4326 = vld [vmem:[%s1 + $0x660] sm:$0xf]
      %v4327 = vld [vmem:[%s1 + $0x664] sm:$0xf]
      %v4332 = vunpack.c.l.b16 %v4324
      %v4333 = vunpack.c.l.b16 %v4325
      %v4334 = vunpack.c.l.b16 %v4326
      %v4335 = vunpack.c.l.b16 %v4327
      %v4336 = vpack.c.b16 %v4333, %v4332
      %v4337 = vpack.c.b16 %v4335, %v4334
      %4340 = vmatprep.subr.bf16.mxu0 0
      %4341 = vmatpush1.bf16.msra.mxu0 %v4336
      %4342 = vmatprep.subr.bf16.mxu0 0
      %4343 = vmatpush1.bf16.msra.mxu0 %v4337
      %4344 = vmatprep.subr.bf16.mxu0 0
      %4345 = vmatpush1.bf16.msra.mxu0 0
      %4346 = vmatprep.subr.bf16.mxu0 0
      %4347 = vmatpush1.bf16.msra.mxu0 0
      %4348 = vmatprep.subr.bf16.mxu0 0
      %4349 = vmatpush1.bf16.msra.mxu0 0
      %4350 = vmatprep.subr.bf16.mxu0 0
      %4351 = vmatpush1.bf16.msra.mxu0 0
      %4352 = vmatprep.subr.bf16.mxu0 0
      %4353 = vmatpush1.bf16.msra.mxu0 0
      %4354 = vmatprep.subr.bf16.mxu0 0
      %4355 = vmatpush1.bf16.msra.mxu0 0
      %4356 = vmatprep.subr.bf16.mxu0 0
      %4357 = vmatpush1.bf16.msra.mxu0 0
      %4358 = vmatprep.subr.bf16.mxu0 0
      %4359 = vmatpush1.bf16.msra.mxu0 0
      %4360 = vmatprep.subr.bf16.mxu0 0
      %4361 = vmatpush1.bf16.msra.mxu0 0
      %4362 = vmatprep.subr.bf16.mxu0 0
      %4363 = vmatpush1.bf16.msra.mxu0 0
      %4364 = vmatprep.subr.bf16.mxu0 0
      %4365 = vmatpush1.bf16.msra.mxu0 0
      %4366 = vmatprep.subr.bf16.mxu0 0
      %4367 = vmatpush1.bf16.msra.mxu0 0
      %4368 = vmatprep.subr.bf16.mxu0 0
      %4369 = vmatpush1.bf16.msra.mxu0 0
      %4370 = vmatprep.subr.bf16.mxu0 0
      %4371 = vmatpush1.bf16.msra.mxu0 0
      %4372 = vmatprep.mubr.bf16.mxu0 0
      %4373 = vmatmul.mubr.bf16.gmra.mrb[0].mxu0 %v4163
      %v4374 = vpop.f32.mrb[0].mxu0
      %v4375 = vadd.f32 0.0, %v4374
      %v4376 = vpop.f32.mrb[0].mxu0
      %v4377 = vpop.f32.mrb[0].mxu0
      %v4378 = vpop.f32.mrb[0].mxu0
      %4379 = vdwg.mxu0
      %v4384 = vunpack.c.l.b16 %v4320
      %v4385 = vunpack.c.l.b16 %v4321
      %v4386 = vunpack.c.l.b16 %v4322
      %v4387 = vunpack.c.l.b16 %v4323
      %v4388 = vpack.c.b16 %v4385, %v4384
      %v4389 = vpack.c.b16 %v4387, %v4386
      %4392 = vmatprep.subr.bf16.mxu0 0
      %4393 = vmatpush1.bf16.msra.mxu0 %v4388
      %4394 = vmatprep.subr.bf16.mxu0 0
      %4395 = vmatpush1.bf16.msra.mxu0 %v4389
      %4396 = vmatprep.subr.bf16.mxu0 0
      %4397 = vmatpush1.bf16.msra.mxu0 0
      %4398 = vmatprep.subr.bf16.mxu0 0
      %4399 = vmatpush1.bf16.msra.mxu0 0
      %4400 = vmatprep.subr.bf16.mxu0 0
      %4401 = vmatpush1.bf16.msra.mxu0 0
      %4402 = vmatprep.subr.bf16.mxu0 0
      %4403 = vmatpush1.bf16.msra.mxu0 0
      %4404 = vmatprep.subr.bf16.mxu0 0
      %4405 = vmatpush1.bf16.msra.mxu0 0
      %4406 = vmatprep.subr.bf16.mxu0 0
      %4407 = vmatpush1.bf16.msra.mxu0 0
      %4408 = vmatprep.subr.bf16.mxu0 0
      %4409 = vmatpush1.bf16.msra.mxu0 0
      %4410 = vmatprep.subr.bf16.mxu0 0
      %4411 = vmatpush1.bf16.msra.mxu0 0
      %4412 = vmatprep.subr.bf16.mxu0 0
      %4413 = vmatpush1.bf16.msra.mxu0 0
      %4414 = vmatprep.subr.bf16.mxu0 0
      %4415 = vmatpush1.bf16.msra.mxu0 0
      %4416 = vmatprep.subr.bf16.mxu0 0
      %4417 = vmatpush1.bf16.msra.mxu0 0
      %4418 = vmatprep.subr.bf16.mxu0 0
      %4419 = vmatpush1.bf16.msra.mxu0 0
      %4420 = vmatprep.subr.bf16.mxu0 0
      %4421 = vmatpush1.bf16.msra.mxu0 0
      %4422 = vmatprep.subr.bf16.mxu0 0
      %4423 = vmatpush1.bf16.msra.mxu0 0
      %4424 = vmatprep.mubr.bf16.mxu0 0
      %4425 = vmatmul.mubr.bf16.gmra.mrb[0].mxu0 %v4218
      %v4426 = vpop.f32.mrb[0].mxu0
      %v4427 = vadd.f32 %v4375, %v4426
      %v4428 = vpop.f32.mrb[0].mxu0
      %v4429 = vpop.f32.mrb[0].mxu0
      %v4430 = vpop.f32.mrb[0].mxu0
      %4431 = vdwg.mxu0
      %v4432 = vld [vmem:[%s1 + $0x668] sm:$0xf]
      %v4433 = vld [vmem:[%s1 + $0x66c] sm:$0xf]
      %v4434 = vld [vmem:[%s1 + $0x670] sm:$0xf]
      %v4435 = vld [vmem:[%s1 + $0x674] sm:$0xf]
      %v4440 = vunpack.c.l.b16 %v4432
      %v4441 = vunpack.c.l.b16 %v4433
      %v4442 = vunpack.c.l.b16 %v4434
      %v4443 = vunpack.c.l.b16 %v4435
      %v4444 = vpack.c.b16 %v4441, %v4440
      %v4445 = vpack.c.b16 %v4443, %v4442
      %4448 = vmatprep.subr.bf16.mxu0 0
      %4449 = vmatpush1.bf16.msra.mxu0 %v4444
      %4450 = vmatprep.subr.bf16.mxu0 0
      %4451 = vmatpush1.bf16.msra.mxu0 %v4445
      %4452 = vmatprep.subr.bf16.mxu0 0
      %4453 = vmatpush1.bf16.msra.mxu0 0
      %4454 = vmatprep.subr.bf16.mxu0 0
      %4455 = vmatpush1.bf16.msra.mxu0 0
      %4456 = vmatprep.subr.bf16.mxu0 0
      %4457 = vmatpush1.bf16.msra.mxu0 0
      %4458 = vmatprep.subr.bf16.mxu0 0
      %4459 = vmatpush1.bf16.msra.mxu0 0
      %4460 = vmatprep.subr.bf16.mxu0 0
      %4461 = vmatpush1.bf16.msra.mxu0 0
      %4462 = vmatprep.subr.bf16.mxu0 0
      %4463 = vmatpush1.bf16.msra.mxu0 0
      %4464 = vmatprep.subr.bf16.mxu0 0
      %4465 = vmatpush1.bf16.msra.mxu0 0
      %4466 = vmatprep.subr.bf16.mxu0 0
      %4467 = vmatpush1.bf16.msra.mxu0 0
      %4468 = vmatprep.subr.bf16.mxu0 0
      %4469 = vmatpush1.bf16.msra.mxu0 0
      %4470 = vmatprep.subr.bf16.mxu0 0
      %4471 = vmatpush1.bf16.msra.mxu0 0
      %4472 = vmatprep.subr.bf16.mxu0 0
      %4473 = vmatpush1.bf16.msra.mxu0 0
      %4474 = vmatprep.subr.bf16.mxu0 0
      %4475 = vmatpush1.bf16.msra.mxu0 0
      %4476 = vmatprep.subr.bf16.mxu0 0
      %4477 = vmatpush1.bf16.msra.mxu0 0
      %4478 = vmatprep.subr.bf16.mxu0 0
      %4479 = vmatpush1.bf16.msra.mxu0 0
      %4480 = vmatprep.mubr.bf16.mxu0 0
      %4481 = vmatmul.mubr.bf16.gmra.mrb[0].mxu0 %v4277
      %v4482 = vpop.f32.mrb[0].mxu0
      %v4483 = vadd.f32 0.0, %v4482
      %v4484 = vpop.f32.mrb[0].mxu0
      %v4485 = vpop.f32.mrb[0].mxu0
      %v4486 = vpop.f32.mrb[0].mxu0
      %4487 = vdwg.mxu0
      %v4488 = vadd.f32 %v4427, %v4483
      %v4489 = vmax.f32 %v4319, %v4488
      %v4490 = vld [vmem:[%s1 + $0x600] sm:$0x3]
      %v4492 = vsel %vm4003, %v4490, 0
      %4494 = vmatprep.subr.bf16.mxu0 0
      %4495 = vmatpush1.bf16.msra.mxu0 %v4009
      %4496 = vmatprep.subr.bf16.mxu0 0
      %4497 = vmatpush1.bf16.msra.mxu0 0
      %4498 = vmatprep.subr.bf16.mxu0 0
      %4499 = vmatpush1.bf16.msra.mxu0 0
      %4500 = vmatprep.subr.bf16.mxu0 0
      %4501 = vmatpush1.bf16.msra.mxu0 0
      %4502 = vmatprep.subr.bf16.mxu0 0
      %4503 = vmatpush1.bf16.msra.mxu0 0
      %4504 = vmatprep.subr.bf16.mxu0 0
      %4505 = vmatpush1.bf16.msra.mxu0 0
      %4506 = vmatprep.subr.bf16.mxu0 0
      %4507 = vmatpush1.bf16.msra.mxu0 0
      %4508 = vmatprep.subr.bf16.mxu0 0
      %4509 = vmatpush1.bf16.msra.mxu0 0
      %4510 = vmatprep.subr.bf16.mxu0 0
      %4511 = vmatpush1.bf16.msra.mxu0 0
      %4512 = vmatprep.subr.bf16.mxu0 0
      %4513 = vmatpush1.bf16.msra.mxu0 0
      %4514 = vmatprep.subr.bf16.mxu0 0
      %4515 = vmatpush1.bf16.msra.mxu0 0
      %4516 = vmatprep.subr.bf16.mxu0 0
      %4517 = vmatpush1.bf16.msra.mxu0 0
      %4518 = vmatprep.subr.bf16.mxu0 0
      %4519 = vmatpush1.bf16.msra.mxu0 0
      %4520 = vmatprep.subr.bf16.mxu0 0
      %4521 = vmatpush1.bf16.msra.mxu0 0
      %4522 = vmatprep.subr.bf16.mxu0 0
      %4523 = vmatpush1.bf16.msra.mxu0 0
      %4524 = vmatprep.subr.bf16.mxu0 0
      %4525 = vmatpush1.bf16.msra.mxu0 0
      %4526 = vmatprep.mubr.bf16.mxu0 0
      %4527 = vmatmul.mubr.bf16.gmra.mrb[0].mxu0 %v4492
      %v4528 = vpop.f32.mrb[0].mxu0
      %v4529 = vadd.f32 0.0, %v4528
      %v4530 = vpop.f32.mrb[0].mxu0
      %v4531 = vpop.f32.mrb[0].mxu0
      %v4532 = vpop.f32.mrb[0].mxu0
      %4533 = vdwg.mxu0
      %v4534 = vpack.c.bf16 %v4529, %v4529
      %v4535 = vld [vmem:[%s1 + $0x608] sm:$0x3]
      %v4537 = vsel %vm4003, %v4535, 0
      %4539 = vmatprep.subr.bf16.mxu0 0
      %4540 = vmatpush1.bf16.msra.mxu0 %v4009
      %4541 = vmatprep.subr.bf16.mxu0 0
      %4542 = vmatpush1.bf16.msra.mxu0 0
      %4543 = vmatprep.subr.bf16.mxu0 0
      %4544 = vmatpush1.bf16.msra.mxu0 0
      %4545 = vmatprep.subr.bf16.mxu0 0
      %4546 = vmatpush1.bf16.msra.mxu0 0
      %4547 = vmatprep.subr.bf16.mxu0 0
      %4548 = vmatpush1.bf16.msra.mxu0 0
      %4549 = vmatprep.subr.bf16.mxu0 0
      %4550 = vmatpush1.bf16.msra.mxu0 0
      %4551 = vmatprep.subr.bf16.mxu0 0
      %4552 = vmatpush1.bf16.msra.mxu0 0
      %4553 = vmatprep.subr.bf16.mxu0 0
      %4554 = vmatpush1.bf16.msra.mxu0 0
      %4555 = vmatprep.subr.bf16.mxu0 0
      %4556 = vmatpush1.bf16.msra.mxu0 0
      %4557 = vmatprep.subr.bf16.mxu0 0
      %4558 = vmatpush1.bf16.msra.mxu0 0
      %4559 = vmatprep.subr.bf16.mxu0 0
      %4560 = vmatpush1.bf16.msra.mxu0 0
      %4561 = vmatprep.subr.bf16.mxu0 0
      %4562 = vmatpush1.bf16.msra.mxu0 0
      %4563 = vmatprep.subr.bf16.mxu0 0
      %4564 = vmatpush1.bf16.msra.mxu0 0
      %4565 = vmatprep.subr.bf16.mxu0 0
      %4566 = vmatpush1.bf16.msra.mxu0 0
      %4567 = vmatprep.subr.bf16.mxu0 0
      %4568 = vmatpush1.bf16.msra.mxu0 0
      %4569 = vmatprep.subr.bf16.mxu0 0
      %4570 = vmatpush1.bf16.msra.mxu0 0
      %4571 = vmatprep.mubr.bf16.mxu0 0
      %4572 = vmatmul.mubr.bf16.gmra.mrb[0].mxu0 %v4537
      %v4573 = vpop.f32.mrb[0].mxu0
      %v4574 = vadd.f32 0.0, %v4573
      %v4575 = vpop.f32.mrb[0].mxu0
      %v4576 = vpop.f32.mrb[0].mxu0
      %v4577 = vpop.f32.mrb[0].mxu0
      %4578 = vdwg.mxu0
      %v4579 = vpack.c.bf16 %v4574, %v4574
      %v4580 = vld [vmem:[%s1 + $0x610] sm:$0x3]
      %v4582 = vsel %vm4003, %v4580, 0
      %4584 = vmatprep.subr.bf16.mxu0 0
      %4585 = vmatpush1.bf16.msra.mxu0 %v4009
      %4586 = vmatprep.subr.bf16.mxu0 0
      %4587 = vmatpush1.bf16.msra.mxu0 0
      %4588 = vmatprep.subr.bf16.mxu0 0
      %4589 = vmatpush1.bf16.msra.mxu0 0
      %4590 = vmatprep.subr.bf16.mxu0 0
      %4591 = vmatpush1.bf16.msra.mxu0 0
      %4592 = vmatprep.subr.bf16.mxu0 0
      %4593 = vmatpush1.bf16.msra.mxu0 0
      %4594 = vmatprep.subr.bf16.mxu0 0
      %4595 = vmatpush1.bf16.msra.mxu0 0
      %4596 = vmatprep.subr.bf16.mxu0 0
      %4597 = vmatpush1.bf16.msra.mxu0 0
      %4598 = vmatprep.subr.bf16.mxu0 0
      %4599 = vmatpush1.bf16.msra.mxu0 0
      %4600 = vmatprep.subr.bf16.mxu0 0
      %4601 = vmatpush1.bf16.msra.mxu0 0
      %4602 = vmatprep.subr.bf16.mxu0 0
      %4603 = vmatpush1.bf16.msra.mxu0 0
      %4604 = vmatprep.subr.bf16.mxu0 0
      %4605 = vmatpush1.bf16.msra.mxu0 0
      %4606 = vmatprep.subr.bf16.mxu0 0
      %4607 = vmatpush1.bf16.msra.mxu0 0
      %4608 = vmatprep.subr.bf16.mxu0 0
      %4609 = vmatpush1.bf16.msra.mxu0 0
      %4610 = vmatprep.subr.bf16.mxu0 0
      %4611 = vmatpush1.bf16.msra.mxu0 0
      %4612 = vmatprep.subr.bf16.mxu0 0
      %4613 = vmatpush1.bf16.msra.mxu0 0
      %4614 = vmatprep.subr.bf16.mxu0 0
      %4615 = vmatpush1.bf16.msra.mxu0 0
      %4616 = vmatprep.mubr.bf16.mxu0 0
      %4617 = vmatmul.mubr.bf16.gmra.mrb[0].mxu0 %v4582
      %v4618 = vpop.f32.mrb[0].mxu0
      %v4619 = vadd.f32 0.0, %v4618
      %v4620 = vpop.f32.mrb[0].mxu0
      %v4621 = vpop.f32.mrb[0].mxu0
      %v4622 = vpop.f32.mrb[0].mxu0
      %4623 = vdwg.mxu0
      %v4624 = vpack.c.bf16 %v4619, %v4619
      %v4626 = vsel %vm2631, %v4579, 0
      %4628 = vmatprep.subr.bf16.mxu0 0
      %4629 = vmatpush1.bf16.msra.mxu0 %v4158
      %4630 = vmatprep.subr.bf16.mxu0 0
      %4631 = vmatpush1.bf16.msra.mxu0 %v4159
      %4632 = vmatprep.subr.bf16.mxu0 0
      %4633 = vmatpush1.bf16.msra.mxu0 0
      %4634 = vmatprep.subr.bf16.mxu0 0
      %4635 = vmatpush1.bf16.msra.mxu0 0
      %4636 = vmatprep.subr.bf16.mxu0 0
      %4637 = vmatpush1.bf16.msra.mxu0 0
      %4638 = vmatprep.subr.bf16.mxu0 0
      %4639 = vmatpush1.bf16.msra.mxu0 0
      %4640 = vmatprep.subr.bf16.mxu0 0
      %4641 = vmatpush1.bf16.msra.mxu0 0
      %4642 = vmatprep.subr.bf16.mxu0 0
      %4643 = vmatpush1.bf16.msra.mxu0 0
      %4644 = vmatprep.subr.bf16.mxu0 0
      %4645 = vmatpush1.bf16.msra.mxu0 0
      %4646 = vmatprep.subr.bf16.mxu0 0
      %4647 = vmatpush1.bf16.msra.mxu0 0
      %4648 = vmatprep.subr.bf16.mxu0 0
      %4649 = vmatpush1.bf16.msra.mxu0 0
      %4650 = vmatprep.subr.bf16.mxu0 0
      %4651 = vmatpush1.bf16.msra.mxu0 0
      %4652 = vmatprep.subr.bf16.mxu0 0
      %4653 = vmatpush1.bf16.msra.mxu0 0
      %4654 = vmatprep.subr.bf16.mxu0 0
      %4655 = vmatpush1.bf16.msra.mxu0 0
      %4656 = vmatprep.subr.bf16.mxu0 0
      %4657 = vmatpush1.bf16.msra.mxu0 0
      %4658 = vmatprep.subr.bf16.mxu0 0
      %4659 = vmatpush1.bf16.msra.mxu0 0
      %4660 = vmatprep.mubr.bf16.mxu0 0
      %4661 = vmatmul.mubr.bf16.gmra.mrb[0].mxu0 %v4626
      %v4662 = vpop.f32.mrb[0].mxu0
      %v4663 = vadd.f32 0.0, %v4662
      %v4664 = vpop.f32.mrb[0].mxu0
      %v4665 = vpop.f32.mrb[0].mxu0
      %v4666 = vpop.f32.mrb[0].mxu0
      %4667 = vdwg.mxu0
      %v4669 = vsel %vm2631, %v4534, 0
      %4671 = vmatprep.subr.bf16.mxu0 0
      %4672 = vmatpush1.bf16.msra.mxu0 %v4213
      %4673 = vmatprep.subr.bf16.mxu0 0
      %4674 = vmatpush1.bf16.msra.mxu0 %v4214
      %4675 = vmatprep.subr.bf16.mxu0 0
      %4676 = vmatpush1.bf16.msra.mxu0 0
      %4677 = vmatprep.subr.bf16.mxu0 0
      %4678 = vmatpush1.bf16.msra.mxu0 0
      %4679 = vmatprep.subr.bf16.mxu0 0
      %4680 = vmatpush1.bf16.msra.mxu0 0
      %4681 = vmatprep.subr.bf16.mxu0 0
      %4682 = vmatpush1.bf16.msra.mxu0 0
      %4683 = vmatprep.subr.bf16.mxu0 0
      %4684 = vmatpush1.bf16.msra.mxu0 0
      %4685 = vmatprep.subr.bf16.mxu0 0
      %4686 = vmatpush1.bf16.msra.mxu0 0
      %4687 = vmatprep.subr.bf16.mxu0 0
      %4688 = vmatpush1.bf16.msra.mxu0 0
      %4689 = vmatprep.subr.bf16.mxu0 0
      %4690 = vmatpush1.bf16.msra.mxu0 0
      %4691 = vmatprep.subr.bf16.mxu0 0
      %4692 = vmatpush1.bf16.msra.mxu0 0
      %4693 = vmatprep.subr.bf16.mxu0 0
      %4694 = vmatpush1.bf16.msra.mxu0 0
      %4695 = vmatprep.subr.bf16.mxu0 0
      %4696 = vmatpush1.bf16.msra.mxu0 0
      %4697 = vmatprep.subr.bf16.mxu0 0
      %4698 = vmatpush1.bf16.msra.mxu0 0
      %4699 = vmatprep.subr.bf16.mxu0 0
      %4700 = vmatpush1.bf16.msra.mxu0 0
      %4701 = vmatprep.subr.bf16.mxu0 0
      %4702 = vmatpush1.bf16.msra.mxu0 0
      %4703 = vmatprep.mubr.bf16.mxu0 0
      %4704 = vmatmul.mubr.bf16.gmra.mrb[0].mxu0 %v4669
      %v4705 = vpop.f32.mrb[0].mxu0
      %v4706 = vadd.f32 %v4663, %v4705
      %v4707 = vpop.f32.mrb[0].mxu0
      %v4708 = vpop.f32.mrb[0].mxu0
      %v4709 = vpop.f32.mrb[0].mxu0
      %4710 = vdwg.mxu0
      %v4712 = vsel %vm2631, %v4624, 0
      %4714 = vmatprep.subr.bf16.mxu0 0
      %4715 = vmatpush1.bf16.msra.mxu0 %v4272
      %4716 = vmatprep.subr.bf16.mxu0 0
      %4717 = vmatpush1.bf16.msra.mxu0 %v4273
      %4718 = vmatprep.subr.bf16.mxu0 0
      %4719 = vmatpush1.bf16.msra.mxu0 0
      %4720 = vmatprep.subr.bf16.mxu0 0
      %4721 = vmatpush1.bf16.msra.mxu0 0
      %4722 = vmatprep.subr.bf16.mxu0 0
      %4723 = vmatpush1.bf16.msra.mxu0 0
      %4724 = vmatprep.subr.bf16.mxu0 0
      %4725 = vmatpush1.bf16.msra.mxu0 0
      %4726 = vmatprep.subr.bf16.mxu0 0
      %4727 = vmatpush1.bf16.msra.mxu0 0
      %4728 = vmatprep.subr.bf16.mxu0 0
      %4729 = vmatpush1.bf16.msra.mxu0 0
      %4730 = vmatprep.subr.bf16.mxu0 0
      %4731 = vmatpush1.bf16.msra.mxu0 0
      %4732 = vmatprep.subr.bf16.mxu0 0
      %4733 = vmatpush1.bf16.msra.mxu0 0
      %4734 = vmatprep.subr.bf16.mxu0 0
      %4735 = vmatpush1.bf16.msra.mxu0 0
      %4736 = vmatprep.subr.bf16.mxu0 0
      %4737 = vmatpush1.bf16.msra.mxu0 0
      %4738 = vmatprep.subr.bf16.mxu0 0
      %4739 = vmatpush1.bf16.msra.mxu0 0
      %4740 = vmatprep.subr.bf16.mxu0 0
      %4741 = vmatpush1.bf16.msra.mxu0 0
      %4742 = vmatprep.subr.bf16.mxu0 0
      %4743 = vmatpush1.bf16.msra.mxu0 0
      %4744 = vmatprep.subr.bf16.mxu0 0
      %4745 = vmatpush1.bf16.msra.mxu0 0
      %4746 = vmatprep.mubr.bf16.mxu0 0
      %4747 = vmatmul.mubr.bf16.gmra.mrb[0].mxu0 %v4712
      %v4748 = vpop.f32.mrb[0].mxu0
      %v4749 = vadd.f32 0.0, %v4748
      %v4750 = vpop.f32.mrb[0].mxu0
      %v4751 = vpop.f32.mrb[0].mxu0
      %v4752 = vpop.f32.mrb[0].mxu0
      %4753 = vdwg.mxu0
      %v4754 = vadd.f32 %v4706, %v4749
      %4755 = vmatprep.subr.bf16.mxu0 0
      %4756 = vmatpush1.bf16.msra.mxu0 %v4336
      %4757 = vmatprep.subr.bf16.mxu0 0
      %4758 = vmatpush1.bf16.msra.mxu0 %v4337
      %4759 = vmatprep.subr.bf16.mxu0 0
      %4760 = vmatpush1.bf16.msra.mxu0 0
      %4761 = vmatprep.subr.bf16.mxu0 0
      %4762 = vmatpush1.bf16.msra.mxu0 0
      %4763 = vmatprep.subr.bf16.mxu0 0
      %4764 = vmatpush1.bf16.msra.mxu0 0
      %4765 = vmatprep.subr.bf16.mxu0 0
      %4766 = vmatpush1.bf16.msra.mxu0 0
      %4767 = vmatprep.subr.bf16.mxu0 0
      %4768 = vmatpush1.bf16.msra.mxu0 0
      %4769 = vmatprep.subr.bf16.mxu0 0
      %4770 = vmatpush1.bf16.msra.mxu0 0
      %4771 = vmatprep.subr.bf16.mxu0 0
      %4772 = vmatpush1.bf16.msra.mxu0 0
      %4773 = vmatprep.subr.bf16.mxu0 0
      %4774 = vmatpush1.bf16.msra.mxu0 0
      %4775 = vmatprep.subr.bf16.mxu0 0
      %4776 = vmatpush1.bf16.msra.mxu0 0
      %4777 = vmatprep.subr.bf16.mxu0 0
      %4778 = vmatpush1.bf16.msra.mxu0 0
      %4779 = vmatprep.subr.bf16.mxu0 0
      %4780 = vmatpush1.bf16.msra.mxu0 0
      %4781 = vmatprep.subr.bf16.mxu0 0
      %4782 = vmatpush1.bf16.msra.mxu0 0
      %4783 = vmatprep.subr.bf16.mxu0 0
      %4784 = vmatpush1.bf16.msra.mxu0 0
      %4785 = vmatprep.subr.bf16.mxu0 0
      %4786 = vmatpush1.bf16.msra.mxu0 0
      %4787 = vmatprep.mubr.bf16.mxu0 0
      %4788 = vmatmul.mubr.bf16.gmra.mrb[0].mxu0 %v4626
      %v4789 = vpop.f32.mrb[0].mxu0
      %v4790 = vadd.f32 0.0, %v4789
      %v4791 = vpop.f32.mrb[0].mxu0
      %v4792 = vpop.f32.mrb[0].mxu0
      %v4793 = vpop.f32.mrb[0].mxu0
      %4794 = vdwg.mxu0
      %4795 = vmatprep.subr.bf16.mxu0 0
      %4796 = vmatpush1.bf16.msra.mxu0 %v4388
      %4797 = vmatprep.subr.bf16.mxu0 0
      %4798 = vmatpush1.bf16.msra.mxu0 %v4389
      %4799 = vmatprep.subr.bf16.mxu0 0
      %4800 = vmatpush1.bf16.msra.mxu0 0
      %4801 = vmatprep.subr.bf16.mxu0 0
      %4802 = vmatpush1.bf16.msra.mxu0 0
      %4803 = vmatprep.subr.bf16.mxu0 0
      %4804 = vmatpush1.bf16.msra.mxu0 0
      %4805 = vmatprep.subr.bf16.mxu0 0
      %4806 = vmatpush1.bf16.msra.mxu0 0
      %4807 = vmatprep.subr.bf16.mxu0 0
      %4808 = vmatpush1.bf16.msra.mxu0 0
      %4809 = vmatprep.subr.bf16.mxu0 0
      %4810 = vmatpush1.bf16.msra.mxu0 0
      %4811 = vmatprep.subr.bf16.mxu0 0
      %4812 = vmatpush1.bf16.msra.mxu0 0
      %4813 = vmatprep.subr.bf16.mxu0 0
      %4814 = vmatpush1.bf16.msra.mxu0 0
      %4815 = vmatprep.subr.bf16.mxu0 0
      %4816 = vmatpush1.bf16.msra.mxu0 0
      %4817 = vmatprep.subr.bf16.mxu0 0
      %4818 = vmatpush1.bf16.msra.mxu0 0
      %4819 = vmatprep.subr.bf16.mxu0 0
      %4820 = vmatpush1.bf16.msra.mxu0 0
      %4821 = vmatprep.subr.bf16.mxu0 0
      %4822 = vmatpush1.bf16.msra.mxu0 0
      %4823 = vmatprep.subr.bf16.mxu0 0
      %4824 = vmatpush1.bf16.msra.mxu0 0
      %4825 = vmatprep.subr.bf16.mxu0 0
      %4826 = vmatpush1.bf16.msra.mxu0 0
      %4827 = vmatprep.mubr.bf16.mxu0 0
      %4828 = vmatmul.mubr.bf16.gmra.mrb[0].mxu0 %v4669
      %v4829 = vpop.f32.mrb[0].mxu0
      %v4830 = vadd.f32 %v4790, %v4829
      %v4831 = vpop.f32.mrb[0].mxu0
      %v4832 = vpop.f32.mrb[0].mxu0
      %v4833 = vpop.f32.mrb[0].mxu0
      %4834 = vdwg.mxu0
      %4835 = vmatprep.subr.bf16.mxu0 0
      %4836 = vmatpush1.bf16.msra.mxu0 %v4444
      %4837 = vmatprep.subr.bf16.mxu0 0
      %4838 = vmatpush1.bf16.msra.mxu0 %v4445
      %4839 = vmatprep.subr.bf16.mxu0 0
      %4840 = vmatpush1.bf16.msra.mxu0 0
      %4841 = vmatprep.subr.bf16.mxu0 0
      %4842 = vmatpush1.bf16.msra.mxu0 0
      %4843 = vmatprep.subr.bf16.mxu0 0
      %4844 = vmatpush1.bf16.msra.mxu0 0
      %4845 = vmatprep.subr.bf16.mxu0 0
      %4846 = vmatpush1.bf16.msra.mxu0 0
      %4847 = vmatprep.subr.bf16.mxu0 0
      %4848 = vmatpush1.bf16.msra.mxu0 0
      %4849 = vmatprep.subr.bf16.mxu0 0
      %4850 = vmatpush1.bf16.msra.mxu0 0
      %4851 = vmatprep.subr.bf16.mxu0 0
      %4852 = vmatpush1.bf16.msra.mxu0 0
      %4853 = vmatprep.subr.bf16.mxu0 0
      %4854 = vmatpush1.bf16.msra.mxu0 0
      %4855 = vmatprep.subr.bf16.mxu0 0
      %4856 = vmatpush1.bf16.msra.mxu0 0
      %4857 = vmatprep.subr.bf16.mxu0 0
      %4858 = vmatpush1.bf16.msra.mxu0 0
      %4859 = vmatprep.subr.bf16.mxu0 0
      %4860 = vmatpush1.bf16.msra.mxu0 0
      %4861 = vmatprep.subr.bf16.mxu0 0
      %4862 = vmatpush1.bf16.msra.mxu0 0
      %4863 = vmatprep.subr.bf16.mxu0 0
      %4864 = vmatpush1.bf16.msra.mxu0 0
      %4865 = vmatprep.subr.bf16.mxu0 0
      %4866 = vmatpush1.bf16.msra.mxu0 0
      %4867 = vmatprep.mubr.bf16.mxu0 0
      %4868 = vmatmul.mubr.bf16.gmra.mrb[0].mxu0 %v4712
      %v4869 = vpop.f32.mrb[0].mxu0
      %v4870 = vadd.f32 0.0, %v4869
      %v4871 = vpop.f32.mrb[0].mxu0
      %v4872 = vpop.f32.mrb[0].mxu0
      %v4873 = vpop.f32.mrb[0].mxu0
      %4874 = vdwg.mxu0
      %v4875 = vadd.f32 %v4830, %v4870
      %v4876 = vmax.f32 %v4754, %v4875
      %v4877 = vmax.f32 %v4489, %v4876
      %v4878 = vld [vmem:[%s2 + $0x20] sm:$0x1]
      %v4879 = vlaneseq
      %v4880 = vshrl.u32 %v4879, 7
      %v4881 = vsub.s32 0, %v4880
      %v4882 = vrot.slane %v4878, %v4881
      %v4883 = vadd.f32 %v4877, %v4882
      %v4884 = vmul.f32 %v4883, 0.5
      %v4885 = vmul.f32 %v4883, 0.044715
      %v4886 = vmul.f32 %v4885, %v4883
      %v4887 = vmul.f32 %v4886, %v4883
      %v4888 = vadd.f32 %v4883, %v4887
      %v4889 = vmul.f32 %v4888, 0.7978846
      %v4890 = vtanh.pop %v4889
      %v4891 = vadd.f32 %v4890, 1.0
      %v4892 = vmul.f32 %v4884, %v4891
      %v4893 = vpack.c.bf16 %v4892, %v4892
      %v4894 = vld [vmem:[%s1 + $0x678] sm:$0x1]
      %vm4895 = vcmask 31744
      %v4897 = vsel %vm4895, %v4894, 0
      %vm4899 = vcmask 1041408
      %v4901 = vsel %vm4899, %v4893, 0
      %4903 = vmatprep.subr.bf16.mxu0 0
      %4904 = vmatpush1.bf16.msra.mxu0 %v4901
      %4905 = vmatprep.subr.bf16.mxu0 0
      %4906 = vmatpush1.bf16.msra.mxu0 0
      %4907 = vmatprep.subr.bf16.mxu0 0
      %4908 = vmatpush1.bf16.msra.mxu0 0
      %4909 = vmatprep.subr.bf16.mxu0 0
      %4910 = vmatpush1.bf16.msra.mxu0 0
      %4911 = vmatprep.subr.bf16.mxu0 0
      %4912 = vmatpush1.bf16.msra.mxu0 0
      %4913 = vmatprep.subr.bf16.mxu0 0
      %4914 = vmatpush1.bf16.msra.mxu0 0
      %4915 = vmatprep.subr.bf16.mxu0 0
      %4916 = vmatpush1.bf16.msra.mxu0 0
      %4917 = vmatprep.subr.bf16.mxu0 0
      %4918 = vmatpush1.bf16.msra.mxu0 0
      %4919 = vmatprep.subr.bf16.mxu0 0
      %4920 = vmatpush1.bf16.msra.mxu0 0
      %4921 = vmatprep.subr.bf16.mxu0 0
      %4922 = vmatpush1.bf16.msra.mxu0 0
      %4923 = vmatprep.subr.bf16.mxu0 0
      %4924 = vmatpush1.bf16.msra.mxu0 0
      %4925 = vmatprep.subr.bf16.mxu0 0
      %4926 = vmatpush1.bf16.msra.mxu0 0
      %4927 = vmatprep.subr.bf16.mxu0 0
      %4928 = vmatpush1.bf16.msra.mxu0 0
      %4929 = vmatprep.subr.bf16.mxu0 0
      %4930 = vmatpush1.bf16.msra.mxu0 0
      %4931 = vmatprep.subr.bf16.mxu0 0
      %4932 = vmatpush1.bf16.msra.mxu0 0
      %4933 = vmatprep.subr.bf16.mxu0 0
      %4934 = vmatpush1.bf16.msra.mxu0 0
      %4935 = vmatprep.mubr.bf16.mxu0 0
      %4936 = vmatmul.mubr.bf16.gmra.mrb[0].mxu0 %v4897
      %v4937 = vpop.f32.mrb[0].mxu0
      %v4938 = vadd.f32 0.0, %v4937
      %v4939 = vpop.f32.mrb[0].mxu0
      %v4940 = vpop.f32.mrb[0].mxu0
      %v4941 = vpop.f32.mrb[0].mxu0
      %4942 = vdwg.mxu0
      %v4943 = vpack.c.bf16 %v4938, %v4938
      %v4944 = vld [vmem:[%s1 + $0x680] sm:$0xf]
      %v4945 = vld [vmem:[%s1 + $0x684] sm:$0xf]
      %v4946 = vld [vmem:[%s1 + $0x688] sm:$0xf]
      %v4947 = vld [vmem:[%s1 + $0x68c] sm:$0xf]
      %v4948 = vld [vmem:[%s1 + $0x690] sm:$0x1]
      %v4950 = vsel %vm4895, %v4948, 0
      %4952 = vmatprep.subr.bf16.mxu0 0
      %4953 = vmatpush1.bf16.msra.mxu0 %v4901
      %4954 = vmatprep.subr.bf16.mxu0 0
      %4955 = vmatpush1.bf16.msra.mxu0 0
      %4956 = vmatprep.subr.bf16.mxu0 0
      %4957 = vmatpush1.bf16.msra.mxu0 0
      %4958 = vmatprep.subr.bf16.mxu0 0
      %4959 = vmatpush1.bf16.msra.mxu0 0
      %4960 = vmatprep.subr.bf16.mxu0 0
      %4961 = vmatpush1.bf16.msra.mxu0 0
      %4962 = vmatprep.subr.bf16.mxu0 0
      %4963 = vmatpush1.bf16.msra.mxu0 0
      %4964 = vmatprep.subr.bf16.mxu0 0
      %4965 = vmatpush1.bf16.msra.mxu0 0
      %4966 = vmatprep.subr.bf16.mxu0 0
      %4967 = vmatpush1.bf16.msra.mxu0 0
      %4968 = vmatprep.subr.bf16.mxu0 0
      %4969 = vmatpush1.bf16.msra.mxu0 0
      %4970 = vmatprep.subr.bf16.mxu0 0
      %4971 = vmatpush1.bf16.msra.mxu0 0
      %4972 = vmatprep.subr.bf16.mxu0 0
      %4973 = vmatpush1.bf16.msra.mxu0 0
      %4974 = vmatprep.subr.bf16.mxu0 0
      %4975 = vmatpush1.bf16.msra.mxu0 0
      %4976 = vmatprep.subr.bf16.mxu0 0
      %4977 = vmatpush1.bf16.msra.mxu0 0
      %4978 = vmatprep.subr.bf16.mxu0 0
      %4979 = vmatpush1.bf16.msra.mxu0 0
      %4980 = vmatprep.subr.bf16.mxu0 0
      %4981 = vmatpush1.bf16.msra.mxu0 0
      %4982 = vmatprep.subr.bf16.mxu0 0
      %4983 = vmatpush1.bf16.msra.mxu0 0
      %4984 = vmatprep.mubr.bf16.mxu0 0
      %4985 = vmatmul.mubr.bf16.gmra.mrb[0].mxu0 %v4950
      %v4986 = vpop.f32.mrb[0].mxu0
      %v4987 = vadd.f32 0.0, %v4986
      %v4988 = vpop.f32.mrb[0].mxu0
      %v4989 = vpop.f32.mrb[0].mxu0
      %v4990 = vpop.f32.mrb[0].mxu0
      %4991 = vdwg.mxu0
      %v4992 = vpack.c.bf16 %v4987, %v4987
      %v4993 = vld [vmem:[%s1 + $0x698] sm:$0xf]
      %v4994 = vld [vmem:[%s1 + $0x69c] sm:$0xf]
      %v4995 = vld [vmem:[%s1 + $0x6a0] sm:$0xf]
      %v4996 = vld [vmem:[%s1 + $0x6a4] sm:$0xf]
      %v5001 = vunpack.c.l.b16 %v4993
      %v5002 = vunpack.c.l.b16 %v4994
      %v5003 = vunpack.c.l.b16 %v4995
      %v5004 = vunpack.c.l.b16 %v4996
      %v5005 = vpack.c.b16 %v5002, %v5001
      %v5006 = vpack.c.b16 %v5004, %v5003
      %v5010 = vsel %vm2631, %v4992, 0
      %5012 = vmatprep.subr.bf16.mxu0 0
      %5013 = vmatpush1.bf16.msra.mxu0 %v5005
      %5014 = vmatprep.subr.bf16.mxu0 0
      %5015 = vmatpush1.bf16.msra.mxu0 %v5006
      %5016 = vmatprep.subr.bf16.mxu0 0
      %5017 = vmatpush1.bf16.msra.mxu0 0
      %5018 = vmatprep.subr.bf16.mxu0 0
      %5019 = vmatpush1.bf16.msra.mxu0 0
      %5020 = vmatprep.subr.bf16.mxu0 0
      %5021 = vmatpush1.bf16.msra.mxu0 0
      %5022 = vmatprep.subr.bf16.mxu0 0
      %5023 = vmatpush1.bf16.msra.mxu0 0
      %5024 = vmatprep.subr.bf16.mxu0 0
      %5025 = vmatpush1.bf16.msra.mxu0 0
      %5026 = vmatprep.subr.bf16.mxu0 0
      %5027 = vmatpush1.bf16.msra.mxu0 0
      %5028 = vmatprep.subr.bf16.mxu0 0
      %5029 = vmatpush1.bf16.msra.mxu0 0
      %5030 = vmatprep.subr.bf16.mxu0 0
      %5031 = vmatpush1.bf16.msra.mxu0 0
      %5032 = vmatprep.subr.bf16.mxu0 0
      %5033 = vmatpush1.bf16.msra.mxu0 0
      %5034 = vmatprep.subr.bf16.mxu0 0
      %5035 = vmatpush1.bf16.msra.mxu0 0
      %5036 = vmatprep.subr.bf16.mxu0 0
      %5037 = vmatpush1.bf16.msra.mxu0 0
      %5038 = vmatprep.subr.bf16.mxu0 0
      %5039 = vmatpush1.bf16.msra.mxu0 0
      %5040 = vmatprep.subr.bf16.mxu0 0
      %5041 = vmatpush1.bf16.msra.mxu0 0
      %5042 = vmatprep.subr.bf16.mxu0 0
      %5043 = vmatpush1.bf16.msra.mxu0 0
      %5044 = vmatprep.mubr.bf16.mxu0 0
      %5045 = vmatmul.mubr.bf16.gmra.mrb[0].mxu0 %v5010
      %v5046 = vpop.f32.mrb[0].mxu0
      %v5047 = vadd.f32 0.0, %v5046
      %v5048 = vpop.f32.mrb[0].mxu0
      %v5049 = vpop.f32.mrb[0].mxu0
      %v5050 = vpop.f32.mrb[0].mxu0
      %5051 = vdwg.mxu0
      %v5056 = vunpack.c.l.b16 %v4944
      %v5057 = vunpack.c.l.b16 %v4945
      %v5058 = vunpack.c.l.b16 %v4946
      %v5059 = vunpack.c.l.b16 %v4947
      %v5060 = vpack.c.b16 %v5057, %v5056
      %v5061 = vpack.c.b16 %v5059, %v5058
      %v5065 = vsel %vm2631, %v4943, 0
      %5067 = vmatprep.subr.bf16.mxu0 0
      %5068 = vmatpush1.bf16.msra.mxu0 %v5060
      %5069 = vmatprep.subr.bf16.mxu0 0
      %5070 = vmatpush1.bf16.msra.mxu0 %v5061
      %5071 = vmatprep.subr.bf16.mxu0 0
      %5072 = vmatpush1.bf16.msra.mxu0 0
      %5073 = vmatprep.subr.bf16.mxu0 0
      %5074 = vmatpush1.bf16.msra.mxu0 0
      %5075 = vmatprep.subr.bf16.mxu0 0
      %5076 = vmatpush1.bf16.msra.mxu0 0
      %5077 = vmatprep.subr.bf16.mxu0 0
      %5078 = vmatpush1.bf16.msra.mxu0 0
      %5079 = vmatprep.subr.bf16.mxu0 0
      %5080 = vmatpush1.bf16.msra.mxu0 0
      %5081 = vmatprep.subr.bf16.mxu0 0
      %5082 = vmatpush1.bf16.msra.mxu0 0
      %5083 = vmatprep.subr.bf16.mxu0 0
      %5084 = vmatpush1.bf16.msra.mxu0 0
      %5085 = vmatprep.subr.bf16.mxu0 0
      %5086 = vmatpush1.bf16.msra.mxu0 0
      %5087 = vmatprep.subr.bf16.mxu0 0
      %5088 = vmatpush1.bf16.msra.mxu0 0
      %5089 = vmatprep.subr.bf16.mxu0 0
      %5090 = vmatpush1.bf16.msra.mxu0 0
      %5091 = vmatprep.subr.bf16.mxu0 0
      %5092 = vmatpush1.bf16.msra.mxu0 0
      %5093 = vmatprep.subr.bf16.mxu0 0
      %5094 = vmatpush1.bf16.msra.mxu0 0
      %5095 = vmatprep.subr.bf16.mxu0 0
      %5096 = vmatpush1.bf16.msra.mxu0 0
      %5097 = vmatprep.subr.bf16.mxu0 0
      %5098 = vmatpush1.bf16.msra.mxu0 0
      %5099 = vmatprep.mubr.bf16.mxu0 0
      %5100 = vmatmul.mubr.bf16.gmra.mrb[0].mxu0 %v5065
      %v5101 = vpop.f32.mrb[0].mxu0
      %v5102 = vadd.f32 %v5047, %v5101
      %v5103 = vpop.f32.mrb[0].mxu0
      %v5104 = vpop.f32.mrb[0].mxu0
      %v5105 = vpop.f32.mrb[0].mxu0
      %5106 = vdwg.mxu0
      %v5107 = vld [vmem:[%s2 + $0x28] sm:$0x1]
      %v5108 = vlaneseq
      %v5109 = vshrl.u32 %v5108, 7
      %v5110 = vsub.s32 0, %v5109
      %v5111 = vrot.slane %v5107, %v5110
      %v5112 = vadd.f32 %v5102, %v5111
      %v5113 = vmul.f32 %v5112, 0.5
      %v5114 = vmul.f32 %v5112, 0.044715
      %v5115 = vmul.f32 %v5114, %v5112
      %v5116 = vmul.f32 %v5115, %v5112
      %v5117 = vadd.f32 %v5112, %v5116
      %v5118 = vmul.f32 %v5117, 0.7978846
      %v5119 = vtanh.pop %v5118
      %v5120 = vadd.f32 %v5119, 1.0
      %v5121 = vmul.f32 %v5113, %v5120
      %v5122 = vpack.c.bf16 %v5121, %v5121
      %v5123 = vld [vmem:[%s1 + $0x6a8] sm:$0xf]
      %v5124 = vld [vmem:[%s1 + $0x6ac] sm:$0xf]
      %v5125 = vld [vmem:[%s1 + $0x6b0] sm:$0xf]
      %v5126 = vld [vmem:[%s1 + $0x6b4] sm:$0xf]
      %v5127 = vld [vmem:[%s2 + $0x30] sm:$0x1]
      %v5128 = vlaneseq
      %v5129 = vshrl.u32 %v5128, 7
      %v5130 = vsub.s32 0, %v5129
      %v5131 = vrot.slane %v5127, %v5130
      %v5136 = vunpack.c.l.b16 %v5123
      %v5137 = vunpack.c.l.b16 %v5124
      %v5138 = vunpack.c.l.b16 %v5125
      %v5139 = vunpack.c.l.b16 %v5126
      %v5140 = vpack.c.b16 %v5137, %v5136
      %v5141 = vpack.c.b16 %v5139, %v5138
      %v5145 = vsel %vm2631, %v5122, 0
      %5147 = vmatprep.subr.bf16.mxu0 0
      %5148 = vmatpush1.bf16.msra.mxu0 %v5140
      %5149 = vmatprep.subr.bf16.mxu0 0
      %5150 = vmatpush1.bf16.msra.mxu0 %v5141
      %5151 = vmatprep.subr.bf16.mxu0 0
      %5152 = vmatpush1.bf16.msra.mxu0 0
      %5153 = vmatprep.subr.bf16.mxu0 0
      %5154 = vmatpush1.bf16.msra.mxu0 0
      %5155 = vmatprep.subr.bf16.mxu0 0
      %5156 = vmatpush1.bf16.msra.mxu0 0
      %5157 = vmatprep.subr.bf16.mxu0 0
      %5158 = vmatpush1.bf16.msra.mxu0 0
      %5159 = vmatprep.subr.bf16.mxu0 0
      %5160 = vmatpush1.bf16.msra.mxu0 0
      %5161 = vmatprep.subr.bf16.mxu0 0
      %5162 = vmatpush1.bf16.msra.mxu0 0
      %5163 = vmatprep.subr.bf16.mxu0 0
      %5164 = vmatpush1.bf16.msra.mxu0 0
      %5165 = vmatprep.subr.bf16.mxu0 0
      %5166 = vmatpush1.bf16.msra.mxu0 0
      %5167 = vmatprep.subr.bf16.mxu0 0
      %5168 = vmatpush1.bf16.msra.mxu0 0
      %5169 = vmatprep.subr.bf16.mxu0 0
      %5170 = vmatpush1.bf16.msra.mxu0 0
      %5171 = vmatprep.subr.bf16.mxu0 0
      %5172 = vmatpush1.bf16.msra.mxu0 0
      %5173 = vmatprep.subr.bf16.mxu0 0
      %5174 = vmatpush1.bf16.msra.mxu0 0
      %5175 = vmatprep.subr.bf16.mxu0 0
      %5176 = vmatpush1.bf16.msra.mxu0 0
      %5177 = vmatprep.subr.bf16.mxu0 0
      %5178 = vmatpush1.bf16.msra.mxu0 0
      %5179 = vmatprep.mubr.bf16.mxu0 0
      %5180 = vmatmul.mubr.bf16.gmra.mrb[0].mxu0 %v5145
      %v5181 = vpop.f32.mrb[0].mxu0
      %v5182 = vadd.f32 %v5131, %v5181
      %v5183 = vpop.f32.mrb[0].mxu0
      %v5184 = vpop.f32.mrb[0].mxu0
      %v5185 = vpop.f32.mrb[0].mxu0
      %5186 = vdwg.mxu0
      %v5187 = vmul.f32 %v5182, 0.5
      %v5188 = vmul.f32 %v5182, 0.044715
      %v5189 = vmul.f32 %v5188, %v5182
      %v5190 = vmul.f32 %v5189, %v5182
      %v5191 = vadd.f32 %v5182, %v5190
      %v5192 = vmul.f32 %v5191, 0.7978846
      %v5193 = vtanh.pop %v5192
      %v5194 = vadd.f32 %v5193, 1.0
      %v5195 = vmul.f32 %v5187, %v5194
      %v5196 = vpack.c.bf16 %v5195, %v5195
      %v5197 = vld [vmem:[%s1 + $0x6b8] sm:$0xf]
      %v5198 = vld [vmem:[%s1 + $0x6bc] sm:$0xf]
      %v5199 = vld [vmem:[%s2 + $0x38] sm:$0x1]
      %v5200 = vlaneseq
      %v5201 = vshrl.u32 %v5200, 7
      %v5202 = vsub.s32 0, %v5201
      %v5203 = vrot.slane %v5199, %v5202
      %v5206 = vunpack.c.l.b16 %v5197
      %v5207 = vunpack.c.l.b16 %v5198
      %v5208 = vpack.c.b16 %v5207, %v5206
      %v5211 = vsel %vm3382, %v5196, 0
      %5213 = vmatprep.subr.bf16.mxu0 0
      %5214 = vmatpush1.bf16.msra.mxu0 %v5208
      %5215 = vmatprep.subr.bf16.mxu0 0
      %5216 = vmatpush1.bf16.msra.mxu0 0
      %5217 = vmatprep.subr.bf16.mxu0 0
      %5218 = vmatpush1.bf16.msra.mxu0 0
      %5219 = vmatprep.subr.bf16.mxu0 0
      %5220 = vmatpush1.bf16.msra.mxu0 0
      %5221 = vmatprep.subr.bf16.mxu0 0
      %5222 = vmatpush1.bf16.msra.mxu0 0
      %5223 = vmatprep.subr.bf16.mxu0 0
      %5224 = vmatpush1.bf16.msra.mxu0 0
      %5225 = vmatprep.subr.bf16.mxu0 0
      %5226 = vmatpush1.bf16.msra.mxu0 0
      %5227 = vmatprep.subr.bf16.mxu0 0
      %5228 = vmatpush1.bf16.msra.mxu0 0
      %5229 = vmatprep.subr.bf16.mxu0 0
      %5230 = vmatpush1.bf16.msra.mxu0 0
      %5231 = vmatprep.subr.bf16.mxu0 0
      %5232 = vmatpush1.bf16.msra.mxu0 0
      %5233 = vmatprep.subr.bf16.mxu0 0
      %5234 = vmatpush1.bf16.msra.mxu0 0
      %5235 = vmatprep.subr.bf16.mxu0 0
      %5236 = vmatpush1.bf16.msra.mxu0 0
      %5237 = vmatprep.subr.bf16.mxu0 0
      %5238 = vmatpush1.bf16.msra.mxu0 0
      %5239 = vmatprep.subr.bf16.mxu0 0
      %5240 = vmatpush1.bf16.msra.mxu0 0
      %5241 = vmatprep.subr.bf16.mxu0 0
      %5242 = vmatpush1.bf16.msra.mxu0 0
      %5243 = vmatprep.subr.bf16.mxu0 0
      %5244 = vmatpush1.bf16.msra.mxu0 0
      %5245 = vmatprep.mubr.bf16.mxu0 0
      %5246 = vmatmul.mubr.bf16.gmra.mrb[0].mxu0 %v5211
      %v5247 = vpop.f32.mrb[0].mxu0
      %v5248 = vadd.f32 %v5203, %v5247
      %v5249 = vpop.f32.mrb[0].mxu0
      %v5250 = vpop.f32.mrb[0].mxu0
      %v5251 = vpop.f32.mrb[0].mxu0
      %5252 = vdwg.mxu0
      %v5253 = vmul.f32 %v5248, 0.5
      %v5254 = vtanh.pop %v5253
      %v5255 = vadd.f32 %v5254, 1.0
      %v5256 = vmul.f32 %v5255, 0.5
      %vm5257 = vcmask 1024
      %5258 = vst.msk [vmem:[%s168] sm:$0x3] %vm5257, %v5256
      %p5259 = scmp.lt.s32.totalorder %s14, 3
      %s5260 = scalar_select %p5259, %s14, 3
      %s5261 = smul.addr %s5260, 2
      %s5262 = scalar_lea.vmem %s3, %s5261
      // Predicated region
      $region33: #{parameter_gan_forward.3} parent=31 // pred_check
        %p5263 = pneg %p100
      $region34: #{parameter_gan_forward.3} parent=31 // pred_check_branch
        %5265 = sbr.rel (%p5263) target = $region36
      $region35: #{parameter_gan_forward.3} parent=31 // pred_region
        _
      $region36: #{parameter_gan_forward.3} parent=31 // pred_fallthru
        _
    $region32: #{parameter_gan_forward.3} parent=5 // pred_fallthru
      _
    %p5266 = scmp.le.s32.totalorder 2, %s9
    // Predicated region
    $region37: #{parameter_gan_forward.3} parent=5 // pred_check
      %p5267 = pneg %p5266
    $region38: #{parameter_gan_forward.3} parent=5 // pred_check_branch
      %5269 = sbr.rel (%p5267) target = $region40
    $region39: #{parameter_gan_forward.3} parent=5 // pred_region
      %s5270 = ssub.s32 %s9, 2
      // Predicated region
      $region41: #{parameter_gan_forward.3} parent=39 // pred_check
        %p5271 = pneg %p106
      $region42: #{parameter_gan_forward.3} parent=39 // pred_check_branch
        %5273 = sbr.rel (%p5271) target = $region44
      $region43: #{parameter_gan_forward.3} parent=39 // pred_region
        %p5274 = scmp.lt.s32.totalorder %s15, 3
        %s5275 = scalar_select %p5274, %s15, 3
        %s5276 = smul.addr %s5275, 2
        %s5277 = scalar_lea.vmem %s3, %s5276
      $region44: #{parameter_gan_forward.3} parent=39 // pred_fallthru
        _
    $region40: #{parameter_gan_forward.3} parent=5 // pred_fallthru
      _
  $region6: #{parameter_gan_forward.3} parent=0 // loop_footer
    %s13 = sadd.s32 1, %s9
  $region7: #{parameter_gan_forward.3} parent=0 // loop_footer_branch
    %8 = sbr.rel target = $region3
  $region8: #{parameter_gan_forward.3} parent=0 // loop_exit
    _

</llo_original>
